<compile_context>
chip_gen: v6e
topology: v6e:2x2x1
jax: 0.10.0
libtpu: 0.0.40
codegen_flags: <defaults>
</compile_context>

<pallas_src>
import math

import jax
import jax.numpy as jnp
from jax import lax
from jax.experimental import pallas as pl
from jax.experimental.pallas import tpu as pltpu

jax.config.update("jax_default_matmul_precision", "highest")


def _round_up(x, m):
    return ((x + m - 1) // m) * m


def _sigmoid(x):
    # Explicit form (exp goes to the EUP); used identically in the reference.
    return 1.0 / (1.0 + jnp.exp(-x))


# --------------------------- fused decoder kernel -----------------------------
def make_decoder_kernel(num_layers, T, Bp, H):
    G = 4 * H

    def kernel(*refs):
        # inputs: x, (w_ih^T, w_hh^T, bias) per layer, fc_w^T(padded), fc_b(padded)
        x_ref = refs[0]
        layer_refs = refs[1:1 + 3 * num_layers]
        fcw_ref = refs[1 + 3 * num_layers]        # (H, F_pad)
        fcb_ref = refs[2 + 3 * num_layers]        # (1, F_pad)
        out_ref = refs[3 + 3 * num_layers]        # (T, Bp, F_pad)
        seq_scr = refs[4 + 3 * num_layers]        # (T, Bp, H)   hidden sequence
        gat_scr = refs[5 + 3 * num_layers]        # (T, Bp, 4H)  hoisted x-projection

        for l in range(num_layers):
            wih_t = layer_refs[3 * l][...]        # (D_in, 4H)  pre-transposed
            whh_t = layer_refs[3 * l + 1][...]    # (H, 4H)     pre-transposed
            bias = layer_refs[3 * l + 2][...]     # (1, 4H)     b_ih + b_hh

            # ---- hoisted input projection: one matmul over all timesteps.
            xin = x_ref[...] if l == 0 else seq_scr[...]
            d_in = xin.shape[-1]
            gx = jnp.dot(xin.reshape(T * Bp, d_in), wih_t,
                         precision=lax.Precision.HIGHEST,
                         preferred_element_type=jnp.float32) + bias
            gat_scr[...] = gx.reshape(T, Bp, G)

            # ---- serial recurrence: only h @ W_hh^T per step (static unroll).
            h = jnp.zeros((Bp, H), jnp.float32)
            c = jnp.zeros((Bp, H), jnp.float32)
            for t in range(T):
                g_all = gat_scr[t] + jnp.dot(
                    h, whh_t, precision=lax.Precision.HIGHEST,
                    preferred_element_type=jnp.float32)          # (Bp, 4H)
                # TODO(synk): at production hidden sizes (H multiple of 128)
                # these lane slices are vreg-aligned; at H=32 they are masked.
                i_g = _sigmoid(g_all[:, 0:H])
                f_g = _sigmoid(g_all[:, H:2 * H])
                g_g = jnp.tanh(g_all[:, 2 * H:3 * H])
                o_g = _sigmoid(g_all[:, 3 * H:4 * H])
                c = f_g * c + i_g * g_g
                h = o_g * jnp.tanh(c)
                seq_scr[t] = h

        # ---- fused FC over the whole sequence, lane-dense (padded) output.
        y = jnp.dot(seq_scr[...].reshape(T * Bp, H), fcw_ref[...],
                    precision=lax.Precision.HIGHEST,
                    preferred_element_type=jnp.float32) + fcb_ref[...]
        out_ref[...] = y.reshape(T, Bp, out_ref.shape[-1])

    return kernel


# ------------------------------ Decoder forward -------------------------------
def decoder_forward(params, x_btd):
    """x_btd: (B, T, enc_hidden) batch-first, like the PyTorch module."""
    x_tbd = jnp.transpose(x_btd, (1, 0, 2)).astype(jnp.float32)   # (T, B, D)
    T, B, D = x_tbd.shape
    layers = params["lstm"]
    L = len(layers)
    H = layers[0]["w_hh"].shape[1]
    F_out = params["fc_w"].shape[0]
    F_pad = _round_up(F_out, 128)
    Bp = _round_up(B, 8)                                          # sublane-aligned batch

    x_pad = jnp.zeros((T, Bp, D), jnp.float32).at[:, :B, :].set(x_tbd)

    inputs = [x_pad]
    for layer in layers:
        inputs.append(jnp.asarray(layer["w_ih"].T, jnp.float32))            # (D_in, 4H)
        inputs.append(jnp.asarray(layer["w_hh"].T, jnp.float32))            # (H, 4H)
        inputs.append((layer["b_ih"] + layer["b_hh"])
                      .reshape(1, 4 * H).astype(jnp.float32))               # (1, 4H)
    fcw_pad = jnp.zeros((H, F_pad), jnp.float32).at[:, :F_out].set(
        params["fc_w"].T.astype(jnp.float32))
    fcb_pad = jnp.zeros((1, F_pad), jnp.float32).at[:, :F_out].set(
        params["fc_b"].astype(jnp.float32))
    inputs += [fcw_pad, fcb_pad]

    out = pl.pallas_call(
        make_decoder_kernel(L, T, Bp, H),
        out_shape=jax.ShapeDtypeStruct((T, Bp, F_pad), jnp.float32),
        scratch_shapes=[
            pltpu.VMEM((T, Bp, H), jnp.float32),       # hidden sequence (layer i/o)
            pltpu.VMEM((T, Bp, 4 * H), jnp.float32),   # hoisted x-projection gates
        ],
    )(*inputs)

    return jnp.transpose(out[:, :B, :F_out], (1, 0, 2))            # (B, T, F)


# ------------------------- deterministic param init ---------------------------
def init_params(key, cfg):
    enc = cfg["encoder_hidden_dim"]
    dec = cfg["decoder_hidden_dim"]
    L = cfg["decoder_num_layer"]
    F_out = cfg["num_features"]
    k = 1.0 / math.sqrt(dec)                                  # PyTorch init range
    layers = []
    for l in range(L):
        d_in = enc if l == 0 else dec
        key, k0, k1, k2, k3 = jax.random.split(key, 5)
        layers.append(dict(
            w_ih=jax.random.uniform(k0, (4 * dec, d_in), jnp.float32, -k, k),
            w_hh=jax.random.uniform(k1, (4 * dec, dec), jnp.float32, -k, k),
            b_ih=jax.random.uniform(k2, (4 * dec,), jnp.float32, -k, k),
            b_hh=jax.random.uniform(k3, (4 * dec,), jnp.float32, -k, k),
        ))
    key, kw, kb = jax.random.split(key, 3)
    return dict(
        lstm=layers,
        fc_w=jax.random.uniform(kw, (F_out, dec), jnp.float32, -k, k),
        fc_b=jax.random.uniform(kb, (F_out,), jnp.float32, -k, k),
    )


# --------------------------- pure-JAX reference -------------------------------
def reference_forward(params, x_btd):
    h_seq = jnp.transpose(x_btd, (1, 0, 2)).astype(jnp.float32)
    B = h_seq.shape[1]
    for layer in params["lstm"]:
        H = layer["w_hh"].shape[1]
        b = layer["b_ih"] + layer["b_hh"]
        w_ih, w_hh = layer["w_ih"], layer["w_hh"]

        def step(carry, x_t, w_ih=w_ih, w_hh=w_hh, b=b, H=H):
            h, c = carry
            gates = x_t @ w_ih.T + h @ w_hh.T + b
            i = _sigmoid(gates[:, :H])
            f = _sigmoid(gates[:, H:2 * H])
            g = jnp.tanh(gates[:, 2 * H:3 * H])
            o = _sigmoid(gates[:, 3 * H:])
            c = f * c + i * g
            h = o * jnp.tanh(c)
            return (h, c), h

        init = (jnp.zeros((B, H), jnp.float32), jnp.zeros((B, H), jnp.float32))
        _, h_seq = lax.scan(step, init, h_seq)
    y = h_seq @ params["fc_w"].T + params["fc_b"]
    return jnp.transpose(y, (1, 0, 2))


if __name__ == "__main__":
    cfg = dict(encoder_hidden_dim=32, decoder_hidden_dim=32,
               decoder_num_layer=2, num_features=4)
    key = jax.random.PRNGKey(0)
    kp, kx = jax.random.split(key)
    params = init_params(kp, cfg)

    B, T = 2, 8
    x = jax.random.normal(kx, (B, T, cfg["encoder_hidden_dim"]), jnp.float32)

    out = jax.block_until_ready(jax.jit(decoder_forward)(params, x))
    ref = reference_forward(params, x)

    assert out.shape == (B, T, cfg["num_features"]), out.shape
    assert jnp.allclose(out, ref, atol=1e-3, rtol=1e-3), \
        float(jnp.max(jnp.abs(out - ref)))
    print("KERNEL_OK")
</pallas_src>

<mosaic_0001>
module attributes {stable_mosaic.version = 11 : i64} {
  func.func @kernel(%arg0: memref<8x8x32xf32, #tpu.memory_space<vmem>>, %arg1: memref<32x128xf32, #tpu.memory_space<vmem>>, %arg2: memref<32x128xf32, #tpu.memory_space<vmem>>, %arg3: memref<1x128xf32, #tpu.memory_space<vmem>>, %arg4: memref<32x128xf32, #tpu.memory_space<vmem>>, %arg5: memref<32x128xf32, #tpu.memory_space<vmem>>, %arg6: memref<1x128xf32, #tpu.memory_space<vmem>>, %arg7: memref<32x128xf32, #tpu.memory_space<vmem>>, %arg8: memref<1x128xf32, #tpu.memory_space<vmem>>, %arg9: memref<8x8x128xf32, #tpu.memory_space<vmem>>, %arg10: memref<8x8x32xf32, #tpu.memory_space<vmem>>, %arg11: memref<8x8x128xf32, #tpu.memory_space<vmem>>) attributes {dimension_semantics = [], scalar_prefetch = 0 : i64, scratch_operands = 2 : i64, tpu.core_type = #tpu.core_type<tc>} {
    %c0 = arith.constant 0 : index
    %c0_0 = arith.constant 0 : index
    %0 = vector.load %arg1[%c0, %c0_0] : memref<32x128xf32, #tpu.memory_space<vmem>>, vector<32x128xf32>
    %c0_1 = arith.constant 0 : index
    %c0_2 = arith.constant 0 : index
    %1 = vector.load %arg2[%c0_1, %c0_2] : memref<32x128xf32, #tpu.memory_space<vmem>>, vector<32x128xf32>
    %c0_3 = arith.constant 0 : index
    %c0_4 = arith.constant 0 : index
    %2 = vector.load %arg3[%c0_3, %c0_4] : memref<1x128xf32, #tpu.memory_space<vmem>>, vector<1x128xf32>
    %c0_5 = arith.constant 0 : index
    %c0_6 = arith.constant 0 : index
    %c0_7 = arith.constant 0 : index
    %3 = vector.load %arg0[%c0_5, %c0_6, %c0_7] : memref<8x8x32xf32, #tpu.memory_space<vmem>>, vector<8x8x32xf32>
    %4 = vector.shape_cast %3 : vector<8x8x32xf32> to vector<64x32xf32>
    %cst = arith.constant dense<0.000000e+00> : vector<64x128xf32>
    %5 = tpu.matmul %4, %0, %cst {dimension_numbers = #tpu.dot_dimension_numbers<[1], [0], [0], [1], [0, 0, 1, 1], [], []>, precision = #tpu.contract_precision<fp32>} : vector<64x32xf32>, vector<32x128xf32>, vector<64x128xf32> -> vector<64x128xf32>
    %6 = vector.broadcast %2 : vector<1x128xf32> to vector<64x128xf32>
    %7 = arith.addf %5, %6 : vector<64x128xf32>
    %8 = vector.shape_cast %7 : vector<64x128xf32> to vector<8x8x128xf32>
    %c0_8 = arith.constant 0 : index
    %c0_9 = arith.constant 0 : index
    %c0_10 = arith.constant 0 : index
    %9 = vector.load %arg11[%c0_8, %c0_9, %c0_10] : memref<8x8x128xf32, #tpu.memory_space<vmem>>, vector<8x8x128xf32>
    tpu.vector_store %arg11[%c0_8, %c0_9, %c0_10], %8 {strides = array<i32>} : memref<8x8x128xf32, #tpu.memory_space<vmem>>, vector<8x8x128xf32>,
    %cst_11 = arith.constant 0.000000e+00 : f32
    %10 = vector.broadcast %cst_11 : f32 to vector<8x32xf32>
    %cst_12 = arith.constant 0.000000e+00 : f32
    %11 = vector.broadcast %cst_12 : f32 to vector<8x32xf32>
    %c0_13 = arith.constant 0 : index
    %c0_14 = arith.constant 0 : index
    %c0_15 = arith.constant 0 : index
    %12 = vector.load %arg11[%c0_13, %c0_14, %c0_15] : memref<8x8x128xf32, #tpu.memory_space<vmem>>, vector<1x8x128xf32>
    %13 = vector.shape_cast %12 : vector<1x8x128xf32> to vector<8x128xf32>
    %cst_16 = arith.constant dense<0.000000e+00> : vector<8x128xf32>
    %14 = tpu.matmul %10, %1, %cst_16 {dimension_numbers = #tpu.dot_dimension_numbers<[1], [0], [0], [1], [0, 0, 1, 1], [], []>, precision = #tpu.contract_precision<fp32>} : vector<8x32xf32>, vector<32x128xf32>, vector<8x128xf32> -> vector<8x128xf32>
    %15 = arith.addf %13, %14 : vector<8x128xf32>
    %16 = vector.extract_strided_slice %15 {offsets = [0, 0], sizes = [8, 32], strides = [1, 1]} : vector<8x128xf32> to vector<8x32xf32>
    %cst_17 = arith.constant 0.000000e+00 : f32
    %17 = vector.broadcast %cst_17 : f32 to vector<8x32xf32>
    %18 = arith.subf %17, %16 : vector<8x32xf32>
    %19 = math.exp %18 : vector<8x32xf32>
    %cst_18 = arith.constant 1.000000e+00 : f32
    %20 = vector.broadcast %cst_18 : f32 to vector<8x32xf32>
    %21 = arith.addf %20, %19 : vector<8x32xf32>
    %cst_19 = arith.constant 1.000000e+00 : f32
    %22 = vector.broadcast %cst_19 : f32 to vector<8x32xf32>
    %23 = arith.divf %22, %21 : vector<8x32xf32>
    %24 = vector.extract_strided_slice %15 {offsets = [0, 32], sizes = [8, 32], strides = [1, 1]} : vector<8x128xf32> to vector<8x32xf32>
    %cst_20 = arith.constant 0.000000e+00 : f32
    %25 = vector.broadcast %cst_20 : f32 to vector<8x32xf32>
    %26 = arith.subf %25, %24 : vector<8x32xf32>
    %27 = math.exp %26 : vector<8x32xf32>
    %cst_21 = arith.constant 1.000000e+00 : f32
    %28 = vector.broadcast %cst_21 : f32 to vector<8x32xf32>
    %29 = arith.addf %28, %27 : vector<8x32xf32>
    %cst_22 = arith.constant 1.000000e+00 : f32
    %30 = vector.broadcast %cst_22 : f32 to vector<8x32xf32>
    %31 = arith.divf %30, %29 : vector<8x32xf32>
    %32 = vector.extract_strided_slice %15 {offsets = [0, 64], sizes = [8, 32], strides = [1, 1]} : vector<8x128xf32> to vector<8x32xf32>
    %33 = math.tanh %32 : vector<8x32xf32>
    %34 = vector.extract_strided_slice %15 {offsets = [0, 96], sizes = [8, 32], strides = [1, 1]} : vector<8x128xf32> to vector<8x32xf32>
    %cst_23 = arith.constant 0.000000e+00 : f32
    %35 = vector.broadcast %cst_23 : f32 to vector<8x32xf32>
    %36 = arith.subf %35, %34 : vector<8x32xf32>
    %37 = math.exp %36 : vector<8x32xf32>
    %cst_24 = arith.constant 1.000000e+00 : f32
    %38 = vector.broadcast %cst_24 : f32 to vector<8x32xf32>
    %39 = arith.addf %38, %37 : vector<8x32xf32>
    %cst_25 = arith.constant 1.000000e+00 : f32
    %40 = vector.broadcast %cst_25 : f32 to vector<8x32xf32>
    %41 = arith.divf %40, %39 : vector<8x32xf32>
    %42 = arith.mulf %31, %11 : vector<8x32xf32>
    %43 = arith.mulf %23, %33 : vector<8x32xf32>
    %44 = arith.addf %42, %43 : vector<8x32xf32>
    %45 = math.tanh %44 : vector<8x32xf32>
    %46 = arith.mulf %41, %45 : vector<8x32xf32>
    %c0_26 = arith.constant 0 : index
    %c0_27 = arith.constant 0 : index
    %c0_28 = arith.constant 0 : index
    %47 = vector.load %arg10[%c0_26, %c0_27, %c0_28] : memref<8x8x32xf32, #tpu.memory_space<vmem>>, vector<1x8x32xf32>
    %48 = vector.shape_cast %47 : vector<1x8x32xf32> to vector<8x32xf32>
    %49 = vector.shape_cast %46 : vector<8x32xf32> to vector<1x8x32xf32>
    tpu.vector_store %arg10[%c0_26, %c0_27, %c0_28], %49 {strides = array<i32>} : memref<8x8x32xf32, #tpu.memory_space<vmem>>, vector<1x8x32xf32>,
    %c1 = arith.constant 1 : index
    %c0_29 = arith.constant 0 : index
    %c0_30 = arith.constant 0 : index
    %50 = vector.load %arg11[%c1, %c0_29, %c0_30] : memref<8x8x128xf32, #tpu.memory_space<vmem>>, vector<1x8x128xf32>
    %51 = vector.shape_cast %50 : vector<1x8x128xf32> to vector<8x128xf32>
    %cst_31 = arith.constant dense<0.000000e+00> : vector<8x128xf32>
    %52 = tpu.matmul %46, %1, %cst_31 {dimension_numbers = #tpu.dot_dimension_numbers<[1], [0], [0], [1], [0, 0, 1, 1], [], []>, precision = #tpu.contract_precision<fp32>} : vector<8x32xf32>, vector<32x128xf32>, vector<8x128xf32> -> vector<8x128xf32>
    %53 = arith.addf %51, %52 : vector<8x128xf32>
    %54 = vector.extract_strided_slice %53 {offsets = [0, 0], sizes = [8, 32], strides = [1, 1]} : vector<8x128xf32> to vector<8x32xf32>
    %cst_32 = arith.constant 0.000000e+00 : f32
    %55 = vector.broadcast %cst_32 : f32 to vector<8x32xf32>
    %56 = arith.subf %55, %54 : vector<8x32xf32>
    %57 = math.exp %56 : vector<8x32xf32>
    %cst_33 = arith.constant 1.000000e+00 : f32
    %58 = vector.broadcast %cst_33 : f32 to vector<8x32xf32>
    %59 = arith.addf %58, %57 : vector<8x32xf32>
    %cst_34 = arith.constant 1.000000e+00 : f32
    %60 = vector.broadcast %cst_34 : f32 to vector<8x32xf32>
    %61 = arith.divf %60, %59 : vector<8x32xf32>
    %62 = vector.extract_strided_slice %53 {offsets = [0, 32], sizes = [8, 32], strides = [1, 1]} : vector<8x128xf32> to vector<8x32xf32>
    %cst_35 = arith.constant 0.000000e+00 : f32
    %63 = vector.broadcast %cst_35 : f32 to vector<8x32xf32>
    %64 = arith.subf %63, %62 : vector<8x32xf32>
    %65 = math.exp %64 : vector<8x32xf32>
    %cst_36 = arith.constant 1.000000e+00 : f32
    %66 = vector.broadcast %cst_36 : f32 to vector<8x32xf32>
    %67 = arith.addf %66, %65 : vector<8x32xf32>
    %cst_37 = arith.constant 1.000000e+00 : f32
    %68 = vector.broadcast %cst_37 : f32 to vector<8x32xf32>
    %69 = arith.divf %68, %67 : vector<8x32xf32>
    %70 = vector.extract_strided_slice %53 {offsets = [0, 64], sizes = [8, 32], strides = [1, 1]} : vector<8x128xf32> to vector<8x32xf32>
    %71 = math.tanh %70 : vector<8x32xf32>
    %72 = vector.extract_strided_slice %53 {offsets = [0, 96], sizes = [8, 32], strides = [1, 1]} : vector<8x128xf32> to vector<8x32xf32>
    %cst_38 = arith.constant 0.000000e+00 : f32
    %73 = vector.broadcast %cst_38 : f32 to vector<8x32xf32>
    %74 = arith.subf %73, %72 : vector<8x32xf32>
    %75 = math.exp %74 : vector<8x32xf32>
    %cst_39 = arith.constant 1.000000e+00 : f32
    %76 = vector.broadcast %cst_39 : f32 to vector<8x32xf32>
    %77 = arith.addf %76, %75 : vector<8x32xf32>
    %cst_40 = arith.constant 1.000000e+00 : f32
    %78 = vector.broadcast %cst_40 : f32 to vector<8x32xf32>
    %79 = arith.divf %78, %77 : vector<8x32xf32>
    %80 = arith.mulf %69, %44 : vector<8x32xf32>
    %81 = arith.mulf %61, %71 : vector<8x32xf32>
    %82 = arith.addf %80, %81 : vector<8x32xf32>
    %83 = math.tanh %82 : vector<8x32xf32>
    %84 = arith.mulf %79, %83 : vector<8x32xf32>
    %c1_41 = arith.constant 1 : index
    %c0_42 = arith.constant 0 : index
    %c0_43 = arith.constant 0 : index
    %85 = vector.load %arg10[%c1_41, %c0_42, %c0_43] : memref<8x8x32xf32, #tpu.memory_space<vmem>>, vector<1x8x32xf32>
    %86 = vector.shape_cast %85 : vector<1x8x32xf32> to vector<8x32xf32>
    %87 = vector.shape_cast %84 : vector<8x32xf32> to vector<1x8x32xf32>
    tpu.vector_store %arg10[%c1_41, %c0_42, %c0_43], %87 {strides = array<i32>} : memref<8x8x32xf32, #tpu.memory_space<vmem>>, vector<1x8x32xf32>,
    %c2 = arith.constant 2 : index
    %c0_44 = arith.constant 0 : index
    %c0_45 = arith.constant 0 : index
    %88 = vector.load %arg11[%c2, %c0_44, %c0_45] : memref<8x8x128xf32, #tpu.memory_space<vmem>>, vector<1x8x128xf32>
    %89 = vector.shape_cast %88 : vector<1x8x128xf32> to vector<8x128xf32>
    %cst_46 = arith.constant dense<0.000000e+00> : vector<8x128xf32>
    %90 = tpu.matmul %84, %1, %cst_46 {dimension_numbers = #tpu.dot_dimension_numbers<[1], [0], [0], [1], [0, 0, 1, 1], [], []>, precision = #tpu.contract_precision<fp32>} : vector<8x32xf32>, vector<32x128xf32>, vector<8x128xf32> -> vector<8x128xf32>
    %91 = arith.addf %89, %90 : vector<8x128xf32>
    %92 = vector.extract_strided_slice %91 {offsets = [0, 0], sizes = [8, 32], strides = [1, 1]} : vector<8x128xf32> to vector<8x32xf32>
    %cst_47 = arith.constant 0.000000e+00 : f32
    %93 = vector.broadcast %cst_47 : f32 to vector<8x32xf32>
    %94 = arith.subf %93, %92 : vector<8x32xf32>
    %95 = math.exp %94 : vector<8x32xf32>
    %cst_48 = arith.constant 1.000000e+00 : f32
    %96 = vector.broadcast %cst_48 : f32 to vector<8x32xf32>
    %97 = arith.addf %96, %95 : vector<8x32xf32>
    %cst_49 = arith.constant 1.000000e+00 : f32
    %98 = vector.broadcast %cst_49 : f32 to vector<8x32xf32>
    %99 = arith.divf %98, %97 : vector<8x32xf32>
    %100 = vector.extract_strided_slice %91 {offsets = [0, 32], sizes = [8, 32], strides = [1, 1]} : vector<8x128xf32> to vector<8x32xf32>
    %cst_50 = arith.constant 0.000000e+00 : f32
    %101 = vector.broadcast %cst_50 : f32 to vector<8x32xf32>
    %102 = arith.subf %101, %100 : vector<8x32xf32>
    %103 = math.exp %102 : vector<8x32xf32>
    %cst_51 = arith.constant 1.000000e+00 : f32
    %104 = vector.broadcast %cst_51 : f32 to vector<8x32xf32>
    %105 = arith.addf %104, %103 : vector<8x32xf32>
    %cst_52 = arith.constant 1.000000e+00 : f32
    %106 = vector.broadcast %cst_52 : f32 to vector<8x32xf32>
    %107 = arith.divf %106, %105 : vector<8x32xf32>
    %108 = vector.extract_strided_slice %91 {offsets = [0, 64], sizes = [8, 32], strides = [1, 1]} : vector<8x128xf32> to vector<8x32xf32>
    %109 = math.tanh %108 : vector<8x32xf32>
    %110 = vector.extract_strided_slice %91 {offsets = [0, 96], sizes = [8, 32], strides = [1, 1]} : vector<8x128xf32> to vector<8x32xf32>
    %cst_53 = arith.constant 0.000000e+00 : f32
    %111 = vector.broadcast %cst_53 : f32 to vector<8x32xf32>
    %112 = arith.subf %111, %110 : vector<8x32xf32>
    %113 = math.exp %112 : vector<8x32xf32>
    %cst_54 = arith.constant 1.000000e+00 : f32
    %114 = vector.broadcast %cst_54 : f32 to vector<8x32xf32>
    %115 = arith.addf %114, %113 : vector<8x32xf32>
    %cst_55 = arith.constant 1.000000e+00 : f32
    %116 = vector.broadcast %cst_55 : f32 to vector<8x32xf32>
    %117 = arith.divf %116, %115 : vector<8x32xf32>
    %118 = arith.mulf %107, %82 : vector<8x32xf32>
    %119 = arith.mulf %99, %109 : vector<8x32xf32>
    %120 = arith.addf %118, %119 : vector<8x32xf32>
    %121 = math.tanh %120 : vector<8x32xf32>
    %122 = arith.mulf %117, %121 : vector<8x32xf32>
    %c2_56 = arith.constant 2 : index
    %c0_57 = arith.constant 0 : index
    %c0_58 = arith.constant 0 : index
    %123 = vector.load %arg10[%c2_56, %c0_57, %c0_58] : memref<8x8x32xf32, #tpu.memory_space<vmem>>, vector<1x8x32xf32>
    %124 = vector.shape_cast %123 : vector<1x8x32xf32> to vector<8x32xf32>
    %125 = vector.shape_cast %122 : vector<8x32xf32> to vector<1x8x32xf32>
    tpu.vector_store %arg10[%c2_56, %c0_57, %c0_58], %125 {strides = array<i32>} : memref<8x8x32xf32, #tpu.memory_space<vmem>>, vector<1x8x32xf32>,
    %c3 = arith.constant 3 : index
    %c0_59 = arith.constant 0 : index
    %c0_60 = arith.constant 0 : index
    %126 = vector.load %arg11[%c3, %c0_59, %c0_60] : memref<8x8x128xf32, #tpu.memory_space<vmem>>, vector<1x8x128xf32>
    %127 = vector.shape_cast %126 : vector<1x8x128xf32> to vector<8x128xf32>
    %cst_61 = arith.constant dense<0.000000e+00> : vector<8x128xf32>
    %128 = tpu.matmul %122, %1, %cst_61 {dimension_numbers = #tpu.dot_dimension_numbers<[1], [0], [0], [1], [0, 0, 1, 1], [], []>, precision = #tpu.contract_precision<fp32>} : vector<8x32xf32>, vector<32x128xf32>, vector<8x128xf32> -> vector<8x128xf32>
    %129 = arith.addf %127, %128 : vector<8x128xf32>
    %130 = vector.extract_strided_slice %129 {offsets = [0, 0], sizes = [8, 32], strides = [1, 1]} : vector<8x128xf32> to vector<8x32xf32>
    %cst_62 = arith.constant 0.000000e+00 : f32
    %131 = vector.broadcast %cst_62 : f32 to vector<8x32xf32>
    %132 = arith.subf %131, %130 : vector<8x32xf32>
    %133 = math.exp %132 : vector<8x32xf32>
    %cst_63 = arith.constant 1.000000e+00 : f32
    %134 = vector.broadcast %cst_63 : f32 to vector<8x32xf32>
    %135 = arith.addf %134, %133 : vector<8x32xf32>
    %cst_64 = arith.constant 1.000000e+00 : f32
    %136 = vector.broadcast %cst_64 : f32 to vector<8x32xf32>
    %137 = arith.divf %136, %135 : vector<8x32xf32>
    %138 = vector.extract_strided_slice %129 {offsets = [0, 32], sizes = [8, 32], strides = [1, 1]} : vector<8x128xf32> to vector<8x32xf32>
    %cst_65 = arith.constant 0.000000e+00 : f32
    %139 = vector.broadcast %cst_65 : f32 to vector<8x32xf32>
    %140 = arith.subf %139, %138 : vector<8x32xf32>
    %141 = math.exp %140 : vector<8x32xf32>
    %cst_66 = arith.constant 1.000000e+00 : f32
    %142 = vector.broadcast %cst_66 : f32 to vector<8x32xf32>
    %143 = arith.addf %142, %141 : vector<8x32xf32>
    %cst_67 = arith.constant 1.000000e+00 : f32
    %144 = vector.broadcast %cst_67 : f32 to vector<8x32xf32>
    %145 = arith.divf %144, %143 : vector<8x32xf32>
    %146 = vector.extract_strided_slice %129 {offsets = [0, 64], sizes = [8, 32], strides = [1, 1]} : vector<8x128xf32> to vector<8x32xf32>
    %147 = math.tanh %146 : vector<8x32xf32>
    %148 = vector.extract_strided_slice %129 {offsets = [0, 96], sizes = [8, 32], strides = [1, 1]} : vector<8x128xf32> to vector<8x32xf32>
    %cst_68 = arith.constant 0.000000e+00 : f32
    %149 = vector.broadcast %cst_68 : f32 to vector<8x32xf32>
    %150 = arith.subf %149, %148 : vector<8x32xf32>
    %151 = math.exp %150 : vector<8x32xf32>
    %cst_69 = arith.constant 1.000000e+00 : f32
    %152 = vector.broadcast %cst_69 : f32 to vector<8x32xf32>
    %153 = arith.addf %152, %151 : vector<8x32xf32>
    %cst_70 = arith.constant 1.000000e+00 : f32
    %154 = vector.broadcast %cst_70 : f32 to vector<8x32xf32>
    %155 = arith.divf %154, %153 : vector<8x32xf32>
    %156 = arith.mulf %145, %120 : vector<8x32xf32>
    %157 = arith.mulf %137, %147 : vector<8x32xf32>
    %158 = arith.addf %156, %157 : vector<8x32xf32>
    %159 = math.tanh %158 : vector<8x32xf32>
    %160 = arith.mulf %155, %159 : vector<8x32xf32>
    %c3_71 = arith.constant 3 : index
    %c0_72 = arith.constant 0 : index
    %c0_73 = arith.constant 0 : index
    %161 = vector.load %arg10[%c3_71, %c0_72, %c0_73] : memref<8x8x32xf32, #tpu.memory_space<vmem>>, vector<1x8x32xf32>
    %162 = vector.shape_cast %161 : vector<1x8x32xf32> to vector<8x32xf32>
    %163 = vector.shape_cast %160 : vector<8x32xf32> to vector<1x8x32xf32>
    tpu.vector_store %arg10[%c3_71, %c0_72, %c0_73], %163 {strides = array<i32>} : memref<8x8x32xf32, #tpu.memory_space<vmem>>, vector<1x8x32xf32>,
    %c4 = arith.constant 4 : index
    %c0_74 = arith.constant 0 : index
    %c0_75 = arith.constant 0 : index
    %164 = vector.load %arg11[%c4, %c0_74, %c0_75] : memref<8x8x128xf32, #tpu.memory_space<vmem>>, vector<1x8x128xf32>
    %165 = vector.shape_cast %164 : vector<1x8x128xf32> to vector<8x128xf32>
    %cst_76 = arith.constant dense<0.000000e+00> : vector<8x128xf32>
    %166 = tpu.matmul %160, %1, %cst_76 {dimension_numbers = #tpu.dot_dimension_numbers<[1], [0], [0], [1], [0, 0, 1, 1], [], []>, precision = #tpu.contract_precision<fp32>} : vector<8x32xf32>, vector<32x128xf32>, vector<8x128xf32> -> vector<8x128xf32>
    %167 = arith.addf %165, %166 : vector<8x128xf32>
    %168 = vector.extract_strided_slice %167 {offsets = [0, 0], sizes = [8, 32], strides = [1, 1]} : vector<8x128xf32> to vector<8x32xf32>
    %cst_77 = arith.constant 0.000000e+00 : f32
    %169 = vector.broadcast %cst_77 : f32 to vector<8x32xf32>
    %170 = arith.subf %169, %168 : vector<8x32xf32>
    %171 = math.exp %170 : vector<8x32xf32>
    %cst_78 = arith.constant 1.000000e+00 : f32
    %172 = vector.broadcast %cst_78 : f32 to vector<8x32xf32>
    %173 = arith.addf %172, %171 : vector<8x32xf32>
    %cst_79 = arith.constant 1.000000e+00 : f32
    %174 = vector.broadcast %cst_79 : f32 to vector<8x32xf32>
    %175 = arith.divf %174, %173 : vector<8x32xf32>
    %176 = vector.extract_strided_slice %167 {offsets = [0, 32], sizes = [8, 32], strides = [1, 1]} : vector<8x128xf32> to vector<8x32xf32>
    %cst_80 = arith.constant 0.000000e+00 : f32
    %177 = vector.broadcast %cst_80 : f32 to vector<8x32xf32>
    %178 = arith.subf %177, %176 : vector<8x32xf32>
    %179 = math.exp %178 : vector<8x32xf32>
    %cst_81 = arith.constant 1.000000e+00 : f32
    %180 = vector.broadcast %cst_81 : f32 to vector<8x32xf32>
    %181 = arith.addf %180, %179 : vector<8x32xf32>
    %cst_82 = arith.constant 1.000000e+00 : f32
    %182 = vector.broadcast %cst_82 : f32 to vector<8x32xf32>
    %183 = arith.divf %182, %181 : vector<8x32xf32>
    %184 = vector.extract_strided_slice %167 {offsets = [0, 64], sizes = [8, 32], strides = [1, 1]} : vector<8x128xf32> to vector<8x32xf32>
    %185 = math.tanh %184 : vector<8x32xf32>
    %186 = vector.extract_strided_slice %167 {offsets = [0, 96], sizes = [8, 32], strides = [1, 1]} : vector<8x128xf32> to vector<8x32xf32>
    %cst_83 = arith.constant 0.000000e+00 : f32
    %187 = vector.broadcast %cst_83 : f32 to vector<8x32xf32>
    %188 = arith.subf %187, %186 : vector<8x32xf32>
    %189 = math.exp %188 : vector<8x32xf32>
    %cst_84 = arith.constant 1.000000e+00 : f32
    %190 = vector.broadcast %cst_84 : f32 to vector<8x32xf32>
    %191 = arith.addf %190, %189 : vector<8x32xf32>
    %cst_85 = arith.constant 1.000000e+00 : f32
    %192 = vector.broadcast %cst_85 : f32 to vector<8x32xf32>
    %193 = arith.divf %192, %191 : vector<8x32xf32>
    %194 = arith.mulf %183, %158 : vector<8x32xf32>
    %195 = arith.mulf %175, %185 : vector<8x32xf32>
    %196 = arith.addf %194, %195 : vector<8x32xf32>
    %197 = math.tanh %196 : vector<8x32xf32>
    %198 = arith.mulf %193, %197 : vector<8x32xf32>
    %c4_86 = arith.constant 4 : index
    %c0_87 = arith.constant 0 : index
    %c0_88 = arith.constant 0 : index
    %199 = vector.load %arg10[%c4_86, %c0_87, %c0_88] : memref<8x8x32xf32, #tpu.memory_space<vmem>>, vector<1x8x32xf32>
    %200 = vector.shape_cast %199 : vector<1x8x32xf32> to vector<8x32xf32>
    %201 = vector.shape_cast %198 : vector<8x32xf32> to vector<1x8x32xf32>
    tpu.vector_store %arg10[%c4_86, %c0_87, %c0_88], %201 {strides = array<i32>} : memref<8x8x32xf32, #tpu.memory_space<vmem>>, vector<1x8x32xf32>,
    %c5 = arith.constant 5 : index
    %c0_89 = arith.constant 0 : index
    %c0_90 = arith.constant 0 : index
    %202 = vector.load %arg11[%c5, %c0_89, %c0_90] : memref<8x8x128xf32, #tpu.memory_space<vmem>>, vector<1x8x128xf32>
    %203 = vector.shape_cast %202 : vector<1x8x128xf32> to vector<8x128xf32>
    %cst_91 = arith.constant dense<0.000000e+00> : vector<8x128xf32>
    %204 = tpu.matmul %198, %1, %cst_91 {dimension_numbers = #tpu.dot_dimension_numbers<[1], [0], [0], [1], [0, 0, 1, 1], [], []>, precision = #tpu.contract_precision<fp32>} : vector<8x32xf32>, vector<32x128xf32>, vector<8x128xf32> -> vector<8x128xf32>
    %205 = arith.addf %203, %204 : vector<8x128xf32>
    %206 = vector.extract_strided_slice %205 {offsets = [0, 0], sizes = [8, 32], strides = [1, 1]} : vector<8x128xf32> to vector<8x32xf32>
    %cst_92 = arith.constant 0.000000e+00 : f32
    %207 = vector.broadcast %cst_92 : f32 to vector<8x32xf32>
    %208 = arith.subf %207, %206 : vector<8x32xf32>
    %209 = math.exp %208 : vector<8x32xf32>
    %cst_93 = arith.constant 1.000000e+00 : f32
    %210 = vector.broadcast %cst_93 : f32 to vector<8x32xf32>
    %211 = arith.addf %210, %209 : vector<8x32xf32>
    %cst_94 = arith.constant 1.000000e+00 : f32
    %212 = vector.broadcast %cst_94 : f32 to vector<8x32xf32>
    %213 = arith.divf %212, %211 : vector<8x32xf32>
    %214 = vector.extract_strided_slice %205 {offsets = [0, 32], sizes = [8, 32], strides = [1, 1]} : vector<8x128xf32> to vector<8x32xf32>
    %cst_95 = arith.constant 0.000000e+00 : f32
    %215 = vector.broadcast %cst_95 : f32 to vector<8x32xf32>
    %216 = arith.subf %215, %214 : vector<8x32xf32>
    %217 = math.exp %216 : vector<8x32xf32>
    %cst_96 = arith.constant 1.000000e+00 : f32
    %218 = vector.broadcast %cst_96 : f32 to vector<8x32xf32>
    %219 = arith.addf %218, %217 : vector<8x32xf32>
    %cst_97 = arith.constant 1.000000e+00 : f32
    %220 = vector.broadcast %cst_97 : f32 to vector<8x32xf32>
    %221 = arith.divf %220, %219 : vector<8x32xf32>
    %222 = vector.extract_strided_slice %205 {offsets = [0, 64], sizes = [8, 32], strides = [1, 1]} : vector<8x128xf32> to vector<8x32xf32>
    %223 = math.tanh %222 : vector<8x32xf32>
    %224 = vector.extract_strided_slice %205 {offsets = [0, 96], sizes = [8, 32], strides = [1, 1]} : vector<8x128xf32> to vector<8x32xf32>
    %cst_98 = arith.constant 0.000000e+00 : f32
    %225 = vector.broadcast %cst_98 : f32 to vector<8x32xf32>
    %226 = arith.subf %225, %224 : vector<8x32xf32>
    %227 = math.exp %226 : vector<8x32xf32>
    %cst_99 = arith.constant 1.000000e+00 : f32
    %228 = vector.broadcast %cst_99 : f32 to vector<8x32xf32>
    %229 = arith.addf %228, %227 : vector<8x32xf32>
    %cst_100 = arith.constant 1.000000e+00 : f32
    %230 = vector.broadcast %cst_100 : f32 to vector<8x32xf32>
    %231 = arith.divf %230, %229 : vector<8x32xf32>
    %232 = arith.mulf %221, %196 : vector<8x32xf32>
    %233 = arith.mulf %213, %223 : vector<8x32xf32>
    %234 = arith.addf %232, %233 : vector<8x32xf32>
    %235 = math.tanh %234 : vector<8x32xf32>
    %236 = arith.mulf %231, %235 : vector<8x32xf32>
    %c5_101 = arith.constant 5 : index
    %c0_102 = arith.constant 0 : index
    %c0_103 = arith.constant 0 : index
    %237 = vector.load %arg10[%c5_101, %c0_102, %c0_103] : memref<8x8x32xf32, #tpu.memory_space<vmem>>, vector<1x8x32xf32>
    %238 = vector.shape_cast %237 : vector<1x8x32xf32> to vector<8x32xf32>
    %239 = vector.shape_cast %236 : vector<8x32xf32> to vector<1x8x32xf32>
    tpu.vector_store %arg10[%c5_101, %c0_102, %c0_103], %239 {strides = array<i32>} : memref<8x8x32xf32, #tpu.memory_space<vmem>>, vector<1x8x32xf32>,
    %c6 = arith.constant 6 : index
    %c0_104 = arith.constant 0 : index
    %c0_105 = arith.constant 0 : index
    %240 = vector.load %arg11[%c6, %c0_104, %c0_105] : memref<8x8x128xf32, #tpu.memory_space<vmem>>, vector<1x8x128xf32>
    %241 = vector.shape_cast %240 : vector<1x8x128xf32> to vector<8x128xf32>
    %cst_106 = arith.constant dense<0.000000e+00> : vector<8x128xf32>
    %242 = tpu.matmul %236, %1, %cst_106 {dimension_numbers = #tpu.dot_dimension_numbers<[1], [0], [0], [1], [0, 0, 1, 1], [], []>, precision = #tpu.contract_precision<fp32>} : vector<8x32xf32>, vector<32x128xf32>, vector<8x128xf32> -> vector<8x128xf32>
    %243 = arith.addf %241, %242 : vector<8x128xf32>
    %244 = vector.extract_strided_slice %243 {offsets = [0, 0], sizes = [8, 32], strides = [1, 1]} : vector<8x128xf32> to vector<8x32xf32>
    %cst_107 = arith.constant 0.000000e+00 : f32
    %245 = vector.broadcast %cst_107 : f32 to vector<8x32xf32>
    %246 = arith.subf %245, %244 : vector<8x32xf32>
    %247 = math.exp %246 : vector<8x32xf32>
    %cst_108 = arith.constant 1.000000e+00 : f32
    %248 = vector.broadcast %cst_108 : f32 to vector<8x32xf32>
    %249 = arith.addf %248, %247 : vector<8x32xf32>
    %cst_109 = arith.constant 1.000000e+00 : f32
    %250 = vector.broadcast %cst_109 : f32 to vector<8x32xf32>
    %251 = arith.divf %250, %249 : vector<8x32xf32>
    %252 = vector.extract_strided_slice %243 {offsets = [0, 32], sizes = [8, 32], strides = [1, 1]} : vector<8x128xf32> to vector<8x32xf32>
    %cst_110 = arith.constant 0.000000e+00 : f32
    %253 = vector.broadcast %cst_110 : f32 to vector<8x32xf32>
    %254 = arith.subf %253, %252 : vector<8x32xf32>
    %255 = math.exp %254 : vector<8x32xf32>
    %cst_111 = arith.constant 1.000000e+00 : f32
    %256 = vector.broadcast %cst_111 : f32 to vector<8x32xf32>
    %257 = arith.addf %256, %255 : vector<8x32xf32>
    %cst_112 = arith.constant 1.000000e+00 : f32
    %258 = vector.broadcast %cst_112 : f32 to vector<8x32xf32>
    %259 = arith.divf %258, %257 : vector<8x32xf32>
    %260 = vector.extract_strided_slice %243 {offsets = [0, 64], sizes = [8, 32], strides = [1, 1]} : vector<8x128xf32> to vector<8x32xf32>
    %261 = math.tanh %260 : vector<8x32xf32>
    %262 = vector.extract_strided_slice %243 {offsets = [0, 96], sizes = [8, 32], strides = [1, 1]} : vector<8x128xf32> to vector<8x32xf32>
    %cst_113 = arith.constant 0.000000e+00 : f32
    %263 = vector.broadcast %cst_113 : f32 to vector<8x32xf32>
    %264 = arith.subf %263, %262 : vector<8x32xf32>
    %265 = math.exp %264 : vector<8x32xf32>
    %cst_114 = arith.constant 1.000000e+00 : f32
    %266 = vector.broadcast %cst_114 : f32 to vector<8x32xf32>
    %267 = arith.addf %266, %265 : vector<8x32xf32>
    %cst_115 = arith.constant 1.000000e+00 : f32
    %268 = vector.broadcast %cst_115 : f32 to vector<8x32xf32>
    %269 = arith.divf %268, %267 : vector<8x32xf32>
    %270 = arith.mulf %259, %234 : vector<8x32xf32>
    %271 = arith.mulf %251, %261 : vector<8x32xf32>
    %272 = arith.addf %270, %271 : vector<8x32xf32>
    %273 = math.tanh %272 : vector<8x32xf32>
    %274 = arith.mulf %269, %273 : vector<8x32xf32>
    %c6_116 = arith.constant 6 : index
    %c0_117 = arith.constant 0 : index
    %c0_118 = arith.constant 0 : index
    %275 = vector.load %arg10[%c6_116, %c0_117, %c0_118] : memref<8x8x32xf32, #tpu.memory_space<vmem>>, vector<1x8x32xf32>
    %276 = vector.shape_cast %275 : vector<1x8x32xf32> to vector<8x32xf32>
    %277 = vector.shape_cast %274 : vector<8x32xf32> to vector<1x8x32xf32>
    tpu.vector_store %arg10[%c6_116, %c0_117, %c0_118], %277 {strides = array<i32>} : memref<8x8x32xf32, #tpu.memory_space<vmem>>, vector<1x8x32xf32>,
    %c7 = arith.constant 7 : index
    %c0_119 = arith.constant 0 : index
    %c0_120 = arith.constant 0 : index
    %278 = vector.load %arg11[%c7, %c0_119, %c0_120] : memref<8x8x128xf32, #tpu.memory_space<vmem>>, vector<1x8x128xf32>
    %279 = vector.shape_cast %278 : vector<1x8x128xf32> to vector<8x128xf32>
    %cst_121 = arith.constant dense<0.000000e+00> : vector<8x128xf32>
    %280 = tpu.matmul %274, %1, %cst_121 {dimension_numbers = #tpu.dot_dimension_numbers<[1], [0], [0], [1], [0, 0, 1, 1], [], []>, precision = #tpu.contract_precision<fp32>} : vector<8x32xf32>, vector<32x128xf32>, vector<8x128xf32> -> vector<8x128xf32>
    %281 = arith.addf %279, %280 : vector<8x128xf32>
    %282 = vector.extract_strided_slice %281 {offsets = [0, 0], sizes = [8, 32], strides = [1, 1]} : vector<8x128xf32> to vector<8x32xf32>
    %cst_122 = arith.constant 0.000000e+00 : f32
    %283 = vector.broadcast %cst_122 : f32 to vector<8x32xf32>
    %284 = arith.subf %283, %282 : vector<8x32xf32>
    %285 = math.exp %284 : vector<8x32xf32>
    %cst_123 = arith.constant 1.000000e+00 : f32
    %286 = vector.broadcast %cst_123 : f32 to vector<8x32xf32>
    %287 = arith.addf %286, %285 : vector<8x32xf32>
    %cst_124 = arith.constant 1.000000e+00 : f32
    %288 = vector.broadcast %cst_124 : f32 to vector<8x32xf32>
    %289 = arith.divf %288, %287 : vector<8x32xf32>
    %290 = vector.extract_strided_slice %281 {offsets = [0, 32], sizes = [8, 32], strides = [1, 1]} : vector<8x128xf32> to vector<8x32xf32>
    %cst_125 = arith.constant 0.000000e+00 : f32
    %291 = vector.broadcast %cst_125 : f32 to vector<8x32xf32>
    %292 = arith.subf %291, %290 : vector<8x32xf32>
    %293 = math.exp %292 : vector<8x32xf32>
    %cst_126 = arith.constant 1.000000e+00 : f32
    %294 = vector.broadcast %cst_126 : f32 to vector<8x32xf32>
    %295 = arith.addf %294, %293 : vector<8x32xf32>
    %cst_127 = arith.constant 1.000000e+00 : f32
    %296 = vector.broadcast %cst_127 : f32 to vector<8x32xf32>
    %297 = arith.divf %296, %295 : vector<8x32xf32>
    %298 = vector.extract_strided_slice %281 {offsets = [0, 64], sizes = [8, 32], strides = [1, 1]} : vector<8x128xf32> to vector<8x32xf32>
    %299 = math.tanh %298 : vector<8x32xf32>
    %300 = vector.extract_strided_slice %281 {offsets = [0, 96], sizes = [8, 32], strides = [1, 1]} : vector<8x128xf32> to vector<8x32xf32>
    %cst_128 = arith.constant 0.000000e+00 : f32
    %301 = vector.broadcast %cst_128 : f32 to vector<8x32xf32>
    %302 = arith.subf %301, %300 : vector<8x32xf32>
    %303 = math.exp %302 : vector<8x32xf32>
    %cst_129 = arith.constant 1.000000e+00 : f32
    %304 = vector.broadcast %cst_129 : f32 to vector<8x32xf32>
    %305 = arith.addf %304, %303 : vector<8x32xf32>
    %cst_130 = arith.constant 1.000000e+00 : f32
    %306 = vector.broadcast %cst_130 : f32 to vector<8x32xf32>
    %307 = arith.divf %306, %305 : vector<8x32xf32>
    %308 = arith.mulf %297, %272 : vector<8x32xf32>
    %309 = arith.mulf %289, %299 : vector<8x32xf32>
    %310 = arith.addf %308, %309 : vector<8x32xf32>
    %311 = math.tanh %310 : vector<8x32xf32>
    %312 = arith.mulf %307, %311 : vector<8x32xf32>
    %c7_131 = arith.constant 7 : index
    %c0_132 = arith.constant 0 : index
    %c0_133 = arith.constant 0 : index
    %313 = vector.load %arg10[%c7_131, %c0_132, %c0_133] : memref<8x8x32xf32, #tpu.memory_space<vmem>>, vector<1x8x32xf32>
    %314 = vector.shape_cast %313 : vector<1x8x32xf32> to vector<8x32xf32>
    %315 = vector.shape_cast %312 : vector<8x32xf32> to vector<1x8x32xf32>
    tpu.vector_store %arg10[%c7_131, %c0_132, %c0_133], %315 {strides = array<i32>} : memref<8x8x32xf32, #tpu.memory_space<vmem>>, vector<1x8x32xf32>,
    %c0_134 = arith.constant 0 : index
    %c0_135 = arith.constant 0 : index
    %316 = vector.load %arg4[%c0_134, %c0_135] : memref<32x128xf32, #tpu.memory_space<vmem>>, vector<32x128xf32>
    %c0_136 = arith.constant 0 : index
    %c0_137 = arith.constant 0 : index
    %317 = vector.load %arg5[%c0_136, %c0_137] : memref<32x128xf32, #tpu.memory_space<vmem>>, vector<32x128xf32>
    %c0_138 = arith.constant 0 : index
    %c0_139 = arith.constant 0 : index
    %318 = vector.load %arg6[%c0_138, %c0_139] : memref<1x128xf32, #tpu.memory_space<vmem>>, vector<1x128xf32>
    %c0_140 = arith.constant 0 : index
    %c0_141 = arith.constant 0 : index
    %c0_142 = arith.constant 0 : index
    %319 = vector.load %arg10[%c0_140, %c0_141, %c0_142] : memref<8x8x32xf32, #tpu.memory_space<vmem>>, vector<8x8x32xf32>
    %320 = vector.shape_cast %319 : vector<8x8x32xf32> to vector<64x32xf32>
    %cst_143 = arith.constant dense<0.000000e+00> : vector<64x128xf32>
    %321 = tpu.matmul %320, %316, %cst_143 {dimension_numbers = #tpu.dot_dimension_numbers<[1], [0], [0], [1], [0, 0, 1, 1], [], []>, precision = #tpu.contract_precision<fp32>} : vector<64x32xf32>, vector<32x128xf32>, vector<64x128xf32> -> vector<64x128xf32>
    %322 = vector.broadcast %318 : vector<1x128xf32> to vector<64x128xf32>
    %323 = arith.addf %321, %322 : vector<64x128xf32>
    %324 = vector.shape_cast %323 : vector<64x128xf32> to vector<8x8x128xf32>
    %c0_144 = arith.constant 0 : index
    %c0_145 = arith.constant 0 : index
    %c0_146 = arith.constant 0 : index
    %325 = vector.load %arg11[%c0_144, %c0_145, %c0_146] : memref<8x8x128xf32, #tpu.memory_space<vmem>>, vector<8x8x128xf32>
    tpu.vector_store %arg11[%c0_144, %c0_145, %c0_146], %324 {strides = array<i32>} : memref<8x8x128xf32, #tpu.memory_space<vmem>>, vector<8x8x128xf32>,
    %cst_147 = arith.constant 0.000000e+00 : f32
    %326 = vector.broadcast %cst_147 : f32 to vector<8x32xf32>
    %cst_148 = arith.constant 0.000000e+00 : f32
    %327 = vector.broadcast %cst_148 : f32 to vector<8x32xf32>
    %c0_149 = arith.constant 0 : index
    %c0_150 = arith.constant 0 : index
    %c0_151 = arith.constant 0 : index
    %328 = vector.load %arg11[%c0_149, %c0_150, %c0_151] : memref<8x8x128xf32, #tpu.memory_space<vmem>>, vector<1x8x128xf32>
    %329 = vector.shape_cast %328 : vector<1x8x128xf32> to vector<8x128xf32>
    %cst_152 = arith.constant dense<0.000000e+00> : vector<8x128xf32>
    %330 = tpu.matmul %326, %317, %cst_152 {dimension_numbers = #tpu.dot_dimension_numbers<[1], [0], [0], [1], [0, 0, 1, 1], [], []>, precision = #tpu.contract_precision<fp32>} : vector<8x32xf32>, vector<32x128xf32>, vector<8x128xf32> -> vector<8x128xf32>
    %331 = arith.addf %329, %330 : vector<8x128xf32>
    %332 = vector.extract_strided_slice %331 {offsets = [0, 0], sizes = [8, 32], strides = [1, 1]} : vector<8x128xf32> to vector<8x32xf32>
    %cst_153 = arith.constant 0.000000e+00 : f32
    %333 = vector.broadcast %cst_153 : f32 to vector<8x32xf32>
    %334 = arith.subf %333, %332 : vector<8x32xf32>
    %335 = math.exp %334 : vector<8x32xf32>
    %cst_154 = arith.constant 1.000000e+00 : f32
    %336 = vector.broadcast %cst_154 : f32 to vector<8x32xf32>
    %337 = arith.addf %336, %335 : vector<8x32xf32>
    %cst_155 = arith.constant 1.000000e+00 : f32
    %338 = vector.broadcast %cst_155 : f32 to vector<8x32xf32>
    %339 = arith.divf %338, %337 : vector<8x32xf32>
    %340 = vector.extract_strided_slice %331 {offsets = [0, 32], sizes = [8, 32], strides = [1, 1]} : vector<8x128xf32> to vector<8x32xf32>
    %cst_156 = arith.constant 0.000000e+00 : f32
    %341 = vector.broadcast %cst_156 : f32 to vector<8x32xf32>
    %342 = arith.subf %341, %340 : vector<8x32xf32>
    %343 = math.exp %342 : vector<8x32xf32>
    %cst_157 = arith.constant 1.000000e+00 : f32
    %344 = vector.broadcast %cst_157 : f32 to vector<8x32xf32>
    %345 = arith.addf %344, %343 : vector<8x32xf32>
    %cst_158 = arith.constant 1.000000e+00 : f32
    %346 = vector.broadcast %cst_158 : f32 to vector<8x32xf32>
    %347 = arith.divf %346, %345 : vector<8x32xf32>
    %348 = vector.extract_strided_slice %331 {offsets = [0, 64], sizes = [8, 32], strides = [1, 1]} : vector<8x128xf32> to vector<8x32xf32>
    %349 = math.tanh %348 : vector<8x32xf32>
    %350 = vector.extract_strided_slice %331 {offsets = [0, 96], sizes = [8, 32], strides = [1, 1]} : vector<8x128xf32> to vector<8x32xf32>
    %cst_159 = arith.constant 0.000000e+00 : f32
    %351 = vector.broadcast %cst_159 : f32 to vector<8x32xf32>
    %352 = arith.subf %351, %350 : vector<8x32xf32>
    %353 = math.exp %352 : vector<8x32xf32>
    %cst_160 = arith.constant 1.000000e+00 : f32
    %354 = vector.broadcast %cst_160 : f32 to vector<8x32xf32>
    %355 = arith.addf %354, %353 : vector<8x32xf32>
    %cst_161 = arith.constant 1.000000e+00 : f32
    %356 = vector.broadcast %cst_161 : f32 to vector<8x32xf32>
    %357 = arith.divf %356, %355 : vector<8x32xf32>
    %358 = arith.mulf %347, %327 : vector<8x32xf32>
    %359 = arith.mulf %339, %349 : vector<8x32xf32>
    %360 = arith.addf %358, %359 : vector<8x32xf32>
    %361 = math.tanh %360 : vector<8x32xf32>
    %362 = arith.mulf %357, %361 : vector<8x32xf32>
    %c0_162 = arith.constant 0 : index
    %c0_163 = arith.constant 0 : index
    %c0_164 = arith.constant 0 : index
    %363 = vector.load %arg10[%c0_162, %c0_163, %c0_164] : memref<8x8x32xf32, #tpu.memory_space<vmem>>, vector<1x8x32xf32>
    %364 = vector.shape_cast %363 : vector<1x8x32xf32> to vector<8x32xf32>
    %365 = vector.shape_cast %362 : vector<8x32xf32> to vector<1x8x32xf32>
    tpu.vector_store %arg10[%c0_162, %c0_163, %c0_164], %365 {strides = array<i32>} : memref<8x8x32xf32, #tpu.memory_space<vmem>>, vector<1x8x32xf32>,
    %c1_165 = arith.constant 1 : index
    %c0_166 = arith.constant 0 : index
    %c0_167 = arith.constant 0 : index
    %366 = vector.load %arg11[%c1_165, %c0_166, %c0_167] : memref<8x8x128xf32, #tpu.memory_space<vmem>>, vector<1x8x128xf32>
    %367 = vector.shape_cast %366 : vector<1x8x128xf32> to vector<8x128xf32>
    %cst_168 = arith.constant dense<0.000000e+00> : vector<8x128xf32>
    %368 = tpu.matmul %362, %317, %cst_168 {dimension_numbers = #tpu.dot_dimension_numbers<[1], [0], [0], [1], [0, 0, 1, 1], [], []>, precision = #tpu.contract_precision<fp32>} : vector<8x32xf32>, vector<32x128xf32>, vector<8x128xf32> -> vector<8x128xf32>
    %369 = arith.addf %367, %368 : vector<8x128xf32>
    %370 = vector.extract_strided_slice %369 {offsets = [0, 0], sizes = [8, 32], strides = [1, 1]} : vector<8x128xf32> to vector<8x32xf32>
    %cst_169 = arith.constant 0.000000e+00 : f32
    %371 = vector.broadcast %cst_169 : f32 to vector<8x32xf32>
    %372 = arith.subf %371, %370 : vector<8x32xf32>
    %373 = math.exp %372 : vector<8x32xf32>
    %cst_170 = arith.constant 1.000000e+00 : f32
    %374 = vector.broadcast %cst_170 : f32 to vector<8x32xf32>
    %375 = arith.addf %374, %373 : vector<8x32xf32>
    %cst_171 = arith.constant 1.000000e+00 : f32
    %376 = vector.broadcast %cst_171 : f32 to vector<8x32xf32>
    %377 = arith.divf %376, %375 : vector<8x32xf32>
    %378 = vector.extract_strided_slice %369 {offsets = [0, 32], sizes = [8, 32], strides = [1, 1]} : vector<8x128xf32> to vector<8x32xf32>
    %cst_172 = arith.constant 0.000000e+00 : f32
    %379 = vector.broadcast %cst_172 : f32 to vector<8x32xf32>
    %380 = arith.subf %379, %378 : vector<8x32xf32>
    %381 = math.exp %380 : vector<8x32xf32>
    %cst_173 = arith.constant 1.000000e+00 : f32
    %382 = vector.broadcast %cst_173 : f32 to vector<8x32xf32>
    %383 = arith.addf %382, %381 : vector<8x32xf32>
    %cst_174 = arith.constant 1.000000e+00 : f32
    %384 = vector.broadcast %cst_174 : f32 to vector<8x32xf32>
    %385 = arith.divf %384, %383 : vector<8x32xf32>
    %386 = vector.extract_strided_slice %369 {offsets = [0, 64], sizes = [8, 32], strides = [1, 1]} : vector<8x128xf32> to vector<8x32xf32>
    %387 = math.tanh %386 : vector<8x32xf32>
    %388 = vector.extract_strided_slice %369 {offsets = [0, 96], sizes = [8, 32], strides = [1, 1]} : vector<8x128xf32> to vector<8x32xf32>
    %cst_175 = arith.constant 0.000000e+00 : f32
    %389 = vector.broadcast %cst_175 : f32 to vector<8x32xf32>
    %390 = arith.subf %389, %388 : vector<8x32xf32>
    %391 = math.exp %390 : vector<8x32xf32>
    %cst_176 = arith.constant 1.000000e+00 : f32
    %392 = vector.broadcast %cst_176 : f32 to vector<8x32xf32>
    %393 = arith.addf %392, %391 : vector<8x32xf32>
    %cst_177 = arith.constant 1.000000e+00 : f32
    %394 = vector.broadcast %cst_177 : f32 to vector<8x32xf32>
    %395 = arith.divf %394, %393 : vector<8x32xf32>
    %396 = arith.mulf %385, %360 : vector<8x32xf32>
    %397 = arith.mulf %377, %387 : vector<8x32xf32>
    %398 = arith.addf %396, %397 : vector<8x32xf32>
    %399 = math.tanh %398 : vector<8x32xf32>
    %400 = arith.mulf %395, %399 : vector<8x32xf32>
    %c1_178 = arith.constant 1 : index
    %c0_179 = arith.constant 0 : index
    %c0_180 = arith.constant 0 : index
    %401 = vector.load %arg10[%c1_178, %c0_179, %c0_180] : memref<8x8x32xf32, #tpu.memory_space<vmem>>, vector<1x8x32xf32>
    %402 = vector.shape_cast %401 : vector<1x8x32xf32> to vector<8x32xf32>
    %403 = vector.shape_cast %400 : vector<8x32xf32> to vector<1x8x32xf32>
    tpu.vector_store %arg10[%c1_178, %c0_179, %c0_180], %403 {strides = array<i32>} : memref<8x8x32xf32, #tpu.memory_space<vmem>>, vector<1x8x32xf32>,
    %c2_181 = arith.constant 2 : index
    %c0_182 = arith.constant 0 : index
    %c0_183 = arith.constant 0 : index
    %404 = vector.load %arg11[%c2_181, %c0_182, %c0_183] : memref<8x8x128xf32, #tpu.memory_space<vmem>>, vector<1x8x128xf32>
    %405 = vector.shape_cast %404 : vector<1x8x128xf32> to vector<8x128xf32>
    %cst_184 = arith.constant dense<0.000000e+00> : vector<8x128xf32>
    %406 = tpu.matmul %400, %317, %cst_184 {dimension_numbers = #tpu.dot_dimension_numbers<[1], [0], [0], [1], [0, 0, 1, 1], [], []>, precision = #tpu.contract_precision<fp32>} : vector<8x32xf32>, vector<32x128xf32>, vector<8x128xf32> -> vector<8x128xf32>
    %407 = arith.addf %405, %406 : vector<8x128xf32>
    %408 = vector.extract_strided_slice %407 {offsets = [0, 0], sizes = [8, 32], strides = [1, 1]} : vector<8x128xf32> to vector<8x32xf32>
    %cst_185 = arith.constant 0.000000e+00 : f32
    %409 = vector.broadcast %cst_185 : f32 to vector<8x32xf32>
    %410 = arith.subf %409, %408 : vector<8x32xf32>
    %411 = math.exp %410 : vector<8x32xf32>
    %cst_186 = arith.constant 1.000000e+00 : f32
    %412 = vector.broadcast %cst_186 : f32 to vector<8x32xf32>
    %413 = arith.addf %412, %411 : vector<8x32xf32>
    %cst_187 = arith.constant 1.000000e+00 : f32
    %414 = vector.broadcast %cst_187 : f32 to vector<8x32xf32>
    %415 = arith.divf %414, %413 : vector<8x32xf32>
    %416 = vector.extract_strided_slice %407 {offsets = [0, 32], sizes = [8, 32], strides = [1, 1]} : vector<8x128xf32> to vector<8x32xf32>
    %cst_188 = arith.constant 0.000000e+00 : f32
    %417 = vector.broadcast %cst_188 : f32 to vector<8x32xf32>
    %418 = arith.subf %417, %416 : vector<8x32xf32>
    %419 = math.exp %418 : vector<8x32xf32>
    %cst_189 = arith.constant 1.000000e+00 : f32
    %420 = vector.broadcast %cst_189 : f32 to vector<8x32xf32>
    %421 = arith.addf %420, %419 : vector<8x32xf32>
    %cst_190 = arith.constant 1.000000e+00 : f32
    %422 = vector.broadcast %cst_190 : f32 to vector<8x32xf32>
    %423 = arith.divf %422, %421 : vector<8x32xf32>
    %424 = vector.extract_strided_slice %407 {offsets = [0, 64], sizes = [8, 32], strides = [1, 1]} : vector<8x128xf32> to vector<8x32xf32>
    %425 = math.tanh %424 : vector<8x32xf32>
    %426 = vector.extract_strided_slice %407 {offsets = [0, 96], sizes = [8, 32], strides = [1, 1]} : vector<8x128xf32> to vector<8x32xf32>
    %cst_191 = arith.constant 0.000000e+00 : f32
    %427 = vector.broadcast %cst_191 : f32 to vector<8x32xf32>
    %428 = arith.subf %427, %426 : vector<8x32xf32>
    %429 = math.exp %428 : vector<8x32xf32>
    %cst_192 = arith.constant 1.000000e+00 : f32
    %430 = vector.broadcast %cst_192 : f32 to vector<8x32xf32>
    %431 = arith.addf %430, %429 : vector<8x32xf32>
    %cst_193 = arith.constant 1.000000e+00 : f32
    %432 = vector.broadcast %cst_193 : f32 to vector<8x32xf32>
    %433 = arith.divf %432, %431 : vector<8x32xf32>
    %434 = arith.mulf %423, %398 : vector<8x32xf32>
    %435 = arith.mulf %415, %425 : vector<8x32xf32>
    %436 = arith.addf %434, %435 : vector<8x32xf32>
    %437 = math.tanh %436 : vector<8x32xf32>
    %438 = arith.mulf %433, %437 : vector<8x32xf32>
    %c2_194 = arith.constant 2 : index
    %c0_195 = arith.constant 0 : index
    %c0_196 = arith.constant 0 : index
    %439 = vector.load %arg10[%c2_194, %c0_195, %c0_196] : memref<8x8x32xf32, #tpu.memory_space<vmem>>, vector<1x8x32xf32>
    %440 = vector.shape_cast %439 : vector<1x8x32xf32> to vector<8x32xf32>
    %441 = vector.shape_cast %438 : vector<8x32xf32> to vector<1x8x32xf32>
    tpu.vector_store %arg10[%c2_194, %c0_195, %c0_196], %441 {strides = array<i32>} : memref<8x8x32xf32, #tpu.memory_space<vmem>>, vector<1x8x32xf32>,
    %c3_197 = arith.constant 3 : index
    %c0_198 = arith.constant 0 : index
    %c0_199 = arith.constant 0 : index
    %442 = vector.load %arg11[%c3_197, %c0_198, %c0_199] : memref<8x8x128xf32, #tpu.memory_space<vmem>>, vector<1x8x128xf32>
    %443 = vector.shape_cast %442 : vector<1x8x128xf32> to vector<8x128xf32>
    %cst_200 = arith.constant dense<0.000000e+00> : vector<8x128xf32>
    %444 = tpu.matmul %438, %317, %cst_200 {dimension_numbers = #tpu.dot_dimension_numbers<[1], [0], [0], [1], [0, 0, 1, 1], [], []>, precision = #tpu.contract_precision<fp32>} : vector<8x32xf32>, vector<32x128xf32>, vector<8x128xf32> -> vector<8x128xf32>
    %445 = arith.addf %443, %444 : vector<8x128xf32>
    %446 = vector.extract_strided_slice %445 {offsets = [0, 0], sizes = [8, 32], strides = [1, 1]} : vector<8x128xf32> to vector<8x32xf32>
    %cst_201 = arith.constant 0.000000e+00 : f32
    %447 = vector.broadcast %cst_201 : f32 to vector<8x32xf32>
    %448 = arith.subf %447, %446 : vector<8x32xf32>
    %449 = math.exp %448 : vector<8x32xf32>
    %cst_202 = arith.constant 1.000000e+00 : f32
    %450 = vector.broadcast %cst_202 : f32 to vector<8x32xf32>
    %451 = arith.addf %450, %449 : vector<8x32xf32>
    %cst_203 = arith.constant 1.000000e+00 : f32
    %452 = vector.broadcast %cst_203 : f32 to vector<8x32xf32>
    %453 = arith.divf %452, %451 : vector<8x32xf32>
    %454 = vector.extract_strided_slice %445 {offsets = [0, 32], sizes = [8, 32], strides = [1, 1]} : vector<8x128xf32> to vector<8x32xf32>
    %cst_204 = arith.constant 0.000000e+00 : f32
    %455 = vector.broadcast %cst_204 : f32 to vector<8x32xf32>
    %456 = arith.subf %455, %454 : vector<8x32xf32>
    %457 = math.exp %456 : vector<8x32xf32>
    %cst_205 = arith.constant 1.000000e+00 : f32
    %458 = vector.broadcast %cst_205 : f32 to vector<8x32xf32>
    %459 = arith.addf %458, %457 : vector<8x32xf32>
    %cst_206 = arith.constant 1.000000e+00 : f32
    %460 = vector.broadcast %cst_206 : f32 to vector<8x32xf32>
    %461 = arith.divf %460, %459 : vector<8x32xf32>
    %462 = vector.extract_strided_slice %445 {offsets = [0, 64], sizes = [8, 32], strides = [1, 1]} : vector<8x128xf32> to vector<8x32xf32>
    %463 = math.tanh %462 : vector<8x32xf32>
    %464 = vector.extract_strided_slice %445 {offsets = [0, 96], sizes = [8, 32], strides = [1, 1]} : vector<8x128xf32> to vector<8x32xf32>
    %cst_207 = arith.constant 0.000000e+00 : f32
    %465 = vector.broadcast %cst_207 : f32 to vector<8x32xf32>
    %466 = arith.subf %465, %464 : vector<8x32xf32>
    %467 = math.exp %466 : vector<8x32xf32>
    %cst_208 = arith.constant 1.000000e+00 : f32
    %468 = vector.broadcast %cst_208 : f32 to vector<8x32xf32>
    %469 = arith.addf %468, %467 : vector<8x32xf32>
    %cst_209 = arith.constant 1.000000e+00 : f32
    %470 = vector.broadcast %cst_209 : f32 to vector<8x32xf32>
    %471 = arith.divf %470, %469 : vector<8x32xf32>
    %472 = arith.mulf %461, %436 : vector<8x32xf32>
    %473 = arith.mulf %453, %463 : vector<8x32xf32>
    %474 = arith.addf %472, %473 : vector<8x32xf32>
    %475 = math.tanh %474 : vector<8x32xf32>
    %476 = arith.mulf %471, %475 : vector<8x32xf32>
    %c3_210 = arith.constant 3 : index
    %c0_211 = arith.constant 0 : index
    %c0_212 = arith.constant 0 : index
    %477 = vector.load %arg10[%c3_210, %c0_211, %c0_212] : memref<8x8x32xf32, #tpu.memory_space<vmem>>, vector<1x8x32xf32>
    %478 = vector.shape_cast %477 : vector<1x8x32xf32> to vector<8x32xf32>
    %479 = vector.shape_cast %476 : vector<8x32xf32> to vector<1x8x32xf32>
    tpu.vector_store %arg10[%c3_210, %c0_211, %c0_212], %479 {strides = array<i32>} : memref<8x8x32xf32, #tpu.memory_space<vmem>>, vector<1x8x32xf32>,
    %c4_213 = arith.constant 4 : index
    %c0_214 = arith.constant 0 : index
    %c0_215 = arith.constant 0 : index
    %480 = vector.load %arg11[%c4_213, %c0_214, %c0_215] : memref<8x8x128xf32, #tpu.memory_space<vmem>>, vector<1x8x128xf32>
    %481 = vector.shape_cast %480 : vector<1x8x128xf32> to vector<8x128xf32>
    %cst_216 = arith.constant dense<0.000000e+00> : vector<8x128xf32>
    %482 = tpu.matmul %476, %317, %cst_216 {dimension_numbers = #tpu.dot_dimension_numbers<[1], [0], [0], [1], [0, 0, 1, 1], [], []>, precision = #tpu.contract_precision<fp32>} : vector<8x32xf32>, vector<32x128xf32>, vector<8x128xf32> -> vector<8x128xf32>
    %483 = arith.addf %481, %482 : vector<8x128xf32>
    %484 = vector.extract_strided_slice %483 {offsets = [0, 0], sizes = [8, 32], strides = [1, 1]} : vector<8x128xf32> to vector<8x32xf32>
    %cst_217 = arith.constant 0.000000e+00 : f32
    %485 = vector.broadcast %cst_217 : f32 to vector<8x32xf32>
    %486 = arith.subf %485, %484 : vector<8x32xf32>
    %487 = math.exp %486 : vector<8x32xf32>
    %cst_218 = arith.constant 1.000000e+00 : f32
    %488 = vector.broadcast %cst_218 : f32 to vector<8x32xf32>
    %489 = arith.addf %488, %487 : vector<8x32xf32>
    %cst_219 = arith.constant 1.000000e+00 : f32
    %490 = vector.broadcast %cst_219 : f32 to vector<8x32xf32>
    %491 = arith.divf %490, %489 : vector<8x32xf32>
    %492 = vector.extract_strided_slice %483 {offsets = [0, 32], sizes = [8, 32], strides = [1, 1]} : vector<8x128xf32> to vector<8x32xf32>
    %cst_220 = arith.constant 0.000000e+00 : f32
    %493 = vector.broadcast %cst_220 : f32 to vector<8x32xf32>
    %494 = arith.subf %493, %492 : vector<8x32xf32>
    %495 = math.exp %494 : vector<8x32xf32>
    %cst_221 = arith.constant 1.000000e+00 : f32
    %496 = vector.broadcast %cst_221 : f32 to vector<8x32xf32>
    %497 = arith.addf %496, %495 : vector<8x32xf32>
    %cst_222 = arith.constant 1.000000e+00 : f32
    %498 = vector.broadcast %cst_222 : f32 to vector<8x32xf32>
    %499 = arith.divf %498, %497 : vector<8x32xf32>
    %500 = vector.extract_strided_slice %483 {offsets = [0, 64], sizes = [8, 32], strides = [1, 1]} : vector<8x128xf32> to vector<8x32xf32>
    %501 = math.tanh %500 : vector<8x32xf32>
    %502 = vector.extract_strided_slice %483 {offsets = [0, 96], sizes = [8, 32], strides = [1, 1]} : vector<8x128xf32> to vector<8x32xf32>
    %cst_223 = arith.constant 0.000000e+00 : f32
    %503 = vector.broadcast %cst_223 : f32 to vector<8x32xf32>
    %504 = arith.subf %503, %502 : vector<8x32xf32>
    %505 = math.exp %504 : vector<8x32xf32>
    %cst_224 = arith.constant 1.000000e+00 : f32
    %506 = vector.broadcast %cst_224 : f32 to vector<8x32xf32>
    %507 = arith.addf %506, %505 : vector<8x32xf32>
    %cst_225 = arith.constant 1.000000e+00 : f32
    %508 = vector.broadcast %cst_225 : f32 to vector<8x32xf32>
    %509 = arith.divf %508, %507 : vector<8x32xf32>
    %510 = arith.mulf %499, %474 : vector<8x32xf32>
    %511 = arith.mulf %491, %501 : vector<8x32xf32>
    %512 = arith.addf %510, %511 : vector<8x32xf32>
    %513 = math.tanh %512 : vector<8x32xf32>
    %514 = arith.mulf %509, %513 : vector<8x32xf32>
    %c4_226 = arith.constant 4 : index
    %c0_227 = arith.constant 0 : index
    %c0_228 = arith.constant 0 : index
    %515 = vector.load %arg10[%c4_226, %c0_227, %c0_228] : memref<8x8x32xf32, #tpu.memory_space<vmem>>, vector<1x8x32xf32>
    %516 = vector.shape_cast %515 : vector<1x8x32xf32> to vector<8x32xf32>
    %517 = vector.shape_cast %514 : vector<8x32xf32> to vector<1x8x32xf32>
    tpu.vector_store %arg10[%c4_226, %c0_227, %c0_228], %517 {strides = array<i32>} : memref<8x8x32xf32, #tpu.memory_space<vmem>>, vector<1x8x32xf32>,
    %c5_229 = arith.constant 5 : index
    %c0_230 = arith.constant 0 : index
    %c0_231 = arith.constant 0 : index
    %518 = vector.load %arg11[%c5_229, %c0_230, %c0_231] : memref<8x8x128xf32, #tpu.memory_space<vmem>>, vector<1x8x128xf32>
    %519 = vector.shape_cast %518 : vector<1x8x128xf32> to vector<8x128xf32>
    %cst_232 = arith.constant dense<0.000000e+00> : vector<8x128xf32>
    %520 = tpu.matmul %514, %317, %cst_232 {dimension_numbers = #tpu.dot_dimension_numbers<[1], [0], [0], [1], [0, 0, 1, 1], [], []>, precision = #tpu.contract_precision<fp32>} : vector<8x32xf32>, vector<32x128xf32>, vector<8x128xf32> -> vector<8x128xf32>
    %521 = arith.addf %519, %520 : vector<8x128xf32>
    %522 = vector.extract_strided_slice %521 {offsets = [0, 0], sizes = [8, 32], strides = [1, 1]} : vector<8x128xf32> to vector<8x32xf32>
    %cst_233 = arith.constant 0.000000e+00 : f32
    %523 = vector.broadcast %cst_233 : f32 to vector<8x32xf32>
    %524 = arith.subf %523, %522 : vector<8x32xf32>
    %525 = math.exp %524 : vector<8x32xf32>
    %cst_234 = arith.constant 1.000000e+00 : f32
    %526 = vector.broadcast %cst_234 : f32 to vector<8x32xf32>
    %527 = arith.addf %526, %525 : vector<8x32xf32>
    %cst_235 = arith.constant 1.000000e+00 : f32
    %528 = vector.broadcast %cst_235 : f32 to vector<8x32xf32>
    %529 = arith.divf %528, %527 : vector<8x32xf32>
    %530 = vector.extract_strided_slice %521 {offsets = [0, 32], sizes = [8, 32], strides = [1, 1]} : vector<8x128xf32> to vector<8x32xf32>
    %cst_236 = arith.constant 0.000000e+00 : f32
    %531 = vector.broadcast %cst_236 : f32 to vector<8x32xf32>
    %532 = arith.subf %531, %530 : vector<8x32xf32>
    %533 = math.exp %532 : vector<8x32xf32>
    %cst_237 = arith.constant 1.000000e+00 : f32
    %534 = vector.broadcast %cst_237 : f32 to vector<8x32xf32>
    %535 = arith.addf %534, %533 : vector<8x32xf32>
    %cst_238 = arith.constant 1.000000e+00 : f32
    %536 = vector.broadcast %cst_238 : f32 to vector<8x32xf32>
    %537 = arith.divf %536, %535 : vector<8x32xf32>
    %538 = vector.extract_strided_slice %521 {offsets = [0, 64], sizes = [8, 32], strides = [1, 1]} : vector<8x128xf32> to vector<8x32xf32>
    %539 = math.tanh %538 : vector<8x32xf32>
    %540 = vector.extract_strided_slice %521 {offsets = [0, 96], sizes = [8, 32], strides = [1, 1]} : vector<8x128xf32> to vector<8x32xf32>
    %cst_239 = arith.constant 0.000000e+00 : f32
    %541 = vector.broadcast %cst_239 : f32 to vector<8x32xf32>
    %542 = arith.subf %541, %540 : vector<8x32xf32>
    %543 = math.exp %542 : vector<8x32xf32>
    %cst_240 = arith.constant 1.000000e+00 : f32
    %544 = vector.broadcast %cst_240 : f32 to vector<8x32xf32>
    %545 = arith.addf %544, %543 : vector<8x32xf32>
    %cst_241 = arith.constant 1.000000e+00 : f32
    %546 = vector.broadcast %cst_241 : f32 to vector<8x32xf32>
    %547 = arith.divf %546, %545 : vector<8x32xf32>
    %548 = arith.mulf %537, %512 : vector<8x32xf32>
    %549 = arith.mulf %529, %539 : vector<8x32xf32>
    %550 = arith.addf %548, %549 : vector<8x32xf32>
    %551 = math.tanh %550 : vector<8x32xf32>
    %552 = arith.mulf %547, %551 : vector<8x32xf32>
    %c5_242 = arith.constant 5 : index
    %c0_243 = arith.constant 0 : index
    %c0_244 = arith.constant 0 : index
    %553 = vector.load %arg10[%c5_242, %c0_243, %c0_244] : memref<8x8x32xf32, #tpu.memory_space<vmem>>, vector<1x8x32xf32>
    %554 = vector.shape_cast %553 : vector<1x8x32xf32> to vector<8x32xf32>
    %555 = vector.shape_cast %552 : vector<8x32xf32> to vector<1x8x32xf32>
    tpu.vector_store %arg10[%c5_242, %c0_243, %c0_244], %555 {strides = array<i32>} : memref<8x8x32xf32, #tpu.memory_space<vmem>>, vector<1x8x32xf32>,
    %c6_245 = arith.constant 6 : index
    %c0_246 = arith.constant 0 : index
    %c0_247 = arith.constant 0 : index
    %556 = vector.load %arg11[%c6_245, %c0_246, %c0_247] : memref<8x8x128xf32, #tpu.memory_space<vmem>>, vector<1x8x128xf32>
    %557 = vector.shape_cast %556 : vector<1x8x128xf32> to vector<8x128xf32>
    %cst_248 = arith.constant dense<0.000000e+00> : vector<8x128xf32>
    %558 = tpu.matmul %552, %317, %cst_248 {dimension_numbers = #tpu.dot_dimension_numbers<[1], [0], [0], [1], [0, 0, 1, 1], [], []>, precision = #tpu.contract_precision<fp32>} : vector<8x32xf32>, vector<32x128xf32>, vector<8x128xf32> -> vector<8x128xf32>
    %559 = arith.addf %557, %558 : vector<8x128xf32>
    %560 = vector.extract_strided_slice %559 {offsets = [0, 0], sizes = [8, 32], strides = [1, 1]} : vector<8x128xf32> to vector<8x32xf32>
    %cst_249 = arith.constant 0.000000e+00 : f32
    %561 = vector.broadcast %cst_249 : f32 to vector<8x32xf32>
    %562 = arith.subf %561, %560 : vector<8x32xf32>
    %563 = math.exp %562 : vector<8x32xf32>
    %cst_250 = arith.constant 1.000000e+00 : f32
    %564 = vector.broadcast %cst_250 : f32 to vector<8x32xf32>
    %565 = arith.addf %564, %563 : vector<8x32xf32>
    %cst_251 = arith.constant 1.000000e+00 : f32
    %566 = vector.broadcast %cst_251 : f32 to vector<8x32xf32>
    %567 = arith.divf %566, %565 : vector<8x32xf32>
    %568 = vector.extract_strided_slice %559 {offsets = [0, 32], sizes = [8, 32], strides = [1, 1]} : vector<8x128xf32> to vector<8x32xf32>
    %cst_252 = arith.constant 0.000000e+00 : f32
    %569 = vector.broadcast %cst_252 : f32 to vector<8x32xf32>
    %570 = arith.subf %569, %568 : vector<8x32xf32>
    %571 = math.exp %570 : vector<8x32xf32>
    %cst_253 = arith.constant 1.000000e+00 : f32
    %572 = vector.broadcast %cst_253 : f32 to vector<8x32xf32>
    %573 = arith.addf %572, %571 : vector<8x32xf32>
    %cst_254 = arith.constant 1.000000e+00 : f32
    %574 = vector.broadcast %cst_254 : f32 to vector<8x32xf32>
    %575 = arith.divf %574, %573 : vector<8x32xf32>
    %576 = vector.extract_strided_slice %559 {offsets = [0, 64], sizes = [8, 32], strides = [1, 1]} : vector<8x128xf32> to vector<8x32xf32>
    %577 = math.tanh %576 : vector<8x32xf32>
    %578 = vector.extract_strided_slice %559 {offsets = [0, 96], sizes = [8, 32], strides = [1, 1]} : vector<8x128xf32> to vector<8x32xf32>
    %cst_255 = arith.constant 0.000000e+00 : f32
    %579 = vector.broadcast %cst_255 : f32 to vector<8x32xf32>
    %580 = arith.subf %579, %578 : vector<8x32xf32>
    %581 = math.exp %580 : vector<8x32xf32>
    %cst_256 = arith.constant 1.000000e+00 : f32
    %582 = vector.broadcast %cst_256 : f32 to vector<8x32xf32>
    %583 = arith.addf %582, %581 : vector<8x32xf32>
    %cst_257 = arith.constant 1.000000e+00 : f32
    %584 = vector.broadcast %cst_257 : f32 to vector<8x32xf32>
    %585 = arith.divf %584, %583 : vector<8x32xf32>
    %586 = arith.mulf %575, %550 : vector<8x32xf32>
    %587 = arith.mulf %567, %577 : vector<8x32xf32>
    %588 = arith.addf %586, %587 : vector<8x32xf32>
    %589 = math.tanh %588 : vector<8x32xf32>
    %590 = arith.mulf %585, %589 : vector<8x32xf32>
    %c6_258 = arith.constant 6 : index
    %c0_259 = arith.constant 0 : index
    %c0_260 = arith.constant 0 : index
    %591 = vector.load %arg10[%c6_258, %c0_259, %c0_260] : memref<8x8x32xf32, #tpu.memory_space<vmem>>, vector<1x8x32xf32>
    %592 = vector.shape_cast %591 : vector<1x8x32xf32> to vector<8x32xf32>
    %593 = vector.shape_cast %590 : vector<8x32xf32> to vector<1x8x32xf32>
    tpu.vector_store %arg10[%c6_258, %c0_259, %c0_260], %593 {strides = array<i32>} : memref<8x8x32xf32, #tpu.memory_space<vmem>>, vector<1x8x32xf32>,
    %c7_261 = arith.constant 7 : index
    %c0_262 = arith.constant 0 : index
    %c0_263 = arith.constant 0 : index
    %594 = vector.load %arg11[%c7_261, %c0_262, %c0_263] : memref<8x8x128xf32, #tpu.memory_space<vmem>>, vector<1x8x128xf32>
    %595 = vector.shape_cast %594 : vector<1x8x128xf32> to vector<8x128xf32>
    %cst_264 = arith.constant dense<0.000000e+00> : vector<8x128xf32>
    %596 = tpu.matmul %590, %317, %cst_264 {dimension_numbers = #tpu.dot_dimension_numbers<[1], [0], [0], [1], [0, 0, 1, 1], [], []>, precision = #tpu.contract_precision<fp32>} : vector<8x32xf32>, vector<32x128xf32>, vector<8x128xf32> -> vector<8x128xf32>
    %597 = arith.addf %595, %596 : vector<8x128xf32>
    %598 = vector.extract_strided_slice %597 {offsets = [0, 0], sizes = [8, 32], strides = [1, 1]} : vector<8x128xf32> to vector<8x32xf32>
    %cst_265 = arith.constant 0.000000e+00 : f32
    %599 = vector.broadcast %cst_265 : f32 to vector<8x32xf32>
    %600 = arith.subf %599, %598 : vector<8x32xf32>
    %601 = math.exp %600 : vector<8x32xf32>
    %cst_266 = arith.constant 1.000000e+00 : f32
    %602 = vector.broadcast %cst_266 : f32 to vector<8x32xf32>
    %603 = arith.addf %602, %601 : vector<8x32xf32>
    %cst_267 = arith.constant 1.000000e+00 : f32
    %604 = vector.broadcast %cst_267 : f32 to vector<8x32xf32>
    %605 = arith.divf %604, %603 : vector<8x32xf32>
    %606 = vector.extract_strided_slice %597 {offsets = [0, 32], sizes = [8, 32], strides = [1, 1]} : vector<8x128xf32> to vector<8x32xf32>
    %cst_268 = arith.constant 0.000000e+00 : f32
    %607 = vector.broadcast %cst_268 : f32 to vector<8x32xf32>
    %608 = arith.subf %607, %606 : vector<8x32xf32>
    %609 = math.exp %608 : vector<8x32xf32>
    %cst_269 = arith.constant 1.000000e+00 : f32
    %610 = vector.broadcast %cst_269 : f32 to vector<8x32xf32>
    %611 = arith.addf %610, %609 : vector<8x32xf32>
    %cst_270 = arith.constant 1.000000e+00 : f32
    %612 = vector.broadcast %cst_270 : f32 to vector<8x32xf32>
    %613 = arith.divf %612, %611 : vector<8x32xf32>
    %614 = vector.extract_strided_slice %597 {offsets = [0, 64], sizes = [8, 32], strides = [1, 1]} : vector<8x128xf32> to vector<8x32xf32>
    %615 = math.tanh %614 : vector<8x32xf32>
    %616 = vector.extract_strided_slice %597 {offsets = [0, 96], sizes = [8, 32], strides = [1, 1]} : vector<8x128xf32> to vector<8x32xf32>
    %cst_271 = arith.constant 0.000000e+00 : f32
    %617 = vector.broadcast %cst_271 : f32 to vector<8x32xf32>
    %618 = arith.subf %617, %616 : vector<8x32xf32>
    %619 = math.exp %618 : vector<8x32xf32>
    %cst_272 = arith.constant 1.000000e+00 : f32
    %620 = vector.broadcast %cst_272 : f32 to vector<8x32xf32>
    %621 = arith.addf %620, %619 : vector<8x32xf32>
    %cst_273 = arith.constant 1.000000e+00 : f32
    %622 = vector.broadcast %cst_273 : f32 to vector<8x32xf32>
    %623 = arith.divf %622, %621 : vector<8x32xf32>
    %624 = arith.mulf %613, %588 : vector<8x32xf32>
    %625 = arith.mulf %605, %615 : vector<8x32xf32>
    %626 = arith.addf %624, %625 : vector<8x32xf32>
    %627 = math.tanh %626 : vector<8x32xf32>
    %628 = arith.mulf %623, %627 : vector<8x32xf32>
    %c7_274 = arith.constant 7 : index
    %c0_275 = arith.constant 0 : index
    %c0_276 = arith.constant 0 : index
    %629 = vector.load %arg10[%c7_274, %c0_275, %c0_276] : memref<8x8x32xf32, #tpu.memory_space<vmem>>, vector<1x8x32xf32>
    %630 = vector.shape_cast %629 : vector<1x8x32xf32> to vector<8x32xf32>
    %631 = vector.shape_cast %628 : vector<8x32xf32> to vector<1x8x32xf32>
    tpu.vector_store %arg10[%c7_274, %c0_275, %c0_276], %631 {strides = array<i32>} : memref<8x8x32xf32, #tpu.memory_space<vmem>>, vector<1x8x32xf32>,
    %c0_277 = arith.constant 0 : index
    %c0_278 = arith.constant 0 : index
    %c0_279 = arith.constant 0 : index
    %632 = vector.load %arg10[%c0_277, %c0_278, %c0_279] : memref<8x8x32xf32, #tpu.memory_space<vmem>>, vector<8x8x32xf32>
    %633 = vector.shape_cast %632 : vector<8x8x32xf32> to vector<64x32xf32>
    %c0_280 = arith.constant 0 : index
    %c0_281 = arith.constant 0 : index
    %634 = vector.load %arg7[%c0_280, %c0_281] : memref<32x128xf32, #tpu.memory_space<vmem>>, vector<32x128xf32>
    %cst_282 = arith.constant dense<0.000000e+00> : vector<64x128xf32>
    %635 = tpu.matmul %633, %634, %cst_282 {dimension_numbers = #tpu.dot_dimension_numbers<[1], [0], [0], [1], [0, 0, 1, 1], [], []>, precision = #tpu.contract_precision<fp32>} : vector<64x32xf32>, vector<32x128xf32>, vector<64x128xf32> -> vector<64x128xf32>
    %c0_283 = arith.constant 0 : index
    %c0_284 = arith.constant 0 : index
    %636 = vector.load %arg8[%c0_283, %c0_284] : memref<1x128xf32, #tpu.memory_space<vmem>>, vector<1x128xf32>
    %637 = vector.broadcast %636 : vector<1x128xf32> to vector<64x128xf32>
    %638 = arith.addf %635, %637 : vector<64x128xf32>
    %639 = vector.shape_cast %638 : vector<64x128xf32> to vector<8x8x128xf32>
    %c0_285 = arith.constant 0 : index
    %c0_286 = arith.constant 0 : index
    %c0_287 = arith.constant 0 : index
    %640 = vector.load %arg9[%c0_285, %c0_286, %c0_287] : memref<8x8x128xf32, #tpu.memory_space<vmem>>, vector<8x8x128xf32>
    tpu.vector_store %arg9[%c0_285, %c0_286, %c0_287], %639 {strides = array<i32>} : memref<8x8x128xf32, #tpu.memory_space<vmem>>, vector<8x8x128xf32>,
    return
  }
}

</mosaic_0001>

<llo_original>
// kernel: decoder_forward.1
$region0: #{decoder_forward.1}
  #allocation0 [shape = 'u32[]', space=smem, size = 0x4, offset = 0x4, fixed_abs, tag = 'smem constant byte address 0x4 - core index']
  #allocation1 [shape = 'u32[144,128]{1,0:T(1,128)}', space=vmem, size = 0x12000, scoped, tag = 'internal scratch']
  #allocation2 [shape = 'f32[8,8,32]{2,1,0:T(8,128)}', space=vmem, size = 0x8000, scoped, tag = 'scratch operand']
  #allocation3 [shape = 'f32[8,8,128]{2,1,0:T(8,128)}', space=vmem, size = 0x8000, scoped, tag = 'scratch operand']
  %s0 = inlined_call_operand.vmem [shape: f32[8,8,32], index: 0, kind: input, shape index: {}]
  %s1 = inlined_call_operand.vmem [shape: f32[32,128], index: 1, kind: input, shape index: {}]
  %s2 = inlined_call_operand.vmem [shape: f32[32,128], index: 2, kind: input, shape index: {}]
  %s3 = inlined_call_operand.vmem [shape: f32[1,128], index: 3, kind: input, shape index: {}]
  %s4 = inlined_call_operand.vmem [shape: f32[32,128], index: 4, kind: input, shape index: {}]
  %s5 = inlined_call_operand.vmem [shape: f32[32,128], index: 5, kind: input, shape index: {}]
  %s6 = inlined_call_operand.vmem [shape: f32[1,128], index: 6, kind: input, shape index: {}]
  %s7 = inlined_call_operand.vmem [shape: f32[32,128], index: 7, kind: input, shape index: {}]
  %s8 = inlined_call_operand.vmem [shape: f32[1,128], index: 8, kind: input, shape index: {}]
  %s9 = inlined_call_operand.vmem [shape: f32[8,8,128], index: 9, kind: output, shape index: {}]
  %s10 = sld [smem:[#allocation0]]
  $region46: #{decoder_forward.1} parent=0
    _
  %s12 = ssub.s32 1, %s10
  %s13 = scalar_select 0, %s12, %s10
  // Predicated region
  $region2: #{decoder_forward.1} parent=0 // pred_check
    _
  $region3: #{decoder_forward.1} parent=0 // pred_check_branch
    %15 = sbr.rel (0) target = $region5
  $region4: #{decoder_forward.1} parent=0 // pred_region
    _
  $region5: #{decoder_forward.1} parent=0 // pred_fallthru
    _
  // Predicated region
  $region6: #{decoder_forward.1} parent=0 // pred_check
    _
  $region7: #{decoder_forward.1} parent=0 // pred_check_branch
    %17 = sbr.rel (0) target = $region9
  $region8: #{decoder_forward.1} parent=0 // pred_region
    _
  $region9: #{decoder_forward.1} parent=0 // pred_fallthru
    _
  // Predicated region
  $region10: #{decoder_forward.1} parent=0 // pred_check
    _
  $region11: #{decoder_forward.1} parent=0 // pred_check_branch
    %19 = sbr.rel (0) target = $region13
  $region12: #{decoder_forward.1} parent=0 // pred_region
    _
  $region13: #{decoder_forward.1} parent=0 // pred_fallthru
    _
  // Predicated region
  $region14: #{decoder_forward.1} parent=0 // pred_check
    _
  $region15: #{decoder_forward.1} parent=0 // pred_check_branch
    %21 = sbr.rel (0) target = $region17
  $region16: #{decoder_forward.1} parent=0 // pred_region
    _
  $region17: #{decoder_forward.1} parent=0 // pred_fallthru
    _
  // Predicated region
  $region18: #{decoder_forward.1} parent=0 // pred_check
    _
  $region19: #{decoder_forward.1} parent=0 // pred_check_branch
    %23 = sbr.rel (0) target = $region21
  $region20: #{decoder_forward.1} parent=0 // pred_region
    _
  $region21: #{decoder_forward.1} parent=0 // pred_fallthru
    _
  // Predicated region
  $region22: #{decoder_forward.1} parent=0 // pred_check
    _
  $region23: #{decoder_forward.1} parent=0 // pred_check_branch
    %25 = sbr.rel (0) target = $region25
  $region24: #{decoder_forward.1} parent=0 // pred_region
    _
  $region25: #{decoder_forward.1} parent=0 // pred_fallthru
    _
  // Predicated region
  $region26: #{decoder_forward.1} parent=0 // pred_check
    _
  $region27: #{decoder_forward.1} parent=0 // pred_check_branch
    %27 = sbr.rel (0) target = $region29
  $region28: #{decoder_forward.1} parent=0 // pred_region
    _
  $region29: #{decoder_forward.1} parent=0 // pred_fallthru
    _
  // Predicated region
  $region30: #{decoder_forward.1} parent=0 // pred_check
    _
  $region31: #{decoder_forward.1} parent=0 // pred_check_branch
    %29 = sbr.rel (0) target = $region33
  $region32: #{decoder_forward.1} parent=0 // pred_region
    _
  $region33: #{decoder_forward.1} parent=0 // pred_fallthru
    _
  // Predicated region
  $region34: #{decoder_forward.1} parent=0 // pred_check
    _
  $region35: #{decoder_forward.1} parent=0 // pred_check_branch
    %31 = sbr.rel (0) target = $region37
  $region36: #{decoder_forward.1} parent=0 // pred_region
    _
  $region37: #{decoder_forward.1} parent=0 // pred_fallthru
    _
  %v32 = vld [vmem:[%s1] sm:$0xff]
  %v33 = vld [vmem:[%s1 + $0x8] sm:$0xff]
  %v34 = vld [vmem:[%s1 + $0x10] sm:$0xff]
  %v35 = vld [vmem:[%s1 + $0x18] sm:$0xff]
  %v36 = vld [vmem:[%s2] sm:$0xff]
  %v37 = vld [vmem:[%s2 + $0x8] sm:$0xff]
  %v38 = vld [vmem:[%s2 + $0x10] sm:$0xff]
  %v39 = vld [vmem:[%s2 + $0x18] sm:$0xff]
  %v40 = vld [vmem:[%s3] sm:$0x1]
  %v41 = vld [vmem:[%s0] sm:$0xff]
  %v42 = vld [vmem:[%s0 + $0x8] sm:$0xff]
  %v43 = vld [vmem:[%s0 + $0x10] sm:$0xff]
  %v44 = vld [vmem:[%s0 + $0x18] sm:$0xff]
  %v45 = vld [vmem:[%s0 + $0x20] sm:$0xff]
  %v46 = vld [vmem:[%s0 + $0x28] sm:$0xff]
  %v47 = vld [vmem:[%s0 + $0x30] sm:$0xff]
  %v48 = vld [vmem:[%s0 + $0x38] sm:$0xff]
  %v50 = vlaneseq
  %v51 = vshrl.u32 %v50, 7
  %v52 = vsub.s32 0, %v51
  %v53 = vrot.slane %v40, %v52
  %vm55 = vcmask 261120
  %v57 = vsel %vm55, %v41, 0
  %v60 = vsel %vm55, %v42, 0
  %v63 = vsel %vm55, %v43, 0
  %v66 = vsel %vm55, %v44, 0
  %v69 = vsel %vm55, %v45, 0
  %v72 = vsel %vm55, %v46, 0
  %v75 = vsel %vm55, %v47, 0
  %v78 = vsel %vm55, %v48, 0
  %80 = vmatprep.subr.mxu0 0.0
  %81 = vmatpush1.msra.mxu0 0.0
  %82 = vmatprep.subr.mxu0 0.0
  %83 = vmatpush1.msra.mxu0 0.0
  %84 = vmatprep.subr.mxu0 0.0
  %85 = vmatpush1.msra.mxu0 0.0
  %86 = vmatprep.subr.mxu0 0.0
  %87 = vmatpush1.msra.mxu0 0.0
  %88 = vmatprep.subr.mxu0 0.0
  %89 = vmatpush1.msra.mxu0 0.0
  %90 = vmatprep.subr.mxu0 0.0
  %91 = vmatpush1.msra.mxu0 0.0
  %92 = vmatprep.subr.mxu0 0.0
  %93 = vmatpush1.msra.mxu0 0.0
  %94 = vmatprep.subr.mxu0 0.0
  %95 = vmatpush1.msra.mxu0 0.0
  %96 = vmatprep.subr.mxu0 0.0
  %97 = vmatpush1.msra.mxu0 0.0
  %98 = vmatprep.subr.mxu0 0.0
  %99 = vmatpush1.msra.mxu0 0.0
  %100 = vmatprep.subr.mxu0 0.0
  %101 = vmatpush1.msra.mxu0 0.0
  %102 = vmatprep.subr.mxu0 0.0
  %103 = vmatpush1.msra.mxu0 0.0
  %104 = vmatprep.subr.mxu0 0.0
  %v105 = vand.u32 %v35, 4294901760
  %106 = vmatpush1.msra.mxu0 %v105
  %107 = vmatprep.subr.mxu0 0.0
  %v108 = vand.u32 %v34, 4294901760
  %109 = vmatpush1.msra.mxu0 %v108
  %110 = vmatprep.subr.mxu0 0.0
  %v111 = vand.u32 %v33, 4294901760
  %112 = vmatpush1.msra.mxu0 %v111
  %113 = vmatprep.subr.mxu0 0.0
  %v114 = vand.u32 %v32, 4294901760
  %115 = vmatpush1.msra.mxu0 %v114
  %116 = vmatprep.subr.mxu0 0.0
  %117 = vmatpush2.msra.mxu0 0.0
  %118 = vmatprep.subr.mxu0 0.0
  %119 = vmatpush2.msra.mxu0 0.0
  %120 = vmatprep.subr.mxu0 0.0
  %121 = vmatpush2.msra.mxu0 0.0
  %122 = vmatprep.subr.mxu0 0.0
  %123 = vmatpush2.msra.mxu0 0.0
  %124 = vmatprep.subr.mxu0 0.0
  %125 = vmatpush2.msra.mxu0 0.0
  %126 = vmatprep.subr.mxu0 0.0
  %127 = vmatpush2.msra.mxu0 0.0
  %128 = vmatprep.subr.mxu0 0.0
  %129 = vmatpush2.msra.mxu0 0.0
  %130 = vmatprep.subr.mxu0 0.0
  %131 = vmatpush2.msra.mxu0 0.0
  %132 = vmatprep.subr.mxu0 0.0
  %133 = vmatpush2.msra.mxu0 0.0
  %134 = vmatprep.subr.mxu0 0.0
  %135 = vmatpush2.msra.mxu0 0.0
  %136 = vmatprep.subr.mxu0 0.0
  %137 = vmatpush2.msra.mxu0 0.0
  %138 = vmatprep.subr.mxu0 0.0
  %139 = vmatpush2.msra.mxu0 0.0
  %140 = vmatprep.subr.mxu0 0.0
  %141 = vmatpush2.msra.mxu0 0.0
  %142 = vmatprep.subr.mxu0 0.0
  %143 = vmatpush2.msra.mxu0 0.0
  %144 = vmatprep.subr.mxu0 0.0
  %145 = vmatpush2.msra.mxu0 0.0
  %146 = vmatprep.subr.mxu0 0.0
  %147 = vmatpush2.msra.mxu0 0.0
  %148 = vmatprep.mubr.f32.mxu0 0.0
  %v149 = vand.u32 %v57, 4294901760
  %v150 = vsub.f32 %v57, %v149
  %v151 = vand.u32 %v150, 4294901760
  %v152 = vsub.f32 %v150, %v151
  %v153 = vand.u32 %v152, 4294901760
  %154 = vmatmul.mubr.f32.gmra.mxu0 %v153
  %v155 = vpop.f32.mrf.mxu0
  %v156 = vadd.f32 %v53, %v155
  %v157 = vpop.f32.mrf.mxu0
  %158 = vmatprep.mubr.f32.mxu0 0.0
  %v159 = vand.u32 %v60, 4294901760
  %v160 = vsub.f32 %v60, %v159
  %v161 = vand.u32 %v160, 4294901760
  %v162 = vsub.f32 %v160, %v161
  %v163 = vand.u32 %v162, 4294901760
  %164 = vmatmul.mubr.f32.gmra.mxu0 %v163
  %v165 = vpop.f32.mrf.mxu0
  %v166 = vadd.f32 %v53, %v165
  %v167 = vpop.f32.mrf.mxu0
  %168 = vmatprep.mubr.f32.mxu0 0.0
  %v169 = vand.u32 %v63, 4294901760
  %v170 = vsub.f32 %v63, %v169
  %v171 = vand.u32 %v170, 4294901760
  %v172 = vsub.f32 %v170, %v171
  %v173 = vand.u32 %v172, 4294901760
  %174 = vmatmul.mubr.f32.gmra.mxu0 %v173
  %v175 = vpop.f32.mrf.mxu0
  %v176 = vadd.f32 %v53, %v175
  %v177 = vpop.f32.mrf.mxu0
  %178 = vmatprep.mubr.f32.mxu0 0.0
  %v179 = vand.u32 %v66, 4294901760
  %v180 = vsub.f32 %v66, %v179
  %v181 = vand.u32 %v180, 4294901760
  %v182 = vsub.f32 %v180, %v181
  %v183 = vand.u32 %v182, 4294901760
  %184 = vmatmul.mubr.f32.gmra.mxu0 %v183
  %v185 = vpop.f32.mrf.mxu0
  %v186 = vadd.f32 %v53, %v185
  %v187 = vpop.f32.mrf.mxu0
  %188 = vmatprep.mubr.f32.mxu0 0.0
  %v189 = vand.u32 %v69, 4294901760
  %v190 = vsub.f32 %v69, %v189
  %v191 = vand.u32 %v190, 4294901760
  %v192 = vsub.f32 %v190, %v191
  %v193 = vand.u32 %v192, 4294901760
  %194 = vmatmul.mubr.f32.gmra.mxu0 %v193
  %v195 = vpop.f32.mrf.mxu0
  %v196 = vadd.f32 %v53, %v195
  %v197 = vpop.f32.mrf.mxu0
  %198 = vmatprep.mubr.f32.mxu0 0.0
  %v199 = vand.u32 %v72, 4294901760
  %v200 = vsub.f32 %v72, %v199
  %v201 = vand.u32 %v200, 4294901760
  %v202 = vsub.f32 %v200, %v201
  %v203 = vand.u32 %v202, 4294901760
  %204 = vmatmul.mubr.f32.gmra.mxu0 %v203
  %v205 = vpop.f32.mrf.mxu0
  %v206 = vadd.f32 %v53, %v205
  %v207 = vpop.f32.mrf.mxu0
  %208 = vmatprep.mubr.f32.mxu0 0.0
  %v209 = vand.u32 %v75, 4294901760
  %v210 = vsub.f32 %v75, %v209
  %v211 = vand.u32 %v210, 4294901760
  %v212 = vsub.f32 %v210, %v211
  %v213 = vand.u32 %v212, 4294901760
  %214 = vmatmul.mubr.f32.gmra.mxu0 %v213
  %v215 = vpop.f32.mrf.mxu0
  %v216 = vadd.f32 %v53, %v215
  %v217 = vpop.f32.mrf.mxu0
  %218 = vmatprep.mubr.f32.mxu0 0.0
  %v219 = vand.u32 %v78, 4294901760
  %v220 = vsub.f32 %v78, %v219
  %v221 = vand.u32 %v220, 4294901760
  %v222 = vsub.f32 %v220, %v221
  %v223 = vand.u32 %v222, 4294901760
  %224 = vmatmul.mubr.f32.gmra.mxu0 %v223
  %v225 = vpop.f32.mrf.mxu0
  %v226 = vadd.f32 %v53, %v225
  %v227 = vpop.f32.mrf.mxu0
  %228 = vdwg.mxu0
  %229 = vmatprep.subr.mxu0 0.0
  %230 = vmatpush1.msra.mxu0 0.0
  %231 = vmatprep.subr.mxu0 0.0
  %232 = vmatpush1.msra.mxu0 0.0
  %233 = vmatprep.subr.mxu0 0.0
  %234 = vmatpush1.msra.mxu0 0.0
  %235 = vmatprep.subr.mxu0 0.0
  %236 = vmatpush1.msra.mxu0 0.0
  %237 = vmatprep.subr.mxu0 0.0
  %238 = vmatpush1.msra.mxu0 0.0
  %239 = vmatprep.subr.mxu0 0.0
  %240 = vmatpush1.msra.mxu0 0.0
  %241 = vmatprep.subr.mxu0 0.0
  %242 = vmatpush1.msra.mxu0 0.0
  %243 = vmatprep.subr.mxu0 0.0
  %244 = vmatpush1.msra.mxu0 0.0
  %245 = vmatprep.subr.mxu0 0.0
  %246 = vmatpush1.msra.mxu0 0.0
  %247 = vmatprep.subr.mxu0 0.0
  %248 = vmatpush1.msra.mxu0 0.0
  %249 = vmatprep.subr.mxu0 0.0
  %250 = vmatpush1.msra.mxu0 0.0
  %251 = vmatprep.subr.mxu0 0.0
  %252 = vmatpush1.msra.mxu0 0.0
  %253 = vmatprep.subr.mxu0 0.0
  %v254 = vand.u32 %v35, 4294901760
  %v255 = vsub.f32 %v35, %v254
  %v256 = vand.u32 %v255, 4294901760
  %v257 = vsub.f32 %v255, %v256
  %v258 = vand.u32 %v257, 4294901760
  %259 = vmatpush1.msra.mxu0 %v258
  %260 = vmatprep.subr.mxu0 0.0
  %v261 = vand.u32 %v34, 4294901760
  %v262 = vsub.f32 %v34, %v261
  %v263 = vand.u32 %v262, 4294901760
  %v264 = vsub.f32 %v262, %v263
  %v265 = vand.u32 %v264, 4294901760
  %266 = vmatpush1.msra.mxu0 %v265
  %267 = vmatprep.subr.mxu0 0.0
  %v268 = vand.u32 %v33, 4294901760
  %v269 = vsub.f32 %v33, %v268
  %v270 = vand.u32 %v269, 4294901760
  %v271 = vsub.f32 %v269, %v270
  %v272 = vand.u32 %v271, 4294901760
  %273 = vmatpush1.msra.mxu0 %v272
  %274 = vmatprep.subr.mxu0 0.0
  %v275 = vand.u32 %v32, 4294901760
  %v276 = vsub.f32 %v32, %v275
  %v277 = vand.u32 %v276, 4294901760
  %v278 = vsub.f32 %v276, %v277
  %v279 = vand.u32 %v278, 4294901760
  %280 = vmatpush1.msra.mxu0 %v279
  %281 = vmatprep.subr.mxu0 0.0
  %282 = vmatpush2.msra.mxu0 0.0
  %283 = vmatprep.subr.mxu0 0.0
  %284 = vmatpush2.msra.mxu0 0.0
  %285 = vmatprep.subr.mxu0 0.0
  %286 = vmatpush2.msra.mxu0 0.0
  %287 = vmatprep.subr.mxu0 0.0
  %288 = vmatpush2.msra.mxu0 0.0
  %289 = vmatprep.subr.mxu0 0.0
  %290 = vmatpush2.msra.mxu0 0.0
  %291 = vmatprep.subr.mxu0 0.0
  %292 = vmatpush2.msra.mxu0 0.0
  %293 = vmatprep.subr.mxu0 0.0
  %294 = vmatpush2.msra.mxu0 0.0
  %295 = vmatprep.subr.mxu0 0.0
  %296 = vmatpush2.msra.mxu0 0.0
  %297 = vmatprep.subr.mxu0 0.0
  %298 = vmatpush2.msra.mxu0 0.0
  %299 = vmatprep.subr.mxu0 0.0
  %300 = vmatpush2.msra.mxu0 0.0
  %301 = vmatprep.subr.mxu0 0.0
  %302 = vmatpush2.msra.mxu0 0.0
  %303 = vmatprep.subr.mxu0 0.0
  %304 = vmatpush2.msra.mxu0 0.0
  %305 = vmatprep.subr.mxu0 0.0
  %306 = vmatpush2.msra.mxu0 0.0
  %307 = vmatprep.subr.mxu0 0.0
  %308 = vmatpush2.msra.mxu0 0.0
  %309 = vmatprep.subr.mxu0 0.0
  %310 = vmatpush2.msra.mxu0 0.0
  %311 = vmatprep.subr.mxu0 0.0
  %312 = vmatpush2.msra.mxu0 0.0
  %313 = vmatprep.mubr.f32.mxu0 0.0
  %v314 = vand.u32 %v57, 4294901760
  %315 = vmatmul.mubr.f32.gmra.mxu0 %v314
  %v316 = vpop.f32.mrf.mxu0
  %v317 = vadd.f32 %v156, %v316
  %v318 = vpop.f32.mrf.mxu0
  %319 = vmatprep.mubr.f32.mxu0 0.0
  %v320 = vand.u32 %v60, 4294901760
  %321 = vmatmul.mubr.f32.gmra.mxu0 %v320
  %v322 = vpop.f32.mrf.mxu0
  %v323 = vadd.f32 %v166, %v322
  %v324 = vpop.f32.mrf.mxu0
  %325 = vmatprep.mubr.f32.mxu0 0.0
  %v326 = vand.u32 %v63, 4294901760
  %327 = vmatmul.mubr.f32.gmra.mxu0 %v326
  %v328 = vpop.f32.mrf.mxu0
  %v329 = vadd.f32 %v176, %v328
  %v330 = vpop.f32.mrf.mxu0
  %331 = vmatprep.mubr.f32.mxu0 0.0
  %v332 = vand.u32 %v66, 4294901760
  %333 = vmatmul.mubr.f32.gmra.mxu0 %v332
  %v334 = vpop.f32.mrf.mxu0
  %v335 = vadd.f32 %v186, %v334
  %v336 = vpop.f32.mrf.mxu0
  %337 = vmatprep.mubr.f32.mxu0 0.0
  %v338 = vand.u32 %v69, 4294901760
  %339 = vmatmul.mubr.f32.gmra.mxu0 %v338
  %v340 = vpop.f32.mrf.mxu0
  %v341 = vadd.f32 %v196, %v340
  %v342 = vpop.f32.mrf.mxu0
  %343 = vmatprep.mubr.f32.mxu0 0.0
  %v344 = vand.u32 %v72, 4294901760
  %345 = vmatmul.mubr.f32.gmra.mxu0 %v344
  %v346 = vpop.f32.mrf.mxu0
  %v347 = vadd.f32 %v206, %v346
  %v348 = vpop.f32.mrf.mxu0
  %349 = vmatprep.mubr.f32.mxu0 0.0
  %v350 = vand.u32 %v75, 4294901760
  %351 = vmatmul.mubr.f32.gmra.mxu0 %v350
  %v352 = vpop.f32.mrf.mxu0
  %v353 = vadd.f32 %v216, %v352
  %v354 = vpop.f32.mrf.mxu0
  %355 = vmatprep.mubr.f32.mxu0 0.0
  %v356 = vand.u32 %v78, 4294901760
  %357 = vmatmul.mubr.f32.gmra.mxu0 %v356
  %v358 = vpop.f32.mrf.mxu0
  %v359 = vadd.f32 %v226, %v358
  %v360 = vpop.f32.mrf.mxu0
  %361 = vdwg.mxu0
  %362 = vmatprep.subr.mxu0 0.0
  %363 = vmatpush1.msra.mxu0 0.0
  %364 = vmatprep.subr.mxu0 0.0
  %365 = vmatpush1.msra.mxu0 0.0
  %366 = vmatprep.subr.mxu0 0.0
  %367 = vmatpush1.msra.mxu0 0.0
  %368 = vmatprep.subr.mxu0 0.0
  %369 = vmatpush1.msra.mxu0 0.0
  %370 = vmatprep.subr.mxu0 0.0
  %371 = vmatpush1.msra.mxu0 0.0
  %372 = vmatprep.subr.mxu0 0.0
  %373 = vmatpush1.msra.mxu0 0.0
  %374 = vmatprep.subr.mxu0 0.0
  %375 = vmatpush1.msra.mxu0 0.0
  %376 = vmatprep.subr.mxu0 0.0
  %377 = vmatpush1.msra.mxu0 0.0
  %378 = vmatprep.subr.mxu0 0.0
  %379 = vmatpush1.msra.mxu0 0.0
  %380 = vmatprep.subr.mxu0 0.0
  %381 = vmatpush1.msra.mxu0 0.0
  %382 = vmatprep.subr.mxu0 0.0
  %383 = vmatpush1.msra.mxu0 0.0
  %384 = vmatprep.subr.mxu0 0.0
  %385 = vmatpush1.msra.mxu0 0.0
  %386 = vmatprep.subr.mxu0 0.0
  %v387 = vand.u32 %v35, 4294901760
  %v388 = vsub.f32 %v35, %v387
  %389 = vmatpush1.msra.mxu0 %v388
  %390 = vmatprep.subr.mxu0 0.0
  %v391 = vand.u32 %v34, 4294901760
  %v392 = vsub.f32 %v34, %v391
  %393 = vmatpush1.msra.mxu0 %v392
  %394 = vmatprep.subr.mxu0 0.0
  %v395 = vand.u32 %v33, 4294901760
  %v396 = vsub.f32 %v33, %v395
  %397 = vmatpush1.msra.mxu0 %v396
  %398 = vmatprep.subr.mxu0 0.0
  %v399 = vand.u32 %v32, 4294901760
  %v400 = vsub.f32 %v32, %v399
  %401 = vmatpush1.msra.mxu0 %v400
  %402 = vmatprep.subr.mxu0 0.0
  %403 = vmatpush2.msra.mxu0 0.0
  %404 = vmatprep.subr.mxu0 0.0
  %405 = vmatpush2.msra.mxu0 0.0
  %406 = vmatprep.subr.mxu0 0.0
  %407 = vmatpush2.msra.mxu0 0.0
  %408 = vmatprep.subr.mxu0 0.0
  %409 = vmatpush2.msra.mxu0 0.0
  %410 = vmatprep.subr.mxu0 0.0
  %411 = vmatpush2.msra.mxu0 0.0
  %412 = vmatprep.subr.mxu0 0.0
  %413 = vmatpush2.msra.mxu0 0.0
  %414 = vmatprep.subr.mxu0 0.0
  %415 = vmatpush2.msra.mxu0 0.0
  %416 = vmatprep.subr.mxu0 0.0
  %417 = vmatpush2.msra.mxu0 0.0
  %418 = vmatprep.subr.mxu0 0.0
  %419 = vmatpush2.msra.mxu0 0.0
  %420 = vmatprep.subr.mxu0 0.0
  %421 = vmatpush2.msra.mxu0 0.0
  %422 = vmatprep.subr.mxu0 0.0
  %423 = vmatpush2.msra.mxu0 0.0
  %424 = vmatprep.subr.mxu0 0.0
  %425 = vmatpush2.msra.mxu0 0.0
  %426 = vmatprep.subr.mxu0 0.0
  %427 = vmatpush2.msra.mxu0 0.0
  %428 = vmatprep.subr.mxu0 0.0
  %429 = vmatpush2.msra.mxu0 0.0
  %430 = vmatprep.subr.mxu0 0.0
  %431 = vmatpush2.msra.mxu0 0.0
  %432 = vmatprep.subr.mxu0 0.0
  %433 = vmatpush2.msra.mxu0 0.0
  %434 = vmatprep.mubr.f32.mxu0 0.0
  %v435 = vand.u32 %v57, 4294901760
  %v436 = vsub.f32 %v57, %v435
  %437 = vmatmul.mubr.f32.gmra.mxu0 %v436
  %v438 = vpop.f32.mrf.mxu0
  %v439 = vadd.f32 %v317, %v438
  %v440 = vpop.f32.mrf.mxu0
  %441 = vmatprep.mubr.f32.mxu0 0.0
  %v442 = vand.u32 %v60, 4294901760
  %v443 = vsub.f32 %v60, %v442
  %444 = vmatmul.mubr.f32.gmra.mxu0 %v443
  %v445 = vpop.f32.mrf.mxu0
  %v446 = vadd.f32 %v323, %v445
  %v447 = vpop.f32.mrf.mxu0
  %448 = vmatprep.mubr.f32.mxu0 0.0
  %v449 = vand.u32 %v63, 4294901760
  %v450 = vsub.f32 %v63, %v449
  %451 = vmatmul.mubr.f32.gmra.mxu0 %v450
  %v452 = vpop.f32.mrf.mxu0
  %v453 = vadd.f32 %v329, %v452
  %v454 = vpop.f32.mrf.mxu0
  %455 = vmatprep.mubr.f32.mxu0 0.0
  %v456 = vand.u32 %v66, 4294901760
  %v457 = vsub.f32 %v66, %v456
  %458 = vmatmul.mubr.f32.gmra.mxu0 %v457
  %v459 = vpop.f32.mrf.mxu0
  %v460 = vadd.f32 %v335, %v459
  %v461 = vpop.f32.mrf.mxu0
  %462 = vmatprep.mubr.f32.mxu0 0.0
  %v463 = vand.u32 %v69, 4294901760
  %v464 = vsub.f32 %v69, %v463
  %465 = vmatmul.mubr.f32.gmra.mxu0 %v464
  %v466 = vpop.f32.mrf.mxu0
  %v467 = vadd.f32 %v341, %v466
  %v468 = vpop.f32.mrf.mxu0
  %469 = vmatprep.mubr.f32.mxu0 0.0
  %v470 = vand.u32 %v72, 4294901760
  %v471 = vsub.f32 %v72, %v470
  %472 = vmatmul.mubr.f32.gmra.mxu0 %v471
  %v473 = vpop.f32.mrf.mxu0
  %v474 = vadd.f32 %v347, %v473
  %v475 = vpop.f32.mrf.mxu0
  %476 = vmatprep.mubr.f32.mxu0 0.0
  %v477 = vand.u32 %v75, 4294901760
  %v478 = vsub.f32 %v75, %v477
  %479 = vmatmul.mubr.f32.gmra.mxu0 %v478
  %v480 = vpop.f32.mrf.mxu0
  %v481 = vadd.f32 %v353, %v480
  %v482 = vpop.f32.mrf.mxu0
  %483 = vmatprep.mubr.f32.mxu0 0.0
  %v484 = vand.u32 %v78, 4294901760
  %v485 = vsub.f32 %v78, %v484
  %486 = vmatmul.mubr.f32.gmra.mxu0 %v485
  %v487 = vpop.f32.mrf.mxu0
  %v488 = vadd.f32 %v359, %v487
  %v489 = vpop.f32.mrf.mxu0
  %490 = vdwg.mxu0
  %491 = vmatprep.subr.mxu0 0.0
  %492 = vmatpush1.msra.mxu0 0.0
  %493 = vmatprep.subr.mxu0 0.0
  %494 = vmatpush1.msra.mxu0 0.0
  %495 = vmatprep.subr.mxu0 0.0
  %496 = vmatpush1.msra.mxu0 0.0
  %497 = vmatprep.subr.mxu0 0.0
  %498 = vmatpush1.msra.mxu0 0.0
  %499 = vmatprep.subr.mxu0 0.0
  %500 = vmatpush1.msra.mxu0 0.0
  %501 = vmatprep.subr.mxu0 0.0
  %502 = vmatpush1.msra.mxu0 0.0
  %503 = vmatprep.subr.mxu0 0.0
  %504 = vmatpush1.msra.mxu0 0.0
  %505 = vmatprep.subr.mxu0 0.0
  %506 = vmatpush1.msra.mxu0 0.0
  %507 = vmatprep.subr.mxu0 0.0
  %508 = vmatpush1.msra.mxu0 0.0
  %509 = vmatprep.subr.mxu0 0.0
  %510 = vmatpush1.msra.mxu0 0.0
  %511 = vmatprep.subr.mxu0 0.0
  %512 = vmatpush1.msra.mxu0 0.0
  %513 = vmatprep.subr.mxu0 0.0
  %514 = vmatpush1.msra.mxu0 0.0
  %515 = vmatprep.subr.mxu0 0.0
  %v516 = vand.u32 %v35, 4294901760
  %517 = vmatpush1.msra.mxu0 %v516
  %518 = vmatprep.subr.mxu0 0.0
  %v519 = vand.u32 %v34, 4294901760
  %520 = vmatpush1.msra.mxu0 %v519
  %521 = vmatprep.subr.mxu0 0.0
  %v522 = vand.u32 %v33, 4294901760
  %523 = vmatpush1.msra.mxu0 %v522
  %524 = vmatprep.subr.mxu0 0.0
  %v525 = vand.u32 %v32, 4294901760
  %526 = vmatpush1.msra.mxu0 %v525
  %527 = vmatprep.subr.mxu0 0.0
  %528 = vmatpush2.msra.mxu0 0.0
  %529 = vmatprep.subr.mxu0 0.0
  %530 = vmatpush2.msra.mxu0 0.0
  %531 = vmatprep.subr.mxu0 0.0
  %532 = vmatpush2.msra.mxu0 0.0
  %533 = vmatprep.subr.mxu0 0.0
  %534 = vmatpush2.msra.mxu0 0.0
  %535 = vmatprep.subr.mxu0 0.0
  %536 = vmatpush2.msra.mxu0 0.0
  %537 = vmatprep.subr.mxu0 0.0
  %538 = vmatpush2.msra.mxu0 0.0
  %539 = vmatprep.subr.mxu0 0.0
  %540 = vmatpush2.msra.mxu0 0.0
  %541 = vmatprep.subr.mxu0 0.0
  %542 = vmatpush2.msra.mxu0 0.0
  %543 = vmatprep.subr.mxu0 0.0
  %544 = vmatpush2.msra.mxu0 0.0
  %545 = vmatprep.subr.mxu0 0.0
  %546 = vmatpush2.msra.mxu0 0.0
  %547 = vmatprep.subr.mxu0 0.0
  %548 = vmatpush2.msra.mxu0 0.0
  %549 = vmatprep.subr.mxu0 0.0
  %550 = vmatpush2.msra.mxu0 0.0
  %551 = vmatprep.subr.mxu0 0.0
  %552 = vmatpush2.msra.mxu0 0.0
  %553 = vmatprep.subr.mxu0 0.0
  %554 = vmatpush2.msra.mxu0 0.0
  %555 = vmatprep.subr.mxu0 0.0
  %556 = vmatpush2.msra.mxu0 0.0
  %557 = vmatprep.subr.mxu0 0.0
  %558 = vmatpush2.msra.mxu0 0.0
  %559 = vmatprep.mubr.f32.mxu0 0.0
  %v560 = vand.u32 %v57, 4294901760
  %v561 = vsub.f32 %v57, %v560
  %v562 = vand.u32 %v561, 4294901760
  %563 = vmatmul.mubr.f32.gmra.mxu0 %v562
  %v564 = vpop.f32.mrf.mxu0
  %v565 = vadd.f32 %v439, %v564
  %v566 = vpop.f32.mrf.mxu0
  %567 = vmatprep.mubr.f32.mxu0 0.0
  %v568 = vand.u32 %v60, 4294901760
  %v569 = vsub.f32 %v60, %v568
  %v570 = vand.u32 %v569, 4294901760
  %571 = vmatmul.mubr.f32.gmra.mxu0 %v570
  %v572 = vpop.f32.mrf.mxu0
  %v573 = vadd.f32 %v446, %v572
  %v574 = vpop.f32.mrf.mxu0
  %575 = vmatprep.mubr.f32.mxu0 0.0
  %v576 = vand.u32 %v63, 4294901760
  %v577 = vsub.f32 %v63, %v576
  %v578 = vand.u32 %v577, 4294901760
  %579 = vmatmul.mubr.f32.gmra.mxu0 %v578
  %v580 = vpop.f32.mrf.mxu0
  %v581 = vadd.f32 %v453, %v580
  %v582 = vpop.f32.mrf.mxu0
  %583 = vmatprep.mubr.f32.mxu0 0.0
  %v584 = vand.u32 %v66, 4294901760
  %v585 = vsub.f32 %v66, %v584
  %v586 = vand.u32 %v585, 4294901760
  %587 = vmatmul.mubr.f32.gmra.mxu0 %v586
  %v588 = vpop.f32.mrf.mxu0
  %v589 = vadd.f32 %v460, %v588
  %v590 = vpop.f32.mrf.mxu0
  %591 = vmatprep.mubr.f32.mxu0 0.0
  %v592 = vand.u32 %v69, 4294901760
  %v593 = vsub.f32 %v69, %v592
  %v594 = vand.u32 %v593, 4294901760
  %595 = vmatmul.mubr.f32.gmra.mxu0 %v594
  %v596 = vpop.f32.mrf.mxu0
  %v597 = vadd.f32 %v467, %v596
  %v598 = vpop.f32.mrf.mxu0
  %599 = vmatprep.mubr.f32.mxu0 0.0
  %v600 = vand.u32 %v72, 4294901760
  %v601 = vsub.f32 %v72, %v600
  %v602 = vand.u32 %v601, 4294901760
  %603 = vmatmul.mubr.f32.gmra.mxu0 %v602
  %v604 = vpop.f32.mrf.mxu0
  %v605 = vadd.f32 %v474, %v604
  %v606 = vpop.f32.mrf.mxu0
  %607 = vmatprep.mubr.f32.mxu0 0.0
  %v608 = vand.u32 %v75, 4294901760
  %v609 = vsub.f32 %v75, %v608
  %v610 = vand.u32 %v609, 4294901760
  %611 = vmatmul.mubr.f32.gmra.mxu0 %v610
  %v612 = vpop.f32.mrf.mxu0
  %v613 = vadd.f32 %v481, %v612
  %v614 = vpop.f32.mrf.mxu0
  %615 = vmatprep.mubr.f32.mxu0 0.0
  %v616 = vand.u32 %v78, 4294901760
  %v617 = vsub.f32 %v78, %v616
  %v618 = vand.u32 %v617, 4294901760
  %619 = vmatmul.mubr.f32.gmra.mxu0 %v618
  %v620 = vpop.f32.mrf.mxu0
  %v621 = vadd.f32 %v488, %v620
  %v622 = vpop.f32.mrf.mxu0
  %623 = vdwg.mxu0
  %624 = vmatprep.subr.mxu0 0.0
  %625 = vmatpush1.msra.mxu0 0.0
  %626 = vmatprep.subr.mxu0 0.0
  %627 = vmatpush1.msra.mxu0 0.0
  %628 = vmatprep.subr.mxu0 0.0
  %629 = vmatpush1.msra.mxu0 0.0
  %630 = vmatprep.subr.mxu0 0.0
  %631 = vmatpush1.msra.mxu0 0.0
  %632 = vmatprep.subr.mxu0 0.0
  %633 = vmatpush1.msra.mxu0 0.0
  %634 = vmatprep.subr.mxu0 0.0
  %635 = vmatpush1.msra.mxu0 0.0
  %636 = vmatprep.subr.mxu0 0.0
  %637 = vmatpush1.msra.mxu0 0.0
  %638 = vmatprep.subr.mxu0 0.0
  %639 = vmatpush1.msra.mxu0 0.0
  %640 = vmatprep.subr.mxu0 0.0
  %641 = vmatpush1.msra.mxu0 0.0
  %642 = vmatprep.subr.mxu0 0.0
  %643 = vmatpush1.msra.mxu0 0.0
  %644 = vmatprep.subr.mxu0 0.0
  %645 = vmatpush1.msra.mxu0 0.0
  %646 = vmatprep.subr.mxu0 0.0
  %647 = vmatpush1.msra.mxu0 0.0
  %648 = vmatprep.subr.mxu0 0.0
  %v649 = vand.u32 %v35, 4294901760
  %v650 = vsub.f32 %v35, %v649
  %v651 = vand.u32 %v650, 4294901760
  %652 = vmatpush1.msra.mxu0 %v651
  %653 = vmatprep.subr.mxu0 0.0
  %v654 = vand.u32 %v34, 4294901760
  %v655 = vsub.f32 %v34, %v654
  %v656 = vand.u32 %v655, 4294901760
  %657 = vmatpush1.msra.mxu0 %v656
  %658 = vmatprep.subr.mxu0 0.0
  %v659 = vand.u32 %v33, 4294901760
  %v660 = vsub.f32 %v33, %v659
  %v661 = vand.u32 %v660, 4294901760
  %662 = vmatpush1.msra.mxu0 %v661
  %663 = vmatprep.subr.mxu0 0.0
  %v664 = vand.u32 %v32, 4294901760
  %v665 = vsub.f32 %v32, %v664
  %v666 = vand.u32 %v665, 4294901760
  %667 = vmatpush1.msra.mxu0 %v666
  %668 = vmatprep.subr.mxu0 0.0
  %669 = vmatpush2.msra.mxu0 0.0
  %670 = vmatprep.subr.mxu0 0.0
  %671 = vmatpush2.msra.mxu0 0.0
  %672 = vmatprep.subr.mxu0 0.0
  %673 = vmatpush2.msra.mxu0 0.0
  %674 = vmatprep.subr.mxu0 0.0
  %675 = vmatpush2.msra.mxu0 0.0
  %676 = vmatprep.subr.mxu0 0.0
  %677 = vmatpush2.msra.mxu0 0.0
  %678 = vmatprep.subr.mxu0 0.0
  %679 = vmatpush2.msra.mxu0 0.0
  %680 = vmatprep.subr.mxu0 0.0
  %681 = vmatpush2.msra.mxu0 0.0
  %682 = vmatprep.subr.mxu0 0.0
  %683 = vmatpush2.msra.mxu0 0.0
  %684 = vmatprep.subr.mxu0 0.0
  %685 = vmatpush2.msra.mxu0 0.0
  %686 = vmatprep.subr.mxu0 0.0
  %687 = vmatpush2.msra.mxu0 0.0
  %688 = vmatprep.subr.mxu0 0.0
  %689 = vmatpush2.msra.mxu0 0.0
  %690 = vmatprep.subr.mxu0 0.0
  %691 = vmatpush2.msra.mxu0 0.0
  %692 = vmatprep.subr.mxu0 0.0
  %693 = vmatpush2.msra.mxu0 0.0
  %694 = vmatprep.subr.mxu0 0.0
  %695 = vmatpush2.msra.mxu0 0.0
  %696 = vmatprep.subr.mxu0 0.0
  %697 = vmatpush2.msra.mxu0 0.0
  %698 = vmatprep.subr.mxu0 0.0
  %699 = vmatpush2.msra.mxu0 0.0
  %700 = vmatprep.mubr.f32.mxu0 0.0
  %v701 = vand.u32 %v57, 4294901760
  %702 = vmatmul.mubr.f32.gmra.mxu0 %v701
  %v703 = vpop.f32.mrf.mxu0
  %v704 = vadd.f32 %v565, %v703
  %v705 = vpop.f32.mrf.mxu0
  %706 = vmatprep.mubr.f32.mxu0 0.0
  %v707 = vand.u32 %v60, 4294901760
  %708 = vmatmul.mubr.f32.gmra.mxu0 %v707
  %v709 = vpop.f32.mrf.mxu0
  %v710 = vadd.f32 %v573, %v709
  %v711 = vpop.f32.mrf.mxu0
  %712 = vmatprep.mubr.f32.mxu0 0.0
  %v713 = vand.u32 %v63, 4294901760
  %714 = vmatmul.mubr.f32.gmra.mxu0 %v713
  %v715 = vpop.f32.mrf.mxu0
  %v716 = vadd.f32 %v581, %v715
  %v717 = vpop.f32.mrf.mxu0
  %718 = vmatprep.mubr.f32.mxu0 0.0
  %v719 = vand.u32 %v66, 4294901760
  %720 = vmatmul.mubr.f32.gmra.mxu0 %v719
  %v721 = vpop.f32.mrf.mxu0
  %v722 = vadd.f32 %v589, %v721
  %v723 = vpop.f32.mrf.mxu0
  %724 = vmatprep.mubr.f32.mxu0 0.0
  %v725 = vand.u32 %v69, 4294901760
  %726 = vmatmul.mubr.f32.gmra.mxu0 %v725
  %v727 = vpop.f32.mrf.mxu0
  %v728 = vadd.f32 %v597, %v727
  %v729 = vpop.f32.mrf.mxu0
  %730 = vmatprep.mubr.f32.mxu0 0.0
  %v731 = vand.u32 %v72, 4294901760
  %732 = vmatmul.mubr.f32.gmra.mxu0 %v731
  %v733 = vpop.f32.mrf.mxu0
  %v734 = vadd.f32 %v605, %v733
  %v735 = vpop.f32.mrf.mxu0
  %736 = vmatprep.mubr.f32.mxu0 0.0
  %v737 = vand.u32 %v75, 4294901760
  %738 = vmatmul.mubr.f32.gmra.mxu0 %v737
  %v739 = vpop.f32.mrf.mxu0
  %v740 = vadd.f32 %v613, %v739
  %v741 = vpop.f32.mrf.mxu0
  %742 = vmatprep.mubr.f32.mxu0 0.0
  %v743 = vand.u32 %v78, 4294901760
  %744 = vmatmul.mubr.f32.gmra.mxu0 %v743
  %v745 = vpop.f32.mrf.mxu0
  %v746 = vadd.f32 %v621, %v745
  %v747 = vpop.f32.mrf.mxu0
  %748 = vdwg.mxu0
  %749 = vmatprep.subr.mxu0 0.0
  %750 = vmatpush1.msra.mxu0 0.0
  %751 = vmatprep.subr.mxu0 0.0
  %752 = vmatpush1.msra.mxu0 0.0
  %753 = vmatprep.subr.mxu0 0.0
  %754 = vmatpush1.msra.mxu0 0.0
  %755 = vmatprep.subr.mxu0 0.0
  %756 = vmatpush1.msra.mxu0 0.0
  %757 = vmatprep.subr.mxu0 0.0
  %758 = vmatpush1.msra.mxu0 0.0
  %759 = vmatprep.subr.mxu0 0.0
  %760 = vmatpush1.msra.mxu0 0.0
  %761 = vmatprep.subr.mxu0 0.0
  %762 = vmatpush1.msra.mxu0 0.0
  %763 = vmatprep.subr.mxu0 0.0
  %764 = vmatpush1.msra.mxu0 0.0
  %765 = vmatprep.subr.mxu0 0.0
  %766 = vmatpush1.msra.mxu0 0.0
  %767 = vmatprep.subr.mxu0 0.0
  %768 = vmatpush1.msra.mxu0 0.0
  %769 = vmatprep.subr.mxu0 0.0
  %770 = vmatpush1.msra.mxu0 0.0
  %771 = vmatprep.subr.mxu0 0.0
  %772 = vmatpush1.msra.mxu0 0.0
  %773 = vmatprep.subr.mxu0 0.0
  %v774 = vand.u32 %v35, 4294901760
  %775 = vmatpush1.msra.mxu0 %v774
  %776 = vmatprep.subr.mxu0 0.0
  %v777 = vand.u32 %v34, 4294901760
  %778 = vmatpush1.msra.mxu0 %v777
  %779 = vmatprep.subr.mxu0 0.0
  %v780 = vand.u32 %v33, 4294901760
  %781 = vmatpush1.msra.mxu0 %v780
  %782 = vmatprep.subr.mxu0 0.0
  %v783 = vand.u32 %v32, 4294901760
  %784 = vmatpush1.msra.mxu0 %v783
  %785 = vmatprep.subr.mxu0 0.0
  %786 = vmatpush2.msra.mxu0 0.0
  %787 = vmatprep.subr.mxu0 0.0
  %788 = vmatpush2.msra.mxu0 0.0
  %789 = vmatprep.subr.mxu0 0.0
  %790 = vmatpush2.msra.mxu0 0.0
  %791 = vmatprep.subr.mxu0 0.0
  %792 = vmatpush2.msra.mxu0 0.0
  %793 = vmatprep.subr.mxu0 0.0
  %794 = vmatpush2.msra.mxu0 0.0
  %795 = vmatprep.subr.mxu0 0.0
  %796 = vmatpush2.msra.mxu0 0.0
  %797 = vmatprep.subr.mxu0 0.0
  %798 = vmatpush2.msra.mxu0 0.0
  %799 = vmatprep.subr.mxu0 0.0
  %800 = vmatpush2.msra.mxu0 0.0
  %801 = vmatprep.subr.mxu0 0.0
  %802 = vmatpush2.msra.mxu0 0.0
  %803 = vmatprep.subr.mxu0 0.0
  %804 = vmatpush2.msra.mxu0 0.0
  %805 = vmatprep.subr.mxu0 0.0
  %806 = vmatpush2.msra.mxu0 0.0
  %807 = vmatprep.subr.mxu0 0.0
  %808 = vmatpush2.msra.mxu0 0.0
  %809 = vmatprep.subr.mxu0 0.0
  %810 = vmatpush2.msra.mxu0 0.0
  %811 = vmatprep.subr.mxu0 0.0
  %812 = vmatpush2.msra.mxu0 0.0
  %813 = vmatprep.subr.mxu0 0.0
  %814 = vmatpush2.msra.mxu0 0.0
  %815 = vmatprep.subr.mxu0 0.0
  %816 = vmatpush2.msra.mxu0 0.0
  %817 = vmatprep.mubr.f32.mxu0 0.0
  %v818 = vand.u32 %v57, 4294901760
  %819 = vmatmul.mubr.f32.gmra.mxu0 %v818
  %v820 = vpop.f32.mrf.mxu0
  %v821 = vadd.f32 %v704, %v820
  %v822 = vpop.f32.mrf.mxu0
  %823 = vmatprep.mubr.f32.mxu0 0.0
  %v824 = vand.u32 %v60, 4294901760
  %825 = vmatmul.mubr.f32.gmra.mxu0 %v824
  %v826 = vpop.f32.mrf.mxu0
  %v827 = vadd.f32 %v710, %v826
  %v828 = vpop.f32.mrf.mxu0
  %829 = vmatprep.mubr.f32.mxu0 0.0
  %v830 = vand.u32 %v63, 4294901760
  %831 = vmatmul.mubr.f32.gmra.mxu0 %v830
  %v832 = vpop.f32.mrf.mxu0
  %v833 = vadd.f32 %v716, %v832
  %v834 = vpop.f32.mrf.mxu0
  %835 = vmatprep.mubr.f32.mxu0 0.0
  %v836 = vand.u32 %v66, 4294901760
  %837 = vmatmul.mubr.f32.gmra.mxu0 %v836
  %v838 = vpop.f32.mrf.mxu0
  %v839 = vadd.f32 %v722, %v838
  %v840 = vpop.f32.mrf.mxu0
  %841 = vmatprep.mubr.f32.mxu0 0.0
  %v842 = vand.u32 %v69, 4294901760
  %843 = vmatmul.mubr.f32.gmra.mxu0 %v842
  %v844 = vpop.f32.mrf.mxu0
  %v845 = vadd.f32 %v728, %v844
  %v846 = vpop.f32.mrf.mxu0
  %847 = vmatprep.mubr.f32.mxu0 0.0
  %v848 = vand.u32 %v72, 4294901760
  %849 = vmatmul.mubr.f32.gmra.mxu0 %v848
  %v850 = vpop.f32.mrf.mxu0
  %v851 = vadd.f32 %v734, %v850
  %v852 = vpop.f32.mrf.mxu0
  %853 = vmatprep.mubr.f32.mxu0 0.0
  %v854 = vand.u32 %v75, 4294901760
  %855 = vmatmul.mubr.f32.gmra.mxu0 %v854
  %v856 = vpop.f32.mrf.mxu0
  %v857 = vadd.f32 %v740, %v856
  %v858 = vpop.f32.mrf.mxu0
  %859 = vmatprep.mubr.f32.mxu0 0.0
  %v860 = vand.u32 %v78, 4294901760
  %861 = vmatmul.mubr.f32.gmra.mxu0 %v860
  %v862 = vpop.f32.mrf.mxu0
  %v863 = vadd.f32 %v746, %v862
  %v864 = vpop.f32.mrf.mxu0
  %865 = vdwg.mxu0
  %866 = vst [vmem:[#allocation3] sm:$0xff] %v821
  %867 = vst [vmem:[#allocation3 + $0x8] sm:$0xff] %v827
  %868 = vst [vmem:[#allocation3 + $0x10] sm:$0xff] %v833
  %869 = vst [vmem:[#allocation3 + $0x18] sm:$0xff] %v839
  %870 = vst [vmem:[#allocation3 + $0x20] sm:$0xff] %v845
  %871 = vst [vmem:[#allocation3 + $0x28] sm:$0xff] %v851
  %872 = vst [vmem:[#allocation3 + $0x30] sm:$0xff] %v857
  %873 = vst [vmem:[#allocation3 + $0x38] sm:$0xff] %v863
  %v874 = vld [vmem:[#allocation3] sm:$0xff]
  %v876 = vsel %vm55, 0.0, 0
  %878 = vmatprep.subr.mxu0 0.0
  %879 = vmatpush1.msra.mxu0 0.0
  %880 = vmatprep.subr.mxu0 0.0
  %881 = vmatpush1.msra.mxu0 0.0
  %882 = vmatprep.subr.mxu0 0.0
  %883 = vmatpush1.msra.mxu0 0.0
  %884 = vmatprep.subr.mxu0 0.0
  %885 = vmatpush1.msra.mxu0 0.0
  %886 = vmatprep.subr.mxu0 0.0
  %887 = vmatpush1.msra.mxu0 0.0
  %888 = vmatprep.subr.mxu0 0.0
  %889 = vmatpush1.msra.mxu0 0.0
  %890 = vmatprep.subr.mxu0 0.0
  %891 = vmatpush1.msra.mxu0 0.0
  %892 = vmatprep.subr.mxu0 0.0
  %893 = vmatpush1.msra.mxu0 0.0
  %894 = vmatprep.subr.mxu0 0.0
  %895 = vmatpush1.msra.mxu0 0.0
  %896 = vmatprep.subr.mxu0 0.0
  %897 = vmatpush1.msra.mxu0 0.0
  %898 = vmatprep.subr.mxu0 0.0
  %899 = vmatpush1.msra.mxu0 0.0
  %900 = vmatprep.subr.mxu0 0.0
  %901 = vmatpush1.msra.mxu0 0.0
  %902 = vmatprep.subr.mxu0 0.0
  %v903 = vand.u32 %v39, 4294901760
  %904 = vmatpush1.msra.mxu0 %v903
  %905 = vmatprep.subr.mxu0 0.0
  %v906 = vand.u32 %v38, 4294901760
  %907 = vmatpush1.msra.mxu0 %v906
  %908 = vmatprep.subr.mxu0 0.0
  %v909 = vand.u32 %v37, 4294901760
  %910 = vmatpush1.msra.mxu0 %v909
  %911 = vmatprep.subr.mxu0 0.0
  %v912 = vand.u32 %v36, 4294901760
  %913 = vmatpush1.msra.mxu0 %v912
  %914 = vmatprep.subr.mxu0 0.0
  %915 = vmatpush2.msra.mxu0 0.0
  %916 = vmatprep.subr.mxu0 0.0
  %917 = vmatpush2.msra.mxu0 0.0
  %918 = vmatprep.subr.mxu0 0.0
  %919 = vmatpush2.msra.mxu0 0.0
  %920 = vmatprep.subr.mxu0 0.0
  %921 = vmatpush2.msra.mxu0 0.0
  %922 = vmatprep.subr.mxu0 0.0
  %923 = vmatpush2.msra.mxu0 0.0
  %924 = vmatprep.subr.mxu0 0.0
  %925 = vmatpush2.msra.mxu0 0.0
  %926 = vmatprep.subr.mxu0 0.0
  %927 = vmatpush2.msra.mxu0 0.0
  %928 = vmatprep.subr.mxu0 0.0
  %929 = vmatpush2.msra.mxu0 0.0
  %930 = vmatprep.subr.mxu0 0.0
  %931 = vmatpush2.msra.mxu0 0.0
  %932 = vmatprep.subr.mxu0 0.0
  %933 = vmatpush2.msra.mxu0 0.0
  %934 = vmatprep.subr.mxu0 0.0
  %935 = vmatpush2.msra.mxu0 0.0
  %936 = vmatprep.subr.mxu0 0.0
  %937 = vmatpush2.msra.mxu0 0.0
  %938 = vmatprep.subr.mxu0 0.0
  %939 = vmatpush2.msra.mxu0 0.0
  %940 = vmatprep.subr.mxu0 0.0
  %941 = vmatpush2.msra.mxu0 0.0
  %942 = vmatprep.subr.mxu0 0.0
  %943 = vmatpush2.msra.mxu0 0.0
  %944 = vmatprep.subr.mxu0 0.0
  %945 = vmatpush2.msra.mxu0 0.0
  %946 = vmatprep.mubr.f32.mxu0 0.0
  %v947 = vand.u32 %v876, 4294901760
  %v948 = vsub.f32 %v876, %v947
  %v949 = vand.u32 %v948, 4294901760
  %v950 = vsub.f32 %v948, %v949
  %v951 = vand.u32 %v950, 4294901760
  %952 = vmatmul.mubr.f32.gmra.mxu0 %v951
  %v953 = vpop.f32.mrf.mxu0
  %v954 = vadd.f32 0.0, %v953
  %v955 = vpop.f32.mrf.mxu0
  %956 = vdwg.mxu0
  %957 = vmatprep.subr.mxu0 0.0
  %958 = vmatpush1.msra.mxu0 0.0
  %959 = vmatprep.subr.mxu0 0.0
  %960 = vmatpush1.msra.mxu0 0.0
  %961 = vmatprep.subr.mxu0 0.0
  %962 = vmatpush1.msra.mxu0 0.0
  %963 = vmatprep.subr.mxu0 0.0
  %964 = vmatpush1.msra.mxu0 0.0
  %965 = vmatprep.subr.mxu0 0.0
  %966 = vmatpush1.msra.mxu0 0.0
  %967 = vmatprep.subr.mxu0 0.0
  %968 = vmatpush1.msra.mxu0 0.0
  %969 = vmatprep.subr.mxu0 0.0
  %970 = vmatpush1.msra.mxu0 0.0
  %971 = vmatprep.subr.mxu0 0.0
  %972 = vmatpush1.msra.mxu0 0.0
  %973 = vmatprep.subr.mxu0 0.0
  %974 = vmatpush1.msra.mxu0 0.0
  %975 = vmatprep.subr.mxu0 0.0
  %976 = vmatpush1.msra.mxu0 0.0
  %977 = vmatprep.subr.mxu0 0.0
  %978 = vmatpush1.msra.mxu0 0.0
  %979 = vmatprep.subr.mxu0 0.0
  %980 = vmatpush1.msra.mxu0 0.0
  %981 = vmatprep.subr.mxu0 0.0
  %v982 = vand.u32 %v39, 4294901760
  %v983 = vsub.f32 %v39, %v982
  %v984 = vand.u32 %v983, 4294901760
  %v985 = vsub.f32 %v983, %v984
  %v986 = vand.u32 %v985, 4294901760
  %987 = vmatpush1.msra.mxu0 %v986
  %988 = vmatprep.subr.mxu0 0.0
  %v989 = vand.u32 %v38, 4294901760
  %v990 = vsub.f32 %v38, %v989
  %v991 = vand.u32 %v990, 4294901760
  %v992 = vsub.f32 %v990, %v991
  %v993 = vand.u32 %v992, 4294901760
  %994 = vmatpush1.msra.mxu0 %v993
  %995 = vmatprep.subr.mxu0 0.0
  %v996 = vand.u32 %v37, 4294901760
  %v997 = vsub.f32 %v37, %v996
  %v998 = vand.u32 %v997, 4294901760
  %v999 = vsub.f32 %v997, %v998
  %v1000 = vand.u32 %v999, 4294901760
  %1001 = vmatpush1.msra.mxu0 %v1000
  %1002 = vmatprep.subr.mxu0 0.0
  %v1003 = vand.u32 %v36, 4294901760
  %v1004 = vsub.f32 %v36, %v1003
  %v1005 = vand.u32 %v1004, 4294901760
  %v1006 = vsub.f32 %v1004, %v1005
  %v1007 = vand.u32 %v1006, 4294901760
  %1008 = vmatpush1.msra.mxu0 %v1007
  %1009 = vmatprep.subr.mxu0 0.0
  %1010 = vmatpush2.msra.mxu0 0.0
  %1011 = vmatprep.subr.mxu0 0.0
  %1012 = vmatpush2.msra.mxu0 0.0
  %1013 = vmatprep.subr.mxu0 0.0
  %1014 = vmatpush2.msra.mxu0 0.0
  %1015 = vmatprep.subr.mxu0 0.0
  %1016 = vmatpush2.msra.mxu0 0.0
  %1017 = vmatprep.subr.mxu0 0.0
  %1018 = vmatpush2.msra.mxu0 0.0
  %1019 = vmatprep.subr.mxu0 0.0
  %1020 = vmatpush2.msra.mxu0 0.0
  %1021 = vmatprep.subr.mxu0 0.0
  %1022 = vmatpush2.msra.mxu0 0.0
  %1023 = vmatprep.subr.mxu0 0.0
  %1024 = vmatpush2.msra.mxu0 0.0
  %1025 = vmatprep.subr.mxu0 0.0
  %1026 = vmatpush2.msra.mxu0 0.0
  %1027 = vmatprep.subr.mxu0 0.0
  %1028 = vmatpush2.msra.mxu0 0.0
  %1029 = vmatprep.subr.mxu0 0.0
  %1030 = vmatpush2.msra.mxu0 0.0
  %1031 = vmatprep.subr.mxu0 0.0
  %1032 = vmatpush2.msra.mxu0 0.0
  %1033 = vmatprep.subr.mxu0 0.0
  %1034 = vmatpush2.msra.mxu0 0.0
  %1035 = vmatprep.subr.mxu0 0.0
  %1036 = vmatpush2.msra.mxu0 0.0
  %1037 = vmatprep.subr.mxu0 0.0
  %1038 = vmatpush2.msra.mxu0 0.0
  %1039 = vmatprep.subr.mxu0 0.0
  %1040 = vmatpush2.msra.mxu0 0.0
  %1041 = vmatprep.mubr.f32.mxu0 0.0
  %v1042 = vand.u32 %v876, 4294901760
  %1043 = vmatmul.mubr.f32.gmra.mxu0 %v1042
  %v1044 = vpop.f32.mrf.mxu0
  %v1045 = vadd.f32 %v954, %v1044
  %v1046 = vpop.f32.mrf.mxu0
  %1047 = vdwg.mxu0
  %1048 = vmatprep.subr.mxu0 0.0
  %1049 = vmatpush1.msra.mxu0 0.0
  %1050 = vmatprep.subr.mxu0 0.0
  %1051 = vmatpush1.msra.mxu0 0.0
  %1052 = vmatprep.subr.mxu0 0.0
  %1053 = vmatpush1.msra.mxu0 0.0
  %1054 = vmatprep.subr.mxu0 0.0
  %1055 = vmatpush1.msra.mxu0 0.0
  %1056 = vmatprep.subr.mxu0 0.0
  %1057 = vmatpush1.msra.mxu0 0.0
  %1058 = vmatprep.subr.mxu0 0.0
  %1059 = vmatpush1.msra.mxu0 0.0
  %1060 = vmatprep.subr.mxu0 0.0
  %1061 = vmatpush1.msra.mxu0 0.0
  %1062 = vmatprep.subr.mxu0 0.0
  %1063 = vmatpush1.msra.mxu0 0.0
  %1064 = vmatprep.subr.mxu0 0.0
  %1065 = vmatpush1.msra.mxu0 0.0
  %1066 = vmatprep.subr.mxu0 0.0
  %1067 = vmatpush1.msra.mxu0 0.0
  %1068 = vmatprep.subr.mxu0 0.0
  %1069 = vmatpush1.msra.mxu0 0.0
  %1070 = vmatprep.subr.mxu0 0.0
  %1071 = vmatpush1.msra.mxu0 0.0
  %1072 = vmatprep.subr.mxu0 0.0
  %v1073 = vand.u32 %v39, 4294901760
  %v1074 = vsub.f32 %v39, %v1073
  %1075 = vmatpush1.msra.mxu0 %v1074
  %1076 = vmatprep.subr.mxu0 0.0
  %v1077 = vand.u32 %v38, 4294901760
  %v1078 = vsub.f32 %v38, %v1077
  %1079 = vmatpush1.msra.mxu0 %v1078
  %1080 = vmatprep.subr.mxu0 0.0
  %v1081 = vand.u32 %v37, 4294901760
  %v1082 = vsub.f32 %v37, %v1081
  %1083 = vmatpush1.msra.mxu0 %v1082
  %1084 = vmatprep.subr.mxu0 0.0
  %v1085 = vand.u32 %v36, 4294901760
  %v1086 = vsub.f32 %v36, %v1085
  %1087 = vmatpush1.msra.mxu0 %v1086
  %1088 = vmatprep.subr.mxu0 0.0
  %1089 = vmatpush2.msra.mxu0 0.0
  %1090 = vmatprep.subr.mxu0 0.0
  %1091 = vmatpush2.msra.mxu0 0.0
  %1092 = vmatprep.subr.mxu0 0.0
  %1093 = vmatpush2.msra.mxu0 0.0
  %1094 = vmatprep.subr.mxu0 0.0
  %1095 = vmatpush2.msra.mxu0 0.0
  %1096 = vmatprep.subr.mxu0 0.0
  %1097 = vmatpush2.msra.mxu0 0.0
  %1098 = vmatprep.subr.mxu0 0.0
  %1099 = vmatpush2.msra.mxu0 0.0
  %1100 = vmatprep.subr.mxu0 0.0
  %1101 = vmatpush2.msra.mxu0 0.0
  %1102 = vmatprep.subr.mxu0 0.0
  %1103 = vmatpush2.msra.mxu0 0.0
  %1104 = vmatprep.subr.mxu0 0.0
  %1105 = vmatpush2.msra.mxu0 0.0
  %1106 = vmatprep.subr.mxu0 0.0
  %1107 = vmatpush2.msra.mxu0 0.0
  %1108 = vmatprep.subr.mxu0 0.0
  %1109 = vmatpush2.msra.mxu0 0.0
  %1110 = vmatprep.subr.mxu0 0.0
  %1111 = vmatpush2.msra.mxu0 0.0
  %1112 = vmatprep.subr.mxu0 0.0
  %1113 = vmatpush2.msra.mxu0 0.0
  %1114 = vmatprep.subr.mxu0 0.0
  %1115 = vmatpush2.msra.mxu0 0.0
  %1116 = vmatprep.subr.mxu0 0.0
  %1117 = vmatpush2.msra.mxu0 0.0
  %1118 = vmatprep.subr.mxu0 0.0
  %1119 = vmatpush2.msra.mxu0 0.0
  %1120 = vmatprep.mubr.f32.mxu0 0.0
  %v1121 = vand.u32 %v876, 4294901760
  %v1122 = vsub.f32 %v876, %v1121
  %1123 = vmatmul.mubr.f32.gmra.mxu0 %v1122
  %v1124 = vpop.f32.mrf.mxu0
  %v1125 = vadd.f32 %v1045, %v1124
  %v1126 = vpop.f32.mrf.mxu0
  %1127 = vdwg.mxu0
  %1128 = vmatprep.subr.mxu0 0.0
  %1129 = vmatpush1.msra.mxu0 0.0
  %1130 = vmatprep.subr.mxu0 0.0
  %1131 = vmatpush1.msra.mxu0 0.0
  %1132 = vmatprep.subr.mxu0 0.0
  %1133 = vmatpush1.msra.mxu0 0.0
  %1134 = vmatprep.subr.mxu0 0.0
  %1135 = vmatpush1.msra.mxu0 0.0
  %1136 = vmatprep.subr.mxu0 0.0
  %1137 = vmatpush1.msra.mxu0 0.0
  %1138 = vmatprep.subr.mxu0 0.0
  %1139 = vmatpush1.msra.mxu0 0.0
  %1140 = vmatprep.subr.mxu0 0.0
  %1141 = vmatpush1.msra.mxu0 0.0
  %1142 = vmatprep.subr.mxu0 0.0
  %1143 = vmatpush1.msra.mxu0 0.0
  %1144 = vmatprep.subr.mxu0 0.0
  %1145 = vmatpush1.msra.mxu0 0.0
  %1146 = vmatprep.subr.mxu0 0.0
  %1147 = vmatpush1.msra.mxu0 0.0
  %1148 = vmatprep.subr.mxu0 0.0
  %1149 = vmatpush1.msra.mxu0 0.0
  %1150 = vmatprep.subr.mxu0 0.0
  %1151 = vmatpush1.msra.mxu0 0.0
  %1152 = vmatprep.subr.mxu0 0.0
  %v1153 = vand.u32 %v39, 4294901760
  %1154 = vmatpush1.msra.mxu0 %v1153
  %1155 = vmatprep.subr.mxu0 0.0
  %v1156 = vand.u32 %v38, 4294901760
  %1157 = vmatpush1.msra.mxu0 %v1156
  %1158 = vmatprep.subr.mxu0 0.0
  %v1159 = vand.u32 %v37, 4294901760
  %1160 = vmatpush1.msra.mxu0 %v1159
  %1161 = vmatprep.subr.mxu0 0.0
  %v1162 = vand.u32 %v36, 4294901760
  %1163 = vmatpush1.msra.mxu0 %v1162
  %1164 = vmatprep.subr.mxu0 0.0
  %1165 = vmatpush2.msra.mxu0 0.0
  %1166 = vmatprep.subr.mxu0 0.0
  %1167 = vmatpush2.msra.mxu0 0.0
  %1168 = vmatprep.subr.mxu0 0.0
  %1169 = vmatpush2.msra.mxu0 0.0
  %1170 = vmatprep.subr.mxu0 0.0
  %1171 = vmatpush2.msra.mxu0 0.0
  %1172 = vmatprep.subr.mxu0 0.0
  %1173 = vmatpush2.msra.mxu0 0.0
  %1174 = vmatprep.subr.mxu0 0.0
  %1175 = vmatpush2.msra.mxu0 0.0
  %1176 = vmatprep.subr.mxu0 0.0
  %1177 = vmatpush2.msra.mxu0 0.0
  %1178 = vmatprep.subr.mxu0 0.0
  %1179 = vmatpush2.msra.mxu0 0.0
  %1180 = vmatprep.subr.mxu0 0.0
  %1181 = vmatpush2.msra.mxu0 0.0
  %1182 = vmatprep.subr.mxu0 0.0
  %1183 = vmatpush2.msra.mxu0 0.0
  %1184 = vmatprep.subr.mxu0 0.0
  %1185 = vmatpush2.msra.mxu0 0.0
  %1186 = vmatprep.subr.mxu0 0.0
  %1187 = vmatpush2.msra.mxu0 0.0
  %1188 = vmatprep.subr.mxu0 0.0
  %1189 = vmatpush2.msra.mxu0 0.0
  %1190 = vmatprep.subr.mxu0 0.0
  %1191 = vmatpush2.msra.mxu0 0.0
  %1192 = vmatprep.subr.mxu0 0.0
  %1193 = vmatpush2.msra.mxu0 0.0
  %1194 = vmatprep.subr.mxu0 0.0
  %1195 = vmatpush2.msra.mxu0 0.0
  %1196 = vmatprep.mubr.f32.mxu0 0.0
  %v1197 = vand.u32 %v876, 4294901760
  %v1198 = vsub.f32 %v876, %v1197
  %v1199 = vand.u32 %v1198, 4294901760
  %1200 = vmatmul.mubr.f32.gmra.mxu0 %v1199
  %v1201 = vpop.f32.mrf.mxu0
  %v1202 = vadd.f32 %v1125, %v1201
  %v1203 = vpop.f32.mrf.mxu0
  %1204 = vdwg.mxu0
  %1205 = vmatprep.subr.mxu0 0.0
  %1206 = vmatpush1.msra.mxu0 0.0
  %1207 = vmatprep.subr.mxu0 0.0
  %1208 = vmatpush1.msra.mxu0 0.0
  %1209 = vmatprep.subr.mxu0 0.0
  %1210 = vmatpush1.msra.mxu0 0.0
  %1211 = vmatprep.subr.mxu0 0.0
  %1212 = vmatpush1.msra.mxu0 0.0
  %1213 = vmatprep.subr.mxu0 0.0
  %1214 = vmatpush1.msra.mxu0 0.0
  %1215 = vmatprep.subr.mxu0 0.0
  %1216 = vmatpush1.msra.mxu0 0.0
  %1217 = vmatprep.subr.mxu0 0.0
  %1218 = vmatpush1.msra.mxu0 0.0
  %1219 = vmatprep.subr.mxu0 0.0
  %1220 = vmatpush1.msra.mxu0 0.0
  %1221 = vmatprep.subr.mxu0 0.0
  %1222 = vmatpush1.msra.mxu0 0.0
  %1223 = vmatprep.subr.mxu0 0.0
  %1224 = vmatpush1.msra.mxu0 0.0
  %1225 = vmatprep.subr.mxu0 0.0
  %1226 = vmatpush1.msra.mxu0 0.0
  %1227 = vmatprep.subr.mxu0 0.0
  %1228 = vmatpush1.msra.mxu0 0.0
  %1229 = vmatprep.subr.mxu0 0.0
  %v1230 = vand.u32 %v39, 4294901760
  %v1231 = vsub.f32 %v39, %v1230
  %v1232 = vand.u32 %v1231, 4294901760
  %1233 = vmatpush1.msra.mxu0 %v1232
  %1234 = vmatprep.subr.mxu0 0.0
  %v1235 = vand.u32 %v38, 4294901760
  %v1236 = vsub.f32 %v38, %v1235
  %v1237 = vand.u32 %v1236, 4294901760
  %1238 = vmatpush1.msra.mxu0 %v1237
  %1239 = vmatprep.subr.mxu0 0.0
  %v1240 = vand.u32 %v37, 4294901760
  %v1241 = vsub.f32 %v37, %v1240
  %v1242 = vand.u32 %v1241, 4294901760
  %1243 = vmatpush1.msra.mxu0 %v1242
  %1244 = vmatprep.subr.mxu0 0.0
  %v1245 = vand.u32 %v36, 4294901760
  %v1246 = vsub.f32 %v36, %v1245
  %v1247 = vand.u32 %v1246, 4294901760
  %1248 = vmatpush1.msra.mxu0 %v1247
  %1249 = vmatprep.subr.mxu0 0.0
  %1250 = vmatpush2.msra.mxu0 0.0
  %1251 = vmatprep.subr.mxu0 0.0
  %1252 = vmatpush2.msra.mxu0 0.0
  %1253 = vmatprep.subr.mxu0 0.0
  %1254 = vmatpush2.msra.mxu0 0.0
  %1255 = vmatprep.subr.mxu0 0.0
  %1256 = vmatpush2.msra.mxu0 0.0
  %1257 = vmatprep.subr.mxu0 0.0
  %1258 = vmatpush2.msra.mxu0 0.0
  %1259 = vmatprep.subr.mxu0 0.0
  %1260 = vmatpush2.msra.mxu0 0.0
  %1261 = vmatprep.subr.mxu0 0.0
  %1262 = vmatpush2.msra.mxu0 0.0
  %1263 = vmatprep.subr.mxu0 0.0
  %1264 = vmatpush2.msra.mxu0 0.0
  %1265 = vmatprep.subr.mxu0 0.0
  %1266 = vmatpush2.msra.mxu0 0.0
  %1267 = vmatprep.subr.mxu0 0.0
  %1268 = vmatpush2.msra.mxu0 0.0
  %1269 = vmatprep.subr.mxu0 0.0
  %1270 = vmatpush2.msra.mxu0 0.0
  %1271 = vmatprep.subr.mxu0 0.0
  %1272 = vmatpush2.msra.mxu0 0.0
  %1273 = vmatprep.subr.mxu0 0.0
  %1274 = vmatpush2.msra.mxu0 0.0
  %1275 = vmatprep.subr.mxu0 0.0
  %1276 = vmatpush2.msra.mxu0 0.0
  %1277 = vmatprep.subr.mxu0 0.0
  %1278 = vmatpush2.msra.mxu0 0.0
  %1279 = vmatprep.subr.mxu0 0.0
  %1280 = vmatpush2.msra.mxu0 0.0
  %1281 = vmatprep.mubr.f32.mxu0 0.0
  %v1282 = vand.u32 %v876, 4294901760
  %1283 = vmatmul.mubr.f32.gmra.mxu0 %v1282
  %v1284 = vpop.f32.mrf.mxu0
  %v1285 = vadd.f32 %v1202, %v1284
  %v1286 = vpop.f32.mrf.mxu0
  %1287 = vdwg.mxu0
  %1288 = vmatprep.subr.mxu0 0.0
  %1289 = vmatpush1.msra.mxu0 0.0
  %1290 = vmatprep.subr.mxu0 0.0
  %1291 = vmatpush1.msra.mxu0 0.0
  %1292 = vmatprep.subr.mxu0 0.0
  %1293 = vmatpush1.msra.mxu0 0.0
  %1294 = vmatprep.subr.mxu0 0.0
  %1295 = vmatpush1.msra.mxu0 0.0
  %1296 = vmatprep.subr.mxu0 0.0
  %1297 = vmatpush1.msra.mxu0 0.0
  %1298 = vmatprep.subr.mxu0 0.0
  %1299 = vmatpush1.msra.mxu0 0.0
  %1300 = vmatprep.subr.mxu0 0.0
  %1301 = vmatpush1.msra.mxu0 0.0
  %1302 = vmatprep.subr.mxu0 0.0
  %1303 = vmatpush1.msra.mxu0 0.0
  %1304 = vmatprep.subr.mxu0 0.0
  %1305 = vmatpush1.msra.mxu0 0.0
  %1306 = vmatprep.subr.mxu0 0.0
  %1307 = vmatpush1.msra.mxu0 0.0
  %1308 = vmatprep.subr.mxu0 0.0
  %1309 = vmatpush1.msra.mxu0 0.0
  %1310 = vmatprep.subr.mxu0 0.0
  %1311 = vmatpush1.msra.mxu0 0.0
  %1312 = vmatprep.subr.mxu0 0.0
  %v1313 = vand.u32 %v39, 4294901760
  %1314 = vmatpush1.msra.mxu0 %v1313
  %1315 = vmatprep.subr.mxu0 0.0
  %v1316 = vand.u32 %v38, 4294901760
  %1317 = vmatpush1.msra.mxu0 %v1316
  %1318 = vmatprep.subr.mxu0 0.0
  %v1319 = vand.u32 %v37, 4294901760
  %1320 = vmatpush1.msra.mxu0 %v1319
  %1321 = vmatprep.subr.mxu0 0.0
  %v1322 = vand.u32 %v36, 4294901760
  %1323 = vmatpush1.msra.mxu0 %v1322
  %1324 = vmatprep.subr.mxu0 0.0
  %1325 = vmatpush2.msra.mxu0 0.0
  %1326 = vmatprep.subr.mxu0 0.0
  %1327 = vmatpush2.msra.mxu0 0.0
  %1328 = vmatprep.subr.mxu0 0.0
  %1329 = vmatpush2.msra.mxu0 0.0
  %1330 = vmatprep.subr.mxu0 0.0
  %1331 = vmatpush2.msra.mxu0 0.0
  %1332 = vmatprep.subr.mxu0 0.0
  %1333 = vmatpush2.msra.mxu0 0.0
  %1334 = vmatprep.subr.mxu0 0.0
  %1335 = vmatpush2.msra.mxu0 0.0
  %1336 = vmatprep.subr.mxu0 0.0
  %1337 = vmatpush2.msra.mxu0 0.0
  %1338 = vmatprep.subr.mxu0 0.0
  %1339 = vmatpush2.msra.mxu0 0.0
  %1340 = vmatprep.subr.mxu0 0.0
  %1341 = vmatpush2.msra.mxu0 0.0
  %1342 = vmatprep.subr.mxu0 0.0
  %1343 = vmatpush2.msra.mxu0 0.0
  %1344 = vmatprep.subr.mxu0 0.0
  %1345 = vmatpush2.msra.mxu0 0.0
  %1346 = vmatprep.subr.mxu0 0.0
  %1347 = vmatpush2.msra.mxu0 0.0
  %1348 = vmatprep.subr.mxu0 0.0
  %1349 = vmatpush2.msra.mxu0 0.0
  %1350 = vmatprep.subr.mxu0 0.0
  %1351 = vmatpush2.msra.mxu0 0.0
  %1352 = vmatprep.subr.mxu0 0.0
  %1353 = vmatpush2.msra.mxu0 0.0
  %1354 = vmatprep.subr.mxu0 0.0
  %1355 = vmatpush2.msra.mxu0 0.0
  %1356 = vmatprep.mubr.f32.mxu0 0.0
  %v1357 = vand.u32 %v876, 4294901760
  %1358 = vmatmul.mubr.f32.gmra.mxu0 %v1357
  %v1359 = vpop.f32.mrf.mxu0
  %v1360 = vadd.f32 %v1285, %v1359
  %v1361 = vpop.f32.mrf.mxu0
  %1362 = vdwg.mxu0
  %v1363 = vadd.f32 %v874, %v1360
  %v1364 = vsub.f32 0.0, %v1363
  %v1365 = vmul.f32 %v1364, 1.442695
  %v1366 = vpow.pop %v1365
  %v1367 = vadd.f32 %v1366, 1.0
  %v1368 = vrcp.pop %v1367
  %v1369 = vmul.f32 1.0, %v1368
  %v1370 = vtanh.pop %v1363
  %v1371 = vmul.f32 %v1369, 0.0
  %1373 = vrot.lane.b32.xlu0 %v1370, 64
  %v1374 = vpop.permute.xlu0 %1373
  %v1376 = vmul.f32 %v1369, %v1374
  %1378 = vrot.lane.b32.xlu0 %v1376, 32
  %v1379 = vpop.permute.xlu0 %1378
  %v1381 = vadd.f32 %v1371, %v1379
  %v1382 = vtanh.pop %v1381
  %1384 = vrot.lane.b32.xlu0 %v1382, 64
  %v1385 = vpop.permute.xlu0 %1384
  %v1387 = vmul.f32 %v1369, %v1385
  %1389 = vrot.lane.b32.xlu0 %v1387, 32
  %v1390 = vpop.permute.xlu0 %1389
  %1392 = vst.msk [vmem:[#allocation2] sm:$0xff] %vm55, %v1390
  %s1393 = scalar_lea.vmem [#allocation3], 8
  %v1394 = vld [vmem:[%s1393] sm:$0xff]
  %v1395 = vsel %vm55, %v1390, 0
  %1397 = vmatprep.subr.mxu0 0.0
  %1398 = vmatpush1.msra.mxu0 0.0
  %1399 = vmatprep.subr.mxu0 0.0
  %1400 = vmatpush1.msra.mxu0 0.0
  %1401 = vmatprep.subr.mxu0 0.0
  %1402 = vmatpush1.msra.mxu0 0.0
  %1403 = vmatprep.subr.mxu0 0.0
  %1404 = vmatpush1.msra.mxu0 0.0
  %1405 = vmatprep.subr.mxu0 0.0
  %1406 = vmatpush1.msra.mxu0 0.0
  %1407 = vmatprep.subr.mxu0 0.0
  %1408 = vmatpush1.msra.mxu0 0.0
  %1409 = vmatprep.subr.mxu0 0.0
  %1410 = vmatpush1.msra.mxu0 0.0
  %1411 = vmatprep.subr.mxu0 0.0
  %1412 = vmatpush1.msra.mxu0 0.0
  %1413 = vmatprep.subr.mxu0 0.0
  %1414 = vmatpush1.msra.mxu0 0.0
  %1415 = vmatprep.subr.mxu0 0.0
  %1416 = vmatpush1.msra.mxu0 0.0
  %1417 = vmatprep.subr.mxu0 0.0
  %1418 = vmatpush1.msra.mxu0 0.0
  %1419 = vmatprep.subr.mxu0 0.0
  %1420 = vmatpush1.msra.mxu0 0.0
  %1421 = vmatprep.subr.mxu0 0.0
  %v1422 = vand.u32 %v39, 4294901760
  %1423 = vmatpush1.msra.mxu0 %v1422
  %1424 = vmatprep.subr.mxu0 0.0
  %v1425 = vand.u32 %v38, 4294901760
  %1426 = vmatpush1.msra.mxu0 %v1425
  %1427 = vmatprep.subr.mxu0 0.0
  %v1428 = vand.u32 %v37, 4294901760
  %1429 = vmatpush1.msra.mxu0 %v1428
  %1430 = vmatprep.subr.mxu0 0.0
  %v1431 = vand.u32 %v36, 4294901760
  %1432 = vmatpush1.msra.mxu0 %v1431
  %1433 = vmatprep.subr.mxu0 0.0
  %1434 = vmatpush2.msra.mxu0 0.0
  %1435 = vmatprep.subr.mxu0 0.0
  %1436 = vmatpush2.msra.mxu0 0.0
  %1437 = vmatprep.subr.mxu0 0.0
  %1438 = vmatpush2.msra.mxu0 0.0
  %1439 = vmatprep.subr.mxu0 0.0
  %1440 = vmatpush2.msra.mxu0 0.0
  %1441 = vmatprep.subr.mxu0 0.0
  %1442 = vmatpush2.msra.mxu0 0.0
  %1443 = vmatprep.subr.mxu0 0.0
  %1444 = vmatpush2.msra.mxu0 0.0
  %1445 = vmatprep.subr.mxu0 0.0
  %1446 = vmatpush2.msra.mxu0 0.0
  %1447 = vmatprep.subr.mxu0 0.0
  %1448 = vmatpush2.msra.mxu0 0.0
  %1449 = vmatprep.subr.mxu0 0.0
  %1450 = vmatpush2.msra.mxu0 0.0
  %1451 = vmatprep.subr.mxu0 0.0
  %1452 = vmatpush2.msra.mxu0 0.0
  %1453 = vmatprep.subr.mxu0 0.0
  %1454 = vmatpush2.msra.mxu0 0.0
  %1455 = vmatprep.subr.mxu0 0.0
  %1456 = vmatpush2.msra.mxu0 0.0
  %1457 = vmatprep.subr.mxu0 0.0
  %1458 = vmatpush2.msra.mxu0 0.0
  %1459 = vmatprep.subr.mxu0 0.0
  %1460 = vmatpush2.msra.mxu0 0.0
  %1461 = vmatprep.subr.mxu0 0.0
  %1462 = vmatpush2.msra.mxu0 0.0
  %1463 = vmatprep.subr.mxu0 0.0
  %1464 = vmatpush2.msra.mxu0 0.0
  %1465 = vmatprep.mubr.f32.mxu0 0.0
  %v1466 = vand.u32 %v1395, 4294901760
  %v1467 = vsub.f32 %v1395, %v1466
  %v1468 = vand.u32 %v1467, 4294901760
  %v1469 = vsub.f32 %v1467, %v1468
  %v1470 = vand.u32 %v1469, 4294901760
  %1471 = vmatmul.mubr.f32.gmra.mxu0 %v1470
  %v1472 = vpop.f32.mrf.mxu0
  %v1473 = vadd.f32 0.0, %v1472
  %v1474 = vpop.f32.mrf.mxu0
  %1475 = vdwg.mxu0
  %1476 = vmatprep.subr.mxu0 0.0
  %1477 = vmatpush1.msra.mxu0 0.0
  %1478 = vmatprep.subr.mxu0 0.0
  %1479 = vmatpush1.msra.mxu0 0.0
  %1480 = vmatprep.subr.mxu0 0.0
  %1481 = vmatpush1.msra.mxu0 0.0
  %1482 = vmatprep.subr.mxu0 0.0
  %1483 = vmatpush1.msra.mxu0 0.0
  %1484 = vmatprep.subr.mxu0 0.0
  %1485 = vmatpush1.msra.mxu0 0.0
  %1486 = vmatprep.subr.mxu0 0.0
  %1487 = vmatpush1.msra.mxu0 0.0
  %1488 = vmatprep.subr.mxu0 0.0
  %1489 = vmatpush1.msra.mxu0 0.0
  %1490 = vmatprep.subr.mxu0 0.0
  %1491 = vmatpush1.msra.mxu0 0.0
  %1492 = vmatprep.subr.mxu0 0.0
  %1493 = vmatpush1.msra.mxu0 0.0
  %1494 = vmatprep.subr.mxu0 0.0
  %1495 = vmatpush1.msra.mxu0 0.0
  %1496 = vmatprep.subr.mxu0 0.0
  %1497 = vmatpush1.msra.mxu0 0.0
  %1498 = vmatprep.subr.mxu0 0.0
  %1499 = vmatpush1.msra.mxu0 0.0
  %1500 = vmatprep.subr.mxu0 0.0
  %v1501 = vand.u32 %v39, 4294901760
  %v1502 = vsub.f32 %v39, %v1501
  %v1503 = vand.u32 %v1502, 4294901760
  %v1504 = vsub.f32 %v1502, %v1503
  %v1505 = vand.u32 %v1504, 4294901760
  %1506 = vmatpush1.msra.mxu0 %v1505
  %1507 = vmatprep.subr.mxu0 0.0
  %v1508 = vand.u32 %v38, 4294901760
  %v1509 = vsub.f32 %v38, %v1508
  %v1510 = vand.u32 %v1509, 4294901760
  %v1511 = vsub.f32 %v1509, %v1510
  %v1512 = vand.u32 %v1511, 4294901760
  %1513 = vmatpush1.msra.mxu0 %v1512
  %1514 = vmatprep.subr.mxu0 0.0
  %v1515 = vand.u32 %v37, 4294901760
  %v1516 = vsub.f32 %v37, %v1515
  %v1517 = vand.u32 %v1516, 4294901760
  %v1518 = vsub.f32 %v1516, %v1517
  %v1519 = vand.u32 %v1518, 4294901760
  %1520 = vmatpush1.msra.mxu0 %v1519
  %1521 = vmatprep.subr.mxu0 0.0
  %v1522 = vand.u32 %v36, 4294901760
  %v1523 = vsub.f32 %v36, %v1522
  %v1524 = vand.u32 %v1523, 4294901760
  %v1525 = vsub.f32 %v1523, %v1524
  %v1526 = vand.u32 %v1525, 4294901760
  %1527 = vmatpush1.msra.mxu0 %v1526
  %1528 = vmatprep.subr.mxu0 0.0
  %1529 = vmatpush2.msra.mxu0 0.0
  %1530 = vmatprep.subr.mxu0 0.0
  %1531 = vmatpush2.msra.mxu0 0.0
  %1532 = vmatprep.subr.mxu0 0.0
  %1533 = vmatpush2.msra.mxu0 0.0
  %1534 = vmatprep.subr.mxu0 0.0
  %1535 = vmatpush2.msra.mxu0 0.0
  %1536 = vmatprep.subr.mxu0 0.0
  %1537 = vmatpush2.msra.mxu0 0.0
  %1538 = vmatprep.subr.mxu0 0.0
  %1539 = vmatpush2.msra.mxu0 0.0
  %1540 = vmatprep.subr.mxu0 0.0
  %1541 = vmatpush2.msra.mxu0 0.0
  %1542 = vmatprep.subr.mxu0 0.0
  %1543 = vmatpush2.msra.mxu0 0.0
  %1544 = vmatprep.subr.mxu0 0.0
  %1545 = vmatpush2.msra.mxu0 0.0
  %1546 = vmatprep.subr.mxu0 0.0
  %1547 = vmatpush2.msra.mxu0 0.0
  %1548 = vmatprep.subr.mxu0 0.0
  %1549 = vmatpush2.msra.mxu0 0.0
  %1550 = vmatprep.subr.mxu0 0.0
  %1551 = vmatpush2.msra.mxu0 0.0
  %1552 = vmatprep.subr.mxu0 0.0
  %1553 = vmatpush2.msra.mxu0 0.0
  %1554 = vmatprep.subr.mxu0 0.0
  %1555 = vmatpush2.msra.mxu0 0.0
  %1556 = vmatprep.subr.mxu0 0.0
  %1557 = vmatpush2.msra.mxu0 0.0
  %1558 = vmatprep.subr.mxu0 0.0
  %1559 = vmatpush2.msra.mxu0 0.0
  %1560 = vmatprep.mubr.f32.mxu0 0.0
  %v1561 = vand.u32 %v1395, 4294901760
  %1562 = vmatmul.mubr.f32.gmra.mxu0 %v1561
  %v1563 = vpop.f32.mrf.mxu0
  %v1564 = vadd.f32 %v1473, %v1563
  %v1565 = vpop.f32.mrf.mxu0
  %1566 = vdwg.mxu0
  %1567 = vmatprep.subr.mxu0 0.0
  %1568 = vmatpush1.msra.mxu0 0.0
  %1569 = vmatprep.subr.mxu0 0.0
  %1570 = vmatpush1.msra.mxu0 0.0
  %1571 = vmatprep.subr.mxu0 0.0
  %1572 = vmatpush1.msra.mxu0 0.0
  %1573 = vmatprep.subr.mxu0 0.0
  %1574 = vmatpush1.msra.mxu0 0.0
  %1575 = vmatprep.subr.mxu0 0.0
  %1576 = vmatpush1.msra.mxu0 0.0
  %1577 = vmatprep.subr.mxu0 0.0
  %1578 = vmatpush1.msra.mxu0 0.0
  %1579 = vmatprep.subr.mxu0 0.0
  %1580 = vmatpush1.msra.mxu0 0.0
  %1581 = vmatprep.subr.mxu0 0.0
  %1582 = vmatpush1.msra.mxu0 0.0
  %1583 = vmatprep.subr.mxu0 0.0
  %1584 = vmatpush1.msra.mxu0 0.0
  %1585 = vmatprep.subr.mxu0 0.0
  %1586 = vmatpush1.msra.mxu0 0.0
  %1587 = vmatprep.subr.mxu0 0.0
  %1588 = vmatpush1.msra.mxu0 0.0
  %1589 = vmatprep.subr.mxu0 0.0
  %1590 = vmatpush1.msra.mxu0 0.0
  %1591 = vmatprep.subr.mxu0 0.0
  %v1592 = vand.u32 %v39, 4294901760
  %v1593 = vsub.f32 %v39, %v1592
  %1594 = vmatpush1.msra.mxu0 %v1593
  %1595 = vmatprep.subr.mxu0 0.0
  %v1596 = vand.u32 %v38, 4294901760
  %v1597 = vsub.f32 %v38, %v1596
  %1598 = vmatpush1.msra.mxu0 %v1597
  %1599 = vmatprep.subr.mxu0 0.0
  %v1600 = vand.u32 %v37, 4294901760
  %v1601 = vsub.f32 %v37, %v1600
  %1602 = vmatpush1.msra.mxu0 %v1601
  %1603 = vmatprep.subr.mxu0 0.0
  %v1604 = vand.u32 %v36, 4294901760
  %v1605 = vsub.f32 %v36, %v1604
  %1606 = vmatpush1.msra.mxu0 %v1605
  %1607 = vmatprep.subr.mxu0 0.0
  %1608 = vmatpush2.msra.mxu0 0.0
  %1609 = vmatprep.subr.mxu0 0.0
  %1610 = vmatpush2.msra.mxu0 0.0
  %1611 = vmatprep.subr.mxu0 0.0
  %1612 = vmatpush2.msra.mxu0 0.0
  %1613 = vmatprep.subr.mxu0 0.0
  %1614 = vmatpush2.msra.mxu0 0.0
  %1615 = vmatprep.subr.mxu0 0.0
  %1616 = vmatpush2.msra.mxu0 0.0
  %1617 = vmatprep.subr.mxu0 0.0
  %1618 = vmatpush2.msra.mxu0 0.0
  %1619 = vmatprep.subr.mxu0 0.0
  %1620 = vmatpush2.msra.mxu0 0.0
  %1621 = vmatprep.subr.mxu0 0.0
  %1622 = vmatpush2.msra.mxu0 0.0
  %1623 = vmatprep.subr.mxu0 0.0
  %1624 = vmatpush2.msra.mxu0 0.0
  %1625 = vmatprep.subr.mxu0 0.0
  %1626 = vmatpush2.msra.mxu0 0.0
  %1627 = vmatprep.subr.mxu0 0.0
  %1628 = vmatpush2.msra.mxu0 0.0
  %1629 = vmatprep.subr.mxu0 0.0
  %1630 = vmatpush2.msra.mxu0 0.0
  %1631 = vmatprep.subr.mxu0 0.0
  %1632 = vmatpush2.msra.mxu0 0.0
  %1633 = vmatprep.subr.mxu0 0.0
  %1634 = vmatpush2.msra.mxu0 0.0
  %1635 = vmatprep.subr.mxu0 0.0
  %1636 = vmatpush2.msra.mxu0 0.0
  %1637 = vmatprep.subr.mxu0 0.0
  %1638 = vmatpush2.msra.mxu0 0.0
  %1639 = vmatprep.mubr.f32.mxu0 0.0
  %v1640 = vand.u32 %v1395, 4294901760
  %v1641 = vsub.f32 %v1395, %v1640
  %1642 = vmatmul.mubr.f32.gmra.mxu0 %v1641
  %v1643 = vpop.f32.mrf.mxu0
  %v1644 = vadd.f32 %v1564, %v1643
  %v1645 = vpop.f32.mrf.mxu0
  %1646 = vdwg.mxu0
  %1647 = vmatprep.subr.mxu0 0.0
  %1648 = vmatpush1.msra.mxu0 0.0
  %1649 = vmatprep.subr.mxu0 0.0
  %1650 = vmatpush1.msra.mxu0 0.0
  %1651 = vmatprep.subr.mxu0 0.0
  %1652 = vmatpush1.msra.mxu0 0.0
  %1653 = vmatprep.subr.mxu0 0.0
  %1654 = vmatpush1.msra.mxu0 0.0
  %1655 = vmatprep.subr.mxu0 0.0
  %1656 = vmatpush1.msra.mxu0 0.0
  %1657 = vmatprep.subr.mxu0 0.0
  %1658 = vmatpush1.msra.mxu0 0.0
  %1659 = vmatprep.subr.mxu0 0.0
  %1660 = vmatpush1.msra.mxu0 0.0
  %1661 = vmatprep.subr.mxu0 0.0
  %1662 = vmatpush1.msra.mxu0 0.0
  %1663 = vmatprep.subr.mxu0 0.0
  %1664 = vmatpush1.msra.mxu0 0.0
  %1665 = vmatprep.subr.mxu0 0.0
  %1666 = vmatpush1.msra.mxu0 0.0
  %1667 = vmatprep.subr.mxu0 0.0
  %1668 = vmatpush1.msra.mxu0 0.0
  %1669 = vmatprep.subr.mxu0 0.0
  %1670 = vmatpush1.msra.mxu0 0.0
  %1671 = vmatprep.subr.mxu0 0.0
  %v1672 = vand.u32 %v39, 4294901760
  %1673 = vmatpush1.msra.mxu0 %v1672
  %1674 = vmatprep.subr.mxu0 0.0
  %v1675 = vand.u32 %v38, 4294901760
  %1676 = vmatpush1.msra.mxu0 %v1675
  %1677 = vmatprep.subr.mxu0 0.0
  %v1678 = vand.u32 %v37, 4294901760
  %1679 = vmatpush1.msra.mxu0 %v1678
  %1680 = vmatprep.subr.mxu0 0.0
  %v1681 = vand.u32 %v36, 4294901760
  %1682 = vmatpush1.msra.mxu0 %v1681
  %1683 = vmatprep.subr.mxu0 0.0
  %1684 = vmatpush2.msra.mxu0 0.0
  %1685 = vmatprep.subr.mxu0 0.0
  %1686 = vmatpush2.msra.mxu0 0.0
  %1687 = vmatprep.subr.mxu0 0.0
  %1688 = vmatpush2.msra.mxu0 0.0
  %1689 = vmatprep.subr.mxu0 0.0
  %1690 = vmatpush2.msra.mxu0 0.0
  %1691 = vmatprep.subr.mxu0 0.0
  %1692 = vmatpush2.msra.mxu0 0.0
  %1693 = vmatprep.subr.mxu0 0.0
  %1694 = vmatpush2.msra.mxu0 0.0
  %1695 = vmatprep.subr.mxu0 0.0
  %1696 = vmatpush2.msra.mxu0 0.0
  %1697 = vmatprep.subr.mxu0 0.0
  %1698 = vmatpush2.msra.mxu0 0.0
  %1699 = vmatprep.subr.mxu0 0.0
  %1700 = vmatpush2.msra.mxu0 0.0
  %1701 = vmatprep.subr.mxu0 0.0
  %1702 = vmatpush2.msra.mxu0 0.0
  %1703 = vmatprep.subr.mxu0 0.0
  %1704 = vmatpush2.msra.mxu0 0.0
  %1705 = vmatprep.subr.mxu0 0.0
  %1706 = vmatpush2.msra.mxu0 0.0
  %1707 = vmatprep.subr.mxu0 0.0
  %1708 = vmatpush2.msra.mxu0 0.0
  %1709 = vmatprep.subr.mxu0 0.0
  %1710 = vmatpush2.msra.mxu0 0.0
  %1711 = vmatprep.subr.mxu0 0.0
  %1712 = vmatpush2.msra.mxu0 0.0
  %1713 = vmatprep.subr.mxu0 0.0
  %1714 = vmatpush2.msra.mxu0 0.0
  %1715 = vmatprep.mubr.f32.mxu0 0.0
  %v1716 = vand.u32 %v1395, 4294901760
  %v1717 = vsub.f32 %v1395, %v1716
  %v1718 = vand.u32 %v1717, 4294901760
  %1719 = vmatmul.mubr.f32.gmra.mxu0 %v1718
  %v1720 = vpop.f32.mrf.mxu0
  %v1721 = vadd.f32 %v1644, %v1720
  %v1722 = vpop.f32.mrf.mxu0
  %1723 = vdwg.mxu0
  %1724 = vmatprep.subr.mxu0 0.0
  %1725 = vmatpush1.msra.mxu0 0.0
  %1726 = vmatprep.subr.mxu0 0.0
  %1727 = vmatpush1.msra.mxu0 0.0
  %1728 = vmatprep.subr.mxu0 0.0
  %1729 = vmatpush1.msra.mxu0 0.0
  %1730 = vmatprep.subr.mxu0 0.0
  %1731 = vmatpush1.msra.mxu0 0.0
  %1732 = vmatprep.subr.mxu0 0.0
  %1733 = vmatpush1.msra.mxu0 0.0
  %1734 = vmatprep.subr.mxu0 0.0
  %1735 = vmatpush1.msra.mxu0 0.0
  %1736 = vmatprep.subr.mxu0 0.0
  %1737 = vmatpush1.msra.mxu0 0.0
  %1738 = vmatprep.subr.mxu0 0.0
  %1739 = vmatpush1.msra.mxu0 0.0
  %1740 = vmatprep.subr.mxu0 0.0
  %1741 = vmatpush1.msra.mxu0 0.0
  %1742 = vmatprep.subr.mxu0 0.0
  %1743 = vmatpush1.msra.mxu0 0.0
  %1744 = vmatprep.subr.mxu0 0.0
  %1745 = vmatpush1.msra.mxu0 0.0
  %1746 = vmatprep.subr.mxu0 0.0
  %1747 = vmatpush1.msra.mxu0 0.0
  %1748 = vmatprep.subr.mxu0 0.0
  %v1749 = vand.u32 %v39, 4294901760
  %v1750 = vsub.f32 %v39, %v1749
  %v1751 = vand.u32 %v1750, 4294901760
  %1752 = vmatpush1.msra.mxu0 %v1751
  %1753 = vmatprep.subr.mxu0 0.0
  %v1754 = vand.u32 %v38, 4294901760
  %v1755 = vsub.f32 %v38, %v1754
  %v1756 = vand.u32 %v1755, 4294901760
  %1757 = vmatpush1.msra.mxu0 %v1756
  %1758 = vmatprep.subr.mxu0 0.0
  %v1759 = vand.u32 %v37, 4294901760
  %v1760 = vsub.f32 %v37, %v1759
  %v1761 = vand.u32 %v1760, 4294901760
  %1762 = vmatpush1.msra.mxu0 %v1761
  %1763 = vmatprep.subr.mxu0 0.0
  %v1764 = vand.u32 %v36, 4294901760
  %v1765 = vsub.f32 %v36, %v1764
  %v1766 = vand.u32 %v1765, 4294901760
  %1767 = vmatpush1.msra.mxu0 %v1766
  %1768 = vmatprep.subr.mxu0 0.0
  %1769 = vmatpush2.msra.mxu0 0.0
  %1770 = vmatprep.subr.mxu0 0.0
  %1771 = vmatpush2.msra.mxu0 0.0
  %1772 = vmatprep.subr.mxu0 0.0
  %1773 = vmatpush2.msra.mxu0 0.0
  %1774 = vmatprep.subr.mxu0 0.0
  %1775 = vmatpush2.msra.mxu0 0.0
  %1776 = vmatprep.subr.mxu0 0.0
  %1777 = vmatpush2.msra.mxu0 0.0
  %1778 = vmatprep.subr.mxu0 0.0
  %1779 = vmatpush2.msra.mxu0 0.0
  %1780 = vmatprep.subr.mxu0 0.0
  %1781 = vmatpush2.msra.mxu0 0.0
  %1782 = vmatprep.subr.mxu0 0.0
  %1783 = vmatpush2.msra.mxu0 0.0
  %1784 = vmatprep.subr.mxu0 0.0
  %1785 = vmatpush2.msra.mxu0 0.0
  %1786 = vmatprep.subr.mxu0 0.0
  %1787 = vmatpush2.msra.mxu0 0.0
  %1788 = vmatprep.subr.mxu0 0.0
  %1789 = vmatpush2.msra.mxu0 0.0
  %1790 = vmatprep.subr.mxu0 0.0
  %1791 = vmatpush2.msra.mxu0 0.0
  %1792 = vmatprep.subr.mxu0 0.0
  %1793 = vmatpush2.msra.mxu0 0.0
  %1794 = vmatprep.subr.mxu0 0.0
  %1795 = vmatpush2.msra.mxu0 0.0
  %1796 = vmatprep.subr.mxu0 0.0
  %1797 = vmatpush2.msra.mxu0 0.0
  %1798 = vmatprep.subr.mxu0 0.0
  %1799 = vmatpush2.msra.mxu0 0.0
  %1800 = vmatprep.mubr.f32.mxu0 0.0
  %v1801 = vand.u32 %v1395, 4294901760
  %1802 = vmatmul.mubr.f32.gmra.mxu0 %v1801
  %v1803 = vpop.f32.mrf.mxu0
  %v1804 = vadd.f32 %v1721, %v1803
  %v1805 = vpop.f32.mrf.mxu0
  %1806 = vdwg.mxu0
  %1807 = vmatprep.subr.mxu0 0.0
  %1808 = vmatpush1.msra.mxu0 0.0
  %1809 = vmatprep.subr.mxu0 0.0
  %1810 = vmatpush1.msra.mxu0 0.0
  %1811 = vmatprep.subr.mxu0 0.0
  %1812 = vmatpush1.msra.mxu0 0.0
  %1813 = vmatprep.subr.mxu0 0.0
  %1814 = vmatpush1.msra.mxu0 0.0
  %1815 = vmatprep.subr.mxu0 0.0
  %1816 = vmatpush1.msra.mxu0 0.0
  %1817 = vmatprep.subr.mxu0 0.0
  %1818 = vmatpush1.msra.mxu0 0.0
  %1819 = vmatprep.subr.mxu0 0.0
  %1820 = vmatpush1.msra.mxu0 0.0
  %1821 = vmatprep.subr.mxu0 0.0
  %1822 = vmatpush1.msra.mxu0 0.0
  %1823 = vmatprep.subr.mxu0 0.0
  %1824 = vmatpush1.msra.mxu0 0.0
  %1825 = vmatprep.subr.mxu0 0.0
  %1826 = vmatpush1.msra.mxu0 0.0
  %1827 = vmatprep.subr.mxu0 0.0
  %1828 = vmatpush1.msra.mxu0 0.0
  %1829 = vmatprep.subr.mxu0 0.0
  %1830 = vmatpush1.msra.mxu0 0.0
  %1831 = vmatprep.subr.mxu0 0.0
  %v1832 = vand.u32 %v39, 4294901760
  %1833 = vmatpush1.msra.mxu0 %v1832
  %1834 = vmatprep.subr.mxu0 0.0
  %v1835 = vand.u32 %v38, 4294901760
  %1836 = vmatpush1.msra.mxu0 %v1835
  %1837 = vmatprep.subr.mxu0 0.0
  %v1838 = vand.u32 %v37, 4294901760
  %1839 = vmatpush1.msra.mxu0 %v1838
  %1840 = vmatprep.subr.mxu0 0.0
  %v1841 = vand.u32 %v36, 4294901760
  %1842 = vmatpush1.msra.mxu0 %v1841
  %1843 = vmatprep.subr.mxu0 0.0
  %1844 = vmatpush2.msra.mxu0 0.0
  %1845 = vmatprep.subr.mxu0 0.0
  %1846 = vmatpush2.msra.mxu0 0.0
  %1847 = vmatprep.subr.mxu0 0.0
  %1848 = vmatpush2.msra.mxu0 0.0
  %1849 = vmatprep.subr.mxu0 0.0
  %1850 = vmatpush2.msra.mxu0 0.0
  %1851 = vmatprep.subr.mxu0 0.0
  %1852 = vmatpush2.msra.mxu0 0.0
  %1853 = vmatprep.subr.mxu0 0.0
  %1854 = vmatpush2.msra.mxu0 0.0
  %1855 = vmatprep.subr.mxu0 0.0
  %1856 = vmatpush2.msra.mxu0 0.0
  %1857 = vmatprep.subr.mxu0 0.0
  %1858 = vmatpush2.msra.mxu0 0.0
  %1859 = vmatprep.subr.mxu0 0.0
  %1860 = vmatpush2.msra.mxu0 0.0
  %1861 = vmatprep.subr.mxu0 0.0
  %1862 = vmatpush2.msra.mxu0 0.0
  %1863 = vmatprep.subr.mxu0 0.0
  %1864 = vmatpush2.msra.mxu0 0.0
  %1865 = vmatprep.subr.mxu0 0.0
  %1866 = vmatpush2.msra.mxu0 0.0
  %1867 = vmatprep.subr.mxu0 0.0
  %1868 = vmatpush2.msra.mxu0 0.0
  %1869 = vmatprep.subr.mxu0 0.0
  %1870 = vmatpush2.msra.mxu0 0.0
  %1871 = vmatprep.subr.mxu0 0.0
  %1872 = vmatpush2.msra.mxu0 0.0
  %1873 = vmatprep.subr.mxu0 0.0
  %1874 = vmatpush2.msra.mxu0 0.0
  %1875 = vmatprep.mubr.f32.mxu0 0.0
  %v1876 = vand.u32 %v1395, 4294901760
  %1877 = vmatmul.mubr.f32.gmra.mxu0 %v1876
  %v1878 = vpop.f32.mrf.mxu0
  %v1879 = vadd.f32 %v1804, %v1878
  %v1880 = vpop.f32.mrf.mxu0
  %1881 = vdwg.mxu0
  %v1882 = vadd.f32 %v1394, %v1879
  %v1883 = vsub.f32 0.0, %v1882
  %v1884 = vmul.f32 %v1883, 1.442695
  %v1885 = vpow.pop %v1884
  %v1886 = vadd.f32 %v1885, 1.0
  %v1887 = vrcp.pop %v1886
  %v1888 = vmul.f32 1.0, %v1887
  %v1889 = vtanh.pop %v1882
  %v1890 = vmul.f32 %v1888, %v1381
  %1892 = vrot.lane.b32.xlu0 %v1889, 64
  %v1893 = vpop.permute.xlu0 %1892
  %v1895 = vmul.f32 %v1888, %v1893
  %1897 = vrot.lane.b32.xlu0 %v1895, 32
  %v1898 = vpop.permute.xlu0 %1897
  %v1900 = vadd.f32 %v1890, %v1898
  %v1901 = vtanh.pop %v1900
  %1903 = vrot.lane.b32.xlu0 %v1901, 64
  %v1904 = vpop.permute.xlu0 %1903
  %v1906 = vmul.f32 %v1888, %v1904
  %1908 = vrot.lane.b32.xlu0 %v1906, 32
  %v1909 = vpop.permute.xlu0 %1908
  %s1911 = scalar_lea.vmem [#allocation2], 8
  %1912 = vst.msk [vmem:[%s1911] sm:$0xff] %vm55, %v1909
  %s1913 = scalar_lea.vmem [#allocation3], 16
  %v1914 = vld [vmem:[%s1913] sm:$0xff]
  %v1915 = vsel %vm55, %v1909, 0
  %1917 = vmatprep.subr.mxu0 0.0
  %1918 = vmatpush1.msra.mxu0 0.0
  %1919 = vmatprep.subr.mxu0 0.0
  %1920 = vmatpush1.msra.mxu0 0.0
  %1921 = vmatprep.subr.mxu0 0.0
  %1922 = vmatpush1.msra.mxu0 0.0
  %1923 = vmatprep.subr.mxu0 0.0
  %1924 = vmatpush1.msra.mxu0 0.0
  %1925 = vmatprep.subr.mxu0 0.0
  %1926 = vmatpush1.msra.mxu0 0.0
  %1927 = vmatprep.subr.mxu0 0.0
  %1928 = vmatpush1.msra.mxu0 0.0
  %1929 = vmatprep.subr.mxu0 0.0
  %1930 = vmatpush1.msra.mxu0 0.0
  %1931 = vmatprep.subr.mxu0 0.0
  %1932 = vmatpush1.msra.mxu0 0.0
  %1933 = vmatprep.subr.mxu0 0.0
  %1934 = vmatpush1.msra.mxu0 0.0
  %1935 = vmatprep.subr.mxu0 0.0
  %1936 = vmatpush1.msra.mxu0 0.0
  %1937 = vmatprep.subr.mxu0 0.0
  %1938 = vmatpush1.msra.mxu0 0.0
  %1939 = vmatprep.subr.mxu0 0.0
  %1940 = vmatpush1.msra.mxu0 0.0
  %1941 = vmatprep.subr.mxu0 0.0
  %v1942 = vand.u32 %v39, 4294901760
  %1943 = vmatpush1.msra.mxu0 %v1942
  %1944 = vmatprep.subr.mxu0 0.0
  %v1945 = vand.u32 %v38, 4294901760
  %1946 = vmatpush1.msra.mxu0 %v1945
  %1947 = vmatprep.subr.mxu0 0.0
  %v1948 = vand.u32 %v37, 4294901760
  %1949 = vmatpush1.msra.mxu0 %v1948
  %1950 = vmatprep.subr.mxu0 0.0
  %v1951 = vand.u32 %v36, 4294901760
  %1952 = vmatpush1.msra.mxu0 %v1951
  %1953 = vmatprep.subr.mxu0 0.0
  %1954 = vmatpush2.msra.mxu0 0.0
  %1955 = vmatprep.subr.mxu0 0.0
  %1956 = vmatpush2.msra.mxu0 0.0
  %1957 = vmatprep.subr.mxu0 0.0
  %1958 = vmatpush2.msra.mxu0 0.0
  %1959 = vmatprep.subr.mxu0 0.0
  %1960 = vmatpush2.msra.mxu0 0.0
  %1961 = vmatprep.subr.mxu0 0.0
  %1962 = vmatpush2.msra.mxu0 0.0
  %1963 = vmatprep.subr.mxu0 0.0
  %1964 = vmatpush2.msra.mxu0 0.0
  %1965 = vmatprep.subr.mxu0 0.0
  %1966 = vmatpush2.msra.mxu0 0.0
  %1967 = vmatprep.subr.mxu0 0.0
  %1968 = vmatpush2.msra.mxu0 0.0
  %1969 = vmatprep.subr.mxu0 0.0
  %1970 = vmatpush2.msra.mxu0 0.0
  %1971 = vmatprep.subr.mxu0 0.0
  %1972 = vmatpush2.msra.mxu0 0.0
  %1973 = vmatprep.subr.mxu0 0.0
  %1974 = vmatpush2.msra.mxu0 0.0
  %1975 = vmatprep.subr.mxu0 0.0
  %1976 = vmatpush2.msra.mxu0 0.0
  %1977 = vmatprep.subr.mxu0 0.0
  %1978 = vmatpush2.msra.mxu0 0.0
  %1979 = vmatprep.subr.mxu0 0.0
  %1980 = vmatpush2.msra.mxu0 0.0
  %1981 = vmatprep.subr.mxu0 0.0
  %1982 = vmatpush2.msra.mxu0 0.0
  %1983 = vmatprep.subr.mxu0 0.0
  %1984 = vmatpush2.msra.mxu0 0.0
  %1985 = vmatprep.mubr.f32.mxu0 0.0
  %v1986 = vand.u32 %v1915, 4294901760
  %v1987 = vsub.f32 %v1915, %v1986
  %v1988 = vand.u32 %v1987, 4294901760
  %v1989 = vsub.f32 %v1987, %v1988
  %v1990 = vand.u32 %v1989, 4294901760
  %1991 = vmatmul.mubr.f32.gmra.mxu0 %v1990
  %v1992 = vpop.f32.mrf.mxu0
  %v1993 = vadd.f32 0.0, %v1992
  %v1994 = vpop.f32.mrf.mxu0
  %1995 = vdwg.mxu0
  %1996 = vmatprep.subr.mxu0 0.0
  %1997 = vmatpush1.msra.mxu0 0.0
  %1998 = vmatprep.subr.mxu0 0.0
  %1999 = vmatpush1.msra.mxu0 0.0
  %2000 = vmatprep.subr.mxu0 0.0
  %2001 = vmatpush1.msra.mxu0 0.0
  %2002 = vmatprep.subr.mxu0 0.0
  %2003 = vmatpush1.msra.mxu0 0.0
  %2004 = vmatprep.subr.mxu0 0.0
  %2005 = vmatpush1.msra.mxu0 0.0
  %2006 = vmatprep.subr.mxu0 0.0
  %2007 = vmatpush1.msra.mxu0 0.0
  %2008 = vmatprep.subr.mxu0 0.0
  %2009 = vmatpush1.msra.mxu0 0.0
  %2010 = vmatprep.subr.mxu0 0.0
  %2011 = vmatpush1.msra.mxu0 0.0
  %2012 = vmatprep.subr.mxu0 0.0
  %2013 = vmatpush1.msra.mxu0 0.0
  %2014 = vmatprep.subr.mxu0 0.0
  %2015 = vmatpush1.msra.mxu0 0.0
  %2016 = vmatprep.subr.mxu0 0.0
  %2017 = vmatpush1.msra.mxu0 0.0
  %2018 = vmatprep.subr.mxu0 0.0
  %2019 = vmatpush1.msra.mxu0 0.0
  %2020 = vmatprep.subr.mxu0 0.0
  %v2021 = vand.u32 %v39, 4294901760
  %v2022 = vsub.f32 %v39, %v2021
  %v2023 = vand.u32 %v2022, 4294901760
  %v2024 = vsub.f32 %v2022, %v2023
  %v2025 = vand.u32 %v2024, 4294901760
  %2026 = vmatpush1.msra.mxu0 %v2025
  %2027 = vmatprep.subr.mxu0 0.0
  %v2028 = vand.u32 %v38, 4294901760
  %v2029 = vsub.f32 %v38, %v2028
  %v2030 = vand.u32 %v2029, 4294901760
  %v2031 = vsub.f32 %v2029, %v2030
  %v2032 = vand.u32 %v2031, 4294901760
  %2033 = vmatpush1.msra.mxu0 %v2032
  %2034 = vmatprep.subr.mxu0 0.0
  %v2035 = vand.u32 %v37, 4294901760
  %v2036 = vsub.f32 %v37, %v2035
  %v2037 = vand.u32 %v2036, 4294901760
  %v2038 = vsub.f32 %v2036, %v2037
  %v2039 = vand.u32 %v2038, 4294901760
  %2040 = vmatpush1.msra.mxu0 %v2039
  %2041 = vmatprep.subr.mxu0 0.0
  %v2042 = vand.u32 %v36, 4294901760
  %v2043 = vsub.f32 %v36, %v2042
  %v2044 = vand.u32 %v2043, 4294901760
  %v2045 = vsub.f32 %v2043, %v2044
  %v2046 = vand.u32 %v2045, 4294901760
  %2047 = vmatpush1.msra.mxu0 %v2046
  %2048 = vmatprep.subr.mxu0 0.0
  %2049 = vmatpush2.msra.mxu0 0.0
  %2050 = vmatprep.subr.mxu0 0.0
  %2051 = vmatpush2.msra.mxu0 0.0
  %2052 = vmatprep.subr.mxu0 0.0
  %2053 = vmatpush2.msra.mxu0 0.0
  %2054 = vmatprep.subr.mxu0 0.0
  %2055 = vmatpush2.msra.mxu0 0.0
  %2056 = vmatprep.subr.mxu0 0.0
  %2057 = vmatpush2.msra.mxu0 0.0
  %2058 = vmatprep.subr.mxu0 0.0
  %2059 = vmatpush2.msra.mxu0 0.0
  %2060 = vmatprep.subr.mxu0 0.0
  %2061 = vmatpush2.msra.mxu0 0.0
  %2062 = vmatprep.subr.mxu0 0.0
  %2063 = vmatpush2.msra.mxu0 0.0
  %2064 = vmatprep.subr.mxu0 0.0
  %2065 = vmatpush2.msra.mxu0 0.0
  %2066 = vmatprep.subr.mxu0 0.0
  %2067 = vmatpush2.msra.mxu0 0.0
  %2068 = vmatprep.subr.mxu0 0.0
  %2069 = vmatpush2.msra.mxu0 0.0
  %2070 = vmatprep.subr.mxu0 0.0
  %2071 = vmatpush2.msra.mxu0 0.0
  %2072 = vmatprep.subr.mxu0 0.0
  %2073 = vmatpush2.msra.mxu0 0.0
  %2074 = vmatprep.subr.mxu0 0.0
  %2075 = vmatpush2.msra.mxu0 0.0
  %2076 = vmatprep.subr.mxu0 0.0
  %2077 = vmatpush2.msra.mxu0 0.0
  %2078 = vmatprep.subr.mxu0 0.0
  %2079 = vmatpush2.msra.mxu0 0.0
  %2080 = vmatprep.mubr.f32.mxu0 0.0
  %v2081 = vand.u32 %v1915, 4294901760
  %2082 = vmatmul.mubr.f32.gmra.mxu0 %v2081
  %v2083 = vpop.f32.mrf.mxu0
  %v2084 = vadd.f32 %v1993, %v2083
  %v2085 = vpop.f32.mrf.mxu0
  %2086 = vdwg.mxu0
  %2087 = vmatprep.subr.mxu0 0.0
  %2088 = vmatpush1.msra.mxu0 0.0
  %2089 = vmatprep.subr.mxu0 0.0
  %2090 = vmatpush1.msra.mxu0 0.0
  %2091 = vmatprep.subr.mxu0 0.0
  %2092 = vmatpush1.msra.mxu0 0.0
  %2093 = vmatprep.subr.mxu0 0.0
  %2094 = vmatpush1.msra.mxu0 0.0
  %2095 = vmatprep.subr.mxu0 0.0
  %2096 = vmatpush1.msra.mxu0 0.0
  %2097 = vmatprep.subr.mxu0 0.0
  %2098 = vmatpush1.msra.mxu0 0.0
  %2099 = vmatprep.subr.mxu0 0.0
  %2100 = vmatpush1.msra.mxu0 0.0
  %2101 = vmatprep.subr.mxu0 0.0
  %2102 = vmatpush1.msra.mxu0 0.0
  %2103 = vmatprep.subr.mxu0 0.0
  %2104 = vmatpush1.msra.mxu0 0.0
  %2105 = vmatprep.subr.mxu0 0.0
  %2106 = vmatpush1.msra.mxu0 0.0
  %2107 = vmatprep.subr.mxu0 0.0
  %2108 = vmatpush1.msra.mxu0 0.0
  %2109 = vmatprep.subr.mxu0 0.0
  %2110 = vmatpush1.msra.mxu0 0.0
  %2111 = vmatprep.subr.mxu0 0.0
  %v2112 = vand.u32 %v39, 4294901760
  %v2113 = vsub.f32 %v39, %v2112
  %2114 = vmatpush1.msra.mxu0 %v2113
  %2115 = vmatprep.subr.mxu0 0.0
  %v2116 = vand.u32 %v38, 4294901760
  %v2117 = vsub.f32 %v38, %v2116
  %2118 = vmatpush1.msra.mxu0 %v2117
  %2119 = vmatprep.subr.mxu0 0.0
  %v2120 = vand.u32 %v37, 4294901760
  %v2121 = vsub.f32 %v37, %v2120
  %2122 = vmatpush1.msra.mxu0 %v2121
  %2123 = vmatprep.subr.mxu0 0.0
  %v2124 = vand.u32 %v36, 4294901760
  %v2125 = vsub.f32 %v36, %v2124
  %2126 = vmatpush1.msra.mxu0 %v2125
  %2127 = vmatprep.subr.mxu0 0.0
  %2128 = vmatpush2.msra.mxu0 0.0
  %2129 = vmatprep.subr.mxu0 0.0
  %2130 = vmatpush2.msra.mxu0 0.0
  %2131 = vmatprep.subr.mxu0 0.0
  %2132 = vmatpush2.msra.mxu0 0.0
  %2133 = vmatprep.subr.mxu0 0.0
  %2134 = vmatpush2.msra.mxu0 0.0
  %2135 = vmatprep.subr.mxu0 0.0
  %2136 = vmatpush2.msra.mxu0 0.0
  %2137 = vmatprep.subr.mxu0 0.0
  %2138 = vmatpush2.msra.mxu0 0.0
  %2139 = vmatprep.subr.mxu0 0.0
  %2140 = vmatpush2.msra.mxu0 0.0
  %2141 = vmatprep.subr.mxu0 0.0
  %2142 = vmatpush2.msra.mxu0 0.0
  %2143 = vmatprep.subr.mxu0 0.0
  %2144 = vmatpush2.msra.mxu0 0.0
  %2145 = vmatprep.subr.mxu0 0.0
  %2146 = vmatpush2.msra.mxu0 0.0
  %2147 = vmatprep.subr.mxu0 0.0
  %2148 = vmatpush2.msra.mxu0 0.0
  %2149 = vmatprep.subr.mxu0 0.0
  %2150 = vmatpush2.msra.mxu0 0.0
  %2151 = vmatprep.subr.mxu0 0.0
  %2152 = vmatpush2.msra.mxu0 0.0
  %2153 = vmatprep.subr.mxu0 0.0
  %2154 = vmatpush2.msra.mxu0 0.0
  %2155 = vmatprep.subr.mxu0 0.0
  %2156 = vmatpush2.msra.mxu0 0.0
  %2157 = vmatprep.subr.mxu0 0.0
  %2158 = vmatpush2.msra.mxu0 0.0
  %2159 = vmatprep.mubr.f32.mxu0 0.0
  %v2160 = vand.u32 %v1915, 4294901760
  %v2161 = vsub.f32 %v1915, %v2160
  %2162 = vmatmul.mubr.f32.gmra.mxu0 %v2161
  %v2163 = vpop.f32.mrf.mxu0
  %v2164 = vadd.f32 %v2084, %v2163
  %v2165 = vpop.f32.mrf.mxu0
  %2166 = vdwg.mxu0
  %2167 = vmatprep.subr.mxu0 0.0
  %2168 = vmatpush1.msra.mxu0 0.0
  %2169 = vmatprep.subr.mxu0 0.0
  %2170 = vmatpush1.msra.mxu0 0.0
  %2171 = vmatprep.subr.mxu0 0.0
  %2172 = vmatpush1.msra.mxu0 0.0
  %2173 = vmatprep.subr.mxu0 0.0
  %2174 = vmatpush1.msra.mxu0 0.0
  %2175 = vmatprep.subr.mxu0 0.0
  %2176 = vmatpush1.msra.mxu0 0.0
  %2177 = vmatprep.subr.mxu0 0.0
  %2178 = vmatpush1.msra.mxu0 0.0
  %2179 = vmatprep.subr.mxu0 0.0
  %2180 = vmatpush1.msra.mxu0 0.0
  %2181 = vmatprep.subr.mxu0 0.0
  %2182 = vmatpush1.msra.mxu0 0.0
  %2183 = vmatprep.subr.mxu0 0.0
  %2184 = vmatpush1.msra.mxu0 0.0
  %2185 = vmatprep.subr.mxu0 0.0
  %2186 = vmatpush1.msra.mxu0 0.0
  %2187 = vmatprep.subr.mxu0 0.0
  %2188 = vmatpush1.msra.mxu0 0.0
  %2189 = vmatprep.subr.mxu0 0.0
  %2190 = vmatpush1.msra.mxu0 0.0
  %2191 = vmatprep.subr.mxu0 0.0
  %v2192 = vand.u32 %v39, 4294901760
  %2193 = vmatpush1.msra.mxu0 %v2192
  %2194 = vmatprep.subr.mxu0 0.0
  %v2195 = vand.u32 %v38, 4294901760
  %2196 = vmatpush1.msra.mxu0 %v2195
  %2197 = vmatprep.subr.mxu0 0.0
  %v2198 = vand.u32 %v37, 4294901760
  %2199 = vmatpush1.msra.mxu0 %v2198
  %2200 = vmatprep.subr.mxu0 0.0
  %v2201 = vand.u32 %v36, 4294901760
  %2202 = vmatpush1.msra.mxu0 %v2201
  %2203 = vmatprep.subr.mxu0 0.0
  %2204 = vmatpush2.msra.mxu0 0.0
  %2205 = vmatprep.subr.mxu0 0.0
  %2206 = vmatpush2.msra.mxu0 0.0
  %2207 = vmatprep.subr.mxu0 0.0
  %2208 = vmatpush2.msra.mxu0 0.0
  %2209 = vmatprep.subr.mxu0 0.0
  %2210 = vmatpush2.msra.mxu0 0.0
  %2211 = vmatprep.subr.mxu0 0.0
  %2212 = vmatpush2.msra.mxu0 0.0
  %2213 = vmatprep.subr.mxu0 0.0
  %2214 = vmatpush2.msra.mxu0 0.0
  %2215 = vmatprep.subr.mxu0 0.0
  %2216 = vmatpush2.msra.mxu0 0.0
  %2217 = vmatprep.subr.mxu0 0.0
  %2218 = vmatpush2.msra.mxu0 0.0
  %2219 = vmatprep.subr.mxu0 0.0
  %2220 = vmatpush2.msra.mxu0 0.0
  %2221 = vmatprep.subr.mxu0 0.0
  %2222 = vmatpush2.msra.mxu0 0.0
  %2223 = vmatprep.subr.mxu0 0.0
  %2224 = vmatpush2.msra.mxu0 0.0
  %2225 = vmatprep.subr.mxu0 0.0
  %2226 = vmatpush2.msra.mxu0 0.0
  %2227 = vmatprep.subr.mxu0 0.0
  %2228 = vmatpush2.msra.mxu0 0.0
  %2229 = vmatprep.subr.mxu0 0.0
  %2230 = vmatpush2.msra.mxu0 0.0
  %2231 = vmatprep.subr.mxu0 0.0
  %2232 = vmatpush2.msra.mxu0 0.0
  %2233 = vmatprep.subr.mxu0 0.0
  %2234 = vmatpush2.msra.mxu0 0.0
  %2235 = vmatprep.mubr.f32.mxu0 0.0
  %v2236 = vand.u32 %v1915, 4294901760
  %v2237 = vsub.f32 %v1915, %v2236
  %v2238 = vand.u32 %v2237, 4294901760
  %2239 = vmatmul.mubr.f32.gmra.mxu0 %v2238
  %v2240 = vpop.f32.mrf.mxu0
  %v2241 = vadd.f32 %v2164, %v2240
  %v2242 = vpop.f32.mrf.mxu0
  %2243 = vdwg.mxu0
  %2244 = vmatprep.subr.mxu0 0.0
  %2245 = vmatpush1.msra.mxu0 0.0
  %2246 = vmatprep.subr.mxu0 0.0
  %2247 = vmatpush1.msra.mxu0 0.0
  %2248 = vmatprep.subr.mxu0 0.0
  %2249 = vmatpush1.msra.mxu0 0.0
  %2250 = vmatprep.subr.mxu0 0.0
  %2251 = vmatpush1.msra.mxu0 0.0
  %2252 = vmatprep.subr.mxu0 0.0
  %2253 = vmatpush1.msra.mxu0 0.0
  %2254 = vmatprep.subr.mxu0 0.0
  %2255 = vmatpush1.msra.mxu0 0.0
  %2256 = vmatprep.subr.mxu0 0.0
  %2257 = vmatpush1.msra.mxu0 0.0
  %2258 = vmatprep.subr.mxu0 0.0
  %2259 = vmatpush1.msra.mxu0 0.0
  %2260 = vmatprep.subr.mxu0 0.0
  %2261 = vmatpush1.msra.mxu0 0.0
  %2262 = vmatprep.subr.mxu0 0.0
  %2263 = vmatpush1.msra.mxu0 0.0
  %2264 = vmatprep.subr.mxu0 0.0
  %2265 = vmatpush1.msra.mxu0 0.0
  %2266 = vmatprep.subr.mxu0 0.0
  %2267 = vmatpush1.msra.mxu0 0.0
  %2268 = vmatprep.subr.mxu0 0.0
  %v2269 = vand.u32 %v39, 4294901760
  %v2270 = vsub.f32 %v39, %v2269
  %v2271 = vand.u32 %v2270, 4294901760
  %2272 = vmatpush1.msra.mxu0 %v2271
  %2273 = vmatprep.subr.mxu0 0.0
  %v2274 = vand.u32 %v38, 4294901760
  %v2275 = vsub.f32 %v38, %v2274
  %v2276 = vand.u32 %v2275, 4294901760
  %2277 = vmatpush1.msra.mxu0 %v2276
  %2278 = vmatprep.subr.mxu0 0.0
  %v2279 = vand.u32 %v37, 4294901760
  %v2280 = vsub.f32 %v37, %v2279
  %v2281 = vand.u32 %v2280, 4294901760
  %2282 = vmatpush1.msra.mxu0 %v2281
  %2283 = vmatprep.subr.mxu0 0.0
  %v2284 = vand.u32 %v36, 4294901760
  %v2285 = vsub.f32 %v36, %v2284
  %v2286 = vand.u32 %v2285, 4294901760
  %2287 = vmatpush1.msra.mxu0 %v2286
  %2288 = vmatprep.subr.mxu0 0.0
  %2289 = vmatpush2.msra.mxu0 0.0
  %2290 = vmatprep.subr.mxu0 0.0
  %2291 = vmatpush2.msra.mxu0 0.0
  %2292 = vmatprep.subr.mxu0 0.0
  %2293 = vmatpush2.msra.mxu0 0.0
  %2294 = vmatprep.subr.mxu0 0.0
  %2295 = vmatpush2.msra.mxu0 0.0
  %2296 = vmatprep.subr.mxu0 0.0
  %2297 = vmatpush2.msra.mxu0 0.0
  %2298 = vmatprep.subr.mxu0 0.0
  %2299 = vmatpush2.msra.mxu0 0.0
  %2300 = vmatprep.subr.mxu0 0.0
  %2301 = vmatpush2.msra.mxu0 0.0
  %2302 = vmatprep.subr.mxu0 0.0
  %2303 = vmatpush2.msra.mxu0 0.0
  %2304 = vmatprep.subr.mxu0 0.0
  %2305 = vmatpush2.msra.mxu0 0.0
  %2306 = vmatprep.subr.mxu0 0.0
  %2307 = vmatpush2.msra.mxu0 0.0
  %2308 = vmatprep.subr.mxu0 0.0
  %2309 = vmatpush2.msra.mxu0 0.0
  %2310 = vmatprep.subr.mxu0 0.0
  %2311 = vmatpush2.msra.mxu0 0.0
  %2312 = vmatprep.subr.mxu0 0.0
  %2313 = vmatpush2.msra.mxu0 0.0
  %2314 = vmatprep.subr.mxu0 0.0
  %2315 = vmatpush2.msra.mxu0 0.0
  %2316 = vmatprep.subr.mxu0 0.0
  %2317 = vmatpush2.msra.mxu0 0.0
  %2318 = vmatprep.subr.mxu0 0.0
  %2319 = vmatpush2.msra.mxu0 0.0
  %2320 = vmatprep.mubr.f32.mxu0 0.0
  %v2321 = vand.u32 %v1915, 4294901760
  %2322 = vmatmul.mubr.f32.gmra.mxu0 %v2321
  %v2323 = vpop.f32.mrf.mxu0
  %v2324 = vadd.f32 %v2241, %v2323
  %v2325 = vpop.f32.mrf.mxu0
  %2326 = vdwg.mxu0
  %2327 = vmatprep.subr.mxu0 0.0
  %2328 = vmatpush1.msra.mxu0 0.0
  %2329 = vmatprep.subr.mxu0 0.0
  %2330 = vmatpush1.msra.mxu0 0.0
  %2331 = vmatprep.subr.mxu0 0.0
  %2332 = vmatpush1.msra.mxu0 0.0
  %2333 = vmatprep.subr.mxu0 0.0
  %2334 = vmatpush1.msra.mxu0 0.0
  %2335 = vmatprep.subr.mxu0 0.0
  %2336 = vmatpush1.msra.mxu0 0.0
  %2337 = vmatprep.subr.mxu0 0.0
  %2338 = vmatpush1.msra.mxu0 0.0
  %2339 = vmatprep.subr.mxu0 0.0
  %2340 = vmatpush1.msra.mxu0 0.0
  %2341 = vmatprep.subr.mxu0 0.0
  %2342 = vmatpush1.msra.mxu0 0.0
  %2343 = vmatprep.subr.mxu0 0.0
  %2344 = vmatpush1.msra.mxu0 0.0
  %2345 = vmatprep.subr.mxu0 0.0
  %2346 = vmatpush1.msra.mxu0 0.0
  %2347 = vmatprep.subr.mxu0 0.0
  %2348 = vmatpush1.msra.mxu0 0.0
  %2349 = vmatprep.subr.mxu0 0.0
  %2350 = vmatpush1.msra.mxu0 0.0
  %2351 = vmatprep.subr.mxu0 0.0
  %v2352 = vand.u32 %v39, 4294901760
  %2353 = vmatpush1.msra.mxu0 %v2352
  %2354 = vmatprep.subr.mxu0 0.0
  %v2355 = vand.u32 %v38, 4294901760
  %2356 = vmatpush1.msra.mxu0 %v2355
  %2357 = vmatprep.subr.mxu0 0.0
  %v2358 = vand.u32 %v37, 4294901760
  %2359 = vmatpush1.msra.mxu0 %v2358
  %2360 = vmatprep.subr.mxu0 0.0
  %v2361 = vand.u32 %v36, 4294901760
  %2362 = vmatpush1.msra.mxu0 %v2361
  %2363 = vmatprep.subr.mxu0 0.0
  %2364 = vmatpush2.msra.mxu0 0.0
  %2365 = vmatprep.subr.mxu0 0.0
  %2366 = vmatpush2.msra.mxu0 0.0
  %2367 = vmatprep.subr.mxu0 0.0
  %2368 = vmatpush2.msra.mxu0 0.0
  %2369 = vmatprep.subr.mxu0 0.0
  %2370 = vmatpush2.msra.mxu0 0.0
  %2371 = vmatprep.subr.mxu0 0.0
  %2372 = vmatpush2.msra.mxu0 0.0
  %2373 = vmatprep.subr.mxu0 0.0
  %2374 = vmatpush2.msra.mxu0 0.0
  %2375 = vmatprep.subr.mxu0 0.0
  %2376 = vmatpush2.msra.mxu0 0.0
  %2377 = vmatprep.subr.mxu0 0.0
  %2378 = vmatpush2.msra.mxu0 0.0
  %2379 = vmatprep.subr.mxu0 0.0
  %2380 = vmatpush2.msra.mxu0 0.0
  %2381 = vmatprep.subr.mxu0 0.0
  %2382 = vmatpush2.msra.mxu0 0.0
  %2383 = vmatprep.subr.mxu0 0.0
  %2384 = vmatpush2.msra.mxu0 0.0
  %2385 = vmatprep.subr.mxu0 0.0
  %2386 = vmatpush2.msra.mxu0 0.0
  %2387 = vmatprep.subr.mxu0 0.0
  %2388 = vmatpush2.msra.mxu0 0.0
  %2389 = vmatprep.subr.mxu0 0.0
  %2390 = vmatpush2.msra.mxu0 0.0
  %2391 = vmatprep.subr.mxu0 0.0
  %2392 = vmatpush2.msra.mxu0 0.0
  %2393 = vmatprep.subr.mxu0 0.0
  %2394 = vmatpush2.msra.mxu0 0.0
  %2395 = vmatprep.mubr.f32.mxu0 0.0
  %v2396 = vand.u32 %v1915, 4294901760
  %2397 = vmatmul.mubr.f32.gmra.mxu0 %v2396
  %v2398 = vpop.f32.mrf.mxu0
  %v2399 = vadd.f32 %v2324, %v2398
  %v2400 = vpop.f32.mrf.mxu0
  %2401 = vdwg.mxu0
  %v2402 = vadd.f32 %v1914, %v2399
  %v2403 = vsub.f32 0.0, %v2402
  %v2404 = vmul.f32 %v2403, 1.442695
  %v2405 = vpow.pop %v2404
  %v2406 = vadd.f32 %v2405, 1.0
  %v2407 = vrcp.pop %v2406
  %v2408 = vmul.f32 1.0, %v2407
  %v2409 = vtanh.pop %v2402
  %v2410 = vmul.f32 %v2408, %v1900
  %2412 = vrot.lane.b32.xlu0 %v2409, 64
  %v2413 = vpop.permute.xlu0 %2412
  %v2415 = vmul.f32 %v2408, %v2413
  %2417 = vrot.lane.b32.xlu0 %v2415, 32
  %v2418 = vpop.permute.xlu0 %2417
  %v2420 = vadd.f32 %v2410, %v2418
  %v2421 = vtanh.pop %v2420
  %2423 = vrot.lane.b32.xlu0 %v2421, 64
  %v2424 = vpop.permute.xlu0 %2423
  %v2426 = vmul.f32 %v2408, %v2424
  %2428 = vrot.lane.b32.xlu0 %v2426, 32
  %v2429 = vpop.permute.xlu0 %2428
  %s2431 = scalar_lea.vmem [#allocation2], 16
  %2432 = vst.msk [vmem:[%s2431] sm:$0xff] %vm55, %v2429
  %s2433 = scalar_lea.vmem [#allocation3], 24
  %v2434 = vld [vmem:[%s2433] sm:$0xff]
  %v2435 = vsel %vm55, %v2429, 0
  %2437 = vmatprep.subr.mxu0 0.0
  %2438 = vmatpush1.msra.mxu0 0.0
  %2439 = vmatprep.subr.mxu0 0.0
  %2440 = vmatpush1.msra.mxu0 0.0
  %2441 = vmatprep.subr.mxu0 0.0
  %2442 = vmatpush1.msra.mxu0 0.0
  %2443 = vmatprep.subr.mxu0 0.0
  %2444 = vmatpush1.msra.mxu0 0.0
  %2445 = vmatprep.subr.mxu0 0.0
  %2446 = vmatpush1.msra.mxu0 0.0
  %2447 = vmatprep.subr.mxu0 0.0
  %2448 = vmatpush1.msra.mxu0 0.0
  %2449 = vmatprep.subr.mxu0 0.0
  %2450 = vmatpush1.msra.mxu0 0.0
  %2451 = vmatprep.subr.mxu0 0.0
  %2452 = vmatpush1.msra.mxu0 0.0
  %2453 = vmatprep.subr.mxu0 0.0
  %2454 = vmatpush1.msra.mxu0 0.0
  %2455 = vmatprep.subr.mxu0 0.0
  %2456 = vmatpush1.msra.mxu0 0.0
  %2457 = vmatprep.subr.mxu0 0.0
  %2458 = vmatpush1.msra.mxu0 0.0
  %2459 = vmatprep.subr.mxu0 0.0
  %2460 = vmatpush1.msra.mxu0 0.0
  %2461 = vmatprep.subr.mxu0 0.0
  %v2462 = vand.u32 %v39, 4294901760
  %2463 = vmatpush1.msra.mxu0 %v2462
  %2464 = vmatprep.subr.mxu0 0.0
  %v2465 = vand.u32 %v38, 4294901760
  %2466 = vmatpush1.msra.mxu0 %v2465
  %2467 = vmatprep.subr.mxu0 0.0
  %v2468 = vand.u32 %v37, 4294901760
  %2469 = vmatpush1.msra.mxu0 %v2468
  %2470 = vmatprep.subr.mxu0 0.0
  %v2471 = vand.u32 %v36, 4294901760
  %2472 = vmatpush1.msra.mxu0 %v2471
  %2473 = vmatprep.subr.mxu0 0.0
  %2474 = vmatpush2.msra.mxu0 0.0
  %2475 = vmatprep.subr.mxu0 0.0
  %2476 = vmatpush2.msra.mxu0 0.0
  %2477 = vmatprep.subr.mxu0 0.0
  %2478 = vmatpush2.msra.mxu0 0.0
  %2479 = vmatprep.subr.mxu0 0.0
  %2480 = vmatpush2.msra.mxu0 0.0
  %2481 = vmatprep.subr.mxu0 0.0
  %2482 = vmatpush2.msra.mxu0 0.0
  %2483 = vmatprep.subr.mxu0 0.0
  %2484 = vmatpush2.msra.mxu0 0.0
  %2485 = vmatprep.subr.mxu0 0.0
  %2486 = vmatpush2.msra.mxu0 0.0
  %2487 = vmatprep.subr.mxu0 0.0
  %2488 = vmatpush2.msra.mxu0 0.0
  %2489 = vmatprep.subr.mxu0 0.0
  %2490 = vmatpush2.msra.mxu0 0.0
  %2491 = vmatprep.subr.mxu0 0.0
  %2492 = vmatpush2.msra.mxu0 0.0
  %2493 = vmatprep.subr.mxu0 0.0
  %2494 = vmatpush2.msra.mxu0 0.0
  %2495 = vmatprep.subr.mxu0 0.0
  %2496 = vmatpush2.msra.mxu0 0.0
  %2497 = vmatprep.subr.mxu0 0.0
  %2498 = vmatpush2.msra.mxu0 0.0
  %2499 = vmatprep.subr.mxu0 0.0
  %2500 = vmatpush2.msra.mxu0 0.0
  %2501 = vmatprep.subr.mxu0 0.0
  %2502 = vmatpush2.msra.mxu0 0.0
  %2503 = vmatprep.subr.mxu0 0.0
  %2504 = vmatpush2.msra.mxu0 0.0
  %2505 = vmatprep.mubr.f32.mxu0 0.0
  %v2506 = vand.u32 %v2435, 4294901760
  %v2507 = vsub.f32 %v2435, %v2506
  %v2508 = vand.u32 %v2507, 4294901760
  %v2509 = vsub.f32 %v2507, %v2508
  %v2510 = vand.u32 %v2509, 4294901760
  %2511 = vmatmul.mubr.f32.gmra.mxu0 %v2510
  %v2512 = vpop.f32.mrf.mxu0
  %v2513 = vadd.f32 0.0, %v2512
  %v2514 = vpop.f32.mrf.mxu0
  %2515 = vdwg.mxu0
  %2516 = vmatprep.subr.mxu0 0.0
  %2517 = vmatpush1.msra.mxu0 0.0
  %2518 = vmatprep.subr.mxu0 0.0
  %2519 = vmatpush1.msra.mxu0 0.0
  %2520 = vmatprep.subr.mxu0 0.0
  %2521 = vmatpush1.msra.mxu0 0.0
  %2522 = vmatprep.subr.mxu0 0.0
  %2523 = vmatpush1.msra.mxu0 0.0
  %2524 = vmatprep.subr.mxu0 0.0
  %2525 = vmatpush1.msra.mxu0 0.0
  %2526 = vmatprep.subr.mxu0 0.0
  %2527 = vmatpush1.msra.mxu0 0.0
  %2528 = vmatprep.subr.mxu0 0.0
  %2529 = vmatpush1.msra.mxu0 0.0
  %2530 = vmatprep.subr.mxu0 0.0
  %2531 = vmatpush1.msra.mxu0 0.0
  %2532 = vmatprep.subr.mxu0 0.0
  %2533 = vmatpush1.msra.mxu0 0.0
  %2534 = vmatprep.subr.mxu0 0.0
  %2535 = vmatpush1.msra.mxu0 0.0
  %2536 = vmatprep.subr.mxu0 0.0
  %2537 = vmatpush1.msra.mxu0 0.0
  %2538 = vmatprep.subr.mxu0 0.0
  %2539 = vmatpush1.msra.mxu0 0.0
  %2540 = vmatprep.subr.mxu0 0.0
  %v2541 = vand.u32 %v39, 4294901760
  %v2542 = vsub.f32 %v39, %v2541
  %v2543 = vand.u32 %v2542, 4294901760
  %v2544 = vsub.f32 %v2542, %v2543
  %v2545 = vand.u32 %v2544, 4294901760
  %2546 = vmatpush1.msra.mxu0 %v2545
  %2547 = vmatprep.subr.mxu0 0.0
  %v2548 = vand.u32 %v38, 4294901760
  %v2549 = vsub.f32 %v38, %v2548
  %v2550 = vand.u32 %v2549, 4294901760
  %v2551 = vsub.f32 %v2549, %v2550
  %v2552 = vand.u32 %v2551, 4294901760
  %2553 = vmatpush1.msra.mxu0 %v2552
  %2554 = vmatprep.subr.mxu0 0.0
  %v2555 = vand.u32 %v37, 4294901760
  %v2556 = vsub.f32 %v37, %v2555
  %v2557 = vand.u32 %v2556, 4294901760
  %v2558 = vsub.f32 %v2556, %v2557
  %v2559 = vand.u32 %v2558, 4294901760
  %2560 = vmatpush1.msra.mxu0 %v2559
  %2561 = vmatprep.subr.mxu0 0.0
  %v2562 = vand.u32 %v36, 4294901760
  %v2563 = vsub.f32 %v36, %v2562
  %v2564 = vand.u32 %v2563, 4294901760
  %v2565 = vsub.f32 %v2563, %v2564
  %v2566 = vand.u32 %v2565, 4294901760
  %2567 = vmatpush1.msra.mxu0 %v2566
  %2568 = vmatprep.subr.mxu0 0.0
  %2569 = vmatpush2.msra.mxu0 0.0
  %2570 = vmatprep.subr.mxu0 0.0
  %2571 = vmatpush2.msra.mxu0 0.0
  %2572 = vmatprep.subr.mxu0 0.0
  %2573 = vmatpush2.msra.mxu0 0.0
  %2574 = vmatprep.subr.mxu0 0.0
  %2575 = vmatpush2.msra.mxu0 0.0
  %2576 = vmatprep.subr.mxu0 0.0
  %2577 = vmatpush2.msra.mxu0 0.0
  %2578 = vmatprep.subr.mxu0 0.0
  %2579 = vmatpush2.msra.mxu0 0.0
  %2580 = vmatprep.subr.mxu0 0.0
  %2581 = vmatpush2.msra.mxu0 0.0
  %2582 = vmatprep.subr.mxu0 0.0
  %2583 = vmatpush2.msra.mxu0 0.0
  %2584 = vmatprep.subr.mxu0 0.0
  %2585 = vmatpush2.msra.mxu0 0.0
  %2586 = vmatprep.subr.mxu0 0.0
  %2587 = vmatpush2.msra.mxu0 0.0
  %2588 = vmatprep.subr.mxu0 0.0
  %2589 = vmatpush2.msra.mxu0 0.0
  %2590 = vmatprep.subr.mxu0 0.0
  %2591 = vmatpush2.msra.mxu0 0.0
  %2592 = vmatprep.subr.mxu0 0.0
  %2593 = vmatpush2.msra.mxu0 0.0
  %2594 = vmatprep.subr.mxu0 0.0
  %2595 = vmatpush2.msra.mxu0 0.0
  %2596 = vmatprep.subr.mxu0 0.0
  %2597 = vmatpush2.msra.mxu0 0.0
  %2598 = vmatprep.subr.mxu0 0.0
  %2599 = vmatpush2.msra.mxu0 0.0
  %2600 = vmatprep.mubr.f32.mxu0 0.0
  %v2601 = vand.u32 %v2435, 4294901760
  %2602 = vmatmul.mubr.f32.gmra.mxu0 %v2601
  %v2603 = vpop.f32.mrf.mxu0
  %v2604 = vadd.f32 %v2513, %v2603
  %v2605 = vpop.f32.mrf.mxu0
  %2606 = vdwg.mxu0
  %2607 = vmatprep.subr.mxu0 0.0
  %2608 = vmatpush1.msra.mxu0 0.0
  %2609 = vmatprep.subr.mxu0 0.0
  %2610 = vmatpush1.msra.mxu0 0.0
  %2611 = vmatprep.subr.mxu0 0.0
  %2612 = vmatpush1.msra.mxu0 0.0
  %2613 = vmatprep.subr.mxu0 0.0
  %2614 = vmatpush1.msra.mxu0 0.0
  %2615 = vmatprep.subr.mxu0 0.0
  %2616 = vmatpush1.msra.mxu0 0.0
  %2617 = vmatprep.subr.mxu0 0.0
  %2618 = vmatpush1.msra.mxu0 0.0
  %2619 = vmatprep.subr.mxu0 0.0
  %2620 = vmatpush1.msra.mxu0 0.0
  %2621 = vmatprep.subr.mxu0 0.0
  %2622 = vmatpush1.msra.mxu0 0.0
  %2623 = vmatprep.subr.mxu0 0.0
  %2624 = vmatpush1.msra.mxu0 0.0
  %2625 = vmatprep.subr.mxu0 0.0
  %2626 = vmatpush1.msra.mxu0 0.0
  %2627 = vmatprep.subr.mxu0 0.0
  %2628 = vmatpush1.msra.mxu0 0.0
  %2629 = vmatprep.subr.mxu0 0.0
  %2630 = vmatpush1.msra.mxu0 0.0
  %2631 = vmatprep.subr.mxu0 0.0
  %v2632 = vand.u32 %v39, 4294901760
  %v2633 = vsub.f32 %v39, %v2632
  %2634 = vmatpush1.msra.mxu0 %v2633
  %2635 = vmatprep.subr.mxu0 0.0
  %v2636 = vand.u32 %v38, 4294901760
  %v2637 = vsub.f32 %v38, %v2636
  %2638 = vmatpush1.msra.mxu0 %v2637
  %2639 = vmatprep.subr.mxu0 0.0
  %v2640 = vand.u32 %v37, 4294901760
  %v2641 = vsub.f32 %v37, %v2640
  %2642 = vmatpush1.msra.mxu0 %v2641
  %2643 = vmatprep.subr.mxu0 0.0
  %v2644 = vand.u32 %v36, 4294901760
  %v2645 = vsub.f32 %v36, %v2644
  %2646 = vmatpush1.msra.mxu0 %v2645
  %2647 = vmatprep.subr.mxu0 0.0
  %2648 = vmatpush2.msra.mxu0 0.0
  %2649 = vmatprep.subr.mxu0 0.0
  %2650 = vmatpush2.msra.mxu0 0.0
  %2651 = vmatprep.subr.mxu0 0.0
  %2652 = vmatpush2.msra.mxu0 0.0
  %2653 = vmatprep.subr.mxu0 0.0
  %2654 = vmatpush2.msra.mxu0 0.0
  %2655 = vmatprep.subr.mxu0 0.0
  %2656 = vmatpush2.msra.mxu0 0.0
  %2657 = vmatprep.subr.mxu0 0.0
  %2658 = vmatpush2.msra.mxu0 0.0
  %2659 = vmatprep.subr.mxu0 0.0
  %2660 = vmatpush2.msra.mxu0 0.0
  %2661 = vmatprep.subr.mxu0 0.0
  %2662 = vmatpush2.msra.mxu0 0.0
  %2663 = vmatprep.subr.mxu0 0.0
  %2664 = vmatpush2.msra.mxu0 0.0
  %2665 = vmatprep.subr.mxu0 0.0
  %2666 = vmatpush2.msra.mxu0 0.0
  %2667 = vmatprep.subr.mxu0 0.0
  %2668 = vmatpush2.msra.mxu0 0.0
  %2669 = vmatprep.subr.mxu0 0.0
  %2670 = vmatpush2.msra.mxu0 0.0
  %2671 = vmatprep.subr.mxu0 0.0
  %2672 = vmatpush2.msra.mxu0 0.0
  %2673 = vmatprep.subr.mxu0 0.0
  %2674 = vmatpush2.msra.mxu0 0.0
  %2675 = vmatprep.subr.mxu0 0.0
  %2676 = vmatpush2.msra.mxu0 0.0
  %2677 = vmatprep.subr.mxu0 0.0
  %2678 = vmatpush2.msra.mxu0 0.0
  %2679 = vmatprep.mubr.f32.mxu0 0.0
  %v2680 = vand.u32 %v2435, 4294901760
  %v2681 = vsub.f32 %v2435, %v2680
  %2682 = vmatmul.mubr.f32.gmra.mxu0 %v2681
  %v2683 = vpop.f32.mrf.mxu0
  %v2684 = vadd.f32 %v2604, %v2683
  %v2685 = vpop.f32.mrf.mxu0
  %2686 = vdwg.mxu0
  %2687 = vmatprep.subr.mxu0 0.0
  %2688 = vmatpush1.msra.mxu0 0.0
  %2689 = vmatprep.subr.mxu0 0.0
  %2690 = vmatpush1.msra.mxu0 0.0
  %2691 = vmatprep.subr.mxu0 0.0
  %2692 = vmatpush1.msra.mxu0 0.0
  %2693 = vmatprep.subr.mxu0 0.0
  %2694 = vmatpush1.msra.mxu0 0.0
  %2695 = vmatprep.subr.mxu0 0.0
  %2696 = vmatpush1.msra.mxu0 0.0
  %2697 = vmatprep.subr.mxu0 0.0
  %2698 = vmatpush1.msra.mxu0 0.0
  %2699 = vmatprep.subr.mxu0 0.0
  %2700 = vmatpush1.msra.mxu0 0.0
  %2701 = vmatprep.subr.mxu0 0.0
  %2702 = vmatpush1.msra.mxu0 0.0
  %2703 = vmatprep.subr.mxu0 0.0
  %2704 = vmatpush1.msra.mxu0 0.0
  %2705 = vmatprep.subr.mxu0 0.0
  %2706 = vmatpush1.msra.mxu0 0.0
  %2707 = vmatprep.subr.mxu0 0.0
  %2708 = vmatpush1.msra.mxu0 0.0
  %2709 = vmatprep.subr.mxu0 0.0
  %2710 = vmatpush1.msra.mxu0 0.0
  %2711 = vmatprep.subr.mxu0 0.0
  %v2712 = vand.u32 %v39, 4294901760
  %2713 = vmatpush1.msra.mxu0 %v2712
  %2714 = vmatprep.subr.mxu0 0.0
  %v2715 = vand.u32 %v38, 4294901760
  %2716 = vmatpush1.msra.mxu0 %v2715
  %2717 = vmatprep.subr.mxu0 0.0
  %v2718 = vand.u32 %v37, 4294901760
  %2719 = vmatpush1.msra.mxu0 %v2718
  %2720 = vmatprep.subr.mxu0 0.0
  %v2721 = vand.u32 %v36, 4294901760
  %2722 = vmatpush1.msra.mxu0 %v2721
  %2723 = vmatprep.subr.mxu0 0.0
  %2724 = vmatpush2.msra.mxu0 0.0
  %2725 = vmatprep.subr.mxu0 0.0
  %2726 = vmatpush2.msra.mxu0 0.0
  %2727 = vmatprep.subr.mxu0 0.0
  %2728 = vmatpush2.msra.mxu0 0.0
  %2729 = vmatprep.subr.mxu0 0.0
  %2730 = vmatpush2.msra.mxu0 0.0
  %2731 = vmatprep.subr.mxu0 0.0
  %2732 = vmatpush2.msra.mxu0 0.0
  %2733 = vmatprep.subr.mxu0 0.0
  %2734 = vmatpush2.msra.mxu0 0.0
  %2735 = vmatprep.subr.mxu0 0.0
  %2736 = vmatpush2.msra.mxu0 0.0
  %2737 = vmatprep.subr.mxu0 0.0
  %2738 = vmatpush2.msra.mxu0 0.0
  %2739 = vmatprep.subr.mxu0 0.0
  %2740 = vmatpush2.msra.mxu0 0.0
  %2741 = vmatprep.subr.mxu0 0.0
  %2742 = vmatpush2.msra.mxu0 0.0
  %2743 = vmatprep.subr.mxu0 0.0
  %2744 = vmatpush2.msra.mxu0 0.0
  %2745 = vmatprep.subr.mxu0 0.0
  %2746 = vmatpush2.msra.mxu0 0.0
  %2747 = vmatprep.subr.mxu0 0.0
  %2748 = vmatpush2.msra.mxu0 0.0
  %2749 = vmatprep.subr.mxu0 0.0
  %2750 = vmatpush2.msra.mxu0 0.0
  %2751 = vmatprep.subr.mxu0 0.0
  %2752 = vmatpush2.msra.mxu0 0.0
  %2753 = vmatprep.subr.mxu0 0.0
  %2754 = vmatpush2.msra.mxu0 0.0
  %2755 = vmatprep.mubr.f32.mxu0 0.0
  %v2756 = vand.u32 %v2435, 4294901760
  %v2757 = vsub.f32 %v2435, %v2756
  %v2758 = vand.u32 %v2757, 4294901760
  %2759 = vmatmul.mubr.f32.gmra.mxu0 %v2758
  %v2760 = vpop.f32.mrf.mxu0
  %v2761 = vadd.f32 %v2684, %v2760
  %v2762 = vpop.f32.mrf.mxu0
  %2763 = vdwg.mxu0
  %2764 = vmatprep.subr.mxu0 0.0
  %2765 = vmatpush1.msra.mxu0 0.0
  %2766 = vmatprep.subr.mxu0 0.0
  %2767 = vmatpush1.msra.mxu0 0.0
  %2768 = vmatprep.subr.mxu0 0.0
  %2769 = vmatpush1.msra.mxu0 0.0
  %2770 = vmatprep.subr.mxu0 0.0
  %2771 = vmatpush1.msra.mxu0 0.0
  %2772 = vmatprep.subr.mxu0 0.0
  %2773 = vmatpush1.msra.mxu0 0.0
  %2774 = vmatprep.subr.mxu0 0.0
  %2775 = vmatpush1.msra.mxu0 0.0
  %2776 = vmatprep.subr.mxu0 0.0
  %2777 = vmatpush1.msra.mxu0 0.0
  %2778 = vmatprep.subr.mxu0 0.0
  %2779 = vmatpush1.msra.mxu0 0.0
  %2780 = vmatprep.subr.mxu0 0.0
  %2781 = vmatpush1.msra.mxu0 0.0
  %2782 = vmatprep.subr.mxu0 0.0
  %2783 = vmatpush1.msra.mxu0 0.0
  %2784 = vmatprep.subr.mxu0 0.0
  %2785 = vmatpush1.msra.mxu0 0.0
  %2786 = vmatprep.subr.mxu0 0.0
  %2787 = vmatpush1.msra.mxu0 0.0
  %2788 = vmatprep.subr.mxu0 0.0
  %v2789 = vand.u32 %v39, 4294901760
  %v2790 = vsub.f32 %v39, %v2789
  %v2791 = vand.u32 %v2790, 4294901760
  %2792 = vmatpush1.msra.mxu0 %v2791
  %2793 = vmatprep.subr.mxu0 0.0
  %v2794 = vand.u32 %v38, 4294901760
  %v2795 = vsub.f32 %v38, %v2794
  %v2796 = vand.u32 %v2795, 4294901760
  %2797 = vmatpush1.msra.mxu0 %v2796
  %2798 = vmatprep.subr.mxu0 0.0
  %v2799 = vand.u32 %v37, 4294901760
  %v2800 = vsub.f32 %v37, %v2799
  %v2801 = vand.u32 %v2800, 4294901760
  %2802 = vmatpush1.msra.mxu0 %v2801
  %2803 = vmatprep.subr.mxu0 0.0
  %v2804 = vand.u32 %v36, 4294901760
  %v2805 = vsub.f32 %v36, %v2804
  %v2806 = vand.u32 %v2805, 4294901760
  %2807 = vmatpush1.msra.mxu0 %v2806
  %2808 = vmatprep.subr.mxu0 0.0
  %2809 = vmatpush2.msra.mxu0 0.0
  %2810 = vmatprep.subr.mxu0 0.0
  %2811 = vmatpush2.msra.mxu0 0.0
  %2812 = vmatprep.subr.mxu0 0.0
  %2813 = vmatpush2.msra.mxu0 0.0
  %2814 = vmatprep.subr.mxu0 0.0
  %2815 = vmatpush2.msra.mxu0 0.0
  %2816 = vmatprep.subr.mxu0 0.0
  %2817 = vmatpush2.msra.mxu0 0.0
  %2818 = vmatprep.subr.mxu0 0.0
  %2819 = vmatpush2.msra.mxu0 0.0
  %2820 = vmatprep.subr.mxu0 0.0
  %2821 = vmatpush2.msra.mxu0 0.0
  %2822 = vmatprep.subr.mxu0 0.0
  %2823 = vmatpush2.msra.mxu0 0.0
  %2824 = vmatprep.subr.mxu0 0.0
  %2825 = vmatpush2.msra.mxu0 0.0
  %2826 = vmatprep.subr.mxu0 0.0
  %2827 = vmatpush2.msra.mxu0 0.0
  %2828 = vmatprep.subr.mxu0 0.0
  %2829 = vmatpush2.msra.mxu0 0.0
  %2830 = vmatprep.subr.mxu0 0.0
  %2831 = vmatpush2.msra.mxu0 0.0
  %2832 = vmatprep.subr.mxu0 0.0
  %2833 = vmatpush2.msra.mxu0 0.0
  %2834 = vmatprep.subr.mxu0 0.0
  %2835 = vmatpush2.msra.mxu0 0.0
  %2836 = vmatprep.subr.mxu0 0.0
  %2837 = vmatpush2.msra.mxu0 0.0
  %2838 = vmatprep.subr.mxu0 0.0
  %2839 = vmatpush2.msra.mxu0 0.0
  %2840 = vmatprep.mubr.f32.mxu0 0.0
  %v2841 = vand.u32 %v2435, 4294901760
  %2842 = vmatmul.mubr.f32.gmra.mxu0 %v2841
  %v2843 = vpop.f32.mrf.mxu0
  %v2844 = vadd.f32 %v2761, %v2843
  %v2845 = vpop.f32.mrf.mxu0
  %2846 = vdwg.mxu0
  %2847 = vmatprep.subr.mxu0 0.0
  %2848 = vmatpush1.msra.mxu0 0.0
  %2849 = vmatprep.subr.mxu0 0.0
  %2850 = vmatpush1.msra.mxu0 0.0
  %2851 = vmatprep.subr.mxu0 0.0
  %2852 = vmatpush1.msra.mxu0 0.0
  %2853 = vmatprep.subr.mxu0 0.0
  %2854 = vmatpush1.msra.mxu0 0.0
  %2855 = vmatprep.subr.mxu0 0.0
  %2856 = vmatpush1.msra.mxu0 0.0
  %2857 = vmatprep.subr.mxu0 0.0
  %2858 = vmatpush1.msra.mxu0 0.0
  %2859 = vmatprep.subr.mxu0 0.0
  %2860 = vmatpush1.msra.mxu0 0.0
  %2861 = vmatprep.subr.mxu0 0.0
  %2862 = vmatpush1.msra.mxu0 0.0
  %2863 = vmatprep.subr.mxu0 0.0
  %2864 = vmatpush1.msra.mxu0 0.0
  %2865 = vmatprep.subr.mxu0 0.0
  %2866 = vmatpush1.msra.mxu0 0.0
  %2867 = vmatprep.subr.mxu0 0.0
  %2868 = vmatpush1.msra.mxu0 0.0
  %2869 = vmatprep.subr.mxu0 0.0
  %2870 = vmatpush1.msra.mxu0 0.0
  %2871 = vmatprep.subr.mxu0 0.0
  %v2872 = vand.u32 %v39, 4294901760
  %2873 = vmatpush1.msra.mxu0 %v2872
  %2874 = vmatprep.subr.mxu0 0.0
  %v2875 = vand.u32 %v38, 4294901760
  %2876 = vmatpush1.msra.mxu0 %v2875
  %2877 = vmatprep.subr.mxu0 0.0
  %v2878 = vand.u32 %v37, 4294901760
  %2879 = vmatpush1.msra.mxu0 %v2878
  %2880 = vmatprep.subr.mxu0 0.0
  %v2881 = vand.u32 %v36, 4294901760
  %2882 = vmatpush1.msra.mxu0 %v2881
  %2883 = vmatprep.subr.mxu0 0.0
  %2884 = vmatpush2.msra.mxu0 0.0
  %2885 = vmatprep.subr.mxu0 0.0
  %2886 = vmatpush2.msra.mxu0 0.0
  %2887 = vmatprep.subr.mxu0 0.0
  %2888 = vmatpush2.msra.mxu0 0.0
  %2889 = vmatprep.subr.mxu0 0.0
  %2890 = vmatpush2.msra.mxu0 0.0
  %2891 = vmatprep.subr.mxu0 0.0
  %2892 = vmatpush2.msra.mxu0 0.0
  %2893 = vmatprep.subr.mxu0 0.0
  %2894 = vmatpush2.msra.mxu0 0.0
  %2895 = vmatprep.subr.mxu0 0.0
  %2896 = vmatpush2.msra.mxu0 0.0
  %2897 = vmatprep.subr.mxu0 0.0
  %2898 = vmatpush2.msra.mxu0 0.0
  %2899 = vmatprep.subr.mxu0 0.0
  %2900 = vmatpush2.msra.mxu0 0.0
  %2901 = vmatprep.subr.mxu0 0.0
  %2902 = vmatpush2.msra.mxu0 0.0
  %2903 = vmatprep.subr.mxu0 0.0
  %2904 = vmatpush2.msra.mxu0 0.0
  %2905 = vmatprep.subr.mxu0 0.0
  %2906 = vmatpush2.msra.mxu0 0.0
  %2907 = vmatprep.subr.mxu0 0.0
  %2908 = vmatpush2.msra.mxu0 0.0
  %2909 = vmatprep.subr.mxu0 0.0
  %2910 = vmatpush2.msra.mxu0 0.0
  %2911 = vmatprep.subr.mxu0 0.0
  %2912 = vmatpush2.msra.mxu0 0.0
  %2913 = vmatprep.subr.mxu0 0.0
  %2914 = vmatpush2.msra.mxu0 0.0
  %2915 = vmatprep.mubr.f32.mxu0 0.0
  %v2916 = vand.u32 %v2435, 4294901760
  %2917 = vmatmul.mubr.f32.gmra.mxu0 %v2916
  %v2918 = vpop.f32.mrf.mxu0
  %v2919 = vadd.f32 %v2844, %v2918
  %v2920 = vpop.f32.mrf.mxu0
  %2921 = vdwg.mxu0
  %v2922 = vadd.f32 %v2434, %v2919
  %v2923 = vsub.f32 0.0, %v2922
  %v2924 = vmul.f32 %v2923, 1.442695
  %v2925 = vpow.pop %v2924
  %v2926 = vadd.f32 %v2925, 1.0
  %v2927 = vrcp.pop %v2926
  %v2928 = vmul.f32 1.0, %v2927
  %v2929 = vtanh.pop %v2922
  %v2930 = vmul.f32 %v2928, %v2420
  %2932 = vrot.lane.b32.xlu0 %v2929, 64
  %v2933 = vpop.permute.xlu0 %2932
  %v2935 = vmul.f32 %v2928, %v2933
  %2937 = vrot.lane.b32.xlu0 %v2935, 32
  %v2938 = vpop.permute.xlu0 %2937
  %v2940 = vadd.f32 %v2930, %v2938
  %v2941 = vtanh.pop %v2940
  %2943 = vrot.lane.b32.xlu0 %v2941, 64
  %v2944 = vpop.permute.xlu0 %2943
  %v2946 = vmul.f32 %v2928, %v2944
  %2948 = vrot.lane.b32.xlu0 %v2946, 32
  %v2949 = vpop.permute.xlu0 %2948
  %s2951 = scalar_lea.vmem [#allocation2], 24
  %2952 = vst.msk [vmem:[%s2951] sm:$0xff] %vm55, %v2949
  %s2953 = scalar_lea.vmem [#allocation3], 32
  %v2954 = vld [vmem:[%s2953] sm:$0xff]
  %v2955 = vsel %vm55, %v2949, 0
  %2957 = vmatprep.subr.mxu0 0.0
  %2958 = vmatpush1.msra.mxu0 0.0
  %2959 = vmatprep.subr.mxu0 0.0
  %2960 = vmatpush1.msra.mxu0 0.0
  %2961 = vmatprep.subr.mxu0 0.0
  %2962 = vmatpush1.msra.mxu0 0.0
  %2963 = vmatprep.subr.mxu0 0.0
  %2964 = vmatpush1.msra.mxu0 0.0
  %2965 = vmatprep.subr.mxu0 0.0
  %2966 = vmatpush1.msra.mxu0 0.0
  %2967 = vmatprep.subr.mxu0 0.0
  %2968 = vmatpush1.msra.mxu0 0.0
  %2969 = vmatprep.subr.mxu0 0.0
  %2970 = vmatpush1.msra.mxu0 0.0
  %2971 = vmatprep.subr.mxu0 0.0
  %2972 = vmatpush1.msra.mxu0 0.0
  %2973 = vmatprep.subr.mxu0 0.0
  %2974 = vmatpush1.msra.mxu0 0.0
  %2975 = vmatprep.subr.mxu0 0.0
  %2976 = vmatpush1.msra.mxu0 0.0
  %2977 = vmatprep.subr.mxu0 0.0
  %2978 = vmatpush1.msra.mxu0 0.0
  %2979 = vmatprep.subr.mxu0 0.0
  %2980 = vmatpush1.msra.mxu0 0.0
  %2981 = vmatprep.subr.mxu0 0.0
  %v2982 = vand.u32 %v39, 4294901760
  %2983 = vmatpush1.msra.mxu0 %v2982
  %2984 = vmatprep.subr.mxu0 0.0
  %v2985 = vand.u32 %v38, 4294901760
  %2986 = vmatpush1.msra.mxu0 %v2985
  %2987 = vmatprep.subr.mxu0 0.0
  %v2988 = vand.u32 %v37, 4294901760
  %2989 = vmatpush1.msra.mxu0 %v2988
  %2990 = vmatprep.subr.mxu0 0.0
  %v2991 = vand.u32 %v36, 4294901760
  %2992 = vmatpush1.msra.mxu0 %v2991
  %2993 = vmatprep.subr.mxu0 0.0
  %2994 = vmatpush2.msra.mxu0 0.0
  %2995 = vmatprep.subr.mxu0 0.0
  %2996 = vmatpush2.msra.mxu0 0.0
  %2997 = vmatprep.subr.mxu0 0.0
  %2998 = vmatpush2.msra.mxu0 0.0
  %2999 = vmatprep.subr.mxu0 0.0
  %3000 = vmatpush2.msra.mxu0 0.0
  %3001 = vmatprep.subr.mxu0 0.0
  %3002 = vmatpush2.msra.mxu0 0.0
  %3003 = vmatprep.subr.mxu0 0.0
  %3004 = vmatpush2.msra.mxu0 0.0
  %3005 = vmatprep.subr.mxu0 0.0
  %3006 = vmatpush2.msra.mxu0 0.0
  %3007 = vmatprep.subr.mxu0 0.0
  %3008 = vmatpush2.msra.mxu0 0.0
  %3009 = vmatprep.subr.mxu0 0.0
  %3010 = vmatpush2.msra.mxu0 0.0
  %3011 = vmatprep.subr.mxu0 0.0
  %3012 = vmatpush2.msra.mxu0 0.0
  %3013 = vmatprep.subr.mxu0 0.0
  %3014 = vmatpush2.msra.mxu0 0.0
  %3015 = vmatprep.subr.mxu0 0.0
  %3016 = vmatpush2.msra.mxu0 0.0
  %3017 = vmatprep.subr.mxu0 0.0
  %3018 = vmatpush2.msra.mxu0 0.0
  %3019 = vmatprep.subr.mxu0 0.0
  %3020 = vmatpush2.msra.mxu0 0.0
  %3021 = vmatprep.subr.mxu0 0.0
  %3022 = vmatpush2.msra.mxu0 0.0
  %3023 = vmatprep.subr.mxu0 0.0
  %3024 = vmatpush2.msra.mxu0 0.0
  %3025 = vmatprep.mubr.f32.mxu0 0.0
  %v3026 = vand.u32 %v2955, 4294901760
  %v3027 = vsub.f32 %v2955, %v3026
  %v3028 = vand.u32 %v3027, 4294901760
  %v3029 = vsub.f32 %v3027, %v3028
  %v3030 = vand.u32 %v3029, 4294901760
  %3031 = vmatmul.mubr.f32.gmra.mxu0 %v3030
  %v3032 = vpop.f32.mrf.mxu0
  %v3033 = vadd.f32 0.0, %v3032
  %v3034 = vpop.f32.mrf.mxu0
  %3035 = vdwg.mxu0
  %3036 = vmatprep.subr.mxu0 0.0
  %3037 = vmatpush1.msra.mxu0 0.0
  %3038 = vmatprep.subr.mxu0 0.0
  %3039 = vmatpush1.msra.mxu0 0.0
  %3040 = vmatprep.subr.mxu0 0.0
  %3041 = vmatpush1.msra.mxu0 0.0
  %3042 = vmatprep.subr.mxu0 0.0
  %3043 = vmatpush1.msra.mxu0 0.0
  %3044 = vmatprep.subr.mxu0 0.0
  %3045 = vmatpush1.msra.mxu0 0.0
  %3046 = vmatprep.subr.mxu0 0.0
  %3047 = vmatpush1.msra.mxu0 0.0
  %3048 = vmatprep.subr.mxu0 0.0
  %3049 = vmatpush1.msra.mxu0 0.0
  %3050 = vmatprep.subr.mxu0 0.0
  %3051 = vmatpush1.msra.mxu0 0.0
  %3052 = vmatprep.subr.mxu0 0.0
  %3053 = vmatpush1.msra.mxu0 0.0
  %3054 = vmatprep.subr.mxu0 0.0
  %3055 = vmatpush1.msra.mxu0 0.0
  %3056 = vmatprep.subr.mxu0 0.0
  %3057 = vmatpush1.msra.mxu0 0.0
  %3058 = vmatprep.subr.mxu0 0.0
  %3059 = vmatpush1.msra.mxu0 0.0
  %3060 = vmatprep.subr.mxu0 0.0
  %v3061 = vand.u32 %v39, 4294901760
  %v3062 = vsub.f32 %v39, %v3061
  %v3063 = vand.u32 %v3062, 4294901760
  %v3064 = vsub.f32 %v3062, %v3063
  %v3065 = vand.u32 %v3064, 4294901760
  %3066 = vmatpush1.msra.mxu0 %v3065
  %3067 = vmatprep.subr.mxu0 0.0
  %v3068 = vand.u32 %v38, 4294901760
  %v3069 = vsub.f32 %v38, %v3068
  %v3070 = vand.u32 %v3069, 4294901760
  %v3071 = vsub.f32 %v3069, %v3070
  %v3072 = vand.u32 %v3071, 4294901760
  %3073 = vmatpush1.msra.mxu0 %v3072
  %3074 = vmatprep.subr.mxu0 0.0
  %v3075 = vand.u32 %v37, 4294901760
  %v3076 = vsub.f32 %v37, %v3075
  %v3077 = vand.u32 %v3076, 4294901760
  %v3078 = vsub.f32 %v3076, %v3077
  %v3079 = vand.u32 %v3078, 4294901760
  %3080 = vmatpush1.msra.mxu0 %v3079
  %3081 = vmatprep.subr.mxu0 0.0
  %v3082 = vand.u32 %v36, 4294901760
  %v3083 = vsub.f32 %v36, %v3082
  %v3084 = vand.u32 %v3083, 4294901760
  %v3085 = vsub.f32 %v3083, %v3084
  %v3086 = vand.u32 %v3085, 4294901760
  %3087 = vmatpush1.msra.mxu0 %v3086
  %3088 = vmatprep.subr.mxu0 0.0
  %3089 = vmatpush2.msra.mxu0 0.0
  %3090 = vmatprep.subr.mxu0 0.0
  %3091 = vmatpush2.msra.mxu0 0.0
  %3092 = vmatprep.subr.mxu0 0.0
  %3093 = vmatpush2.msra.mxu0 0.0
  %3094 = vmatprep.subr.mxu0 0.0
  %3095 = vmatpush2.msra.mxu0 0.0
  %3096 = vmatprep.subr.mxu0 0.0
  %3097 = vmatpush2.msra.mxu0 0.0
  %3098 = vmatprep.subr.mxu0 0.0
  %3099 = vmatpush2.msra.mxu0 0.0
  %3100 = vmatprep.subr.mxu0 0.0
  %3101 = vmatpush2.msra.mxu0 0.0
  %3102 = vmatprep.subr.mxu0 0.0
  %3103 = vmatpush2.msra.mxu0 0.0
  %3104 = vmatprep.subr.mxu0 0.0
  %3105 = vmatpush2.msra.mxu0 0.0
  %3106 = vmatprep.subr.mxu0 0.0
  %3107 = vmatpush2.msra.mxu0 0.0
  %3108 = vmatprep.subr.mxu0 0.0
  %3109 = vmatpush2.msra.mxu0 0.0
  %3110 = vmatprep.subr.mxu0 0.0
  %3111 = vmatpush2.msra.mxu0 0.0
  %3112 = vmatprep.subr.mxu0 0.0
  %3113 = vmatpush2.msra.mxu0 0.0
  %3114 = vmatprep.subr.mxu0 0.0
  %3115 = vmatpush2.msra.mxu0 0.0
  %3116 = vmatprep.subr.mxu0 0.0
  %3117 = vmatpush2.msra.mxu0 0.0
  %3118 = vmatprep.subr.mxu0 0.0
  %3119 = vmatpush2.msra.mxu0 0.0
  %3120 = vmatprep.mubr.f32.mxu0 0.0
  %v3121 = vand.u32 %v2955, 4294901760
  %3122 = vmatmul.mubr.f32.gmra.mxu0 %v3121
  %v3123 = vpop.f32.mrf.mxu0
  %v3124 = vadd.f32 %v3033, %v3123
  %v3125 = vpop.f32.mrf.mxu0
  %3126 = vdwg.mxu0
  %3127 = vmatprep.subr.mxu0 0.0
  %3128 = vmatpush1.msra.mxu0 0.0
  %3129 = vmatprep.subr.mxu0 0.0
  %3130 = vmatpush1.msra.mxu0 0.0
  %3131 = vmatprep.subr.mxu0 0.0
  %3132 = vmatpush1.msra.mxu0 0.0
  %3133 = vmatprep.subr.mxu0 0.0
  %3134 = vmatpush1.msra.mxu0 0.0
  %3135 = vmatprep.subr.mxu0 0.0
  %3136 = vmatpush1.msra.mxu0 0.0
  %3137 = vmatprep.subr.mxu0 0.0
  %3138 = vmatpush1.msra.mxu0 0.0
  %3139 = vmatprep.subr.mxu0 0.0
  %3140 = vmatpush1.msra.mxu0 0.0
  %3141 = vmatprep.subr.mxu0 0.0
  %3142 = vmatpush1.msra.mxu0 0.0
  %3143 = vmatprep.subr.mxu0 0.0
  %3144 = vmatpush1.msra.mxu0 0.0
  %3145 = vmatprep.subr.mxu0 0.0
  %3146 = vmatpush1.msra.mxu0 0.0
  %3147 = vmatprep.subr.mxu0 0.0
  %3148 = vmatpush1.msra.mxu0 0.0
  %3149 = vmatprep.subr.mxu0 0.0
  %3150 = vmatpush1.msra.mxu0 0.0
  %3151 = vmatprep.subr.mxu0 0.0
  %v3152 = vand.u32 %v39, 4294901760
  %v3153 = vsub.f32 %v39, %v3152
  %3154 = vmatpush1.msra.mxu0 %v3153
  %3155 = vmatprep.subr.mxu0 0.0
  %v3156 = vand.u32 %v38, 4294901760
  %v3157 = vsub.f32 %v38, %v3156
  %3158 = vmatpush1.msra.mxu0 %v3157
  %3159 = vmatprep.subr.mxu0 0.0
  %v3160 = vand.u32 %v37, 4294901760
  %v3161 = vsub.f32 %v37, %v3160
  %3162 = vmatpush1.msra.mxu0 %v3161
  %3163 = vmatprep.subr.mxu0 0.0
  %v3164 = vand.u32 %v36, 4294901760
  %v3165 = vsub.f32 %v36, %v3164
  %3166 = vmatpush1.msra.mxu0 %v3165
  %3167 = vmatprep.subr.mxu0 0.0
  %3168 = vmatpush2.msra.mxu0 0.0
  %3169 = vmatprep.subr.mxu0 0.0
  %3170 = vmatpush2.msra.mxu0 0.0
  %3171 = vmatprep.subr.mxu0 0.0
  %3172 = vmatpush2.msra.mxu0 0.0
  %3173 = vmatprep.subr.mxu0 0.0
  %3174 = vmatpush2.msra.mxu0 0.0
  %3175 = vmatprep.subr.mxu0 0.0
  %3176 = vmatpush2.msra.mxu0 0.0
  %3177 = vmatprep.subr.mxu0 0.0
  %3178 = vmatpush2.msra.mxu0 0.0
  %3179 = vmatprep.subr.mxu0 0.0
  %3180 = vmatpush2.msra.mxu0 0.0
  %3181 = vmatprep.subr.mxu0 0.0
  %3182 = vmatpush2.msra.mxu0 0.0
  %3183 = vmatprep.subr.mxu0 0.0
  %3184 = vmatpush2.msra.mxu0 0.0
  %3185 = vmatprep.subr.mxu0 0.0
  %3186 = vmatpush2.msra.mxu0 0.0
  %3187 = vmatprep.subr.mxu0 0.0
  %3188 = vmatpush2.msra.mxu0 0.0
  %3189 = vmatprep.subr.mxu0 0.0
  %3190 = vmatpush2.msra.mxu0 0.0
  %3191 = vmatprep.subr.mxu0 0.0
  %3192 = vmatpush2.msra.mxu0 0.0
  %3193 = vmatprep.subr.mxu0 0.0
  %3194 = vmatpush2.msra.mxu0 0.0
  %3195 = vmatprep.subr.mxu0 0.0
  %3196 = vmatpush2.msra.mxu0 0.0
  %3197 = vmatprep.subr.mxu0 0.0
  %3198 = vmatpush2.msra.mxu0 0.0
  %3199 = vmatprep.mubr.f32.mxu0 0.0
  %v3200 = vand.u32 %v2955, 4294901760
  %v3201 = vsub.f32 %v2955, %v3200
  %3202 = vmatmul.mubr.f32.gmra.mxu0 %v3201
  %v3203 = vpop.f32.mrf.mxu0
  %v3204 = vadd.f32 %v3124, %v3203
  %v3205 = vpop.f32.mrf.mxu0
  %3206 = vdwg.mxu0
  %3207 = vmatprep.subr.mxu0 0.0
  %3208 = vmatpush1.msra.mxu0 0.0
  %3209 = vmatprep.subr.mxu0 0.0
  %3210 = vmatpush1.msra.mxu0 0.0
  %3211 = vmatprep.subr.mxu0 0.0
  %3212 = vmatpush1.msra.mxu0 0.0
  %3213 = vmatprep.subr.mxu0 0.0
  %3214 = vmatpush1.msra.mxu0 0.0
  %3215 = vmatprep.subr.mxu0 0.0
  %3216 = vmatpush1.msra.mxu0 0.0
  %3217 = vmatprep.subr.mxu0 0.0
  %3218 = vmatpush1.msra.mxu0 0.0
  %3219 = vmatprep.subr.mxu0 0.0
  %3220 = vmatpush1.msra.mxu0 0.0
  %3221 = vmatprep.subr.mxu0 0.0
  %3222 = vmatpush1.msra.mxu0 0.0
  %3223 = vmatprep.subr.mxu0 0.0
  %3224 = vmatpush1.msra.mxu0 0.0
  %3225 = vmatprep.subr.mxu0 0.0
  %3226 = vmatpush1.msra.mxu0 0.0
  %3227 = vmatprep.subr.mxu0 0.0
  %3228 = vmatpush1.msra.mxu0 0.0
  %3229 = vmatprep.subr.mxu0 0.0
  %3230 = vmatpush1.msra.mxu0 0.0
  %3231 = vmatprep.subr.mxu0 0.0
  %v3232 = vand.u32 %v39, 4294901760
  %3233 = vmatpush1.msra.mxu0 %v3232
  %3234 = vmatprep.subr.mxu0 0.0
  %v3235 = vand.u32 %v38, 4294901760
  %3236 = vmatpush1.msra.mxu0 %v3235
  %3237 = vmatprep.subr.mxu0 0.0
  %v3238 = vand.u32 %v37, 4294901760
  %3239 = vmatpush1.msra.mxu0 %v3238
  %3240 = vmatprep.subr.mxu0 0.0
  %v3241 = vand.u32 %v36, 4294901760
  %3242 = vmatpush1.msra.mxu0 %v3241
  %3243 = vmatprep.subr.mxu0 0.0
  %3244 = vmatpush2.msra.mxu0 0.0
  %3245 = vmatprep.subr.mxu0 0.0
  %3246 = vmatpush2.msra.mxu0 0.0
  %3247 = vmatprep.subr.mxu0 0.0
  %3248 = vmatpush2.msra.mxu0 0.0
  %3249 = vmatprep.subr.mxu0 0.0
  %3250 = vmatpush2.msra.mxu0 0.0
  %3251 = vmatprep.subr.mxu0 0.0
  %3252 = vmatpush2.msra.mxu0 0.0
  %3253 = vmatprep.subr.mxu0 0.0
  %3254 = vmatpush2.msra.mxu0 0.0
  %3255 = vmatprep.subr.mxu0 0.0
  %3256 = vmatpush2.msra.mxu0 0.0
  %3257 = vmatprep.subr.mxu0 0.0
  %3258 = vmatpush2.msra.mxu0 0.0
  %3259 = vmatprep.subr.mxu0 0.0
  %3260 = vmatpush2.msra.mxu0 0.0
  %3261 = vmatprep.subr.mxu0 0.0
  %3262 = vmatpush2.msra.mxu0 0.0
  %3263 = vmatprep.subr.mxu0 0.0
  %3264 = vmatpush2.msra.mxu0 0.0
  %3265 = vmatprep.subr.mxu0 0.0
  %3266 = vmatpush2.msra.mxu0 0.0
  %3267 = vmatprep.subr.mxu0 0.0
  %3268 = vmatpush2.msra.mxu0 0.0
  %3269 = vmatprep.subr.mxu0 0.0
  %3270 = vmatpush2.msra.mxu0 0.0
  %3271 = vmatprep.subr.mxu0 0.0
  %3272 = vmatpush2.msra.mxu0 0.0
  %3273 = vmatprep.subr.mxu0 0.0
  %3274 = vmatpush2.msra.mxu0 0.0
  %3275 = vmatprep.mubr.f32.mxu0 0.0
  %v3276 = vand.u32 %v2955, 4294901760
  %v3277 = vsub.f32 %v2955, %v3276
  %v3278 = vand.u32 %v3277, 4294901760
  %3279 = vmatmul.mubr.f32.gmra.mxu0 %v3278
  %v3280 = vpop.f32.mrf.mxu0
  %v3281 = vadd.f32 %v3204, %v3280
  %v3282 = vpop.f32.mrf.mxu0
  %3283 = vdwg.mxu0
  %3284 = vmatprep.subr.mxu0 0.0
  %3285 = vmatpush1.msra.mxu0 0.0
  %3286 = vmatprep.subr.mxu0 0.0
  %3287 = vmatpush1.msra.mxu0 0.0
  %3288 = vmatprep.subr.mxu0 0.0
  %3289 = vmatpush1.msra.mxu0 0.0
  %3290 = vmatprep.subr.mxu0 0.0
  %3291 = vmatpush1.msra.mxu0 0.0
  %3292 = vmatprep.subr.mxu0 0.0
  %3293 = vmatpush1.msra.mxu0 0.0
  %3294 = vmatprep.subr.mxu0 0.0
  %3295 = vmatpush1.msra.mxu0 0.0
  %3296 = vmatprep.subr.mxu0 0.0
  %3297 = vmatpush1.msra.mxu0 0.0
  %3298 = vmatprep.subr.mxu0 0.0
  %3299 = vmatpush1.msra.mxu0 0.0
  %3300 = vmatprep.subr.mxu0 0.0
  %3301 = vmatpush1.msra.mxu0 0.0
  %3302 = vmatprep.subr.mxu0 0.0
  %3303 = vmatpush1.msra.mxu0 0.0
  %3304 = vmatprep.subr.mxu0 0.0
  %3305 = vmatpush1.msra.mxu0 0.0
  %3306 = vmatprep.subr.mxu0 0.0
  %3307 = vmatpush1.msra.mxu0 0.0
  %3308 = vmatprep.subr.mxu0 0.0
  %v3309 = vand.u32 %v39, 4294901760
  %v3310 = vsub.f32 %v39, %v3309
  %v3311 = vand.u32 %v3310, 4294901760
  %3312 = vmatpush1.msra.mxu0 %v3311
  %3313 = vmatprep.subr.mxu0 0.0
  %v3314 = vand.u32 %v38, 4294901760
  %v3315 = vsub.f32 %v38, %v3314
  %v3316 = vand.u32 %v3315, 4294901760
  %3317 = vmatpush1.msra.mxu0 %v3316
  %3318 = vmatprep.subr.mxu0 0.0
  %v3319 = vand.u32 %v37, 4294901760
  %v3320 = vsub.f32 %v37, %v3319
  %v3321 = vand.u32 %v3320, 4294901760
  %3322 = vmatpush1.msra.mxu0 %v3321
  %3323 = vmatprep.subr.mxu0 0.0
  %v3324 = vand.u32 %v36, 4294901760
  %v3325 = vsub.f32 %v36, %v3324
  %v3326 = vand.u32 %v3325, 4294901760
  %3327 = vmatpush1.msra.mxu0 %v3326
  %3328 = vmatprep.subr.mxu0 0.0
  %3329 = vmatpush2.msra.mxu0 0.0
  %3330 = vmatprep.subr.mxu0 0.0
  %3331 = vmatpush2.msra.mxu0 0.0
  %3332 = vmatprep.subr.mxu0 0.0
  %3333 = vmatpush2.msra.mxu0 0.0
  %3334 = vmatprep.subr.mxu0 0.0
  %3335 = vmatpush2.msra.mxu0 0.0
  %3336 = vmatprep.subr.mxu0 0.0
  %3337 = vmatpush2.msra.mxu0 0.0
  %3338 = vmatprep.subr.mxu0 0.0
  %3339 = vmatpush2.msra.mxu0 0.0
  %3340 = vmatprep.subr.mxu0 0.0
  %3341 = vmatpush2.msra.mxu0 0.0
  %3342 = vmatprep.subr.mxu0 0.0
  %3343 = vmatpush2.msra.mxu0 0.0
  %3344 = vmatprep.subr.mxu0 0.0
  %3345 = vmatpush2.msra.mxu0 0.0
  %3346 = vmatprep.subr.mxu0 0.0
  %3347 = vmatpush2.msra.mxu0 0.0
  %3348 = vmatprep.subr.mxu0 0.0
  %3349 = vmatpush2.msra.mxu0 0.0
  %3350 = vmatprep.subr.mxu0 0.0
  %3351 = vmatpush2.msra.mxu0 0.0
  %3352 = vmatprep.subr.mxu0 0.0
  %3353 = vmatpush2.msra.mxu0 0.0
  %3354 = vmatprep.subr.mxu0 0.0
  %3355 = vmatpush2.msra.mxu0 0.0
  %3356 = vmatprep.subr.mxu0 0.0
  %3357 = vmatpush2.msra.mxu0 0.0
  %3358 = vmatprep.subr.mxu0 0.0
  %3359 = vmatpush2.msra.mxu0 0.0
  %3360 = vmatprep.mubr.f32.mxu0 0.0
  %v3361 = vand.u32 %v2955, 4294901760
  %3362 = vmatmul.mubr.f32.gmra.mxu0 %v3361
  %v3363 = vpop.f32.mrf.mxu0
  %v3364 = vadd.f32 %v3281, %v3363
  %v3365 = vpop.f32.mrf.mxu0
  %3366 = vdwg.mxu0
  %3367 = vmatprep.subr.mxu0 0.0
  %3368 = vmatpush1.msra.mxu0 0.0
  %3369 = vmatprep.subr.mxu0 0.0
  %3370 = vmatpush1.msra.mxu0 0.0
  %3371 = vmatprep.subr.mxu0 0.0
  %3372 = vmatpush1.msra.mxu0 0.0
  %3373 = vmatprep.subr.mxu0 0.0
  %3374 = vmatpush1.msra.mxu0 0.0
  %3375 = vmatprep.subr.mxu0 0.0
  %3376 = vmatpush1.msra.mxu0 0.0
  %3377 = vmatprep.subr.mxu0 0.0
  %3378 = vmatpush1.msra.mxu0 0.0
  %3379 = vmatprep.subr.mxu0 0.0
  %3380 = vmatpush1.msra.mxu0 0.0
  %3381 = vmatprep.subr.mxu0 0.0
  %3382 = vmatpush1.msra.mxu0 0.0
  %3383 = vmatprep.subr.mxu0 0.0
  %3384 = vmatpush1.msra.mxu0 0.0
  %3385 = vmatprep.subr.mxu0 0.0
  %3386 = vmatpush1.msra.mxu0 0.0
  %3387 = vmatprep.subr.mxu0 0.0
  %3388 = vmatpush1.msra.mxu0 0.0
  %3389 = vmatprep.subr.mxu0 0.0
  %3390 = vmatpush1.msra.mxu0 0.0
  %3391 = vmatprep.subr.mxu0 0.0
  %v3392 = vand.u32 %v39, 4294901760
  %3393 = vmatpush1.msra.mxu0 %v3392
  %3394 = vmatprep.subr.mxu0 0.0
  %v3395 = vand.u32 %v38, 4294901760
  %3396 = vmatpush1.msra.mxu0 %v3395
  %3397 = vmatprep.subr.mxu0 0.0
  %v3398 = vand.u32 %v37, 4294901760
  %3399 = vmatpush1.msra.mxu0 %v3398
  %3400 = vmatprep.subr.mxu0 0.0
  %v3401 = vand.u32 %v36, 4294901760
  %3402 = vmatpush1.msra.mxu0 %v3401
  %3403 = vmatprep.subr.mxu0 0.0
  %3404 = vmatpush2.msra.mxu0 0.0
  %3405 = vmatprep.subr.mxu0 0.0
  %3406 = vmatpush2.msra.mxu0 0.0
  %3407 = vmatprep.subr.mxu0 0.0
  %3408 = vmatpush2.msra.mxu0 0.0
  %3409 = vmatprep.subr.mxu0 0.0
  %3410 = vmatpush2.msra.mxu0 0.0
  %3411 = vmatprep.subr.mxu0 0.0
  %3412 = vmatpush2.msra.mxu0 0.0
  %3413 = vmatprep.subr.mxu0 0.0
  %3414 = vmatpush2.msra.mxu0 0.0
  %3415 = vmatprep.subr.mxu0 0.0
  %3416 = vmatpush2.msra.mxu0 0.0
  %3417 = vmatprep.subr.mxu0 0.0
  %3418 = vmatpush2.msra.mxu0 0.0
  %3419 = vmatprep.subr.mxu0 0.0
  %3420 = vmatpush2.msra.mxu0 0.0
  %3421 = vmatprep.subr.mxu0 0.0
  %3422 = vmatpush2.msra.mxu0 0.0
  %3423 = vmatprep.subr.mxu0 0.0
  %3424 = vmatpush2.msra.mxu0 0.0
  %3425 = vmatprep.subr.mxu0 0.0
  %3426 = vmatpush2.msra.mxu0 0.0
  %3427 = vmatprep.subr.mxu0 0.0
  %3428 = vmatpush2.msra.mxu0 0.0
  %3429 = vmatprep.subr.mxu0 0.0
  %3430 = vmatpush2.msra.mxu0 0.0
  %3431 = vmatprep.subr.mxu0 0.0
  %3432 = vmatpush2.msra.mxu0 0.0
  %3433 = vmatprep.subr.mxu0 0.0
  %3434 = vmatpush2.msra.mxu0 0.0
  %3435 = vmatprep.mubr.f32.mxu0 0.0
  %v3436 = vand.u32 %v2955, 4294901760
  %3437 = vmatmul.mubr.f32.gmra.mxu0 %v3436
  %v3438 = vpop.f32.mrf.mxu0
  %v3439 = vadd.f32 %v3364, %v3438
  %v3440 = vpop.f32.mrf.mxu0
  %3441 = vdwg.mxu0
  %v3442 = vadd.f32 %v2954, %v3439
  %v3443 = vsub.f32 0.0, %v3442
  %v3444 = vmul.f32 %v3443, 1.442695
  %v3445 = vpow.pop %v3444
  %v3446 = vadd.f32 %v3445, 1.0
  %v3447 = vrcp.pop %v3446
  %v3448 = vmul.f32 1.0, %v3447
  %v3449 = vtanh.pop %v3442
  %v3450 = vmul.f32 %v3448, %v2940
  %3452 = vrot.lane.b32.xlu0 %v3449, 64
  %v3453 = vpop.permute.xlu0 %3452
  %v3455 = vmul.f32 %v3448, %v3453
  %3457 = vrot.lane.b32.xlu0 %v3455, 32
  %v3458 = vpop.permute.xlu0 %3457
  %v3460 = vadd.f32 %v3450, %v3458
  %v3461 = vtanh.pop %v3460
  %3463 = vrot.lane.b32.xlu0 %v3461, 64
  %v3464 = vpop.permute.xlu0 %3463
  %v3466 = vmul.f32 %v3448, %v3464
  %3468 = vrot.lane.b32.xlu0 %v3466, 32
  %v3469 = vpop.permute.xlu0 %3468
  %s3471 = scalar_lea.vmem [#allocation2], 32
  %3472 = vst.msk [vmem:[%s3471] sm:$0xff] %vm55, %v3469
  %s3473 = scalar_lea.vmem [#allocation3], 40
  %v3474 = vld [vmem:[%s3473] sm:$0xff]
  %v3475 = vsel %vm55, %v3469, 0
  %3477 = vmatprep.subr.mxu0 0.0
  %3478 = vmatpush1.msra.mxu0 0.0
  %3479 = vmatprep.subr.mxu0 0.0
  %3480 = vmatpush1.msra.mxu0 0.0
  %3481 = vmatprep.subr.mxu0 0.0
  %3482 = vmatpush1.msra.mxu0 0.0
  %3483 = vmatprep.subr.mxu0 0.0
  %3484 = vmatpush1.msra.mxu0 0.0
  %3485 = vmatprep.subr.mxu0 0.0
  %3486 = vmatpush1.msra.mxu0 0.0
  %3487 = vmatprep.subr.mxu0 0.0
  %3488 = vmatpush1.msra.mxu0 0.0
  %3489 = vmatprep.subr.mxu0 0.0
  %3490 = vmatpush1.msra.mxu0 0.0
  %3491 = vmatprep.subr.mxu0 0.0
  %3492 = vmatpush1.msra.mxu0 0.0
  %3493 = vmatprep.subr.mxu0 0.0
  %3494 = vmatpush1.msra.mxu0 0.0
  %3495 = vmatprep.subr.mxu0 0.0
  %3496 = vmatpush1.msra.mxu0 0.0
  %3497 = vmatprep.subr.mxu0 0.0
  %3498 = vmatpush1.msra.mxu0 0.0
  %3499 = vmatprep.subr.mxu0 0.0
  %3500 = vmatpush1.msra.mxu0 0.0
  %3501 = vmatprep.subr.mxu0 0.0
  %v3502 = vand.u32 %v39, 4294901760
  %3503 = vmatpush1.msra.mxu0 %v3502
  %3504 = vmatprep.subr.mxu0 0.0
  %v3505 = vand.u32 %v38, 4294901760
  %3506 = vmatpush1.msra.mxu0 %v3505
  %3507 = vmatprep.subr.mxu0 0.0
  %v3508 = vand.u32 %v37, 4294901760
  %3509 = vmatpush1.msra.mxu0 %v3508
  %3510 = vmatprep.subr.mxu0 0.0
  %v3511 = vand.u32 %v36, 4294901760
  %3512 = vmatpush1.msra.mxu0 %v3511
  %3513 = vmatprep.subr.mxu0 0.0
  %3514 = vmatpush2.msra.mxu0 0.0
  %3515 = vmatprep.subr.mxu0 0.0
  %3516 = vmatpush2.msra.mxu0 0.0
  %3517 = vmatprep.subr.mxu0 0.0
  %3518 = vmatpush2.msra.mxu0 0.0
  %3519 = vmatprep.subr.mxu0 0.0
  %3520 = vmatpush2.msra.mxu0 0.0
  %3521 = vmatprep.subr.mxu0 0.0
  %3522 = vmatpush2.msra.mxu0 0.0
  %3523 = vmatprep.subr.mxu0 0.0
  %3524 = vmatpush2.msra.mxu0 0.0
  %3525 = vmatprep.subr.mxu0 0.0
  %3526 = vmatpush2.msra.mxu0 0.0
  %3527 = vmatprep.subr.mxu0 0.0
  %3528 = vmatpush2.msra.mxu0 0.0
  %3529 = vmatprep.subr.mxu0 0.0
  %3530 = vmatpush2.msra.mxu0 0.0
  %3531 = vmatprep.subr.mxu0 0.0
  %3532 = vmatpush2.msra.mxu0 0.0
  %3533 = vmatprep.subr.mxu0 0.0
  %3534 = vmatpush2.msra.mxu0 0.0
  %3535 = vmatprep.subr.mxu0 0.0
  %3536 = vmatpush2.msra.mxu0 0.0
  %3537 = vmatprep.subr.mxu0 0.0
  %3538 = vmatpush2.msra.mxu0 0.0
  %3539 = vmatprep.subr.mxu0 0.0
  %3540 = vmatpush2.msra.mxu0 0.0
  %3541 = vmatprep.subr.mxu0 0.0
  %3542 = vmatpush2.msra.mxu0 0.0
  %3543 = vmatprep.subr.mxu0 0.0
  %3544 = vmatpush2.msra.mxu0 0.0
  %3545 = vmatprep.mubr.f32.mxu0 0.0
  %v3546 = vand.u32 %v3475, 4294901760
  %v3547 = vsub.f32 %v3475, %v3546
  %v3548 = vand.u32 %v3547, 4294901760
  %v3549 = vsub.f32 %v3547, %v3548
  %v3550 = vand.u32 %v3549, 4294901760
  %3551 = vmatmul.mubr.f32.gmra.mxu0 %v3550
  %v3552 = vpop.f32.mrf.mxu0
  %v3553 = vadd.f32 0.0, %v3552
  %v3554 = vpop.f32.mrf.mxu0
  %3555 = vdwg.mxu0
  %3556 = vmatprep.subr.mxu0 0.0
  %3557 = vmatpush1.msra.mxu0 0.0
  %3558 = vmatprep.subr.mxu0 0.0
  %3559 = vmatpush1.msra.mxu0 0.0
  %3560 = vmatprep.subr.mxu0 0.0
  %3561 = vmatpush1.msra.mxu0 0.0
  %3562 = vmatprep.subr.mxu0 0.0
  %3563 = vmatpush1.msra.mxu0 0.0
  %3564 = vmatprep.subr.mxu0 0.0
  %3565 = vmatpush1.msra.mxu0 0.0
  %3566 = vmatprep.subr.mxu0 0.0
  %3567 = vmatpush1.msra.mxu0 0.0
  %3568 = vmatprep.subr.mxu0 0.0
  %3569 = vmatpush1.msra.mxu0 0.0
  %3570 = vmatprep.subr.mxu0 0.0
  %3571 = vmatpush1.msra.mxu0 0.0
  %3572 = vmatprep.subr.mxu0 0.0
  %3573 = vmatpush1.msra.mxu0 0.0
  %3574 = vmatprep.subr.mxu0 0.0
  %3575 = vmatpush1.msra.mxu0 0.0
  %3576 = vmatprep.subr.mxu0 0.0
  %3577 = vmatpush1.msra.mxu0 0.0
  %3578 = vmatprep.subr.mxu0 0.0
  %3579 = vmatpush1.msra.mxu0 0.0
  %3580 = vmatprep.subr.mxu0 0.0
  %v3581 = vand.u32 %v39, 4294901760
  %v3582 = vsub.f32 %v39, %v3581
  %v3583 = vand.u32 %v3582, 4294901760
  %v3584 = vsub.f32 %v3582, %v3583
  %v3585 = vand.u32 %v3584, 4294901760
  %3586 = vmatpush1.msra.mxu0 %v3585
  %3587 = vmatprep.subr.mxu0 0.0
  %v3588 = vand.u32 %v38, 4294901760
  %v3589 = vsub.f32 %v38, %v3588
  %v3590 = vand.u32 %v3589, 4294901760
  %v3591 = vsub.f32 %v3589, %v3590
  %v3592 = vand.u32 %v3591, 4294901760
  %3593 = vmatpush1.msra.mxu0 %v3592
  %3594 = vmatprep.subr.mxu0 0.0
  %v3595 = vand.u32 %v37, 4294901760
  %v3596 = vsub.f32 %v37, %v3595
  %v3597 = vand.u32 %v3596, 4294901760
  %v3598 = vsub.f32 %v3596, %v3597
  %v3599 = vand.u32 %v3598, 4294901760
  %3600 = vmatpush1.msra.mxu0 %v3599
  %3601 = vmatprep.subr.mxu0 0.0
  %v3602 = vand.u32 %v36, 4294901760
  %v3603 = vsub.f32 %v36, %v3602
  %v3604 = vand.u32 %v3603, 4294901760
  %v3605 = vsub.f32 %v3603, %v3604
  %v3606 = vand.u32 %v3605, 4294901760
  %3607 = vmatpush1.msra.mxu0 %v3606
  %3608 = vmatprep.subr.mxu0 0.0
  %3609 = vmatpush2.msra.mxu0 0.0
  %3610 = vmatprep.subr.mxu0 0.0
  %3611 = vmatpush2.msra.mxu0 0.0
  %3612 = vmatprep.subr.mxu0 0.0
  %3613 = vmatpush2.msra.mxu0 0.0
  %3614 = vmatprep.subr.mxu0 0.0
  %3615 = vmatpush2.msra.mxu0 0.0
  %3616 = vmatprep.subr.mxu0 0.0
  %3617 = vmatpush2.msra.mxu0 0.0
  %3618 = vmatprep.subr.mxu0 0.0
  %3619 = vmatpush2.msra.mxu0 0.0
  %3620 = vmatprep.subr.mxu0 0.0
  %3621 = vmatpush2.msra.mxu0 0.0
  %3622 = vmatprep.subr.mxu0 0.0
  %3623 = vmatpush2.msra.mxu0 0.0
  %3624 = vmatprep.subr.mxu0 0.0
  %3625 = vmatpush2.msra.mxu0 0.0
  %3626 = vmatprep.subr.mxu0 0.0
  %3627 = vmatpush2.msra.mxu0 0.0
  %3628 = vmatprep.subr.mxu0 0.0
  %3629 = vmatpush2.msra.mxu0 0.0
  %3630 = vmatprep.subr.mxu0 0.0
  %3631 = vmatpush2.msra.mxu0 0.0
  %3632 = vmatprep.subr.mxu0 0.0
  %3633 = vmatpush2.msra.mxu0 0.0
  %3634 = vmatprep.subr.mxu0 0.0
  %3635 = vmatpush2.msra.mxu0 0.0
  %3636 = vmatprep.subr.mxu0 0.0
  %3637 = vmatpush2.msra.mxu0 0.0
  %3638 = vmatprep.subr.mxu0 0.0
  %3639 = vmatpush2.msra.mxu0 0.0
  %3640 = vmatprep.mubr.f32.mxu0 0.0
  %v3641 = vand.u32 %v3475, 4294901760
  %3642 = vmatmul.mubr.f32.gmra.mxu0 %v3641
  %v3643 = vpop.f32.mrf.mxu0
  %v3644 = vadd.f32 %v3553, %v3643
  %v3645 = vpop.f32.mrf.mxu0
  %3646 = vdwg.mxu0
  %3647 = vmatprep.subr.mxu0 0.0
  %3648 = vmatpush1.msra.mxu0 0.0
  %3649 = vmatprep.subr.mxu0 0.0
  %3650 = vmatpush1.msra.mxu0 0.0
  %3651 = vmatprep.subr.mxu0 0.0
  %3652 = vmatpush1.msra.mxu0 0.0
  %3653 = vmatprep.subr.mxu0 0.0
  %3654 = vmatpush1.msra.mxu0 0.0
  %3655 = vmatprep.subr.mxu0 0.0
  %3656 = vmatpush1.msra.mxu0 0.0
  %3657 = vmatprep.subr.mxu0 0.0
  %3658 = vmatpush1.msra.mxu0 0.0
  %3659 = vmatprep.subr.mxu0 0.0
  %3660 = vmatpush1.msra.mxu0 0.0
  %3661 = vmatprep.subr.mxu0 0.0
  %3662 = vmatpush1.msra.mxu0 0.0
  %3663 = vmatprep.subr.mxu0 0.0
  %3664 = vmatpush1.msra.mxu0 0.0
  %3665 = vmatprep.subr.mxu0 0.0
  %3666 = vmatpush1.msra.mxu0 0.0
  %3667 = vmatprep.subr.mxu0 0.0
  %3668 = vmatpush1.msra.mxu0 0.0
  %3669 = vmatprep.subr.mxu0 0.0
  %3670 = vmatpush1.msra.mxu0 0.0
  %3671 = vmatprep.subr.mxu0 0.0
  %v3672 = vand.u32 %v39, 4294901760
  %v3673 = vsub.f32 %v39, %v3672
  %3674 = vmatpush1.msra.mxu0 %v3673
  %3675 = vmatprep.subr.mxu0 0.0
  %v3676 = vand.u32 %v38, 4294901760
  %v3677 = vsub.f32 %v38, %v3676
  %3678 = vmatpush1.msra.mxu0 %v3677
  %3679 = vmatprep.subr.mxu0 0.0
  %v3680 = vand.u32 %v37, 4294901760
  %v3681 = vsub.f32 %v37, %v3680
  %3682 = vmatpush1.msra.mxu0 %v3681
  %3683 = vmatprep.subr.mxu0 0.0
  %v3684 = vand.u32 %v36, 4294901760
  %v3685 = vsub.f32 %v36, %v3684
  %3686 = vmatpush1.msra.mxu0 %v3685
  %3687 = vmatprep.subr.mxu0 0.0
  %3688 = vmatpush2.msra.mxu0 0.0
  %3689 = vmatprep.subr.mxu0 0.0
  %3690 = vmatpush2.msra.mxu0 0.0
  %3691 = vmatprep.subr.mxu0 0.0
  %3692 = vmatpush2.msra.mxu0 0.0
  %3693 = vmatprep.subr.mxu0 0.0
  %3694 = vmatpush2.msra.mxu0 0.0
  %3695 = vmatprep.subr.mxu0 0.0
  %3696 = vmatpush2.msra.mxu0 0.0
  %3697 = vmatprep.subr.mxu0 0.0
  %3698 = vmatpush2.msra.mxu0 0.0
  %3699 = vmatprep.subr.mxu0 0.0
  %3700 = vmatpush2.msra.mxu0 0.0
  %3701 = vmatprep.subr.mxu0 0.0
  %3702 = vmatpush2.msra.mxu0 0.0
  %3703 = vmatprep.subr.mxu0 0.0
  %3704 = vmatpush2.msra.mxu0 0.0
  %3705 = vmatprep.subr.mxu0 0.0
  %3706 = vmatpush2.msra.mxu0 0.0
  %3707 = vmatprep.subr.mxu0 0.0
  %3708 = vmatpush2.msra.mxu0 0.0
  %3709 = vmatprep.subr.mxu0 0.0
  %3710 = vmatpush2.msra.mxu0 0.0
  %3711 = vmatprep.subr.mxu0 0.0
  %3712 = vmatpush2.msra.mxu0 0.0
  %3713 = vmatprep.subr.mxu0 0.0
  %3714 = vmatpush2.msra.mxu0 0.0
  %3715 = vmatprep.subr.mxu0 0.0
  %3716 = vmatpush2.msra.mxu0 0.0
  %3717 = vmatprep.subr.mxu0 0.0
  %3718 = vmatpush2.msra.mxu0 0.0
  %3719 = vmatprep.mubr.f32.mxu0 0.0
  %v3720 = vand.u32 %v3475, 4294901760
  %v3721 = vsub.f32 %v3475, %v3720
  %3722 = vmatmul.mubr.f32.gmra.mxu0 %v3721
  %v3723 = vpop.f32.mrf.mxu0
  %v3724 = vadd.f32 %v3644, %v3723
  %v3725 = vpop.f32.mrf.mxu0
  %3726 = vdwg.mxu0
  %3727 = vmatprep.subr.mxu0 0.0
  %3728 = vmatpush1.msra.mxu0 0.0
  %3729 = vmatprep.subr.mxu0 0.0
  %3730 = vmatpush1.msra.mxu0 0.0
  %3731 = vmatprep.subr.mxu0 0.0
  %3732 = vmatpush1.msra.mxu0 0.0
  %3733 = vmatprep.subr.mxu0 0.0
  %3734 = vmatpush1.msra.mxu0 0.0
  %3735 = vmatprep.subr.mxu0 0.0
  %3736 = vmatpush1.msra.mxu0 0.0
  %3737 = vmatprep.subr.mxu0 0.0
  %3738 = vmatpush1.msra.mxu0 0.0
  %3739 = vmatprep.subr.mxu0 0.0
  %3740 = vmatpush1.msra.mxu0 0.0
  %3741 = vmatprep.subr.mxu0 0.0
  %3742 = vmatpush1.msra.mxu0 0.0
  %3743 = vmatprep.subr.mxu0 0.0
  %3744 = vmatpush1.msra.mxu0 0.0
  %3745 = vmatprep.subr.mxu0 0.0
  %3746 = vmatpush1.msra.mxu0 0.0
  %3747 = vmatprep.subr.mxu0 0.0
  %3748 = vmatpush1.msra.mxu0 0.0
  %3749 = vmatprep.subr.mxu0 0.0
  %3750 = vmatpush1.msra.mxu0 0.0
  %3751 = vmatprep.subr.mxu0 0.0
  %v3752 = vand.u32 %v39, 4294901760
  %3753 = vmatpush1.msra.mxu0 %v3752
  %3754 = vmatprep.subr.mxu0 0.0
  %v3755 = vand.u32 %v38, 4294901760
  %3756 = vmatpush1.msra.mxu0 %v3755
  %3757 = vmatprep.subr.mxu0 0.0
  %v3758 = vand.u32 %v37, 4294901760
  %3759 = vmatpush1.msra.mxu0 %v3758
  %3760 = vmatprep.subr.mxu0 0.0
  %v3761 = vand.u32 %v36, 4294901760
  %3762 = vmatpush1.msra.mxu0 %v3761
  %3763 = vmatprep.subr.mxu0 0.0
  %3764 = vmatpush2.msra.mxu0 0.0
  %3765 = vmatprep.subr.mxu0 0.0
  %3766 = vmatpush2.msra.mxu0 0.0
  %3767 = vmatprep.subr.mxu0 0.0
  %3768 = vmatpush2.msra.mxu0 0.0
  %3769 = vmatprep.subr.mxu0 0.0
  %3770 = vmatpush2.msra.mxu0 0.0
  %3771 = vmatprep.subr.mxu0 0.0
  %3772 = vmatpush2.msra.mxu0 0.0
  %3773 = vmatprep.subr.mxu0 0.0
  %3774 = vmatpush2.msra.mxu0 0.0
  %3775 = vmatprep.subr.mxu0 0.0
  %3776 = vmatpush2.msra.mxu0 0.0
  %3777 = vmatprep.subr.mxu0 0.0
  %3778 = vmatpush2.msra.mxu0 0.0
  %3779 = vmatprep.subr.mxu0 0.0
  %3780 = vmatpush2.msra.mxu0 0.0
  %3781 = vmatprep.subr.mxu0 0.0
  %3782 = vmatpush2.msra.mxu0 0.0
  %3783 = vmatprep.subr.mxu0 0.0
  %3784 = vmatpush2.msra.mxu0 0.0
  %3785 = vmatprep.subr.mxu0 0.0
  %3786 = vmatpush2.msra.mxu0 0.0
  %3787 = vmatprep.subr.mxu0 0.0
  %3788 = vmatpush2.msra.mxu0 0.0
  %3789 = vmatprep.subr.mxu0 0.0
  %3790 = vmatpush2.msra.mxu0 0.0
  %3791 = vmatprep.subr.mxu0 0.0
  %3792 = vmatpush2.msra.mxu0 0.0
  %3793 = vmatprep.subr.mxu0 0.0
  %3794 = vmatpush2.msra.mxu0 0.0
  %3795 = vmatprep.mubr.f32.mxu0 0.0
  %v3796 = vand.u32 %v3475, 4294901760
  %v3797 = vsub.f32 %v3475, %v3796
  %v3798 = vand.u32 %v3797, 4294901760
  %3799 = vmatmul.mubr.f32.gmra.mxu0 %v3798
  %v3800 = vpop.f32.mrf.mxu0
  %v3801 = vadd.f32 %v3724, %v3800
  %v3802 = vpop.f32.mrf.mxu0
  %3803 = vdwg.mxu0
  %3804 = vmatprep.subr.mxu0 0.0
  %3805 = vmatpush1.msra.mxu0 0.0
  %3806 = vmatprep.subr.mxu0 0.0
  %3807 = vmatpush1.msra.mxu0 0.0
  %3808 = vmatprep.subr.mxu0 0.0
  %3809 = vmatpush1.msra.mxu0 0.0
  %3810 = vmatprep.subr.mxu0 0.0
  %3811 = vmatpush1.msra.mxu0 0.0
  %3812 = vmatprep.subr.mxu0 0.0
  %3813 = vmatpush1.msra.mxu0 0.0
  %3814 = vmatprep.subr.mxu0 0.0
  %3815 = vmatpush1.msra.mxu0 0.0
  %3816 = vmatprep.subr.mxu0 0.0
  %3817 = vmatpush1.msra.mxu0 0.0
  %3818 = vmatprep.subr.mxu0 0.0
  %3819 = vmatpush1.msra.mxu0 0.0
  %3820 = vmatprep.subr.mxu0 0.0
  %3821 = vmatpush1.msra.mxu0 0.0
  %3822 = vmatprep.subr.mxu0 0.0
  %3823 = vmatpush1.msra.mxu0 0.0
  %3824 = vmatprep.subr.mxu0 0.0
  %3825 = vmatpush1.msra.mxu0 0.0
  %3826 = vmatprep.subr.mxu0 0.0
  %3827 = vmatpush1.msra.mxu0 0.0
  %3828 = vmatprep.subr.mxu0 0.0
  %v3829 = vand.u32 %v39, 4294901760
  %v3830 = vsub.f32 %v39, %v3829
  %v3831 = vand.u32 %v3830, 4294901760
  %3832 = vmatpush1.msra.mxu0 %v3831
  %3833 = vmatprep.subr.mxu0 0.0
  %v3834 = vand.u32 %v38, 4294901760
  %v3835 = vsub.f32 %v38, %v3834
  %v3836 = vand.u32 %v3835, 4294901760
  %3837 = vmatpush1.msra.mxu0 %v3836
  %3838 = vmatprep.subr.mxu0 0.0
  %v3839 = vand.u32 %v37, 4294901760
  %v3840 = vsub.f32 %v37, %v3839
  %v3841 = vand.u32 %v3840, 4294901760
  %3842 = vmatpush1.msra.mxu0 %v3841
  %3843 = vmatprep.subr.mxu0 0.0
  %v3844 = vand.u32 %v36, 4294901760
  %v3845 = vsub.f32 %v36, %v3844
  %v3846 = vand.u32 %v3845, 4294901760
  %3847 = vmatpush1.msra.mxu0 %v3846
  %3848 = vmatprep.subr.mxu0 0.0
  %3849 = vmatpush2.msra.mxu0 0.0
  %3850 = vmatprep.subr.mxu0 0.0
  %3851 = vmatpush2.msra.mxu0 0.0
  %3852 = vmatprep.subr.mxu0 0.0
  %3853 = vmatpush2.msra.mxu0 0.0
  %3854 = vmatprep.subr.mxu0 0.0
  %3855 = vmatpush2.msra.mxu0 0.0
  %3856 = vmatprep.subr.mxu0 0.0
  %3857 = vmatpush2.msra.mxu0 0.0
  %3858 = vmatprep.subr.mxu0 0.0
  %3859 = vmatpush2.msra.mxu0 0.0
  %3860 = vmatprep.subr.mxu0 0.0
  %3861 = vmatpush2.msra.mxu0 0.0
  %3862 = vmatprep.subr.mxu0 0.0
  %3863 = vmatpush2.msra.mxu0 0.0
  %3864 = vmatprep.subr.mxu0 0.0
  %3865 = vmatpush2.msra.mxu0 0.0
  %3866 = vmatprep.subr.mxu0 0.0
  %3867 = vmatpush2.msra.mxu0 0.0
  %3868 = vmatprep.subr.mxu0 0.0
  %3869 = vmatpush2.msra.mxu0 0.0
  %3870 = vmatprep.subr.mxu0 0.0
  %3871 = vmatpush2.msra.mxu0 0.0
  %3872 = vmatprep.subr.mxu0 0.0
  %3873 = vmatpush2.msra.mxu0 0.0
  %3874 = vmatprep.subr.mxu0 0.0
  %3875 = vmatpush2.msra.mxu0 0.0
  %3876 = vmatprep.subr.mxu0 0.0
  %3877 = vmatpush2.msra.mxu0 0.0
  %3878 = vmatprep.subr.mxu0 0.0
  %3879 = vmatpush2.msra.mxu0 0.0
  %3880 = vmatprep.mubr.f32.mxu0 0.0
  %v3881 = vand.u32 %v3475, 4294901760
  %3882 = vmatmul.mubr.f32.gmra.mxu0 %v3881
  %v3883 = vpop.f32.mrf.mxu0
  %v3884 = vadd.f32 %v3801, %v3883
  %v3885 = vpop.f32.mrf.mxu0
  %3886 = vdwg.mxu0
  %3887 = vmatprep.subr.mxu0 0.0
  %3888 = vmatpush1.msra.mxu0 0.0
  %3889 = vmatprep.subr.mxu0 0.0
  %3890 = vmatpush1.msra.mxu0 0.0
  %3891 = vmatprep.subr.mxu0 0.0
  %3892 = vmatpush1.msra.mxu0 0.0
  %3893 = vmatprep.subr.mxu0 0.0
  %3894 = vmatpush1.msra.mxu0 0.0
  %3895 = vmatprep.subr.mxu0 0.0
  %3896 = vmatpush1.msra.mxu0 0.0
  %3897 = vmatprep.subr.mxu0 0.0
  %3898 = vmatpush1.msra.mxu0 0.0
  %3899 = vmatprep.subr.mxu0 0.0
  %3900 = vmatpush1.msra.mxu0 0.0
  %3901 = vmatprep.subr.mxu0 0.0
  %3902 = vmatpush1.msra.mxu0 0.0
  %3903 = vmatprep.subr.mxu0 0.0
  %3904 = vmatpush1.msra.mxu0 0.0
  %3905 = vmatprep.subr.mxu0 0.0
  %3906 = vmatpush1.msra.mxu0 0.0
  %3907 = vmatprep.subr.mxu0 0.0
  %3908 = vmatpush1.msra.mxu0 0.0
  %3909 = vmatprep.subr.mxu0 0.0
  %3910 = vmatpush1.msra.mxu0 0.0
  %3911 = vmatprep.subr.mxu0 0.0
  %v3912 = vand.u32 %v39, 4294901760
  %3913 = vmatpush1.msra.mxu0 %v3912
  %3914 = vmatprep.subr.mxu0 0.0
  %v3915 = vand.u32 %v38, 4294901760
  %3916 = vmatpush1.msra.mxu0 %v3915
  %3917 = vmatprep.subr.mxu0 0.0
  %v3918 = vand.u32 %v37, 4294901760
  %3919 = vmatpush1.msra.mxu0 %v3918
  %3920 = vmatprep.subr.mxu0 0.0
  %v3921 = vand.u32 %v36, 4294901760
  %3922 = vmatpush1.msra.mxu0 %v3921
  %3923 = vmatprep.subr.mxu0 0.0
  %3924 = vmatpush2.msra.mxu0 0.0
  %3925 = vmatprep.subr.mxu0 0.0
  %3926 = vmatpush2.msra.mxu0 0.0
  %3927 = vmatprep.subr.mxu0 0.0
  %3928 = vmatpush2.msra.mxu0 0.0
  %3929 = vmatprep.subr.mxu0 0.0
  %3930 = vmatpush2.msra.mxu0 0.0
  %3931 = vmatprep.subr.mxu0 0.0
  %3932 = vmatpush2.msra.mxu0 0.0
  %3933 = vmatprep.subr.mxu0 0.0
  %3934 = vmatpush2.msra.mxu0 0.0
  %3935 = vmatprep.subr.mxu0 0.0
  %3936 = vmatpush2.msra.mxu0 0.0
  %3937 = vmatprep.subr.mxu0 0.0
  %3938 = vmatpush2.msra.mxu0 0.0
  %3939 = vmatprep.subr.mxu0 0.0
  %3940 = vmatpush2.msra.mxu0 0.0
  %3941 = vmatprep.subr.mxu0 0.0
  %3942 = vmatpush2.msra.mxu0 0.0
  %3943 = vmatprep.subr.mxu0 0.0
  %3944 = vmatpush2.msra.mxu0 0.0
  %3945 = vmatprep.subr.mxu0 0.0
  %3946 = vmatpush2.msra.mxu0 0.0
  %3947 = vmatprep.subr.mxu0 0.0
  %3948 = vmatpush2.msra.mxu0 0.0
  %3949 = vmatprep.subr.mxu0 0.0
  %3950 = vmatpush2.msra.mxu0 0.0
  %3951 = vmatprep.subr.mxu0 0.0
  %3952 = vmatpush2.msra.mxu0 0.0
  %3953 = vmatprep.subr.mxu0 0.0
  %3954 = vmatpush2.msra.mxu0 0.0
  %3955 = vmatprep.mubr.f32.mxu0 0.0
  %v3956 = vand.u32 %v3475, 4294901760
  %3957 = vmatmul.mubr.f32.gmra.mxu0 %v3956
  %v3958 = vpop.f32.mrf.mxu0
  %v3959 = vadd.f32 %v3884, %v3958
  %v3960 = vpop.f32.mrf.mxu0
  %3961 = vdwg.mxu0
  %v3962 = vadd.f32 %v3474, %v3959
  %v3963 = vsub.f32 0.0, %v3962
  %v3964 = vmul.f32 %v3963, 1.442695
  %v3965 = vpow.pop %v3964
  %v3966 = vadd.f32 %v3965, 1.0
  %v3967 = vrcp.pop %v3966
  %v3968 = vmul.f32 1.0, %v3967
  %v3969 = vtanh.pop %v3962
  %v3970 = vmul.f32 %v3968, %v3460
  %3972 = vrot.lane.b32.xlu0 %v3969, 64
  %v3973 = vpop.permute.xlu0 %3972
  %v3975 = vmul.f32 %v3968, %v3973
  %3977 = vrot.lane.b32.xlu0 %v3975, 32
  %v3978 = vpop.permute.xlu0 %3977
  %v3980 = vadd.f32 %v3970, %v3978
  %v3981 = vtanh.pop %v3980
  %3983 = vrot.lane.b32.xlu0 %v3981, 64
  %v3984 = vpop.permute.xlu0 %3983
  %v3986 = vmul.f32 %v3968, %v3984
  %3988 = vrot.lane.b32.xlu0 %v3986, 32
  %v3989 = vpop.permute.xlu0 %3988
  %s3991 = scalar_lea.vmem [#allocation2], 40
  %3992 = vst.msk [vmem:[%s3991] sm:$0xff] %vm55, %v3989
  %s3993 = scalar_lea.vmem [#allocation3], 48
  %v3994 = vld [vmem:[%s3993] sm:$0xff]
  %v3995 = vsel %vm55, %v3989, 0
  %3997 = vmatprep.subr.mxu0 0.0
  %3998 = vmatpush1.msra.mxu0 0.0
  %3999 = vmatprep.subr.mxu0 0.0
  %4000 = vmatpush1.msra.mxu0 0.0
  %4001 = vmatprep.subr.mxu0 0.0
  %4002 = vmatpush1.msra.mxu0 0.0
  %4003 = vmatprep.subr.mxu0 0.0
  %4004 = vmatpush1.msra.mxu0 0.0
  %4005 = vmatprep.subr.mxu0 0.0
  %4006 = vmatpush1.msra.mxu0 0.0
  %4007 = vmatprep.subr.mxu0 0.0
  %4008 = vmatpush1.msra.mxu0 0.0
  %4009 = vmatprep.subr.mxu0 0.0
  %4010 = vmatpush1.msra.mxu0 0.0
  %4011 = vmatprep.subr.mxu0 0.0
  %4012 = vmatpush1.msra.mxu0 0.0
  %4013 = vmatprep.subr.mxu0 0.0
  %4014 = vmatpush1.msra.mxu0 0.0
  %4015 = vmatprep.subr.mxu0 0.0
  %4016 = vmatpush1.msra.mxu0 0.0
  %4017 = vmatprep.subr.mxu0 0.0
  %4018 = vmatpush1.msra.mxu0 0.0
  %4019 = vmatprep.subr.mxu0 0.0
  %4020 = vmatpush1.msra.mxu0 0.0
  %4021 = vmatprep.subr.mxu0 0.0
  %v4022 = vand.u32 %v39, 4294901760
  %4023 = vmatpush1.msra.mxu0 %v4022
  %4024 = vmatprep.subr.mxu0 0.0
  %v4025 = vand.u32 %v38, 4294901760
  %4026 = vmatpush1.msra.mxu0 %v4025
  %4027 = vmatprep.subr.mxu0 0.0
  %v4028 = vand.u32 %v37, 4294901760
  %4029 = vmatpush1.msra.mxu0 %v4028
  %4030 = vmatprep.subr.mxu0 0.0
  %v4031 = vand.u32 %v36, 4294901760
  %4032 = vmatpush1.msra.mxu0 %v4031
  %4033 = vmatprep.subr.mxu0 0.0
  %4034 = vmatpush2.msra.mxu0 0.0
  %4035 = vmatprep.subr.mxu0 0.0
  %4036 = vmatpush2.msra.mxu0 0.0
  %4037 = vmatprep.subr.mxu0 0.0
  %4038 = vmatpush2.msra.mxu0 0.0
  %4039 = vmatprep.subr.mxu0 0.0
  %4040 = vmatpush2.msra.mxu0 0.0
  %4041 = vmatprep.subr.mxu0 0.0
  %4042 = vmatpush2.msra.mxu0 0.0
  %4043 = vmatprep.subr.mxu0 0.0
  %4044 = vmatpush2.msra.mxu0 0.0
  %4045 = vmatprep.subr.mxu0 0.0
  %4046 = vmatpush2.msra.mxu0 0.0
  %4047 = vmatprep.subr.mxu0 0.0
  %4048 = vmatpush2.msra.mxu0 0.0
  %4049 = vmatprep.subr.mxu0 0.0
  %4050 = vmatpush2.msra.mxu0 0.0
  %4051 = vmatprep.subr.mxu0 0.0
  %4052 = vmatpush2.msra.mxu0 0.0
  %4053 = vmatprep.subr.mxu0 0.0
  %4054 = vmatpush2.msra.mxu0 0.0
  %4055 = vmatprep.subr.mxu0 0.0
  %4056 = vmatpush2.msra.mxu0 0.0
  %4057 = vmatprep.subr.mxu0 0.0
  %4058 = vmatpush2.msra.mxu0 0.0
  %4059 = vmatprep.subr.mxu0 0.0
  %4060 = vmatpush2.msra.mxu0 0.0
  %4061 = vmatprep.subr.mxu0 0.0
  %4062 = vmatpush2.msra.mxu0 0.0
  %4063 = vmatprep.subr.mxu0 0.0
  %4064 = vmatpush2.msra.mxu0 0.0
  %4065 = vmatprep.mubr.f32.mxu0 0.0
  %v4066 = vand.u32 %v3995, 4294901760
  %v4067 = vsub.f32 %v3995, %v4066
  %v4068 = vand.u32 %v4067, 4294901760
  %v4069 = vsub.f32 %v4067, %v4068
  %v4070 = vand.u32 %v4069, 4294901760
  %4071 = vmatmul.mubr.f32.gmra.mxu0 %v4070
  %v4072 = vpop.f32.mrf.mxu0
  %v4073 = vadd.f32 0.0, %v4072
  %v4074 = vpop.f32.mrf.mxu0
  %4075 = vdwg.mxu0
  %4076 = vmatprep.subr.mxu0 0.0
  %4077 = vmatpush1.msra.mxu0 0.0
  %4078 = vmatprep.subr.mxu0 0.0
  %4079 = vmatpush1.msra.mxu0 0.0
  %4080 = vmatprep.subr.mxu0 0.0
  %4081 = vmatpush1.msra.mxu0 0.0
  %4082 = vmatprep.subr.mxu0 0.0
  %4083 = vmatpush1.msra.mxu0 0.0
  %4084 = vmatprep.subr.mxu0 0.0
  %4085 = vmatpush1.msra.mxu0 0.0
  %4086 = vmatprep.subr.mxu0 0.0
  %4087 = vmatpush1.msra.mxu0 0.0
  %4088 = vmatprep.subr.mxu0 0.0
  %4089 = vmatpush1.msra.mxu0 0.0
  %4090 = vmatprep.subr.mxu0 0.0
  %4091 = vmatpush1.msra.mxu0 0.0
  %4092 = vmatprep.subr.mxu0 0.0
  %4093 = vmatpush1.msra.mxu0 0.0
  %4094 = vmatprep.subr.mxu0 0.0
  %4095 = vmatpush1.msra.mxu0 0.0
  %4096 = vmatprep.subr.mxu0 0.0
  %4097 = vmatpush1.msra.mxu0 0.0
  %4098 = vmatprep.subr.mxu0 0.0
  %4099 = vmatpush1.msra.mxu0 0.0
  %4100 = vmatprep.subr.mxu0 0.0
  %v4101 = vand.u32 %v39, 4294901760
  %v4102 = vsub.f32 %v39, %v4101
  %v4103 = vand.u32 %v4102, 4294901760
  %v4104 = vsub.f32 %v4102, %v4103
  %v4105 = vand.u32 %v4104, 4294901760
  %4106 = vmatpush1.msra.mxu0 %v4105
  %4107 = vmatprep.subr.mxu0 0.0
  %v4108 = vand.u32 %v38, 4294901760
  %v4109 = vsub.f32 %v38, %v4108
  %v4110 = vand.u32 %v4109, 4294901760
  %v4111 = vsub.f32 %v4109, %v4110
  %v4112 = vand.u32 %v4111, 4294901760
  %4113 = vmatpush1.msra.mxu0 %v4112
  %4114 = vmatprep.subr.mxu0 0.0
  %v4115 = vand.u32 %v37, 4294901760
  %v4116 = vsub.f32 %v37, %v4115
  %v4117 = vand.u32 %v4116, 4294901760
  %v4118 = vsub.f32 %v4116, %v4117
  %v4119 = vand.u32 %v4118, 4294901760
  %4120 = vmatpush1.msra.mxu0 %v4119
  %4121 = vmatprep.subr.mxu0 0.0
  %v4122 = vand.u32 %v36, 4294901760
  %v4123 = vsub.f32 %v36, %v4122
  %v4124 = vand.u32 %v4123, 4294901760
  %v4125 = vsub.f32 %v4123, %v4124
  %v4126 = vand.u32 %v4125, 4294901760
  %4127 = vmatpush1.msra.mxu0 %v4126
  %4128 = vmatprep.subr.mxu0 0.0
  %4129 = vmatpush2.msra.mxu0 0.0
  %4130 = vmatprep.subr.mxu0 0.0
  %4131 = vmatpush2.msra.mxu0 0.0
  %4132 = vmatprep.subr.mxu0 0.0
  %4133 = vmatpush2.msra.mxu0 0.0
  %4134 = vmatprep.subr.mxu0 0.0
  %4135 = vmatpush2.msra.mxu0 0.0
  %4136 = vmatprep.subr.mxu0 0.0
  %4137 = vmatpush2.msra.mxu0 0.0
  %4138 = vmatprep.subr.mxu0 0.0
  %4139 = vmatpush2.msra.mxu0 0.0
  %4140 = vmatprep.subr.mxu0 0.0
  %4141 = vmatpush2.msra.mxu0 0.0
  %4142 = vmatprep.subr.mxu0 0.0
  %4143 = vmatpush2.msra.mxu0 0.0
  %4144 = vmatprep.subr.mxu0 0.0
  %4145 = vmatpush2.msra.mxu0 0.0
  %4146 = vmatprep.subr.mxu0 0.0
  %4147 = vmatpush2.msra.mxu0 0.0
  %4148 = vmatprep.subr.mxu0 0.0
  %4149 = vmatpush2.msra.mxu0 0.0
  %4150 = vmatprep.subr.mxu0 0.0
  %4151 = vmatpush2.msra.mxu0 0.0
  %4152 = vmatprep.subr.mxu0 0.0
  %4153 = vmatpush2.msra.mxu0 0.0
  %4154 = vmatprep.subr.mxu0 0.0
  %4155 = vmatpush2.msra.mxu0 0.0
  %4156 = vmatprep.subr.mxu0 0.0
  %4157 = vmatpush2.msra.mxu0 0.0
  %4158 = vmatprep.subr.mxu0 0.0
  %4159 = vmatpush2.msra.mxu0 0.0
  %4160 = vmatprep.mubr.f32.mxu0 0.0
  %v4161 = vand.u32 %v3995, 4294901760
  %4162 = vmatmul.mubr.f32.gmra.mxu0 %v4161
  %v4163 = vpop.f32.mrf.mxu0
  %v4164 = vadd.f32 %v4073, %v4163
  %v4165 = vpop.f32.mrf.mxu0
  %4166 = vdwg.mxu0
  %4167 = vmatprep.subr.mxu0 0.0
  %4168 = vmatpush1.msra.mxu0 0.0
  %4169 = vmatprep.subr.mxu0 0.0
  %4170 = vmatpush1.msra.mxu0 0.0
  %4171 = vmatprep.subr.mxu0 0.0
  %4172 = vmatpush1.msra.mxu0 0.0
  %4173 = vmatprep.subr.mxu0 0.0
  %4174 = vmatpush1.msra.mxu0 0.0
  %4175 = vmatprep.subr.mxu0 0.0
  %4176 = vmatpush1.msra.mxu0 0.0
  %4177 = vmatprep.subr.mxu0 0.0
  %4178 = vmatpush1.msra.mxu0 0.0
  %4179 = vmatprep.subr.mxu0 0.0
  %4180 = vmatpush1.msra.mxu0 0.0
  %4181 = vmatprep.subr.mxu0 0.0
  %4182 = vmatpush1.msra.mxu0 0.0
  %4183 = vmatprep.subr.mxu0 0.0
  %4184 = vmatpush1.msra.mxu0 0.0
  %4185 = vmatprep.subr.mxu0 0.0
  %4186 = vmatpush1.msra.mxu0 0.0
  %4187 = vmatprep.subr.mxu0 0.0
  %4188 = vmatpush1.msra.mxu0 0.0
  %4189 = vmatprep.subr.mxu0 0.0
  %4190 = vmatpush1.msra.mxu0 0.0
  %4191 = vmatprep.subr.mxu0 0.0
  %v4192 = vand.u32 %v39, 4294901760
  %v4193 = vsub.f32 %v39, %v4192
  %4194 = vmatpush1.msra.mxu0 %v4193
  %4195 = vmatprep.subr.mxu0 0.0
  %v4196 = vand.u32 %v38, 4294901760
  %v4197 = vsub.f32 %v38, %v4196
  %4198 = vmatpush1.msra.mxu0 %v4197
  %4199 = vmatprep.subr.mxu0 0.0
  %v4200 = vand.u32 %v37, 4294901760
  %v4201 = vsub.f32 %v37, %v4200
  %4202 = vmatpush1.msra.mxu0 %v4201
  %4203 = vmatprep.subr.mxu0 0.0
  %v4204 = vand.u32 %v36, 4294901760
  %v4205 = vsub.f32 %v36, %v4204
  %4206 = vmatpush1.msra.mxu0 %v4205
  %4207 = vmatprep.subr.mxu0 0.0
  %4208 = vmatpush2.msra.mxu0 0.0
  %4209 = vmatprep.subr.mxu0 0.0
  %4210 = vmatpush2.msra.mxu0 0.0
  %4211 = vmatprep.subr.mxu0 0.0
  %4212 = vmatpush2.msra.mxu0 0.0
  %4213 = vmatprep.subr.mxu0 0.0
  %4214 = vmatpush2.msra.mxu0 0.0
  %4215 = vmatprep.subr.mxu0 0.0
  %4216 = vmatpush2.msra.mxu0 0.0
  %4217 = vmatprep.subr.mxu0 0.0
  %4218 = vmatpush2.msra.mxu0 0.0
  %4219 = vmatprep.subr.mxu0 0.0
  %4220 = vmatpush2.msra.mxu0 0.0
  %4221 = vmatprep.subr.mxu0 0.0
  %4222 = vmatpush2.msra.mxu0 0.0
  %4223 = vmatprep.subr.mxu0 0.0
  %4224 = vmatpush2.msra.mxu0 0.0
  %4225 = vmatprep.subr.mxu0 0.0
  %4226 = vmatpush2.msra.mxu0 0.0
  %4227 = vmatprep.subr.mxu0 0.0
  %4228 = vmatpush2.msra.mxu0 0.0
  %4229 = vmatprep.subr.mxu0 0.0
  %4230 = vmatpush2.msra.mxu0 0.0
  %4231 = vmatprep.subr.mxu0 0.0
  %4232 = vmatpush2.msra.mxu0 0.0
  %4233 = vmatprep.subr.mxu0 0.0
  %4234 = vmatpush2.msra.mxu0 0.0
  %4235 = vmatprep.subr.mxu0 0.0
  %4236 = vmatpush2.msra.mxu0 0.0
  %4237 = vmatprep.subr.mxu0 0.0
  %4238 = vmatpush2.msra.mxu0 0.0
  %4239 = vmatprep.mubr.f32.mxu0 0.0
  %v4240 = vand.u32 %v3995, 4294901760
  %v4241 = vsub.f32 %v3995, %v4240
  %4242 = vmatmul.mubr.f32.gmra.mxu0 %v4241
  %v4243 = vpop.f32.mrf.mxu0
  %v4244 = vadd.f32 %v4164, %v4243
  %v4245 = vpop.f32.mrf.mxu0
  %4246 = vdwg.mxu0
  %4247 = vmatprep.subr.mxu0 0.0
  %4248 = vmatpush1.msra.mxu0 0.0
  %4249 = vmatprep.subr.mxu0 0.0
  %4250 = vmatpush1.msra.mxu0 0.0
  %4251 = vmatprep.subr.mxu0 0.0
  %4252 = vmatpush1.msra.mxu0 0.0
  %4253 = vmatprep.subr.mxu0 0.0
  %4254 = vmatpush1.msra.mxu0 0.0
  %4255 = vmatprep.subr.mxu0 0.0
  %4256 = vmatpush1.msra.mxu0 0.0
  %4257 = vmatprep.subr.mxu0 0.0
  %4258 = vmatpush1.msra.mxu0 0.0
  %4259 = vmatprep.subr.mxu0 0.0
  %4260 = vmatpush1.msra.mxu0 0.0
  %4261 = vmatprep.subr.mxu0 0.0
  %4262 = vmatpush1.msra.mxu0 0.0
  %4263 = vmatprep.subr.mxu0 0.0
  %4264 = vmatpush1.msra.mxu0 0.0
  %4265 = vmatprep.subr.mxu0 0.0
  %4266 = vmatpush1.msra.mxu0 0.0
  %4267 = vmatprep.subr.mxu0 0.0
  %4268 = vmatpush1.msra.mxu0 0.0
  %4269 = vmatprep.subr.mxu0 0.0
  %4270 = vmatpush1.msra.mxu0 0.0
  %4271 = vmatprep.subr.mxu0 0.0
  %v4272 = vand.u32 %v39, 4294901760
  %4273 = vmatpush1.msra.mxu0 %v4272
  %4274 = vmatprep.subr.mxu0 0.0
  %v4275 = vand.u32 %v38, 4294901760
  %4276 = vmatpush1.msra.mxu0 %v4275
  %4277 = vmatprep.subr.mxu0 0.0
  %v4278 = vand.u32 %v37, 4294901760
  %4279 = vmatpush1.msra.mxu0 %v4278
  %4280 = vmatprep.subr.mxu0 0.0
  %v4281 = vand.u32 %v36, 4294901760
  %4282 = vmatpush1.msra.mxu0 %v4281
  %4283 = vmatprep.subr.mxu0 0.0
  %4284 = vmatpush2.msra.mxu0 0.0
  %4285 = vmatprep.subr.mxu0 0.0
  %4286 = vmatpush2.msra.mxu0 0.0
  %4287 = vmatprep.subr.mxu0 0.0
  %4288 = vmatpush2.msra.mxu0 0.0
  %4289 = vmatprep.subr.mxu0 0.0
  %4290 = vmatpush2.msra.mxu0 0.0
  %4291 = vmatprep.subr.mxu0 0.0
  %4292 = vmatpush2.msra.mxu0 0.0
  %4293 = vmatprep.subr.mxu0 0.0
  %4294 = vmatpush2.msra.mxu0 0.0
  %4295 = vmatprep.subr.mxu0 0.0
  %4296 = vmatpush2.msra.mxu0 0.0
  %4297 = vmatprep.subr.mxu0 0.0
  %4298 = vmatpush2.msra.mxu0 0.0
  %4299 = vmatprep.subr.mxu0 0.0
  %4300 = vmatpush2.msra.mxu0 0.0
  %4301 = vmatprep.subr.mxu0 0.0
  %4302 = vmatpush2.msra.mxu0 0.0
  %4303 = vmatprep.subr.mxu0 0.0
  %4304 = vmatpush2.msra.mxu0 0.0
  %4305 = vmatprep.subr.mxu0 0.0
  %4306 = vmatpush2.msra.mxu0 0.0
  %4307 = vmatprep.subr.mxu0 0.0
  %4308 = vmatpush2.msra.mxu0 0.0
  %4309 = vmatprep.subr.mxu0 0.0
  %4310 = vmatpush2.msra.mxu0 0.0
  %4311 = vmatprep.subr.mxu0 0.0
  %4312 = vmatpush2.msra.mxu0 0.0
  %4313 = vmatprep.subr.mxu0 0.0
  %4314 = vmatpush2.msra.mxu0 0.0
  %4315 = vmatprep.mubr.f32.mxu0 0.0
  %v4316 = vand.u32 %v3995, 4294901760
  %v4317 = vsub.f32 %v3995, %v4316
  %v4318 = vand.u32 %v4317, 4294901760
  %4319 = vmatmul.mubr.f32.gmra.mxu0 %v4318
  %v4320 = vpop.f32.mrf.mxu0
  %v4321 = vadd.f32 %v4244, %v4320
  %v4322 = vpop.f32.mrf.mxu0
  %4323 = vdwg.mxu0
  %4324 = vmatprep.subr.mxu0 0.0
  %4325 = vmatpush1.msra.mxu0 0.0
  %4326 = vmatprep.subr.mxu0 0.0
  %4327 = vmatpush1.msra.mxu0 0.0
  %4328 = vmatprep.subr.mxu0 0.0
  %4329 = vmatpush1.msra.mxu0 0.0
  %4330 = vmatprep.subr.mxu0 0.0
  %4331 = vmatpush1.msra.mxu0 0.0
  %4332 = vmatprep.subr.mxu0 0.0
  %4333 = vmatpush1.msra.mxu0 0.0
  %4334 = vmatprep.subr.mxu0 0.0
  %4335 = vmatpush1.msra.mxu0 0.0
  %4336 = vmatprep.subr.mxu0 0.0
  %4337 = vmatpush1.msra.mxu0 0.0
  %4338 = vmatprep.subr.mxu0 0.0
  %4339 = vmatpush1.msra.mxu0 0.0
  %4340 = vmatprep.subr.mxu0 0.0
  %4341 = vmatpush1.msra.mxu0 0.0
  %4342 = vmatprep.subr.mxu0 0.0
  %4343 = vmatpush1.msra.mxu0 0.0
  %4344 = vmatprep.subr.mxu0 0.0
  %4345 = vmatpush1.msra.mxu0 0.0
  %4346 = vmatprep.subr.mxu0 0.0
  %4347 = vmatpush1.msra.mxu0 0.0
  %4348 = vmatprep.subr.mxu0 0.0
  %v4349 = vand.u32 %v39, 4294901760
  %v4350 = vsub.f32 %v39, %v4349
  %v4351 = vand.u32 %v4350, 4294901760
  %4352 = vmatpush1.msra.mxu0 %v4351
  %4353 = vmatprep.subr.mxu0 0.0
  %v4354 = vand.u32 %v38, 4294901760
  %v4355 = vsub.f32 %v38, %v4354
  %v4356 = vand.u32 %v4355, 4294901760
  %4357 = vmatpush1.msra.mxu0 %v4356
  %4358 = vmatprep.subr.mxu0 0.0
  %v4359 = vand.u32 %v37, 4294901760
  %v4360 = vsub.f32 %v37, %v4359
  %v4361 = vand.u32 %v4360, 4294901760
  %4362 = vmatpush1.msra.mxu0 %v4361
  %4363 = vmatprep.subr.mxu0 0.0
  %v4364 = vand.u32 %v36, 4294901760
  %v4365 = vsub.f32 %v36, %v4364
  %v4366 = vand.u32 %v4365, 4294901760
  %4367 = vmatpush1.msra.mxu0 %v4366
  %4368 = vmatprep.subr.mxu0 0.0
  %4369 = vmatpush2.msra.mxu0 0.0
  %4370 = vmatprep.subr.mxu0 0.0
  %4371 = vmatpush2.msra.mxu0 0.0
  %4372 = vmatprep.subr.mxu0 0.0
  %4373 = vmatpush2.msra.mxu0 0.0
  %4374 = vmatprep.subr.mxu0 0.0
  %4375 = vmatpush2.msra.mxu0 0.0
  %4376 = vmatprep.subr.mxu0 0.0
  %4377 = vmatpush2.msra.mxu0 0.0
  %4378 = vmatprep.subr.mxu0 0.0
  %4379 = vmatpush2.msra.mxu0 0.0
  %4380 = vmatprep.subr.mxu0 0.0
  %4381 = vmatpush2.msra.mxu0 0.0
  %4382 = vmatprep.subr.mxu0 0.0
  %4383 = vmatpush2.msra.mxu0 0.0
  %4384 = vmatprep.subr.mxu0 0.0
  %4385 = vmatpush2.msra.mxu0 0.0
  %4386 = vmatprep.subr.mxu0 0.0
  %4387 = vmatpush2.msra.mxu0 0.0
  %4388 = vmatprep.subr.mxu0 0.0
  %4389 = vmatpush2.msra.mxu0 0.0
  %4390 = vmatprep.subr.mxu0 0.0
  %4391 = vmatpush2.msra.mxu0 0.0
  %4392 = vmatprep.subr.mxu0 0.0
  %4393 = vmatpush2.msra.mxu0 0.0
  %4394 = vmatprep.subr.mxu0 0.0
  %4395 = vmatpush2.msra.mxu0 0.0
  %4396 = vmatprep.subr.mxu0 0.0
  %4397 = vmatpush2.msra.mxu0 0.0
  %4398 = vmatprep.subr.mxu0 0.0
  %4399 = vmatpush2.msra.mxu0 0.0
  %4400 = vmatprep.mubr.f32.mxu0 0.0
  %v4401 = vand.u32 %v3995, 4294901760
  %4402 = vmatmul.mubr.f32.gmra.mxu0 %v4401
  %v4403 = vpop.f32.mrf.mxu0
  %v4404 = vadd.f32 %v4321, %v4403
  %v4405 = vpop.f32.mrf.mxu0
  %4406 = vdwg.mxu0
  %4407 = vmatprep.subr.mxu0 0.0
  %4408 = vmatpush1.msra.mxu0 0.0
  %4409 = vmatprep.subr.mxu0 0.0
  %4410 = vmatpush1.msra.mxu0 0.0
  %4411 = vmatprep.subr.mxu0 0.0
  %4412 = vmatpush1.msra.mxu0 0.0
  %4413 = vmatprep.subr.mxu0 0.0
  %4414 = vmatpush1.msra.mxu0 0.0
  %4415 = vmatprep.subr.mxu0 0.0
  %4416 = vmatpush1.msra.mxu0 0.0
  %4417 = vmatprep.subr.mxu0 0.0
  %4418 = vmatpush1.msra.mxu0 0.0
  %4419 = vmatprep.subr.mxu0 0.0
  %4420 = vmatpush1.msra.mxu0 0.0
  %4421 = vmatprep.subr.mxu0 0.0
  %4422 = vmatpush1.msra.mxu0 0.0
  %4423 = vmatprep.subr.mxu0 0.0
  %4424 = vmatpush1.msra.mxu0 0.0
  %4425 = vmatprep.subr.mxu0 0.0
  %4426 = vmatpush1.msra.mxu0 0.0
  %4427 = vmatprep.subr.mxu0 0.0
  %4428 = vmatpush1.msra.mxu0 0.0
  %4429 = vmatprep.subr.mxu0 0.0
  %4430 = vmatpush1.msra.mxu0 0.0
  %4431 = vmatprep.subr.mxu0 0.0
  %v4432 = vand.u32 %v39, 4294901760
  %4433 = vmatpush1.msra.mxu0 %v4432
  %4434 = vmatprep.subr.mxu0 0.0
  %v4435 = vand.u32 %v38, 4294901760
  %4436 = vmatpush1.msra.mxu0 %v4435
  %4437 = vmatprep.subr.mxu0 0.0
  %v4438 = vand.u32 %v37, 4294901760
  %4439 = vmatpush1.msra.mxu0 %v4438
  %4440 = vmatprep.subr.mxu0 0.0
  %v4441 = vand.u32 %v36, 4294901760
  %4442 = vmatpush1.msra.mxu0 %v4441
  %4443 = vmatprep.subr.mxu0 0.0
  %4444 = vmatpush2.msra.mxu0 0.0
  %4445 = vmatprep.subr.mxu0 0.0
  %4446 = vmatpush2.msra.mxu0 0.0
  %4447 = vmatprep.subr.mxu0 0.0
  %4448 = vmatpush2.msra.mxu0 0.0
  %4449 = vmatprep.subr.mxu0 0.0
  %4450 = vmatpush2.msra.mxu0 0.0
  %4451 = vmatprep.subr.mxu0 0.0
  %4452 = vmatpush2.msra.mxu0 0.0
  %4453 = vmatprep.subr.mxu0 0.0
  %4454 = vmatpush2.msra.mxu0 0.0
  %4455 = vmatprep.subr.mxu0 0.0
  %4456 = vmatpush2.msra.mxu0 0.0
  %4457 = vmatprep.subr.mxu0 0.0
  %4458 = vmatpush2.msra.mxu0 0.0
  %4459 = vmatprep.subr.mxu0 0.0
  %4460 = vmatpush2.msra.mxu0 0.0
  %4461 = vmatprep.subr.mxu0 0.0
  %4462 = vmatpush2.msra.mxu0 0.0
  %4463 = vmatprep.subr.mxu0 0.0
  %4464 = vmatpush2.msra.mxu0 0.0
  %4465 = vmatprep.subr.mxu0 0.0
  %4466 = vmatpush2.msra.mxu0 0.0
  %4467 = vmatprep.subr.mxu0 0.0
  %4468 = vmatpush2.msra.mxu0 0.0
  %4469 = vmatprep.subr.mxu0 0.0
  %4470 = vmatpush2.msra.mxu0 0.0
  %4471 = vmatprep.subr.mxu0 0.0
  %4472 = vmatpush2.msra.mxu0 0.0
  %4473 = vmatprep.subr.mxu0 0.0
  %4474 = vmatpush2.msra.mxu0 0.0
  %4475 = vmatprep.mubr.f32.mxu0 0.0
  %v4476 = vand.u32 %v3995, 4294901760
  %4477 = vmatmul.mubr.f32.gmra.mxu0 %v4476
  %v4478 = vpop.f32.mrf.mxu0
  %v4479 = vadd.f32 %v4404, %v4478
  %v4480 = vpop.f32.mrf.mxu0
  %4481 = vdwg.mxu0
  %v4482 = vadd.f32 %v3994, %v4479
  %v4483 = vsub.f32 0.0, %v4482
  %v4484 = vmul.f32 %v4483, 1.442695
  %v4485 = vpow.pop %v4484
  %v4486 = vadd.f32 %v4485, 1.0
  %v4487 = vrcp.pop %v4486
  %v4488 = vmul.f32 1.0, %v4487
  %v4489 = vtanh.pop %v4482
  %v4490 = vmul.f32 %v4488, %v3980
  %4492 = vrot.lane.b32.xlu0 %v4489, 64
  %v4493 = vpop.permute.xlu0 %4492
  %v4495 = vmul.f32 %v4488, %v4493
  %4497 = vrot.lane.b32.xlu0 %v4495, 32
  %v4498 = vpop.permute.xlu0 %4497
  %v4500 = vadd.f32 %v4490, %v4498
  %v4501 = vtanh.pop %v4500
  %4503 = vrot.lane.b32.xlu0 %v4501, 64
  %v4504 = vpop.permute.xlu0 %4503
  %v4506 = vmul.f32 %v4488, %v4504
  %4508 = vrot.lane.b32.xlu0 %v4506, 32
  %v4509 = vpop.permute.xlu0 %4508
  %s4511 = scalar_lea.vmem [#allocation2], 48
  %4512 = vst.msk [vmem:[%s4511] sm:$0xff] %vm55, %v4509
  %s4513 = scalar_lea.vmem [#allocation3], 56
  %v4514 = vld [vmem:[%s4513] sm:$0xff]
  %v4515 = vsel %vm55, %v4509, 0
  %4517 = vmatprep.subr.mxu0 0.0
  %4518 = vmatpush1.msra.mxu0 0.0
  %4519 = vmatprep.subr.mxu0 0.0
  %4520 = vmatpush1.msra.mxu0 0.0
  %4521 = vmatprep.subr.mxu0 0.0
  %4522 = vmatpush1.msra.mxu0 0.0
  %4523 = vmatprep.subr.mxu0 0.0
  %4524 = vmatpush1.msra.mxu0 0.0
  %4525 = vmatprep.subr.mxu0 0.0
  %4526 = vmatpush1.msra.mxu0 0.0
  %4527 = vmatprep.subr.mxu0 0.0
  %4528 = vmatpush1.msra.mxu0 0.0
  %4529 = vmatprep.subr.mxu0 0.0
  %4530 = vmatpush1.msra.mxu0 0.0
  %4531 = vmatprep.subr.mxu0 0.0
  %4532 = vmatpush1.msra.mxu0 0.0
  %4533 = vmatprep.subr.mxu0 0.0
  %4534 = vmatpush1.msra.mxu0 0.0
  %4535 = vmatprep.subr.mxu0 0.0
  %4536 = vmatpush1.msra.mxu0 0.0
  %4537 = vmatprep.subr.mxu0 0.0
  %4538 = vmatpush1.msra.mxu0 0.0
  %4539 = vmatprep.subr.mxu0 0.0
  %4540 = vmatpush1.msra.mxu0 0.0
  %4541 = vmatprep.subr.mxu0 0.0
  %v4542 = vand.u32 %v39, 4294901760
  %4543 = vmatpush1.msra.mxu0 %v4542
  %4544 = vmatprep.subr.mxu0 0.0
  %v4545 = vand.u32 %v38, 4294901760
  %4546 = vmatpush1.msra.mxu0 %v4545
  %4547 = vmatprep.subr.mxu0 0.0
  %v4548 = vand.u32 %v37, 4294901760
  %4549 = vmatpush1.msra.mxu0 %v4548
  %4550 = vmatprep.subr.mxu0 0.0
  %v4551 = vand.u32 %v36, 4294901760
  %4552 = vmatpush1.msra.mxu0 %v4551
  %4553 = vmatprep.subr.mxu0 0.0
  %4554 = vmatpush2.msra.mxu0 0.0
  %4555 = vmatprep.subr.mxu0 0.0
  %4556 = vmatpush2.msra.mxu0 0.0
  %4557 = vmatprep.subr.mxu0 0.0
  %4558 = vmatpush2.msra.mxu0 0.0
  %4559 = vmatprep.subr.mxu0 0.0
  %4560 = vmatpush2.msra.mxu0 0.0
  %4561 = vmatprep.subr.mxu0 0.0
  %4562 = vmatpush2.msra.mxu0 0.0
  %4563 = vmatprep.subr.mxu0 0.0
  %4564 = vmatpush2.msra.mxu0 0.0
  %4565 = vmatprep.subr.mxu0 0.0
  %4566 = vmatpush2.msra.mxu0 0.0
  %4567 = vmatprep.subr.mxu0 0.0
  %4568 = vmatpush2.msra.mxu0 0.0
  %4569 = vmatprep.subr.mxu0 0.0
  %4570 = vmatpush2.msra.mxu0 0.0
  %4571 = vmatprep.subr.mxu0 0.0
  %4572 = vmatpush2.msra.mxu0 0.0
  %4573 = vmatprep.subr.mxu0 0.0
  %4574 = vmatpush2.msra.mxu0 0.0
  %4575 = vmatprep.subr.mxu0 0.0
  %4576 = vmatpush2.msra.mxu0 0.0
  %4577 = vmatprep.subr.mxu0 0.0
  %4578 = vmatpush2.msra.mxu0 0.0
  %4579 = vmatprep.subr.mxu0 0.0
  %4580 = vmatpush2.msra.mxu0 0.0
  %4581 = vmatprep.subr.mxu0 0.0
  %4582 = vmatpush2.msra.mxu0 0.0
  %4583 = vmatprep.subr.mxu0 0.0
  %4584 = vmatpush2.msra.mxu0 0.0
  %4585 = vmatprep.mubr.f32.mxu0 0.0
  %v4586 = vand.u32 %v4515, 4294901760
  %v4587 = vsub.f32 %v4515, %v4586
  %v4588 = vand.u32 %v4587, 4294901760
  %v4589 = vsub.f32 %v4587, %v4588
  %v4590 = vand.u32 %v4589, 4294901760
  %4591 = vmatmul.mubr.f32.gmra.mxu0 %v4590
  %v4592 = vpop.f32.mrf.mxu0
  %v4593 = vadd.f32 0.0, %v4592
  %v4594 = vpop.f32.mrf.mxu0
  %4595 = vdwg.mxu0
  %4596 = vmatprep.subr.mxu0 0.0
  %4597 = vmatpush1.msra.mxu0 0.0
  %4598 = vmatprep.subr.mxu0 0.0
  %4599 = vmatpush1.msra.mxu0 0.0
  %4600 = vmatprep.subr.mxu0 0.0
  %4601 = vmatpush1.msra.mxu0 0.0
  %4602 = vmatprep.subr.mxu0 0.0
  %4603 = vmatpush1.msra.mxu0 0.0
  %4604 = vmatprep.subr.mxu0 0.0
  %4605 = vmatpush1.msra.mxu0 0.0
  %4606 = vmatprep.subr.mxu0 0.0
  %4607 = vmatpush1.msra.mxu0 0.0
  %4608 = vmatprep.subr.mxu0 0.0
  %4609 = vmatpush1.msra.mxu0 0.0
  %4610 = vmatprep.subr.mxu0 0.0
  %4611 = vmatpush1.msra.mxu0 0.0
  %4612 = vmatprep.subr.mxu0 0.0
  %4613 = vmatpush1.msra.mxu0 0.0
  %4614 = vmatprep.subr.mxu0 0.0
  %4615 = vmatpush1.msra.mxu0 0.0
  %4616 = vmatprep.subr.mxu0 0.0
  %4617 = vmatpush1.msra.mxu0 0.0
  %4618 = vmatprep.subr.mxu0 0.0
  %4619 = vmatpush1.msra.mxu0 0.0
  %4620 = vmatprep.subr.mxu0 0.0
  %v4621 = vand.u32 %v39, 4294901760
  %v4622 = vsub.f32 %v39, %v4621
  %v4623 = vand.u32 %v4622, 4294901760
  %v4624 = vsub.f32 %v4622, %v4623
  %v4625 = vand.u32 %v4624, 4294901760
  %4626 = vmatpush1.msra.mxu0 %v4625
  %4627 = vmatprep.subr.mxu0 0.0
  %v4628 = vand.u32 %v38, 4294901760
  %v4629 = vsub.f32 %v38, %v4628
  %v4630 = vand.u32 %v4629, 4294901760
  %v4631 = vsub.f32 %v4629, %v4630
  %v4632 = vand.u32 %v4631, 4294901760
  %4633 = vmatpush1.msra.mxu0 %v4632
  %4634 = vmatprep.subr.mxu0 0.0
  %v4635 = vand.u32 %v37, 4294901760
  %v4636 = vsub.f32 %v37, %v4635
  %v4637 = vand.u32 %v4636, 4294901760
  %v4638 = vsub.f32 %v4636, %v4637
  %v4639 = vand.u32 %v4638, 4294901760
  %4640 = vmatpush1.msra.mxu0 %v4639
  %4641 = vmatprep.subr.mxu0 0.0
  %v4642 = vand.u32 %v36, 4294901760
  %v4643 = vsub.f32 %v36, %v4642
  %v4644 = vand.u32 %v4643, 4294901760
  %v4645 = vsub.f32 %v4643, %v4644
  %v4646 = vand.u32 %v4645, 4294901760
  %4647 = vmatpush1.msra.mxu0 %v4646
  %4648 = vmatprep.subr.mxu0 0.0
  %4649 = vmatpush2.msra.mxu0 0.0
  %4650 = vmatprep.subr.mxu0 0.0
  %4651 = vmatpush2.msra.mxu0 0.0
  %4652 = vmatprep.subr.mxu0 0.0
  %4653 = vmatpush2.msra.mxu0 0.0
  %4654 = vmatprep.subr.mxu0 0.0
  %4655 = vmatpush2.msra.mxu0 0.0
  %4656 = vmatprep.subr.mxu0 0.0
  %4657 = vmatpush2.msra.mxu0 0.0
  %4658 = vmatprep.subr.mxu0 0.0
  %4659 = vmatpush2.msra.mxu0 0.0
  %4660 = vmatprep.subr.mxu0 0.0
  %4661 = vmatpush2.msra.mxu0 0.0
  %4662 = vmatprep.subr.mxu0 0.0
  %4663 = vmatpush2.msra.mxu0 0.0
  %4664 = vmatprep.subr.mxu0 0.0
  %4665 = vmatpush2.msra.mxu0 0.0
  %4666 = vmatprep.subr.mxu0 0.0
  %4667 = vmatpush2.msra.mxu0 0.0
  %4668 = vmatprep.subr.mxu0 0.0
  %4669 = vmatpush2.msra.mxu0 0.0
  %4670 = vmatprep.subr.mxu0 0.0
  %4671 = vmatpush2.msra.mxu0 0.0
  %4672 = vmatprep.subr.mxu0 0.0
  %4673 = vmatpush2.msra.mxu0 0.0
  %4674 = vmatprep.subr.mxu0 0.0
  %4675 = vmatpush2.msra.mxu0 0.0
  %4676 = vmatprep.subr.mxu0 0.0
  %4677 = vmatpush2.msra.mxu0 0.0
  %4678 = vmatprep.subr.mxu0 0.0
  %4679 = vmatpush2.msra.mxu0 0.0
  %4680 = vmatprep.mubr.f32.mxu0 0.0
  %v4681 = vand.u32 %v4515, 4294901760
  %4682 = vmatmul.mubr.f32.gmra.mxu0 %v4681
  %v4683 = vpop.f32.mrf.mxu0
  %v4684 = vadd.f32 %v4593, %v4683
  %v4685 = vpop.f32.mrf.mxu0
  %4686 = vdwg.mxu0
  %4687 = vmatprep.subr.mxu0 0.0
  %4688 = vmatpush1.msra.mxu0 0.0
  %4689 = vmatprep.subr.mxu0 0.0
  %4690 = vmatpush1.msra.mxu0 0.0
  %4691 = vmatprep.subr.mxu0 0.0
  %4692 = vmatpush1.msra.mxu0 0.0
  %4693 = vmatprep.subr.mxu0 0.0
  %4694 = vmatpush1.msra.mxu0 0.0
  %4695 = vmatprep.subr.mxu0 0.0
  %4696 = vmatpush1.msra.mxu0 0.0
  %4697 = vmatprep.subr.mxu0 0.0
  %4698 = vmatpush1.msra.mxu0 0.0
  %4699 = vmatprep.subr.mxu0 0.0
  %4700 = vmatpush1.msra.mxu0 0.0
  %4701 = vmatprep.subr.mxu0 0.0
  %4702 = vmatpush1.msra.mxu0 0.0
  %4703 = vmatprep.subr.mxu0 0.0
  %4704 = vmatpush1.msra.mxu0 0.0
  %4705 = vmatprep.subr.mxu0 0.0
  %4706 = vmatpush1.msra.mxu0 0.0
  %4707 = vmatprep.subr.mxu0 0.0
  %4708 = vmatpush1.msra.mxu0 0.0
  %4709 = vmatprep.subr.mxu0 0.0
  %4710 = vmatpush1.msra.mxu0 0.0
  %4711 = vmatprep.subr.mxu0 0.0
  %v4712 = vand.u32 %v39, 4294901760
  %v4713 = vsub.f32 %v39, %v4712
  %4714 = vmatpush1.msra.mxu0 %v4713
  %4715 = vmatprep.subr.mxu0 0.0
  %v4716 = vand.u32 %v38, 4294901760
  %v4717 = vsub.f32 %v38, %v4716
  %4718 = vmatpush1.msra.mxu0 %v4717
  %4719 = vmatprep.subr.mxu0 0.0
  %v4720 = vand.u32 %v37, 4294901760
  %v4721 = vsub.f32 %v37, %v4720
  %4722 = vmatpush1.msra.mxu0 %v4721
  %4723 = vmatprep.subr.mxu0 0.0
  %v4724 = vand.u32 %v36, 4294901760
  %v4725 = vsub.f32 %v36, %v4724
  %4726 = vmatpush1.msra.mxu0 %v4725
  %4727 = vmatprep.subr.mxu0 0.0
  %4728 = vmatpush2.msra.mxu0 0.0
  %4729 = vmatprep.subr.mxu0 0.0
  %4730 = vmatpush2.msra.mxu0 0.0
  %4731 = vmatprep.subr.mxu0 0.0
  %4732 = vmatpush2.msra.mxu0 0.0
  %4733 = vmatprep.subr.mxu0 0.0
  %4734 = vmatpush2.msra.mxu0 0.0
  %4735 = vmatprep.subr.mxu0 0.0
  %4736 = vmatpush2.msra.mxu0 0.0
  %4737 = vmatprep.subr.mxu0 0.0
  %4738 = vmatpush2.msra.mxu0 0.0
  %4739 = vmatprep.subr.mxu0 0.0
  %4740 = vmatpush2.msra.mxu0 0.0
  %4741 = vmatprep.subr.mxu0 0.0
  %4742 = vmatpush2.msra.mxu0 0.0
  %4743 = vmatprep.subr.mxu0 0.0
  %4744 = vmatpush2.msra.mxu0 0.0
  %4745 = vmatprep.subr.mxu0 0.0
  %4746 = vmatpush2.msra.mxu0 0.0
  %4747 = vmatprep.subr.mxu0 0.0
  %4748 = vmatpush2.msra.mxu0 0.0
  %4749 = vmatprep.subr.mxu0 0.0
  %4750 = vmatpush2.msra.mxu0 0.0
  %4751 = vmatprep.subr.mxu0 0.0
  %4752 = vmatpush2.msra.mxu0 0.0
  %4753 = vmatprep.subr.mxu0 0.0
  %4754 = vmatpush2.msra.mxu0 0.0
  %4755 = vmatprep.subr.mxu0 0.0
  %4756 = vmatpush2.msra.mxu0 0.0
  %4757 = vmatprep.subr.mxu0 0.0
  %4758 = vmatpush2.msra.mxu0 0.0
  %4759 = vmatprep.mubr.f32.mxu0 0.0
  %v4760 = vand.u32 %v4515, 4294901760
  %v4761 = vsub.f32 %v4515, %v4760
  %4762 = vmatmul.mubr.f32.gmra.mxu0 %v4761
  %v4763 = vpop.f32.mrf.mxu0
  %v4764 = vadd.f32 %v4684, %v4763
  %v4765 = vpop.f32.mrf.mxu0
  %4766 = vdwg.mxu0
  %4767 = vmatprep.subr.mxu0 0.0
  %4768 = vmatpush1.msra.mxu0 0.0
  %4769 = vmatprep.subr.mxu0 0.0
  %4770 = vmatpush1.msra.mxu0 0.0
  %4771 = vmatprep.subr.mxu0 0.0
  %4772 = vmatpush1.msra.mxu0 0.0
  %4773 = vmatprep.subr.mxu0 0.0
  %4774 = vmatpush1.msra.mxu0 0.0
  %4775 = vmatprep.subr.mxu0 0.0
  %4776 = vmatpush1.msra.mxu0 0.0
  %4777 = vmatprep.subr.mxu0 0.0
  %4778 = vmatpush1.msra.mxu0 0.0
  %4779 = vmatprep.subr.mxu0 0.0
  %4780 = vmatpush1.msra.mxu0 0.0
  %4781 = vmatprep.subr.mxu0 0.0
  %4782 = vmatpush1.msra.mxu0 0.0
  %4783 = vmatprep.subr.mxu0 0.0
  %4784 = vmatpush1.msra.mxu0 0.0
  %4785 = vmatprep.subr.mxu0 0.0
  %4786 = vmatpush1.msra.mxu0 0.0
  %4787 = vmatprep.subr.mxu0 0.0
  %4788 = vmatpush1.msra.mxu0 0.0
  %4789 = vmatprep.subr.mxu0 0.0
  %4790 = vmatpush1.msra.mxu0 0.0
  %4791 = vmatprep.subr.mxu0 0.0
  %v4792 = vand.u32 %v39, 4294901760
  %4793 = vmatpush1.msra.mxu0 %v4792
  %4794 = vmatprep.subr.mxu0 0.0
  %v4795 = vand.u32 %v38, 4294901760
  %4796 = vmatpush1.msra.mxu0 %v4795
  %4797 = vmatprep.subr.mxu0 0.0
  %v4798 = vand.u32 %v37, 4294901760
  %4799 = vmatpush1.msra.mxu0 %v4798
  %4800 = vmatprep.subr.mxu0 0.0
  %v4801 = vand.u32 %v36, 4294901760
  %4802 = vmatpush1.msra.mxu0 %v4801
  %4803 = vmatprep.subr.mxu0 0.0
  %4804 = vmatpush2.msra.mxu0 0.0
  %4805 = vmatprep.subr.mxu0 0.0
  %4806 = vmatpush2.msra.mxu0 0.0
  %4807 = vmatprep.subr.mxu0 0.0
  %4808 = vmatpush2.msra.mxu0 0.0
  %4809 = vmatprep.subr.mxu0 0.0
  %4810 = vmatpush2.msra.mxu0 0.0
  %4811 = vmatprep.subr.mxu0 0.0
  %4812 = vmatpush2.msra.mxu0 0.0
  %4813 = vmatprep.subr.mxu0 0.0
  %4814 = vmatpush2.msra.mxu0 0.0
  %4815 = vmatprep.subr.mxu0 0.0
  %4816 = vmatpush2.msra.mxu0 0.0
  %4817 = vmatprep.subr.mxu0 0.0
  %4818 = vmatpush2.msra.mxu0 0.0
  %4819 = vmatprep.subr.mxu0 0.0
  %4820 = vmatpush2.msra.mxu0 0.0
  %4821 = vmatprep.subr.mxu0 0.0
  %4822 = vmatpush2.msra.mxu0 0.0
  %4823 = vmatprep.subr.mxu0 0.0
  %4824 = vmatpush2.msra.mxu0 0.0
  %4825 = vmatprep.subr.mxu0 0.0
  %4826 = vmatpush2.msra.mxu0 0.0
  %4827 = vmatprep.subr.mxu0 0.0
  %4828 = vmatpush2.msra.mxu0 0.0
  %4829 = vmatprep.subr.mxu0 0.0
  %4830 = vmatpush2.msra.mxu0 0.0
  %4831 = vmatprep.subr.mxu0 0.0
  %4832 = vmatpush2.msra.mxu0 0.0
  %4833 = vmatprep.subr.mxu0 0.0
  %4834 = vmatpush2.msra.mxu0 0.0
  %4835 = vmatprep.mubr.f32.mxu0 0.0
  %v4836 = vand.u32 %v4515, 4294901760
  %v4837 = vsub.f32 %v4515, %v4836
  %v4838 = vand.u32 %v4837, 4294901760
  %4839 = vmatmul.mubr.f32.gmra.mxu0 %v4838
  %v4840 = vpop.f32.mrf.mxu0
  %v4841 = vadd.f32 %v4764, %v4840
  %v4842 = vpop.f32.mrf.mxu0
  %4843 = vdwg.mxu0
  %4844 = vmatprep.subr.mxu0 0.0
  %4845 = vmatpush1.msra.mxu0 0.0
  %4846 = vmatprep.subr.mxu0 0.0
  %4847 = vmatpush1.msra.mxu0 0.0
  %4848 = vmatprep.subr.mxu0 0.0
  %4849 = vmatpush1.msra.mxu0 0.0
  %4850 = vmatprep.subr.mxu0 0.0
  %4851 = vmatpush1.msra.mxu0 0.0
  %4852 = vmatprep.subr.mxu0 0.0
  %4853 = vmatpush1.msra.mxu0 0.0
  %4854 = vmatprep.subr.mxu0 0.0
  %4855 = vmatpush1.msra.mxu0 0.0
  %4856 = vmatprep.subr.mxu0 0.0
  %4857 = vmatpush1.msra.mxu0 0.0
  %4858 = vmatprep.subr.mxu0 0.0
  %4859 = vmatpush1.msra.mxu0 0.0
  %4860 = vmatprep.subr.mxu0 0.0
  %4861 = vmatpush1.msra.mxu0 0.0
  %4862 = vmatprep.subr.mxu0 0.0
  %4863 = vmatpush1.msra.mxu0 0.0
  %4864 = vmatprep.subr.mxu0 0.0
  %4865 = vmatpush1.msra.mxu0 0.0
  %4866 = vmatprep.subr.mxu0 0.0
  %4867 = vmatpush1.msra.mxu0 0.0
  %4868 = vmatprep.subr.mxu0 0.0
  %v4869 = vand.u32 %v39, 4294901760
  %v4870 = vsub.f32 %v39, %v4869
  %v4871 = vand.u32 %v4870, 4294901760
  %4872 = vmatpush1.msra.mxu0 %v4871
  %4873 = vmatprep.subr.mxu0 0.0
  %v4874 = vand.u32 %v38, 4294901760
  %v4875 = vsub.f32 %v38, %v4874
  %v4876 = vand.u32 %v4875, 4294901760
  %4877 = vmatpush1.msra.mxu0 %v4876
  %4878 = vmatprep.subr.mxu0 0.0
  %v4879 = vand.u32 %v37, 4294901760
  %v4880 = vsub.f32 %v37, %v4879
  %v4881 = vand.u32 %v4880, 4294901760
  %4882 = vmatpush1.msra.mxu0 %v4881
  %4883 = vmatprep.subr.mxu0 0.0
  %v4884 = vand.u32 %v36, 4294901760
  %v4885 = vsub.f32 %v36, %v4884
  %v4886 = vand.u32 %v4885, 4294901760
  %4887 = vmatpush1.msra.mxu0 %v4886
  %4888 = vmatprep.subr.mxu0 0.0
  %4889 = vmatpush2.msra.mxu0 0.0
  %4890 = vmatprep.subr.mxu0 0.0
  %4891 = vmatpush2.msra.mxu0 0.0
  %4892 = vmatprep.subr.mxu0 0.0
  %4893 = vmatpush2.msra.mxu0 0.0
  %4894 = vmatprep.subr.mxu0 0.0
  %4895 = vmatpush2.msra.mxu0 0.0
  %4896 = vmatprep.subr.mxu0 0.0
  %4897 = vmatpush2.msra.mxu0 0.0
  %4898 = vmatprep.subr.mxu0 0.0
  %4899 = vmatpush2.msra.mxu0 0.0
  %4900 = vmatprep.subr.mxu0 0.0
  %4901 = vmatpush2.msra.mxu0 0.0
  %4902 = vmatprep.subr.mxu0 0.0
  %4903 = vmatpush2.msra.mxu0 0.0
  %4904 = vmatprep.subr.mxu0 0.0
  %4905 = vmatpush2.msra.mxu0 0.0
  %4906 = vmatprep.subr.mxu0 0.0
  %4907 = vmatpush2.msra.mxu0 0.0
  %4908 = vmatprep.subr.mxu0 0.0
  %4909 = vmatpush2.msra.mxu0 0.0
  %4910 = vmatprep.subr.mxu0 0.0
  %4911 = vmatpush2.msra.mxu0 0.0
  %4912 = vmatprep.subr.mxu0 0.0
  %4913 = vmatpush2.msra.mxu0 0.0
  %4914 = vmatprep.subr.mxu0 0.0
  %4915 = vmatpush2.msra.mxu0 0.0
  %4916 = vmatprep.subr.mxu0 0.0
  %4917 = vmatpush2.msra.mxu0 0.0
  %4918 = vmatprep.subr.mxu0 0.0
  %4919 = vmatpush2.msra.mxu0 0.0
  %4920 = vmatprep.mubr.f32.mxu0 0.0
  %v4921 = vand.u32 %v4515, 4294901760
  %4922 = vmatmul.mubr.f32.gmra.mxu0 %v4921
  %v4923 = vpop.f32.mrf.mxu0
  %v4924 = vadd.f32 %v4841, %v4923
  %v4925 = vpop.f32.mrf.mxu0
  %4926 = vdwg.mxu0
  %4927 = vmatprep.subr.mxu0 0.0
  %4928 = vmatpush1.msra.mxu0 0.0
  %4929 = vmatprep.subr.mxu0 0.0
  %4930 = vmatpush1.msra.mxu0 0.0
  %4931 = vmatprep.subr.mxu0 0.0
  %4932 = vmatpush1.msra.mxu0 0.0
  %4933 = vmatprep.subr.mxu0 0.0
  %4934 = vmatpush1.msra.mxu0 0.0
  %4935 = vmatprep.subr.mxu0 0.0
  %4936 = vmatpush1.msra.mxu0 0.0
  %4937 = vmatprep.subr.mxu0 0.0
  %4938 = vmatpush1.msra.mxu0 0.0
  %4939 = vmatprep.subr.mxu0 0.0
  %4940 = vmatpush1.msra.mxu0 0.0
  %4941 = vmatprep.subr.mxu0 0.0
  %4942 = vmatpush1.msra.mxu0 0.0
  %4943 = vmatprep.subr.mxu0 0.0
  %4944 = vmatpush1.msra.mxu0 0.0
  %4945 = vmatprep.subr.mxu0 0.0
  %4946 = vmatpush1.msra.mxu0 0.0
  %4947 = vmatprep.subr.mxu0 0.0
  %4948 = vmatpush1.msra.mxu0 0.0
  %4949 = vmatprep.subr.mxu0 0.0
  %4950 = vmatpush1.msra.mxu0 0.0
  %4951 = vmatprep.subr.mxu0 0.0
  %v4952 = vand.u32 %v39, 4294901760
  %4953 = vmatpush1.msra.mxu0 %v4952
  %4954 = vmatprep.subr.mxu0 0.0
  %v4955 = vand.u32 %v38, 4294901760
  %4956 = vmatpush1.msra.mxu0 %v4955
  %4957 = vmatprep.subr.mxu0 0.0
  %v4958 = vand.u32 %v37, 4294901760
  %4959 = vmatpush1.msra.mxu0 %v4958
  %4960 = vmatprep.subr.mxu0 0.0
  %v4961 = vand.u32 %v36, 4294901760
  %4962 = vmatpush1.msra.mxu0 %v4961
  %4963 = vmatprep.subr.mxu0 0.0
  %4964 = vmatpush2.msra.mxu0 0.0
  %4965 = vmatprep.subr.mxu0 0.0
  %4966 = vmatpush2.msra.mxu0 0.0
  %4967 = vmatprep.subr.mxu0 0.0
  %4968 = vmatpush2.msra.mxu0 0.0
  %4969 = vmatprep.subr.mxu0 0.0
  %4970 = vmatpush2.msra.mxu0 0.0
  %4971 = vmatprep.subr.mxu0 0.0
  %4972 = vmatpush2.msra.mxu0 0.0
  %4973 = vmatprep.subr.mxu0 0.0
  %4974 = vmatpush2.msra.mxu0 0.0
  %4975 = vmatprep.subr.mxu0 0.0
  %4976 = vmatpush2.msra.mxu0 0.0
  %4977 = vmatprep.subr.mxu0 0.0
  %4978 = vmatpush2.msra.mxu0 0.0
  %4979 = vmatprep.subr.mxu0 0.0
  %4980 = vmatpush2.msra.mxu0 0.0
  %4981 = vmatprep.subr.mxu0 0.0
  %4982 = vmatpush2.msra.mxu0 0.0
  %4983 = vmatprep.subr.mxu0 0.0
  %4984 = vmatpush2.msra.mxu0 0.0
  %4985 = vmatprep.subr.mxu0 0.0
  %4986 = vmatpush2.msra.mxu0 0.0
  %4987 = vmatprep.subr.mxu0 0.0
  %4988 = vmatpush2.msra.mxu0 0.0
  %4989 = vmatprep.subr.mxu0 0.0
  %4990 = vmatpush2.msra.mxu0 0.0
  %4991 = vmatprep.subr.mxu0 0.0
  %4992 = vmatpush2.msra.mxu0 0.0
  %4993 = vmatprep.subr.mxu0 0.0
  %4994 = vmatpush2.msra.mxu0 0.0
  %4995 = vmatprep.mubr.f32.mxu0 0.0
  %v4996 = vand.u32 %v4515, 4294901760
  %4997 = vmatmul.mubr.f32.gmra.mxu0 %v4996
  %v4998 = vpop.f32.mrf.mxu0
  %v4999 = vadd.f32 %v4924, %v4998
  %v5000 = vpop.f32.mrf.mxu0
  %5001 = vdwg.mxu0
  %v5002 = vadd.f32 %v4514, %v4999
  %v5003 = vsub.f32 0.0, %v5002
  %v5004 = vmul.f32 %v5003, 1.442695
  %v5005 = vpow.pop %v5004
  %v5006 = vadd.f32 %v5005, 1.0
  %v5007 = vrcp.pop %v5006
  %v5008 = vmul.f32 1.0, %v5007
  %v5009 = vtanh.pop %v5002
  %v5010 = vmul.f32 %v5008, %v4500
  %5012 = vrot.lane.b32.xlu0 %v5009, 64
  %v5013 = vpop.permute.xlu0 %5012
  %v5015 = vmul.f32 %v5008, %v5013
  %5017 = vrot.lane.b32.xlu0 %v5015, 32
  %v5018 = vpop.permute.xlu0 %5017
  %v5020 = vadd.f32 %v5010, %v5018
  %v5021 = vtanh.pop %v5020
  %5023 = vrot.lane.b32.xlu0 %v5021, 64
  %v5024 = vpop.permute.xlu0 %5023
  %v5026 = vmul.f32 %v5008, %v5024
  %5028 = vrot.lane.b32.xlu0 %v5026, 32
  %v5029 = vpop.permute.xlu0 %5028
  %s5031 = scalar_lea.vmem [#allocation2], 56
  %5032 = vst.msk [vmem:[%s5031] sm:$0xff] %vm55, %v5029
  %v5033 = vld [vmem:[%s4] sm:$0xff]
  %v5034 = vld [vmem:[%s4 + $0x8] sm:$0xff]
  %v5035 = vld [vmem:[%s4 + $0x10] sm:$0xff]
  %v5036 = vld [vmem:[%s4 + $0x18] sm:$0xff]
  %v5037 = vld [vmem:[%s5] sm:$0xff]
  %v5038 = vld [vmem:[%s5 + $0x8] sm:$0xff]
  %v5039 = vld [vmem:[%s5 + $0x10] sm:$0xff]
  %v5040 = vld [vmem:[%s5 + $0x18] sm:$0xff]
  %v5041 = vld [vmem:[%s6] sm:$0x1]
  %v5042 = vld [vmem:[#allocation2] sm:$0xff]
  %v5043 = vld [vmem:[#allocation2 + $0x8] sm:$0xff]
  %v5044 = vld [vmem:[#allocation2 + $0x10] sm:$0xff]
  %v5045 = vld [vmem:[#allocation2 + $0x18] sm:$0xff]
  %v5046 = vld [vmem:[#allocation2 + $0x20] sm:$0xff]
  %v5047 = vld [vmem:[#allocation2 + $0x28] sm:$0xff]
  %v5048 = vld [vmem:[#allocation2 + $0x30] sm:$0xff]
  %v5049 = vld [vmem:[#allocation2 + $0x38] sm:$0xff]
  %v5051 = vlaneseq
  %v5052 = vshrl.u32 %v5051, 7
  %v5053 = vsub.s32 0, %v5052
  %v5054 = vrot.slane %v5041, %v5053
  %v5057 = vsel %vm55, %v5042, 0
  %v5060 = vsel %vm55, %v5043, 0
  %v5063 = vsel %vm55, %v5044, 0
  %v5066 = vsel %vm55, %v5045, 0
  %v5069 = vsel %vm55, %v5046, 0
  %v5072 = vsel %vm55, %v5047, 0
  %v5075 = vsel %vm55, %v5048, 0
  %v5078 = vsel %vm55, %v5049, 0
  %5080 = vmatprep.subr.mxu0 0.0
  %5081 = vmatpush1.msra.mxu0 0.0
  %5082 = vmatprep.subr.mxu0 0.0
  %5083 = vmatpush1.msra.mxu0 0.0
  %5084 = vmatprep.subr.mxu0 0.0
  %5085 = vmatpush1.msra.mxu0 0.0
  %5086 = vmatprep.subr.mxu0 0.0
  %5087 = vmatpush1.msra.mxu0 0.0
  %5088 = vmatprep.subr.mxu0 0.0
  %5089 = vmatpush1.msra.mxu0 0.0
  %5090 = vmatprep.subr.mxu0 0.0
  %5091 = vmatpush1.msra.mxu0 0.0
  %5092 = vmatprep.subr.mxu0 0.0
  %5093 = vmatpush1.msra.mxu0 0.0
  %5094 = vmatprep.subr.mxu0 0.0
  %5095 = vmatpush1.msra.mxu0 0.0
  %5096 = vmatprep.subr.mxu0 0.0
  %5097 = vmatpush1.msra.mxu0 0.0
  %5098 = vmatprep.subr.mxu0 0.0
  %5099 = vmatpush1.msra.mxu0 0.0
  %5100 = vmatprep.subr.mxu0 0.0
  %5101 = vmatpush1.msra.mxu0 0.0
  %5102 = vmatprep.subr.mxu0 0.0
  %5103 = vmatpush1.msra.mxu0 0.0
  %5104 = vmatprep.subr.mxu0 0.0
  %v5105 = vand.u32 %v5036, 4294901760
  %5106 = vmatpush1.msra.mxu0 %v5105
  %5107 = vmatprep.subr.mxu0 0.0
  %v5108 = vand.u32 %v5035, 4294901760
  %5109 = vmatpush1.msra.mxu0 %v5108
  %5110 = vmatprep.subr.mxu0 0.0
  %v5111 = vand.u32 %v5034, 4294901760
  %5112 = vmatpush1.msra.mxu0 %v5111
  %5113 = vmatprep.subr.mxu0 0.0
  %v5114 = vand.u32 %v5033, 4294901760
  %5115 = vmatpush1.msra.mxu0 %v5114
  %5116 = vmatprep.subr.mxu0 0.0
  %5117 = vmatpush2.msra.mxu0 0.0
  %5118 = vmatprep.subr.mxu0 0.0
  %5119 = vmatpush2.msra.mxu0 0.0
  %5120 = vmatprep.subr.mxu0 0.0
  %5121 = vmatpush2.msra.mxu0 0.0
  %5122 = vmatprep.subr.mxu0 0.0
  %5123 = vmatpush2.msra.mxu0 0.0
  %5124 = vmatprep.subr.mxu0 0.0
  %5125 = vmatpush2.msra.mxu0 0.0
  %5126 = vmatprep.subr.mxu0 0.0
  %5127 = vmatpush2.msra.mxu0 0.0
  %5128 = vmatprep.subr.mxu0 0.0
  %5129 = vmatpush2.msra.mxu0 0.0
  %5130 = vmatprep.subr.mxu0 0.0
  %5131 = vmatpush2.msra.mxu0 0.0
  %5132 = vmatprep.subr.mxu0 0.0
  %5133 = vmatpush2.msra.mxu0 0.0
  %5134 = vmatprep.subr.mxu0 0.0
  %5135 = vmatpush2.msra.mxu0 0.0
  %5136 = vmatprep.subr.mxu0 0.0
  %5137 = vmatpush2.msra.mxu0 0.0
  %5138 = vmatprep.subr.mxu0 0.0
  %5139 = vmatpush2.msra.mxu0 0.0
  %5140 = vmatprep.subr.mxu0 0.0
  %5141 = vmatpush2.msra.mxu0 0.0
  %5142 = vmatprep.subr.mxu0 0.0
  %5143 = vmatpush2.msra.mxu0 0.0
  %5144 = vmatprep.subr.mxu0 0.0
  %5145 = vmatpush2.msra.mxu0 0.0
  %5146 = vmatprep.subr.mxu0 0.0
  %5147 = vmatpush2.msra.mxu0 0.0
  %5148 = vmatprep.mubr.f32.mxu0 0.0
  %v5149 = vand.u32 %v5057, 4294901760
  %v5150 = vsub.f32 %v5057, %v5149
  %v5151 = vand.u32 %v5150, 4294901760
  %v5152 = vsub.f32 %v5150, %v5151
  %v5153 = vand.u32 %v5152, 4294901760
  %5154 = vmatmul.mubr.f32.gmra.mxu0 %v5153
  %v5155 = vpop.f32.mrf.mxu0
  %v5156 = vadd.f32 %v5054, %v5155
  %v5157 = vpop.f32.mrf.mxu0
  %5158 = vmatprep.mubr.f32.mxu0 0.0
  %v5159 = vand.u32 %v5060, 4294901760
  %v5160 = vsub.f32 %v5060, %v5159
  %v5161 = vand.u32 %v5160, 4294901760
  %v5162 = vsub.f32 %v5160, %v5161
  %v5163 = vand.u32 %v5162, 4294901760
  %5164 = vmatmul.mubr.f32.gmra.mxu0 %v5163
  %v5165 = vpop.f32.mrf.mxu0
  %v5166 = vadd.f32 %v5054, %v5165
  %v5167 = vpop.f32.mrf.mxu0
  %5168 = vmatprep.mubr.f32.mxu0 0.0
  %v5169 = vand.u32 %v5063, 4294901760
  %v5170 = vsub.f32 %v5063, %v5169
  %v5171 = vand.u32 %v5170, 4294901760
  %v5172 = vsub.f32 %v5170, %v5171
  %v5173 = vand.u32 %v5172, 4294901760
  %5174 = vmatmul.mubr.f32.gmra.mxu0 %v5173
  %v5175 = vpop.f32.mrf.mxu0
  %v5176 = vadd.f32 %v5054, %v5175
  %v5177 = vpop.f32.mrf.mxu0
  %5178 = vmatprep.mubr.f32.mxu0 0.0
  %v5179 = vand.u32 %v5066, 4294901760
  %v5180 = vsub.f32 %v5066, %v5179
  %v5181 = vand.u32 %v5180, 4294901760
  %v5182 = vsub.f32 %v5180, %v5181
  %v5183 = vand.u32 %v5182, 4294901760
  %5184 = vmatmul.mubr.f32.gmra.mxu0 %v5183
  %v5185 = vpop.f32.mrf.mxu0
  %v5186 = vadd.f32 %v5054, %v5185
  %v5187 = vpop.f32.mrf.mxu0
  %5188 = vmatprep.mubr.f32.mxu0 0.0
  %v5189 = vand.u32 %v5069, 4294901760
  %v5190 = vsub.f32 %v5069, %v5189
  %v5191 = vand.u32 %v5190, 4294901760
  %v5192 = vsub.f32 %v5190, %v5191
  %v5193 = vand.u32 %v5192, 4294901760
  %5194 = vmatmul.mubr.f32.gmra.mxu0 %v5193
  %v5195 = vpop.f32.mrf.mxu0
  %v5196 = vadd.f32 %v5054, %v5195
  %v5197 = vpop.f32.mrf.mxu0
  %5198 = vmatprep.mubr.f32.mxu0 0.0
  %v5199 = vand.u32 %v5072, 4294901760
  %v5200 = vsub.f32 %v5072, %v5199
  %v5201 = vand.u32 %v5200, 4294901760
  %v5202 = vsub.f32 %v5200, %v5201
  %v5203 = vand.u32 %v5202, 4294901760
  %5204 = vmatmul.mubr.f32.gmra.mxu0 %v5203
  %v5205 = vpop.f32.mrf.mxu0
  %v5206 = vadd.f32 %v5054, %v5205
  %v5207 = vpop.f32.mrf.mxu0
  %5208 = vmatprep.mubr.f32.mxu0 0.0
  %v5209 = vand.u32 %v5075, 4294901760
  %v5210 = vsub.f32 %v5075, %v5209
  %v5211 = vand.u32 %v5210, 4294901760
  %v5212 = vsub.f32 %v5210, %v5211
  %v5213 = vand.u32 %v5212, 4294901760
  %5214 = vmatmul.mubr.f32.gmra.mxu0 %v5213
  %v5215 = vpop.f32.mrf.mxu0
  %v5216 = vadd.f32 %v5054, %v5215
  %v5217 = vpop.f32.mrf.mxu0
  %5218 = vmatprep.mubr.f32.mxu0 0.0
  %v5219 = vand.u32 %v5078, 4294901760
  %v5220 = vsub.f32 %v5078, %v5219
  %v5221 = vand.u32 %v5220, 4294901760
  %v5222 = vsub.f32 %v5220, %v5221
  %v5223 = vand.u32 %v5222, 4294901760
  %5224 = vmatmul.mubr.f32.gmra.mxu0 %v5223
  %v5225 = vpop.f32.mrf.mxu0
  %v5226 = vadd.f32 %v5054, %v5225
  %v5227 = vpop.f32.mrf.mxu0
  %5228 = vdwg.mxu0
  %5229 = vmatprep.subr.mxu0 0.0
  %5230 = vmatpush1.msra.mxu0 0.0
  %5231 = vmatprep.subr.mxu0 0.0
  %5232 = vmatpush1.msra.mxu0 0.0
  %5233 = vmatprep.subr.mxu0 0.0
  %5234 = vmatpush1.msra.mxu0 0.0
  %5235 = vmatprep.subr.mxu0 0.0
  %5236 = vmatpush1.msra.mxu0 0.0
  %5237 = vmatprep.subr.mxu0 0.0
  %5238 = vmatpush1.msra.mxu0 0.0
  %5239 = vmatprep.subr.mxu0 0.0
  %5240 = vmatpush1.msra.mxu0 0.0
  %5241 = vmatprep.subr.mxu0 0.0
  %5242 = vmatpush1.msra.mxu0 0.0
  %5243 = vmatprep.subr.mxu0 0.0
  %5244 = vmatpush1.msra.mxu0 0.0
  %5245 = vmatprep.subr.mxu0 0.0
  %5246 = vmatpush1.msra.mxu0 0.0
  %5247 = vmatprep.subr.mxu0 0.0
  %5248 = vmatpush1.msra.mxu0 0.0
  %5249 = vmatprep.subr.mxu0 0.0
  %5250 = vmatpush1.msra.mxu0 0.0
  %5251 = vmatprep.subr.mxu0 0.0
  %5252 = vmatpush1.msra.mxu0 0.0
  %5253 = vmatprep.subr.mxu0 0.0
  %v5254 = vand.u32 %v5036, 4294901760
  %v5255 = vsub.f32 %v5036, %v5254
  %v5256 = vand.u32 %v5255, 4294901760
  %v5257 = vsub.f32 %v5255, %v5256
  %v5258 = vand.u32 %v5257, 4294901760
  %5259 = vmatpush1.msra.mxu0 %v5258
  %5260 = vmatprep.subr.mxu0 0.0
  %v5261 = vand.u32 %v5035, 4294901760
  %v5262 = vsub.f32 %v5035, %v5261
  %v5263 = vand.u32 %v5262, 4294901760
  %v5264 = vsub.f32 %v5262, %v5263
  %v5265 = vand.u32 %v5264, 4294901760
  %5266 = vmatpush1.msra.mxu0 %v5265
  %5267 = vmatprep.subr.mxu0 0.0
  %v5268 = vand.u32 %v5034, 4294901760
  %v5269 = vsub.f32 %v5034, %v5268
  %v5270 = vand.u32 %v5269, 4294901760
  %v5271 = vsub.f32 %v5269, %v5270
  %v5272 = vand.u32 %v5271, 4294901760
  %5273 = vmatpush1.msra.mxu0 %v5272
  %5274 = vmatprep.subr.mxu0 0.0
  %v5275 = vand.u32 %v5033, 4294901760
  %v5276 = vsub.f32 %v5033, %v5275
  %v5277 = vand.u32 %v5276, 4294901760
  %v5278 = vsub.f32 %v5276, %v5277
  %v5279 = vand.u32 %v5278, 4294901760
  %5280 = vmatpush1.msra.mxu0 %v5279
  %5281 = vmatprep.subr.mxu0 0.0
  %5282 = vmatpush2.msra.mxu0 0.0
  %5283 = vmatprep.subr.mxu0 0.0
  %5284 = vmatpush2.msra.mxu0 0.0
  %5285 = vmatprep.subr.mxu0 0.0
  %5286 = vmatpush2.msra.mxu0 0.0
  %5287 = vmatprep.subr.mxu0 0.0
  %5288 = vmatpush2.msra.mxu0 0.0
  %5289 = vmatprep.subr.mxu0 0.0
  %5290 = vmatpush2.msra.mxu0 0.0
  %5291 = vmatprep.subr.mxu0 0.0
  %5292 = vmatpush2.msra.mxu0 0.0
  %5293 = vmatprep.subr.mxu0 0.0
  %5294 = vmatpush2.msra.mxu0 0.0
  %5295 = vmatprep.subr.mxu0 0.0
  %5296 = vmatpush2.msra.mxu0 0.0
  %5297 = vmatprep.subr.mxu0 0.0
  %5298 = vmatpush2.msra.mxu0 0.0
  %5299 = vmatprep.subr.mxu0 0.0
  %5300 = vmatpush2.msra.mxu0 0.0
  %5301 = vmatprep.subr.mxu0 0.0
  %5302 = vmatpush2.msra.mxu0 0.0
  %5303 = vmatprep.subr.mxu0 0.0
  %5304 = vmatpush2.msra.mxu0 0.0
  %5305 = vmatprep.subr.mxu0 0.0
  %5306 = vmatpush2.msra.mxu0 0.0
  %5307 = vmatprep.subr.mxu0 0.0
  %5308 = vmatpush2.msra.mxu0 0.0
  %5309 = vmatprep.subr.mxu0 0.0
  %5310 = vmatpush2.msra.mxu0 0.0
  %5311 = vmatprep.subr.mxu0 0.0
  %5312 = vmatpush2.msra.mxu0 0.0
  %5313 = vmatprep.mubr.f32.mxu0 0.0
  %v5314 = vand.u32 %v5057, 4294901760
  %5315 = vmatmul.mubr.f32.gmra.mxu0 %v5314
  %v5316 = vpop.f32.mrf.mxu0
  %v5317 = vadd.f32 %v5156, %v5316
  %v5318 = vpop.f32.mrf.mxu0
  %5319 = vmatprep.mubr.f32.mxu0 0.0
  %v5320 = vand.u32 %v5060, 4294901760
  %5321 = vmatmul.mubr.f32.gmra.mxu0 %v5320
  %v5322 = vpop.f32.mrf.mxu0
  %v5323 = vadd.f32 %v5166, %v5322
  %v5324 = vpop.f32.mrf.mxu0
  %5325 = vmatprep.mubr.f32.mxu0 0.0
  %v5326 = vand.u32 %v5063, 4294901760
  %5327 = vmatmul.mubr.f32.gmra.mxu0 %v5326
  %v5328 = vpop.f32.mrf.mxu0
  %v5329 = vadd.f32 %v5176, %v5328
  %v5330 = vpop.f32.mrf.mxu0
  %5331 = vmatprep.mubr.f32.mxu0 0.0
  %v5332 = vand.u32 %v5066, 4294901760
  %5333 = vmatmul.mubr.f32.gmra.mxu0 %v5332
  %v5334 = vpop.f32.mrf.mxu0
  %v5335 = vadd.f32 %v5186, %v5334
  %v5336 = vpop.f32.mrf.mxu0
  %5337 = vmatprep.mubr.f32.mxu0 0.0
  %v5338 = vand.u32 %v5069, 4294901760
  %5339 = vmatmul.mubr.f32.gmra.mxu0 %v5338
  %v5340 = vpop.f32.mrf.mxu0
  %v5341 = vadd.f32 %v5196, %v5340
  %v5342 = vpop.f32.mrf.mxu0
  %5343 = vmatprep.mubr.f32.mxu0 0.0
  %v5344 = vand.u32 %v5072, 4294901760
  %5345 = vmatmul.mubr.f32.gmra.mxu0 %v5344
  %v5346 = vpop.f32.mrf.mxu0
  %v5347 = vadd.f32 %v5206, %v5346
  %v5348 = vpop.f32.mrf.mxu0
  %5349 = vmatprep.mubr.f32.mxu0 0.0
  %v5350 = vand.u32 %v5075, 4294901760
  %5351 = vmatmul.mubr.f32.gmra.mxu0 %v5350
  %v5352 = vpop.f32.mrf.mxu0
  %v5353 = vadd.f32 %v5216, %v5352
  %v5354 = vpop.f32.mrf.mxu0
  %5355 = vmatprep.mubr.f32.mxu0 0.0
  %v5356 = vand.u32 %v5078, 4294901760
  %5357 = vmatmul.mubr.f32.gmra.mxu0 %v5356
  %v5358 = vpop.f32.mrf.mxu0
  %v5359 = vadd.f32 %v5226, %v5358
  %v5360 = vpop.f32.mrf.mxu0
  %5361 = vdwg.mxu0
  %5362 = vmatprep.subr.mxu0 0.0
  %5363 = vmatpush1.msra.mxu0 0.0
  %5364 = vmatprep.subr.mxu0 0.0
  %5365 = vmatpush1.msra.mxu0 0.0
  %5366 = vmatprep.subr.mxu0 0.0
  %5367 = vmatpush1.msra.mxu0 0.0
  %5368 = vmatprep.subr.mxu0 0.0
  %5369 = vmatpush1.msra.mxu0 0.0
  %5370 = vmatprep.subr.mxu0 0.0
  %5371 = vmatpush1.msra.mxu0 0.0
  %5372 = vmatprep.subr.mxu0 0.0
  %5373 = vmatpush1.msra.mxu0 0.0
  %5374 = vmatprep.subr.mxu0 0.0
  %5375 = vmatpush1.msra.mxu0 0.0
  %5376 = vmatprep.subr.mxu0 0.0
  %5377 = vmatpush1.msra.mxu0 0.0
  %5378 = vmatprep.subr.mxu0 0.0
  %5379 = vmatpush1.msra.mxu0 0.0
  %5380 = vmatprep.subr.mxu0 0.0
  %5381 = vmatpush1.msra.mxu0 0.0
  %5382 = vmatprep.subr.mxu0 0.0
  %5383 = vmatpush1.msra.mxu0 0.0
  %5384 = vmatprep.subr.mxu0 0.0
  %5385 = vmatpush1.msra.mxu0 0.0
  %5386 = vmatprep.subr.mxu0 0.0
  %v5387 = vand.u32 %v5036, 4294901760
  %v5388 = vsub.f32 %v5036, %v5387
  %5389 = vmatpush1.msra.mxu0 %v5388
  %5390 = vmatprep.subr.mxu0 0.0
  %v5391 = vand.u32 %v5035, 4294901760
  %v5392 = vsub.f32 %v5035, %v5391
  %5393 = vmatpush1.msra.mxu0 %v5392
  %5394 = vmatprep.subr.mxu0 0.0
  %v5395 = vand.u32 %v5034, 4294901760
  %v5396 = vsub.f32 %v5034, %v5395
  %5397 = vmatpush1.msra.mxu0 %v5396
  %5398 = vmatprep.subr.mxu0 0.0
  %v5399 = vand.u32 %v5033, 4294901760
  %v5400 = vsub.f32 %v5033, %v5399
  %5401 = vmatpush1.msra.mxu0 %v5400
  %5402 = vmatprep.subr.mxu0 0.0
  %5403 = vmatpush2.msra.mxu0 0.0
  %5404 = vmatprep.subr.mxu0 0.0
  %5405 = vmatpush2.msra.mxu0 0.0
  %5406 = vmatprep.subr.mxu0 0.0
  %5407 = vmatpush2.msra.mxu0 0.0
  %5408 = vmatprep.subr.mxu0 0.0
  %5409 = vmatpush2.msra.mxu0 0.0
  %5410 = vmatprep.subr.mxu0 0.0
  %5411 = vmatpush2.msra.mxu0 0.0
  %5412 = vmatprep.subr.mxu0 0.0
  %5413 = vmatpush2.msra.mxu0 0.0
  %5414 = vmatprep.subr.mxu0 0.0
  %5415 = vmatpush2.msra.mxu0 0.0
  %5416 = vmatprep.subr.mxu0 0.0
  %5417 = vmatpush2.msra.mxu0 0.0
  %5418 = vmatprep.subr.mxu0 0.0
  %5419 = vmatpush2.msra.mxu0 0.0
  %5420 = vmatprep.subr.mxu0 0.0
  %5421 = vmatpush2.msra.mxu0 0.0
  %5422 = vmatprep.subr.mxu0 0.0
  %5423 = vmatpush2.msra.mxu0 0.0
  %5424 = vmatprep.subr.mxu0 0.0
  %5425 = vmatpush2.msra.mxu0 0.0
  %5426 = vmatprep.subr.mxu0 0.0
  %5427 = vmatpush2.msra.mxu0 0.0
  %5428 = vmatprep.subr.mxu0 0.0
  %5429 = vmatpush2.msra.mxu0 0.0
  %5430 = vmatprep.subr.mxu0 0.0
  %5431 = vmatpush2.msra.mxu0 0.0
  %5432 = vmatprep.subr.mxu0 0.0
  %5433 = vmatpush2.msra.mxu0 0.0
  %5434 = vmatprep.mubr.f32.mxu0 0.0
  %v5435 = vand.u32 %v5057, 4294901760
  %v5436 = vsub.f32 %v5057, %v5435
  %5437 = vmatmul.mubr.f32.gmra.mxu0 %v5436
  %v5438 = vpop.f32.mrf.mxu0
  %v5439 = vadd.f32 %v5317, %v5438
  %v5440 = vpop.f32.mrf.mxu0
  %5441 = vmatprep.mubr.f32.mxu0 0.0
  %v5442 = vand.u32 %v5060, 4294901760
  %v5443 = vsub.f32 %v5060, %v5442
  %5444 = vmatmul.mubr.f32.gmra.mxu0 %v5443
  %v5445 = vpop.f32.mrf.mxu0
  %v5446 = vadd.f32 %v5323, %v5445
  %v5447 = vpop.f32.mrf.mxu0
  %5448 = vmatprep.mubr.f32.mxu0 0.0
  %v5449 = vand.u32 %v5063, 4294901760
  %v5450 = vsub.f32 %v5063, %v5449
  %5451 = vmatmul.mubr.f32.gmra.mxu0 %v5450
  %v5452 = vpop.f32.mrf.mxu0
  %v5453 = vadd.f32 %v5329, %v5452
  %v5454 = vpop.f32.mrf.mxu0
  %5455 = vmatprep.mubr.f32.mxu0 0.0
  %v5456 = vand.u32 %v5066, 4294901760
  %v5457 = vsub.f32 %v5066, %v5456
  %5458 = vmatmul.mubr.f32.gmra.mxu0 %v5457
  %v5459 = vpop.f32.mrf.mxu0
  %v5460 = vadd.f32 %v5335, %v5459
  %v5461 = vpop.f32.mrf.mxu0
  %5462 = vmatprep.mubr.f32.mxu0 0.0
  %v5463 = vand.u32 %v5069, 4294901760
  %v5464 = vsub.f32 %v5069, %v5463
  %5465 = vmatmul.mubr.f32.gmra.mxu0 %v5464
  %v5466 = vpop.f32.mrf.mxu0
  %v5467 = vadd.f32 %v5341, %v5466
  %v5468 = vpop.f32.mrf.mxu0
  %5469 = vmatprep.mubr.f32.mxu0 0.0
  %v5470 = vand.u32 %v5072, 4294901760
  %v5471 = vsub.f32 %v5072, %v5470
  %5472 = vmatmul.mubr.f32.gmra.mxu0 %v5471
  %v5473 = vpop.f32.mrf.mxu0
  %v5474 = vadd.f32 %v5347, %v5473
  %v5475 = vpop.f32.mrf.mxu0
  %5476 = vmatprep.mubr.f32.mxu0 0.0
  %v5477 = vand.u32 %v5075, 4294901760
  %v5478 = vsub.f32 %v5075, %v5477
  %5479 = vmatmul.mubr.f32.gmra.mxu0 %v5478
  %v5480 = vpop.f32.mrf.mxu0
  %v5481 = vadd.f32 %v5353, %v5480
  %v5482 = vpop.f32.mrf.mxu0
  %5483 = vmatprep.mubr.f32.mxu0 0.0
  %v5484 = vand.u32 %v5078, 4294901760
  %v5485 = vsub.f32 %v5078, %v5484
  %5486 = vmatmul.mubr.f32.gmra.mxu0 %v5485
  %v5487 = vpop.f32.mrf.mxu0
  %v5488 = vadd.f32 %v5359, %v5487
  %v5489 = vpop.f32.mrf.mxu0
  %5490 = vdwg.mxu0
  %5491 = vmatprep.subr.mxu0 0.0
  %5492 = vmatpush1.msra.mxu0 0.0
  %5493 = vmatprep.subr.mxu0 0.0
  %5494 = vmatpush1.msra.mxu0 0.0
  %5495 = vmatprep.subr.mxu0 0.0
  %5496 = vmatpush1.msra.mxu0 0.0
  %5497 = vmatprep.subr.mxu0 0.0
  %5498 = vmatpush1.msra.mxu0 0.0
  %5499 = vmatprep.subr.mxu0 0.0
  %5500 = vmatpush1.msra.mxu0 0.0
  %5501 = vmatprep.subr.mxu0 0.0
  %5502 = vmatpush1.msra.mxu0 0.0
  %5503 = vmatprep.subr.mxu0 0.0
  %5504 = vmatpush1.msra.mxu0 0.0
  %5505 = vmatprep.subr.mxu0 0.0
  %5506 = vmatpush1.msra.mxu0 0.0
  %5507 = vmatprep.subr.mxu0 0.0
  %5508 = vmatpush1.msra.mxu0 0.0
  %5509 = vmatprep.subr.mxu0 0.0
  %5510 = vmatpush1.msra.mxu0 0.0
  %5511 = vmatprep.subr.mxu0 0.0
  %5512 = vmatpush1.msra.mxu0 0.0
  %5513 = vmatprep.subr.mxu0 0.0
  %5514 = vmatpush1.msra.mxu0 0.0
  %5515 = vmatprep.subr.mxu0 0.0
  %v5516 = vand.u32 %v5036, 4294901760
  %5517 = vmatpush1.msra.mxu0 %v5516
  %5518 = vmatprep.subr.mxu0 0.0
  %v5519 = vand.u32 %v5035, 4294901760
  %5520 = vmatpush1.msra.mxu0 %v5519
  %5521 = vmatprep.subr.mxu0 0.0
  %v5522 = vand.u32 %v5034, 4294901760
  %5523 = vmatpush1.msra.mxu0 %v5522
  %5524 = vmatprep.subr.mxu0 0.0
  %v5525 = vand.u32 %v5033, 4294901760
  %5526 = vmatpush1.msra.mxu0 %v5525
  %5527 = vmatprep.subr.mxu0 0.0
  %5528 = vmatpush2.msra.mxu0 0.0
  %5529 = vmatprep.subr.mxu0 0.0
  %5530 = vmatpush2.msra.mxu0 0.0
  %5531 = vmatprep.subr.mxu0 0.0
  %5532 = vmatpush2.msra.mxu0 0.0
  %5533 = vmatprep.subr.mxu0 0.0
  %5534 = vmatpush2.msra.mxu0 0.0
  %5535 = vmatprep.subr.mxu0 0.0
  %5536 = vmatpush2.msra.mxu0 0.0
  %5537 = vmatprep.subr.mxu0 0.0
  %5538 = vmatpush2.msra.mxu0 0.0
  %5539 = vmatprep.subr.mxu0 0.0
  %5540 = vmatpush2.msra.mxu0 0.0
  %5541 = vmatprep.subr.mxu0 0.0
  %5542 = vmatpush2.msra.mxu0 0.0
  %5543 = vmatprep.subr.mxu0 0.0
  %5544 = vmatpush2.msra.mxu0 0.0
  %5545 = vmatprep.subr.mxu0 0.0
  %5546 = vmatpush2.msra.mxu0 0.0
  %5547 = vmatprep.subr.mxu0 0.0
  %5548 = vmatpush2.msra.mxu0 0.0
  %5549 = vmatprep.subr.mxu0 0.0
  %5550 = vmatpush2.msra.mxu0 0.0
  %5551 = vmatprep.subr.mxu0 0.0
  %5552 = vmatpush2.msra.mxu0 0.0
  %5553 = vmatprep.subr.mxu0 0.0
  %5554 = vmatpush2.msra.mxu0 0.0
  %5555 = vmatprep.subr.mxu0 0.0
  %5556 = vmatpush2.msra.mxu0 0.0
  %5557 = vmatprep.subr.mxu0 0.0
  %5558 = vmatpush2.msra.mxu0 0.0
  %5559 = vmatprep.mubr.f32.mxu0 0.0
  %v5560 = vand.u32 %v5057, 4294901760
  %v5561 = vsub.f32 %v5057, %v5560
  %v5562 = vand.u32 %v5561, 4294901760
  %5563 = vmatmul.mubr.f32.gmra.mxu0 %v5562
  %v5564 = vpop.f32.mrf.mxu0
  %v5565 = vadd.f32 %v5439, %v5564
  %v5566 = vpop.f32.mrf.mxu0
  %5567 = vmatprep.mubr.f32.mxu0 0.0
  %v5568 = vand.u32 %v5060, 4294901760
  %v5569 = vsub.f32 %v5060, %v5568
  %v5570 = vand.u32 %v5569, 4294901760
  %5571 = vmatmul.mubr.f32.gmra.mxu0 %v5570
  %v5572 = vpop.f32.mrf.mxu0
  %v5573 = vadd.f32 %v5446, %v5572
  %v5574 = vpop.f32.mrf.mxu0
  %5575 = vmatprep.mubr.f32.mxu0 0.0
  %v5576 = vand.u32 %v5063, 4294901760
  %v5577 = vsub.f32 %v5063, %v5576
  %v5578 = vand.u32 %v5577, 4294901760
  %5579 = vmatmul.mubr.f32.gmra.mxu0 %v5578
  %v5580 = vpop.f32.mrf.mxu0
  %v5581 = vadd.f32 %v5453, %v5580
  %v5582 = vpop.f32.mrf.mxu0
  %5583 = vmatprep.mubr.f32.mxu0 0.0
  %v5584 = vand.u32 %v5066, 4294901760
  %v5585 = vsub.f32 %v5066, %v5584
  %v5586 = vand.u32 %v5585, 4294901760
  %5587 = vmatmul.mubr.f32.gmra.mxu0 %v5586
  %v5588 = vpop.f32.mrf.mxu0
  %v5589 = vadd.f32 %v5460, %v5588
  %v5590 = vpop.f32.mrf.mxu0
  %5591 = vmatprep.mubr.f32.mxu0 0.0
  %v5592 = vand.u32 %v5069, 4294901760
  %v5593 = vsub.f32 %v5069, %v5592
  %v5594 = vand.u32 %v5593, 4294901760
  %5595 = vmatmul.mubr.f32.gmra.mxu0 %v5594
  %v5596 = vpop.f32.mrf.mxu0
  %v5597 = vadd.f32 %v5467, %v5596
  %v5598 = vpop.f32.mrf.mxu0
  %5599 = vmatprep.mubr.f32.mxu0 0.0
  %v5600 = vand.u32 %v5072, 4294901760
  %v5601 = vsub.f32 %v5072, %v5600
  %v5602 = vand.u32 %v5601, 4294901760
  %5603 = vmatmul.mubr.f32.gmra.mxu0 %v5602
  %v5604 = vpop.f32.mrf.mxu0
  %v5605 = vadd.f32 %v5474, %v5604
  %v5606 = vpop.f32.mrf.mxu0
  %5607 = vmatprep.mubr.f32.mxu0 0.0
  %v5608 = vand.u32 %v5075, 4294901760
  %v5609 = vsub.f32 %v5075, %v5608
  %v5610 = vand.u32 %v5609, 4294901760
  %5611 = vmatmul.mubr.f32.gmra.mxu0 %v5610
  %v5612 = vpop.f32.mrf.mxu0
  %v5613 = vadd.f32 %v5481, %v5612
  %v5614 = vpop.f32.mrf.mxu0
  %5615 = vmatprep.mubr.f32.mxu0 0.0
  %v5616 = vand.u32 %v5078, 4294901760
  %v5617 = vsub.f32 %v5078, %v5616
  %v5618 = vand.u32 %v5617, 4294901760
  %5619 = vmatmul.mubr.f32.gmra.mxu0 %v5618
  %v5620 = vpop.f32.mrf.mxu0
  %v5621 = vadd.f32 %v5488, %v5620
  %v5622 = vpop.f32.mrf.mxu0
  %5623 = vdwg.mxu0
  %5624 = vmatprep.subr.mxu0 0.0
  %5625 = vmatpush1.msra.mxu0 0.0
  %5626 = vmatprep.subr.mxu0 0.0
  %5627 = vmatpush1.msra.mxu0 0.0
  %5628 = vmatprep.subr.mxu0 0.0
  %5629 = vmatpush1.msra.mxu0 0.0
  %5630 = vmatprep.subr.mxu0 0.0
  %5631 = vmatpush1.msra.mxu0 0.0
  %5632 = vmatprep.subr.mxu0 0.0
  %5633 = vmatpush1.msra.mxu0 0.0
  %5634 = vmatprep.subr.mxu0 0.0
  %5635 = vmatpush1.msra.mxu0 0.0
  %5636 = vmatprep.subr.mxu0 0.0
  %5637 = vmatpush1.msra.mxu0 0.0
  %5638 = vmatprep.subr.mxu0 0.0
  %5639 = vmatpush1.msra.mxu0 0.0
  %5640 = vmatprep.subr.mxu0 0.0
  %5641 = vmatpush1.msra.mxu0 0.0
  %5642 = vmatprep.subr.mxu0 0.0
  %5643 = vmatpush1.msra.mxu0 0.0
  %5644 = vmatprep.subr.mxu0 0.0
  %5645 = vmatpush1.msra.mxu0 0.0
  %5646 = vmatprep.subr.mxu0 0.0
  %5647 = vmatpush1.msra.mxu0 0.0
  %5648 = vmatprep.subr.mxu0 0.0
  %v5649 = vand.u32 %v5036, 4294901760
  %v5650 = vsub.f32 %v5036, %v5649
  %v5651 = vand.u32 %v5650, 4294901760
  %5652 = vmatpush1.msra.mxu0 %v5651
  %5653 = vmatprep.subr.mxu0 0.0
  %v5654 = vand.u32 %v5035, 4294901760
  %v5655 = vsub.f32 %v5035, %v5654
  %v5656 = vand.u32 %v5655, 4294901760
  %5657 = vmatpush1.msra.mxu0 %v5656
  %5658 = vmatprep.subr.mxu0 0.0
  %v5659 = vand.u32 %v5034, 4294901760
  %v5660 = vsub.f32 %v5034, %v5659
  %v5661 = vand.u32 %v5660, 4294901760
  %5662 = vmatpush1.msra.mxu0 %v5661
  %5663 = vmatprep.subr.mxu0 0.0
  %v5664 = vand.u32 %v5033, 4294901760
  %v5665 = vsub.f32 %v5033, %v5664
  %v5666 = vand.u32 %v5665, 4294901760
  %5667 = vmatpush1.msra.mxu0 %v5666
  %5668 = vmatprep.subr.mxu0 0.0
  %5669 = vmatpush2.msra.mxu0 0.0
  %5670 = vmatprep.subr.mxu0 0.0
  %5671 = vmatpush2.msra.mxu0 0.0
  %5672 = vmatprep.subr.mxu0 0.0
  %5673 = vmatpush2.msra.mxu0 0.0
  %5674 = vmatprep.subr.mxu0 0.0
  %5675 = vmatpush2.msra.mxu0 0.0
  %5676 = vmatprep.subr.mxu0 0.0
  %5677 = vmatpush2.msra.mxu0 0.0
  %5678 = vmatprep.subr.mxu0 0.0
  %5679 = vmatpush2.msra.mxu0 0.0
  %5680 = vmatprep.subr.mxu0 0.0
  %5681 = vmatpush2.msra.mxu0 0.0
  %5682 = vmatprep.subr.mxu0 0.0
  %5683 = vmatpush2.msra.mxu0 0.0
  %5684 = vmatprep.subr.mxu0 0.0
  %5685 = vmatpush2.msra.mxu0 0.0
  %5686 = vmatprep.subr.mxu0 0.0
  %5687 = vmatpush2.msra.mxu0 0.0
  %5688 = vmatprep.subr.mxu0 0.0
  %5689 = vmatpush2.msra.mxu0 0.0
  %5690 = vmatprep.subr.mxu0 0.0
  %5691 = vmatpush2.msra.mxu0 0.0
  %5692 = vmatprep.subr.mxu0 0.0
  %5693 = vmatpush2.msra.mxu0 0.0
  %5694 = vmatprep.subr.mxu0 0.0
  %5695 = vmatpush2.msra.mxu0 0.0
  %5696 = vmatprep.subr.mxu0 0.0
  %5697 = vmatpush2.msra.mxu0 0.0
  %5698 = vmatprep.subr.mxu0 0.0
  %5699 = vmatpush2.msra.mxu0 0.0
  %5700 = vmatprep.mubr.f32.mxu0 0.0
  %v5701 = vand.u32 %v5057, 4294901760
  %5702 = vmatmul.mubr.f32.gmra.mxu0 %v5701
  %v5703 = vpop.f32.mrf.mxu0
  %v5704 = vadd.f32 %v5565, %v5703
  %v5705 = vpop.f32.mrf.mxu0
  %5706 = vmatprep.mubr.f32.mxu0 0.0
  %v5707 = vand.u32 %v5060, 4294901760
  %5708 = vmatmul.mubr.f32.gmra.mxu0 %v5707
  %v5709 = vpop.f32.mrf.mxu0
  %v5710 = vadd.f32 %v5573, %v5709
  %v5711 = vpop.f32.mrf.mxu0
  %5712 = vmatprep.mubr.f32.mxu0 0.0
  %v5713 = vand.u32 %v5063, 4294901760
  %5714 = vmatmul.mubr.f32.gmra.mxu0 %v5713
  %v5715 = vpop.f32.mrf.mxu0
  %v5716 = vadd.f32 %v5581, %v5715
  %v5717 = vpop.f32.mrf.mxu0
  %5718 = vmatprep.mubr.f32.mxu0 0.0
  %v5719 = vand.u32 %v5066, 4294901760
  %5720 = vmatmul.mubr.f32.gmra.mxu0 %v5719
  %v5721 = vpop.f32.mrf.mxu0
  %v5722 = vadd.f32 %v5589, %v5721
  %v5723 = vpop.f32.mrf.mxu0
  %5724 = vmatprep.mubr.f32.mxu0 0.0
  %v5725 = vand.u32 %v5069, 4294901760
  %5726 = vmatmul.mubr.f32.gmra.mxu0 %v5725
  %v5727 = vpop.f32.mrf.mxu0
  %v5728 = vadd.f32 %v5597, %v5727
  %v5729 = vpop.f32.mrf.mxu0
  %5730 = vmatprep.mubr.f32.mxu0 0.0
  %v5731 = vand.u32 %v5072, 4294901760
  %5732 = vmatmul.mubr.f32.gmra.mxu0 %v5731
  %v5733 = vpop.f32.mrf.mxu0
  %v5734 = vadd.f32 %v5605, %v5733
  %v5735 = vpop.f32.mrf.mxu0
  %5736 = vmatprep.mubr.f32.mxu0 0.0
  %v5737 = vand.u32 %v5075, 4294901760
  %5738 = vmatmul.mubr.f32.gmra.mxu0 %v5737
  %v5739 = vpop.f32.mrf.mxu0
  %v5740 = vadd.f32 %v5613, %v5739
  %v5741 = vpop.f32.mrf.mxu0
  %5742 = vmatprep.mubr.f32.mxu0 0.0
  %v5743 = vand.u32 %v5078, 4294901760
  %5744 = vmatmul.mubr.f32.gmra.mxu0 %v5743
  %v5745 = vpop.f32.mrf.mxu0
  %v5746 = vadd.f32 %v5621, %v5745
  %v5747 = vpop.f32.mrf.mxu0
  %5748 = vdwg.mxu0
  %5749 = vmatprep.subr.mxu0 0.0
  %5750 = vmatpush1.msra.mxu0 0.0
  %5751 = vmatprep.subr.mxu0 0.0
  %5752 = vmatpush1.msra.mxu0 0.0
  %5753 = vmatprep.subr.mxu0 0.0
  %5754 = vmatpush1.msra.mxu0 0.0
  %5755 = vmatprep.subr.mxu0 0.0
  %5756 = vmatpush1.msra.mxu0 0.0
  %5757 = vmatprep.subr.mxu0 0.0
  %5758 = vmatpush1.msra.mxu0 0.0
  %5759 = vmatprep.subr.mxu0 0.0
  %5760 = vmatpush1.msra.mxu0 0.0
  %5761 = vmatprep.subr.mxu0 0.0
  %5762 = vmatpush1.msra.mxu0 0.0
  %5763 = vmatprep.subr.mxu0 0.0
  %5764 = vmatpush1.msra.mxu0 0.0
  %5765 = vmatprep.subr.mxu0 0.0
  %5766 = vmatpush1.msra.mxu0 0.0
  %5767 = vmatprep.subr.mxu0 0.0
  %5768 = vmatpush1.msra.mxu0 0.0
  %5769 = vmatprep.subr.mxu0 0.0
  %5770 = vmatpush1.msra.mxu0 0.0
  %5771 = vmatprep.subr.mxu0 0.0
  %5772 = vmatpush1.msra.mxu0 0.0
  %5773 = vmatprep.subr.mxu0 0.0
  %v5774 = vand.u32 %v5036, 4294901760
  %5775 = vmatpush1.msra.mxu0 %v5774
  %5776 = vmatprep.subr.mxu0 0.0
  %v5777 = vand.u32 %v5035, 4294901760
  %5778 = vmatpush1.msra.mxu0 %v5777
  %5779 = vmatprep.subr.mxu0 0.0
  %v5780 = vand.u32 %v5034, 4294901760
  %5781 = vmatpush1.msra.mxu0 %v5780
  %5782 = vmatprep.subr.mxu0 0.0
  %v5783 = vand.u32 %v5033, 4294901760
  %5784 = vmatpush1.msra.mxu0 %v5783
  %5785 = vmatprep.subr.mxu0 0.0
  %5786 = vmatpush2.msra.mxu0 0.0
  %5787 = vmatprep.subr.mxu0 0.0
  %5788 = vmatpush2.msra.mxu0 0.0
  %5789 = vmatprep.subr.mxu0 0.0
  %5790 = vmatpush2.msra.mxu0 0.0
  %5791 = vmatprep.subr.mxu0 0.0
  %5792 = vmatpush2.msra.mxu0 0.0
  %5793 = vmatprep.subr.mxu0 0.0
  %5794 = vmatpush2.msra.mxu0 0.0
  %5795 = vmatprep.subr.mxu0 0.0
  %5796 = vmatpush2.msra.mxu0 0.0
  %5797 = vmatprep.subr.mxu0 0.0
  %5798 = vmatpush2.msra.mxu0 0.0
  %5799 = vmatprep.subr.mxu0 0.0
  %5800 = vmatpush2.msra.mxu0 0.0
  %5801 = vmatprep.subr.mxu0 0.0
  %5802 = vmatpush2.msra.mxu0 0.0
  %5803 = vmatprep.subr.mxu0 0.0
  %5804 = vmatpush2.msra.mxu0 0.0
  %5805 = vmatprep.subr.mxu0 0.0
  %5806 = vmatpush2.msra.mxu0 0.0
  %5807 = vmatprep.subr.mxu0 0.0
  %5808 = vmatpush2.msra.mxu0 0.0
  %5809 = vmatprep.subr.mxu0 0.0
  %5810 = vmatpush2.msra.mxu0 0.0
  %5811 = vmatprep.subr.mxu0 0.0
  %5812 = vmatpush2.msra.mxu0 0.0
  %5813 = vmatprep.subr.mxu0 0.0
  %5814 = vmatpush2.msra.mxu0 0.0
  %5815 = vmatprep.subr.mxu0 0.0
  %5816 = vmatpush2.msra.mxu0 0.0
  %5817 = vmatprep.mubr.f32.mxu0 0.0
  %v5818 = vand.u32 %v5057, 4294901760
  %5819 = vmatmul.mubr.f32.gmra.mxu0 %v5818
  %v5820 = vpop.f32.mrf.mxu0
  %v5821 = vadd.f32 %v5704, %v5820
  %v5822 = vpop.f32.mrf.mxu0
  %5823 = vmatprep.mubr.f32.mxu0 0.0
  %v5824 = vand.u32 %v5060, 4294901760
  %5825 = vmatmul.mubr.f32.gmra.mxu0 %v5824
  %v5826 = vpop.f32.mrf.mxu0
  %v5827 = vadd.f32 %v5710, %v5826
  %v5828 = vpop.f32.mrf.mxu0
  %5829 = vmatprep.mubr.f32.mxu0 0.0
  %v5830 = vand.u32 %v5063, 4294901760
  %5831 = vmatmul.mubr.f32.gmra.mxu0 %v5830
  %v5832 = vpop.f32.mrf.mxu0
  %v5833 = vadd.f32 %v5716, %v5832
  %v5834 = vpop.f32.mrf.mxu0
  %5835 = vmatprep.mubr.f32.mxu0 0.0
  %v5836 = vand.u32 %v5066, 4294901760
  %5837 = vmatmul.mubr.f32.gmra.mxu0 %v5836
  %v5838 = vpop.f32.mrf.mxu0
  %v5839 = vadd.f32 %v5722, %v5838
  %v5840 = vpop.f32.mrf.mxu0
  %5841 = vmatprep.mubr.f32.mxu0 0.0
  %v5842 = vand.u32 %v5069, 4294901760
  %5843 = vmatmul.mubr.f32.gmra.mxu0 %v5842
  %v5844 = vpop.f32.mrf.mxu0
  %v5845 = vadd.f32 %v5728, %v5844
  %v5846 = vpop.f32.mrf.mxu0
  %5847 = vmatprep.mubr.f32.mxu0 0.0
  %v5848 = vand.u32 %v5072, 4294901760
  %5849 = vmatmul.mubr.f32.gmra.mxu0 %v5848
  %v5850 = vpop.f32.mrf.mxu0
  %v5851 = vadd.f32 %v5734, %v5850
  %v5852 = vpop.f32.mrf.mxu0
  %5853 = vmatprep.mubr.f32.mxu0 0.0
  %v5854 = vand.u32 %v5075, 4294901760
  %5855 = vmatmul.mubr.f32.gmra.mxu0 %v5854
  %v5856 = vpop.f32.mrf.mxu0
  %v5857 = vadd.f32 %v5740, %v5856
  %v5858 = vpop.f32.mrf.mxu0
  %5859 = vmatprep.mubr.f32.mxu0 0.0
  %v5860 = vand.u32 %v5078, 4294901760
  %5861 = vmatmul.mubr.f32.gmra.mxu0 %v5860
  %v5862 = vpop.f32.mrf.mxu0
  %v5863 = vadd.f32 %v5746, %v5862
  %v5864 = vpop.f32.mrf.mxu0
  %5865 = vdwg.mxu0
  %5866 = vst [vmem:[#allocation3] sm:$0xff] %v5821
  %5867 = vst [vmem:[#allocation3 + $0x8] sm:$0xff] %v5827
  %5868 = vst [vmem:[#allocation3 + $0x10] sm:$0xff] %v5833
  %5869 = vst [vmem:[#allocation3 + $0x18] sm:$0xff] %v5839
  %5870 = vst [vmem:[#allocation3 + $0x20] sm:$0xff] %v5845
  %5871 = vst [vmem:[#allocation3 + $0x28] sm:$0xff] %v5851
  %5872 = vst [vmem:[#allocation3 + $0x30] sm:$0xff] %v5857
  %5873 = vst [vmem:[#allocation3 + $0x38] sm:$0xff] %v5863
  %v5874 = vld [vmem:[#allocation3] sm:$0xff]
  %5875 = vmatprep.subr.mxu0 0.0
  %5876 = vmatpush1.msra.mxu0 0.0
  %5877 = vmatprep.subr.mxu0 0.0
  %5878 = vmatpush1.msra.mxu0 0.0
  %5879 = vmatprep.subr.mxu0 0.0
  %5880 = vmatpush1.msra.mxu0 0.0
  %5881 = vmatprep.subr.mxu0 0.0
  %5882 = vmatpush1.msra.mxu0 0.0
  %5883 = vmatprep.subr.mxu0 0.0
  %5884 = vmatpush1.msra.mxu0 0.0
  %5885 = vmatprep.subr.mxu0 0.0
  %5886 = vmatpush1.msra.mxu0 0.0
  %5887 = vmatprep.subr.mxu0 0.0
  %5888 = vmatpush1.msra.mxu0 0.0
  %5889 = vmatprep.subr.mxu0 0.0
  %5890 = vmatpush1.msra.mxu0 0.0
  %5891 = vmatprep.subr.mxu0 0.0
  %5892 = vmatpush1.msra.mxu0 0.0
  %5893 = vmatprep.subr.mxu0 0.0
  %5894 = vmatpush1.msra.mxu0 0.0
  %5895 = vmatprep.subr.mxu0 0.0
  %5896 = vmatpush1.msra.mxu0 0.0
  %5897 = vmatprep.subr.mxu0 0.0
  %5898 = vmatpush1.msra.mxu0 0.0
  %5899 = vmatprep.subr.mxu0 0.0
  %v5900 = vand.u32 %v5040, 4294901760
  %5901 = vmatpush1.msra.mxu0 %v5900
  %5902 = vmatprep.subr.mxu0 0.0
  %v5903 = vand.u32 %v5039, 4294901760
  %5904 = vmatpush1.msra.mxu0 %v5903
  %5905 = vmatprep.subr.mxu0 0.0
  %v5906 = vand.u32 %v5038, 4294901760
  %5907 = vmatpush1.msra.mxu0 %v5906
  %5908 = vmatprep.subr.mxu0 0.0
  %v5909 = vand.u32 %v5037, 4294901760
  %5910 = vmatpush1.msra.mxu0 %v5909
  %5911 = vmatprep.subr.mxu0 0.0
  %5912 = vmatpush2.msra.mxu0 0.0
  %5913 = vmatprep.subr.mxu0 0.0
  %5914 = vmatpush2.msra.mxu0 0.0
  %5915 = vmatprep.subr.mxu0 0.0
  %5916 = vmatpush2.msra.mxu0 0.0
  %5917 = vmatprep.subr.mxu0 0.0
  %5918 = vmatpush2.msra.mxu0 0.0
  %5919 = vmatprep.subr.mxu0 0.0
  %5920 = vmatpush2.msra.mxu0 0.0
  %5921 = vmatprep.subr.mxu0 0.0
  %5922 = vmatpush2.msra.mxu0 0.0
  %5923 = vmatprep.subr.mxu0 0.0
  %5924 = vmatpush2.msra.mxu0 0.0
  %5925 = vmatprep.subr.mxu0 0.0
  %5926 = vmatpush2.msra.mxu0 0.0
  %5927 = vmatprep.subr.mxu0 0.0
  %5928 = vmatpush2.msra.mxu0 0.0
  %5929 = vmatprep.subr.mxu0 0.0
  %5930 = vmatpush2.msra.mxu0 0.0
  %5931 = vmatprep.subr.mxu0 0.0
  %5932 = vmatpush2.msra.mxu0 0.0
  %5933 = vmatprep.subr.mxu0 0.0
  %5934 = vmatpush2.msra.mxu0 0.0
  %5935 = vmatprep.subr.mxu0 0.0
  %5936 = vmatpush2.msra.mxu0 0.0
  %5937 = vmatprep.subr.mxu0 0.0
  %5938 = vmatpush2.msra.mxu0 0.0
  %5939 = vmatprep.subr.mxu0 0.0
  %5940 = vmatpush2.msra.mxu0 0.0
  %5941 = vmatprep.subr.mxu0 0.0
  %5942 = vmatpush2.msra.mxu0 0.0
  %5943 = vmatprep.mubr.f32.mxu0 0.0
  %v5944 = vand.u32 %v876, 4294901760
  %v5945 = vsub.f32 %v876, %v5944
  %v5946 = vand.u32 %v5945, 4294901760
  %v5947 = vsub.f32 %v5945, %v5946
  %v5948 = vand.u32 %v5947, 4294901760
  %5949 = vmatmul.mubr.f32.gmra.mxu0 %v5948
  %v5950 = vpop.f32.mrf.mxu0
  %v5951 = vadd.f32 0.0, %v5950
  %v5952 = vpop.f32.mrf.mxu0
  %5953 = vdwg.mxu0
  %5954 = vmatprep.subr.mxu0 0.0
  %5955 = vmatpush1.msra.mxu0 0.0
  %5956 = vmatprep.subr.mxu0 0.0
  %5957 = vmatpush1.msra.mxu0 0.0
  %5958 = vmatprep.subr.mxu0 0.0
  %5959 = vmatpush1.msra.mxu0 0.0
  %5960 = vmatprep.subr.mxu0 0.0
  %5961 = vmatpush1.msra.mxu0 0.0
  %5962 = vmatprep.subr.mxu0 0.0
  %5963 = vmatpush1.msra.mxu0 0.0
  %5964 = vmatprep.subr.mxu0 0.0
  %5965 = vmatpush1.msra.mxu0 0.0
  %5966 = vmatprep.subr.mxu0 0.0
  %5967 = vmatpush1.msra.mxu0 0.0
  %5968 = vmatprep.subr.mxu0 0.0
  %5969 = vmatpush1.msra.mxu0 0.0
  %5970 = vmatprep.subr.mxu0 0.0
  %5971 = vmatpush1.msra.mxu0 0.0
  %5972 = vmatprep.subr.mxu0 0.0
  %5973 = vmatpush1.msra.mxu0 0.0
  %5974 = vmatprep.subr.mxu0 0.0
  %5975 = vmatpush1.msra.mxu0 0.0
  %5976 = vmatprep.subr.mxu0 0.0
  %5977 = vmatpush1.msra.mxu0 0.0
  %5978 = vmatprep.subr.mxu0 0.0
  %v5979 = vand.u32 %v5040, 4294901760
  %v5980 = vsub.f32 %v5040, %v5979
  %v5981 = vand.u32 %v5980, 4294901760
  %v5982 = vsub.f32 %v5980, %v5981
  %v5983 = vand.u32 %v5982, 4294901760
  %5984 = vmatpush1.msra.mxu0 %v5983
  %5985 = vmatprep.subr.mxu0 0.0
  %v5986 = vand.u32 %v5039, 4294901760
  %v5987 = vsub.f32 %v5039, %v5986
  %v5988 = vand.u32 %v5987, 4294901760
  %v5989 = vsub.f32 %v5987, %v5988
  %v5990 = vand.u32 %v5989, 4294901760
  %5991 = vmatpush1.msra.mxu0 %v5990
  %5992 = vmatprep.subr.mxu0 0.0
  %v5993 = vand.u32 %v5038, 4294901760
  %v5994 = vsub.f32 %v5038, %v5993
  %v5995 = vand.u32 %v5994, 4294901760
  %v5996 = vsub.f32 %v5994, %v5995
  %v5997 = vand.u32 %v5996, 4294901760
  %5998 = vmatpush1.msra.mxu0 %v5997
  %5999 = vmatprep.subr.mxu0 0.0
  %v6000 = vand.u32 %v5037, 4294901760
  %v6001 = vsub.f32 %v5037, %v6000
  %v6002 = vand.u32 %v6001, 4294901760
  %v6003 = vsub.f32 %v6001, %v6002
  %v6004 = vand.u32 %v6003, 4294901760
  %6005 = vmatpush1.msra.mxu0 %v6004
  %6006 = vmatprep.subr.mxu0 0.0
  %6007 = vmatpush2.msra.mxu0 0.0
  %6008 = vmatprep.subr.mxu0 0.0
  %6009 = vmatpush2.msra.mxu0 0.0
  %6010 = vmatprep.subr.mxu0 0.0
  %6011 = vmatpush2.msra.mxu0 0.0
  %6012 = vmatprep.subr.mxu0 0.0
  %6013 = vmatpush2.msra.mxu0 0.0
  %6014 = vmatprep.subr.mxu0 0.0
  %6015 = vmatpush2.msra.mxu0 0.0
  %6016 = vmatprep.subr.mxu0 0.0
  %6017 = vmatpush2.msra.mxu0 0.0
  %6018 = vmatprep.subr.mxu0 0.0
  %6019 = vmatpush2.msra.mxu0 0.0
  %6020 = vmatprep.subr.mxu0 0.0
  %6021 = vmatpush2.msra.mxu0 0.0
  %6022 = vmatprep.subr.mxu0 0.0
  %6023 = vmatpush2.msra.mxu0 0.0
  %6024 = vmatprep.subr.mxu0 0.0
  %6025 = vmatpush2.msra.mxu0 0.0
  %6026 = vmatprep.subr.mxu0 0.0
  %6027 = vmatpush2.msra.mxu0 0.0
  %6028 = vmatprep.subr.mxu0 0.0
  %6029 = vmatpush2.msra.mxu0 0.0
  %6030 = vmatprep.subr.mxu0 0.0
  %6031 = vmatpush2.msra.mxu0 0.0
  %6032 = vmatprep.subr.mxu0 0.0
  %6033 = vmatpush2.msra.mxu0 0.0
  %6034 = vmatprep.subr.mxu0 0.0
  %6035 = vmatpush2.msra.mxu0 0.0
  %6036 = vmatprep.subr.mxu0 0.0
  %6037 = vmatpush2.msra.mxu0 0.0
  %6038 = vmatprep.mubr.f32.mxu0 0.0
  %v6039 = vand.u32 %v876, 4294901760
  %6040 = vmatmul.mubr.f32.gmra.mxu0 %v6039
  %v6041 = vpop.f32.mrf.mxu0
  %v6042 = vadd.f32 %v5951, %v6041
  %v6043 = vpop.f32.mrf.mxu0
  %6044 = vdwg.mxu0
  %6045 = vmatprep.subr.mxu0 0.0
  %6046 = vmatpush1.msra.mxu0 0.0
  %6047 = vmatprep.subr.mxu0 0.0
  %6048 = vmatpush1.msra.mxu0 0.0
  %6049 = vmatprep.subr.mxu0 0.0
  %6050 = vmatpush1.msra.mxu0 0.0
  %6051 = vmatprep.subr.mxu0 0.0
  %6052 = vmatpush1.msra.mxu0 0.0
  %6053 = vmatprep.subr.mxu0 0.0
  %6054 = vmatpush1.msra.mxu0 0.0
  %6055 = vmatprep.subr.mxu0 0.0
  %6056 = vmatpush1.msra.mxu0 0.0
  %6057 = vmatprep.subr.mxu0 0.0
  %6058 = vmatpush1.msra.mxu0 0.0
  %6059 = vmatprep.subr.mxu0 0.0
  %6060 = vmatpush1.msra.mxu0 0.0
  %6061 = vmatprep.subr.mxu0 0.0
  %6062 = vmatpush1.msra.mxu0 0.0
  %6063 = vmatprep.subr.mxu0 0.0
  %6064 = vmatpush1.msra.mxu0 0.0
  %6065 = vmatprep.subr.mxu0 0.0
  %6066 = vmatpush1.msra.mxu0 0.0
  %6067 = vmatprep.subr.mxu0 0.0
  %6068 = vmatpush1.msra.mxu0 0.0
  %6069 = vmatprep.subr.mxu0 0.0
  %v6070 = vand.u32 %v5040, 4294901760
  %v6071 = vsub.f32 %v5040, %v6070
  %6072 = vmatpush1.msra.mxu0 %v6071
  %6073 = vmatprep.subr.mxu0 0.0
  %v6074 = vand.u32 %v5039, 4294901760
  %v6075 = vsub.f32 %v5039, %v6074
  %6076 = vmatpush1.msra.mxu0 %v6075
  %6077 = vmatprep.subr.mxu0 0.0
  %v6078 = vand.u32 %v5038, 4294901760
  %v6079 = vsub.f32 %v5038, %v6078
  %6080 = vmatpush1.msra.mxu0 %v6079
  %6081 = vmatprep.subr.mxu0 0.0
  %v6082 = vand.u32 %v5037, 4294901760
  %v6083 = vsub.f32 %v5037, %v6082
  %6084 = vmatpush1.msra.mxu0 %v6083
  %6085 = vmatprep.subr.mxu0 0.0
  %6086 = vmatpush2.msra.mxu0 0.0
  %6087 = vmatprep.subr.mxu0 0.0
  %6088 = vmatpush2.msra.mxu0 0.0
  %6089 = vmatprep.subr.mxu0 0.0
  %6090 = vmatpush2.msra.mxu0 0.0
  %6091 = vmatprep.subr.mxu0 0.0
  %6092 = vmatpush2.msra.mxu0 0.0
  %6093 = vmatprep.subr.mxu0 0.0
  %6094 = vmatpush2.msra.mxu0 0.0
  %6095 = vmatprep.subr.mxu0 0.0
  %6096 = vmatpush2.msra.mxu0 0.0
  %6097 = vmatprep.subr.mxu0 0.0
  %6098 = vmatpush2.msra.mxu0 0.0
  %6099 = vmatprep.subr.mxu0 0.0
  %6100 = vmatpush2.msra.mxu0 0.0
  %6101 = vmatprep.subr.mxu0 0.0
  %6102 = vmatpush2.msra.mxu0 0.0
  %6103 = vmatprep.subr.mxu0 0.0
  %6104 = vmatpush2.msra.mxu0 0.0
  %6105 = vmatprep.subr.mxu0 0.0
  %6106 = vmatpush2.msra.mxu0 0.0
  %6107 = vmatprep.subr.mxu0 0.0
  %6108 = vmatpush2.msra.mxu0 0.0
  %6109 = vmatprep.subr.mxu0 0.0
  %6110 = vmatpush2.msra.mxu0 0.0
  %6111 = vmatprep.subr.mxu0 0.0
  %6112 = vmatpush2.msra.mxu0 0.0
  %6113 = vmatprep.subr.mxu0 0.0
  %6114 = vmatpush2.msra.mxu0 0.0
  %6115 = vmatprep.subr.mxu0 0.0
  %6116 = vmatpush2.msra.mxu0 0.0
  %6117 = vmatprep.mubr.f32.mxu0 0.0
  %v6118 = vand.u32 %v876, 4294901760
  %v6119 = vsub.f32 %v876, %v6118
  %6120 = vmatmul.mubr.f32.gmra.mxu0 %v6119
  %v6121 = vpop.f32.mrf.mxu0
  %v6122 = vadd.f32 %v6042, %v6121
  %v6123 = vpop.f32.mrf.mxu0
  %6124 = vdwg.mxu0
  %6125 = vmatprep.subr.mxu0 0.0
  %6126 = vmatpush1.msra.mxu0 0.0
  %6127 = vmatprep.subr.mxu0 0.0
  %6128 = vmatpush1.msra.mxu0 0.0
  %6129 = vmatprep.subr.mxu0 0.0
  %6130 = vmatpush1.msra.mxu0 0.0
  %6131 = vmatprep.subr.mxu0 0.0
  %6132 = vmatpush1.msra.mxu0 0.0
  %6133 = vmatprep.subr.mxu0 0.0
  %6134 = vmatpush1.msra.mxu0 0.0
  %6135 = vmatprep.subr.mxu0 0.0
  %6136 = vmatpush1.msra.mxu0 0.0
  %6137 = vmatprep.subr.mxu0 0.0
  %6138 = vmatpush1.msra.mxu0 0.0
  %6139 = vmatprep.subr.mxu0 0.0
  %6140 = vmatpush1.msra.mxu0 0.0
  %6141 = vmatprep.subr.mxu0 0.0
  %6142 = vmatpush1.msra.mxu0 0.0
  %6143 = vmatprep.subr.mxu0 0.0
  %6144 = vmatpush1.msra.mxu0 0.0
  %6145 = vmatprep.subr.mxu0 0.0
  %6146 = vmatpush1.msra.mxu0 0.0
  %6147 = vmatprep.subr.mxu0 0.0
  %6148 = vmatpush1.msra.mxu0 0.0
  %6149 = vmatprep.subr.mxu0 0.0
  %v6150 = vand.u32 %v5040, 4294901760
  %6151 = vmatpush1.msra.mxu0 %v6150
  %6152 = vmatprep.subr.mxu0 0.0
  %v6153 = vand.u32 %v5039, 4294901760
  %6154 = vmatpush1.msra.mxu0 %v6153
  %6155 = vmatprep.subr.mxu0 0.0
  %v6156 = vand.u32 %v5038, 4294901760
  %6157 = vmatpush1.msra.mxu0 %v6156
  %6158 = vmatprep.subr.mxu0 0.0
  %v6159 = vand.u32 %v5037, 4294901760
  %6160 = vmatpush1.msra.mxu0 %v6159
  %6161 = vmatprep.subr.mxu0 0.0
  %6162 = vmatpush2.msra.mxu0 0.0
  %6163 = vmatprep.subr.mxu0 0.0
  %6164 = vmatpush2.msra.mxu0 0.0
  %6165 = vmatprep.subr.mxu0 0.0
  %6166 = vmatpush2.msra.mxu0 0.0
  %6167 = vmatprep.subr.mxu0 0.0
  %6168 = vmatpush2.msra.mxu0 0.0
  %6169 = vmatprep.subr.mxu0 0.0
  %6170 = vmatpush2.msra.mxu0 0.0
  %6171 = vmatprep.subr.mxu0 0.0
  %6172 = vmatpush2.msra.mxu0 0.0
  %6173 = vmatprep.subr.mxu0 0.0
  %6174 = vmatpush2.msra.mxu0 0.0
  %6175 = vmatprep.subr.mxu0 0.0
  %6176 = vmatpush2.msra.mxu0 0.0
  %6177 = vmatprep.subr.mxu0 0.0
  %6178 = vmatpush2.msra.mxu0 0.0
  %6179 = vmatprep.subr.mxu0 0.0
  %6180 = vmatpush2.msra.mxu0 0.0
  %6181 = vmatprep.subr.mxu0 0.0
  %6182 = vmatpush2.msra.mxu0 0.0
  %6183 = vmatprep.subr.mxu0 0.0
  %6184 = vmatpush2.msra.mxu0 0.0
  %6185 = vmatprep.subr.mxu0 0.0
  %6186 = vmatpush2.msra.mxu0 0.0
  %6187 = vmatprep.subr.mxu0 0.0
  %6188 = vmatpush2.msra.mxu0 0.0
  %6189 = vmatprep.subr.mxu0 0.0
  %6190 = vmatpush2.msra.mxu0 0.0
  %6191 = vmatprep.subr.mxu0 0.0
  %6192 = vmatpush2.msra.mxu0 0.0
  %6193 = vmatprep.mubr.f32.mxu0 0.0
  %v6194 = vand.u32 %v876, 4294901760
  %v6195 = vsub.f32 %v876, %v6194
  %v6196 = vand.u32 %v6195, 4294901760
  %6197 = vmatmul.mubr.f32.gmra.mxu0 %v6196
  %v6198 = vpop.f32.mrf.mxu0
  %v6199 = vadd.f32 %v6122, %v6198
  %v6200 = vpop.f32.mrf.mxu0
  %6201 = vdwg.mxu0
  %6202 = vmatprep.subr.mxu0 0.0
  %6203 = vmatpush1.msra.mxu0 0.0
  %6204 = vmatprep.subr.mxu0 0.0
  %6205 = vmatpush1.msra.mxu0 0.0
  %6206 = vmatprep.subr.mxu0 0.0
  %6207 = vmatpush1.msra.mxu0 0.0
  %6208 = vmatprep.subr.mxu0 0.0
  %6209 = vmatpush1.msra.mxu0 0.0
  %6210 = vmatprep.subr.mxu0 0.0
  %6211 = vmatpush1.msra.mxu0 0.0
  %6212 = vmatprep.subr.mxu0 0.0
  %6213 = vmatpush1.msra.mxu0 0.0
  %6214 = vmatprep.subr.mxu0 0.0
  %6215 = vmatpush1.msra.mxu0 0.0
  %6216 = vmatprep.subr.mxu0 0.0
  %6217 = vmatpush1.msra.mxu0 0.0
  %6218 = vmatprep.subr.mxu0 0.0
  %6219 = vmatpush1.msra.mxu0 0.0
  %6220 = vmatprep.subr.mxu0 0.0
  %6221 = vmatpush1.msra.mxu0 0.0
  %6222 = vmatprep.subr.mxu0 0.0
  %6223 = vmatpush1.msra.mxu0 0.0
  %6224 = vmatprep.subr.mxu0 0.0
  %6225 = vmatpush1.msra.mxu0 0.0
  %6226 = vmatprep.subr.mxu0 0.0
  %v6227 = vand.u32 %v5040, 4294901760
  %v6228 = vsub.f32 %v5040, %v6227
  %v6229 = vand.u32 %v6228, 4294901760
  %6230 = vmatpush1.msra.mxu0 %v6229
  %6231 = vmatprep.subr.mxu0 0.0
  %v6232 = vand.u32 %v5039, 4294901760
  %v6233 = vsub.f32 %v5039, %v6232
  %v6234 = vand.u32 %v6233, 4294901760
  %6235 = vmatpush1.msra.mxu0 %v6234
  %6236 = vmatprep.subr.mxu0 0.0
  %v6237 = vand.u32 %v5038, 4294901760
  %v6238 = vsub.f32 %v5038, %v6237
  %v6239 = vand.u32 %v6238, 4294901760
  %6240 = vmatpush1.msra.mxu0 %v6239
  %6241 = vmatprep.subr.mxu0 0.0
  %v6242 = vand.u32 %v5037, 4294901760
  %v6243 = vsub.f32 %v5037, %v6242
  %v6244 = vand.u32 %v6243, 4294901760
  %6245 = vmatpush1.msra.mxu0 %v6244
  %6246 = vmatprep.subr.mxu0 0.0
  %6247 = vmatpush2.msra.mxu0 0.0
  %6248 = vmatprep.subr.mxu0 0.0
  %6249 = vmatpush2.msra.mxu0 0.0
  %6250 = vmatprep.subr.mxu0 0.0
  %6251 = vmatpush2.msra.mxu0 0.0
  %6252 = vmatprep.subr.mxu0 0.0
  %6253 = vmatpush2.msra.mxu0 0.0
  %6254 = vmatprep.subr.mxu0 0.0
  %6255 = vmatpush2.msra.mxu0 0.0
  %6256 = vmatprep.subr.mxu0 0.0
  %6257 = vmatpush2.msra.mxu0 0.0
  %6258 = vmatprep.subr.mxu0 0.0
  %6259 = vmatpush2.msra.mxu0 0.0
  %6260 = vmatprep.subr.mxu0 0.0
  %6261 = vmatpush2.msra.mxu0 0.0
  %6262 = vmatprep.subr.mxu0 0.0
  %6263 = vmatpush2.msra.mxu0 0.0
  %6264 = vmatprep.subr.mxu0 0.0
  %6265 = vmatpush2.msra.mxu0 0.0
  %6266 = vmatprep.subr.mxu0 0.0
  %6267 = vmatpush2.msra.mxu0 0.0
  %6268 = vmatprep.subr.mxu0 0.0
  %6269 = vmatpush2.msra.mxu0 0.0
  %6270 = vmatprep.subr.mxu0 0.0
  %6271 = vmatpush2.msra.mxu0 0.0
  %6272 = vmatprep.subr.mxu0 0.0
  %6273 = vmatpush2.msra.mxu0 0.0
  %6274 = vmatprep.subr.mxu0 0.0
  %6275 = vmatpush2.msra.mxu0 0.0
  %6276 = vmatprep.subr.mxu0 0.0
  %6277 = vmatpush2.msra.mxu0 0.0
  %6278 = vmatprep.mubr.f32.mxu0 0.0
  %v6279 = vand.u32 %v876, 4294901760
  %6280 = vmatmul.mubr.f32.gmra.mxu0 %v6279
  %v6281 = vpop.f32.mrf.mxu0
  %v6282 = vadd.f32 %v6199, %v6281
  %v6283 = vpop.f32.mrf.mxu0
  %6284 = vdwg.mxu0
  %6285 = vmatprep.subr.mxu0 0.0
  %6286 = vmatpush1.msra.mxu0 0.0
  %6287 = vmatprep.subr.mxu0 0.0
  %6288 = vmatpush1.msra.mxu0 0.0
  %6289 = vmatprep.subr.mxu0 0.0
  %6290 = vmatpush1.msra.mxu0 0.0
  %6291 = vmatprep.subr.mxu0 0.0
  %6292 = vmatpush1.msra.mxu0 0.0
  %6293 = vmatprep.subr.mxu0 0.0
  %6294 = vmatpush1.msra.mxu0 0.0
  %6295 = vmatprep.subr.mxu0 0.0
  %6296 = vmatpush1.msra.mxu0 0.0
  %6297 = vmatprep.subr.mxu0 0.0
  %6298 = vmatpush1.msra.mxu0 0.0
  %6299 = vmatprep.subr.mxu0 0.0
  %6300 = vmatpush1.msra.mxu0 0.0
  %6301 = vmatprep.subr.mxu0 0.0
  %6302 = vmatpush1.msra.mxu0 0.0
  %6303 = vmatprep.subr.mxu0 0.0
  %6304 = vmatpush1.msra.mxu0 0.0
  %6305 = vmatprep.subr.mxu0 0.0
  %6306 = vmatpush1.msra.mxu0 0.0
  %6307 = vmatprep.subr.mxu0 0.0
  %6308 = vmatpush1.msra.mxu0 0.0
  %6309 = vmatprep.subr.mxu0 0.0
  %v6310 = vand.u32 %v5040, 4294901760
  %6311 = vmatpush1.msra.mxu0 %v6310
  %6312 = vmatprep.subr.mxu0 0.0
  %v6313 = vand.u32 %v5039, 4294901760
  %6314 = vmatpush1.msra.mxu0 %v6313
  %6315 = vmatprep.subr.mxu0 0.0
  %v6316 = vand.u32 %v5038, 4294901760
  %6317 = vmatpush1.msra.mxu0 %v6316
  %6318 = vmatprep.subr.mxu0 0.0
  %v6319 = vand.u32 %v5037, 4294901760
  %6320 = vmatpush1.msra.mxu0 %v6319
  %6321 = vmatprep.subr.mxu0 0.0
  %6322 = vmatpush2.msra.mxu0 0.0
  %6323 = vmatprep.subr.mxu0 0.0
  %6324 = vmatpush2.msra.mxu0 0.0
  %6325 = vmatprep.subr.mxu0 0.0
  %6326 = vmatpush2.msra.mxu0 0.0
  %6327 = vmatprep.subr.mxu0 0.0
  %6328 = vmatpush2.msra.mxu0 0.0
  %6329 = vmatprep.subr.mxu0 0.0
  %6330 = vmatpush2.msra.mxu0 0.0
  %6331 = vmatprep.subr.mxu0 0.0
  %6332 = vmatpush2.msra.mxu0 0.0
  %6333 = vmatprep.subr.mxu0 0.0
  %6334 = vmatpush2.msra.mxu0 0.0
  %6335 = vmatprep.subr.mxu0 0.0
  %6336 = vmatpush2.msra.mxu0 0.0
  %6337 = vmatprep.subr.mxu0 0.0
  %6338 = vmatpush2.msra.mxu0 0.0
  %6339 = vmatprep.subr.mxu0 0.0
  %6340 = vmatpush2.msra.mxu0 0.0
  %6341 = vmatprep.subr.mxu0 0.0
  %6342 = vmatpush2.msra.mxu0 0.0
  %6343 = vmatprep.subr.mxu0 0.0
  %6344 = vmatpush2.msra.mxu0 0.0
  %6345 = vmatprep.subr.mxu0 0.0
  %6346 = vmatpush2.msra.mxu0 0.0
  %6347 = vmatprep.subr.mxu0 0.0
  %6348 = vmatpush2.msra.mxu0 0.0
  %6349 = vmatprep.subr.mxu0 0.0
  %6350 = vmatpush2.msra.mxu0 0.0
  %6351 = vmatprep.subr.mxu0 0.0
  %6352 = vmatpush2.msra.mxu0 0.0
  %6353 = vmatprep.mubr.f32.mxu0 0.0
  %v6354 = vand.u32 %v876, 4294901760
  %6355 = vmatmul.mubr.f32.gmra.mxu0 %v6354
  %v6356 = vpop.f32.mrf.mxu0
  %v6357 = vadd.f32 %v6282, %v6356
  %v6358 = vpop.f32.mrf.mxu0
  %6359 = vdwg.mxu0
  %v6360 = vadd.f32 %v5874, %v6357
  %v6361 = vsub.f32 0.0, %v6360
  %v6362 = vmul.f32 %v6361, 1.442695
  %v6363 = vpow.pop %v6362
  %v6364 = vadd.f32 %v6363, 1.0
  %v6365 = vrcp.pop %v6364
  %v6366 = vmul.f32 1.0, %v6365
  %v6367 = vtanh.pop %v6360
  %v6368 = vmul.f32 %v6366, 0.0
  %6370 = vrot.lane.b32.xlu0 %v6367, 64
  %v6371 = vpop.permute.xlu0 %6370
  %v6373 = vmul.f32 %v6366, %v6371
  %6375 = vrot.lane.b32.xlu0 %v6373, 32
  %v6376 = vpop.permute.xlu0 %6375
  %v6378 = vadd.f32 %v6368, %v6376
  %v6379 = vtanh.pop %v6378
  %6381 = vrot.lane.b32.xlu0 %v6379, 64
  %v6382 = vpop.permute.xlu0 %6381
  %v6384 = vmul.f32 %v6366, %v6382
  %6386 = vrot.lane.b32.xlu0 %v6384, 32
  %v6387 = vpop.permute.xlu0 %6386
  %6389 = vst.msk [vmem:[#allocation2] sm:$0xff] %vm55, %v6387
  %v6390 = vld [vmem:[%s1393] sm:$0xff]
  %v6391 = vsel %vm55, %v6387, 0
  %6393 = vmatprep.subr.mxu0 0.0
  %6394 = vmatpush1.msra.mxu0 0.0
  %6395 = vmatprep.subr.mxu0 0.0
  %6396 = vmatpush1.msra.mxu0 0.0
  %6397 = vmatprep.subr.mxu0 0.0
  %6398 = vmatpush1.msra.mxu0 0.0
  %6399 = vmatprep.subr.mxu0 0.0
  %6400 = vmatpush1.msra.mxu0 0.0
  %6401 = vmatprep.subr.mxu0 0.0
  %6402 = vmatpush1.msra.mxu0 0.0
  %6403 = vmatprep.subr.mxu0 0.0
  %6404 = vmatpush1.msra.mxu0 0.0
  %6405 = vmatprep.subr.mxu0 0.0
  %6406 = vmatpush1.msra.mxu0 0.0
  %6407 = vmatprep.subr.mxu0 0.0
  %6408 = vmatpush1.msra.mxu0 0.0
  %6409 = vmatprep.subr.mxu0 0.0
  %6410 = vmatpush1.msra.mxu0 0.0
  %6411 = vmatprep.subr.mxu0 0.0
  %6412 = vmatpush1.msra.mxu0 0.0
  %6413 = vmatprep.subr.mxu0 0.0
  %6414 = vmatpush1.msra.mxu0 0.0
  %6415 = vmatprep.subr.mxu0 0.0
  %6416 = vmatpush1.msra.mxu0 0.0
  %6417 = vmatprep.subr.mxu0 0.0
  %v6418 = vand.u32 %v5040, 4294901760
  %6419 = vmatpush1.msra.mxu0 %v6418
  %6420 = vmatprep.subr.mxu0 0.0
  %v6421 = vand.u32 %v5039, 4294901760
  %6422 = vmatpush1.msra.mxu0 %v6421
  %6423 = vmatprep.subr.mxu0 0.0
  %v6424 = vand.u32 %v5038, 4294901760
  %6425 = vmatpush1.msra.mxu0 %v6424
  %6426 = vmatprep.subr.mxu0 0.0
  %v6427 = vand.u32 %v5037, 4294901760
  %6428 = vmatpush1.msra.mxu0 %v6427
  %6429 = vmatprep.subr.mxu0 0.0
  %6430 = vmatpush2.msra.mxu0 0.0
  %6431 = vmatprep.subr.mxu0 0.0
  %6432 = vmatpush2.msra.mxu0 0.0
  %6433 = vmatprep.subr.mxu0 0.0
  %6434 = vmatpush2.msra.mxu0 0.0
  %6435 = vmatprep.subr.mxu0 0.0
  %6436 = vmatpush2.msra.mxu0 0.0
  %6437 = vmatprep.subr.mxu0 0.0
  %6438 = vmatpush2.msra.mxu0 0.0
  %6439 = vmatprep.subr.mxu0 0.0
  %6440 = vmatpush2.msra.mxu0 0.0
  %6441 = vmatprep.subr.mxu0 0.0
  %6442 = vmatpush2.msra.mxu0 0.0
  %6443 = vmatprep.subr.mxu0 0.0
  %6444 = vmatpush2.msra.mxu0 0.0
  %6445 = vmatprep.subr.mxu0 0.0
  %6446 = vmatpush2.msra.mxu0 0.0
  %6447 = vmatprep.subr.mxu0 0.0
  %6448 = vmatpush2.msra.mxu0 0.0
  %6449 = vmatprep.subr.mxu0 0.0
  %6450 = vmatpush2.msra.mxu0 0.0
  %6451 = vmatprep.subr.mxu0 0.0
  %6452 = vmatpush2.msra.mxu0 0.0
  %6453 = vmatprep.subr.mxu0 0.0
  %6454 = vmatpush2.msra.mxu0 0.0
  %6455 = vmatprep.subr.mxu0 0.0
  %6456 = vmatpush2.msra.mxu0 0.0
  %6457 = vmatprep.subr.mxu0 0.0
  %6458 = vmatpush2.msra.mxu0 0.0
  %6459 = vmatprep.subr.mxu0 0.0
  %6460 = vmatpush2.msra.mxu0 0.0
  %6461 = vmatprep.mubr.f32.mxu0 0.0
  %v6462 = vand.u32 %v6391, 4294901760
  %v6463 = vsub.f32 %v6391, %v6462
  %v6464 = vand.u32 %v6463, 4294901760
  %v6465 = vsub.f32 %v6463, %v6464
  %v6466 = vand.u32 %v6465, 4294901760
  %6467 = vmatmul.mubr.f32.gmra.mxu0 %v6466
  %v6468 = vpop.f32.mrf.mxu0
  %v6469 = vadd.f32 0.0, %v6468
  %v6470 = vpop.f32.mrf.mxu0
  %6471 = vdwg.mxu0
  %6472 = vmatprep.subr.mxu0 0.0
  %6473 = vmatpush1.msra.mxu0 0.0
  %6474 = vmatprep.subr.mxu0 0.0
  %6475 = vmatpush1.msra.mxu0 0.0
  %6476 = vmatprep.subr.mxu0 0.0
  %6477 = vmatpush1.msra.mxu0 0.0
  %6478 = vmatprep.subr.mxu0 0.0
  %6479 = vmatpush1.msra.mxu0 0.0
  %6480 = vmatprep.subr.mxu0 0.0
  %6481 = vmatpush1.msra.mxu0 0.0
  %6482 = vmatprep.subr.mxu0 0.0
  %6483 = vmatpush1.msra.mxu0 0.0
  %6484 = vmatprep.subr.mxu0 0.0
  %6485 = vmatpush1.msra.mxu0 0.0
  %6486 = vmatprep.subr.mxu0 0.0
  %6487 = vmatpush1.msra.mxu0 0.0
  %6488 = vmatprep.subr.mxu0 0.0
  %6489 = vmatpush1.msra.mxu0 0.0
  %6490 = vmatprep.subr.mxu0 0.0
  %6491 = vmatpush1.msra.mxu0 0.0
  %6492 = vmatprep.subr.mxu0 0.0
  %6493 = vmatpush1.msra.mxu0 0.0
  %6494 = vmatprep.subr.mxu0 0.0
  %6495 = vmatpush1.msra.mxu0 0.0
  %6496 = vmatprep.subr.mxu0 0.0
  %v6497 = vand.u32 %v5040, 4294901760
  %v6498 = vsub.f32 %v5040, %v6497
  %v6499 = vand.u32 %v6498, 4294901760
  %v6500 = vsub.f32 %v6498, %v6499
  %v6501 = vand.u32 %v6500, 4294901760
  %6502 = vmatpush1.msra.mxu0 %v6501
  %6503 = vmatprep.subr.mxu0 0.0
  %v6504 = vand.u32 %v5039, 4294901760
  %v6505 = vsub.f32 %v5039, %v6504
  %v6506 = vand.u32 %v6505, 4294901760
  %v6507 = vsub.f32 %v6505, %v6506
  %v6508 = vand.u32 %v6507, 4294901760
  %6509 = vmatpush1.msra.mxu0 %v6508
  %6510 = vmatprep.subr.mxu0 0.0
  %v6511 = vand.u32 %v5038, 4294901760
  %v6512 = vsub.f32 %v5038, %v6511
  %v6513 = vand.u32 %v6512, 4294901760
  %v6514 = vsub.f32 %v6512, %v6513
  %v6515 = vand.u32 %v6514, 4294901760
  %6516 = vmatpush1.msra.mxu0 %v6515
  %6517 = vmatprep.subr.mxu0 0.0
  %v6518 = vand.u32 %v5037, 4294901760
  %v6519 = vsub.f32 %v5037, %v6518
  %v6520 = vand.u32 %v6519, 4294901760
  %v6521 = vsub.f32 %v6519, %v6520
  %v6522 = vand.u32 %v6521, 4294901760
  %6523 = vmatpush1.msra.mxu0 %v6522
  %6524 = vmatprep.subr.mxu0 0.0
  %6525 = vmatpush2.msra.mxu0 0.0
  %6526 = vmatprep.subr.mxu0 0.0
  %6527 = vmatpush2.msra.mxu0 0.0
  %6528 = vmatprep.subr.mxu0 0.0
  %6529 = vmatpush2.msra.mxu0 0.0
  %6530 = vmatprep.subr.mxu0 0.0
  %6531 = vmatpush2.msra.mxu0 0.0
  %6532 = vmatprep.subr.mxu0 0.0
  %6533 = vmatpush2.msra.mxu0 0.0
  %6534 = vmatprep.subr.mxu0 0.0
  %6535 = vmatpush2.msra.mxu0 0.0
  %6536 = vmatprep.subr.mxu0 0.0
  %6537 = vmatpush2.msra.mxu0 0.0
  %6538 = vmatprep.subr.mxu0 0.0
  %6539 = vmatpush2.msra.mxu0 0.0
  %6540 = vmatprep.subr.mxu0 0.0
  %6541 = vmatpush2.msra.mxu0 0.0
  %6542 = vmatprep.subr.mxu0 0.0
  %6543 = vmatpush2.msra.mxu0 0.0
  %6544 = vmatprep.subr.mxu0 0.0
  %6545 = vmatpush2.msra.mxu0 0.0
  %6546 = vmatprep.subr.mxu0 0.0
  %6547 = vmatpush2.msra.mxu0 0.0
  %6548 = vmatprep.subr.mxu0 0.0
  %6549 = vmatpush2.msra.mxu0 0.0
  %6550 = vmatprep.subr.mxu0 0.0
  %6551 = vmatpush2.msra.mxu0 0.0
  %6552 = vmatprep.subr.mxu0 0.0
  %6553 = vmatpush2.msra.mxu0 0.0
  %6554 = vmatprep.subr.mxu0 0.0
  %6555 = vmatpush2.msra.mxu0 0.0
  %6556 = vmatprep.mubr.f32.mxu0 0.0
  %v6557 = vand.u32 %v6391, 4294901760
  %6558 = vmatmul.mubr.f32.gmra.mxu0 %v6557
  %v6559 = vpop.f32.mrf.mxu0
  %v6560 = vadd.f32 %v6469, %v6559
  %v6561 = vpop.f32.mrf.mxu0
  %6562 = vdwg.mxu0
  %6563 = vmatprep.subr.mxu0 0.0
  %6564 = vmatpush1.msra.mxu0 0.0
  %6565 = vmatprep.subr.mxu0 0.0
  %6566 = vmatpush1.msra.mxu0 0.0
  %6567 = vmatprep.subr.mxu0 0.0
  %6568 = vmatpush1.msra.mxu0 0.0
  %6569 = vmatprep.subr.mxu0 0.0
  %6570 = vmatpush1.msra.mxu0 0.0
  %6571 = vmatprep.subr.mxu0 0.0
  %6572 = vmatpush1.msra.mxu0 0.0
  %6573 = vmatprep.subr.mxu0 0.0
  %6574 = vmatpush1.msra.mxu0 0.0
  %6575 = vmatprep.subr.mxu0 0.0
  %6576 = vmatpush1.msra.mxu0 0.0
  %6577 = vmatprep.subr.mxu0 0.0
  %6578 = vmatpush1.msra.mxu0 0.0
  %6579 = vmatprep.subr.mxu0 0.0
  %6580 = vmatpush1.msra.mxu0 0.0
  %6581 = vmatprep.subr.mxu0 0.0
  %6582 = vmatpush1.msra.mxu0 0.0
  %6583 = vmatprep.subr.mxu0 0.0
  %6584 = vmatpush1.msra.mxu0 0.0
  %6585 = vmatprep.subr.mxu0 0.0
  %6586 = vmatpush1.msra.mxu0 0.0
  %6587 = vmatprep.subr.mxu0 0.0
  %v6588 = vand.u32 %v5040, 4294901760
  %v6589 = vsub.f32 %v5040, %v6588
  %6590 = vmatpush1.msra.mxu0 %v6589
  %6591 = vmatprep.subr.mxu0 0.0
  %v6592 = vand.u32 %v5039, 4294901760
  %v6593 = vsub.f32 %v5039, %v6592
  %6594 = vmatpush1.msra.mxu0 %v6593
  %6595 = vmatprep.subr.mxu0 0.0
  %v6596 = vand.u32 %v5038, 4294901760
  %v6597 = vsub.f32 %v5038, %v6596
  %6598 = vmatpush1.msra.mxu0 %v6597
  %6599 = vmatprep.subr.mxu0 0.0
  %v6600 = vand.u32 %v5037, 4294901760
  %v6601 = vsub.f32 %v5037, %v6600
  %6602 = vmatpush1.msra.mxu0 %v6601
  %6603 = vmatprep.subr.mxu0 0.0
  %6604 = vmatpush2.msra.mxu0 0.0
  %6605 = vmatprep.subr.mxu0 0.0
  %6606 = vmatpush2.msra.mxu0 0.0
  %6607 = vmatprep.subr.mxu0 0.0
  %6608 = vmatpush2.msra.mxu0 0.0
  %6609 = vmatprep.subr.mxu0 0.0
  %6610 = vmatpush2.msra.mxu0 0.0
  %6611 = vmatprep.subr.mxu0 0.0
  %6612 = vmatpush2.msra.mxu0 0.0
  %6613 = vmatprep.subr.mxu0 0.0
  %6614 = vmatpush2.msra.mxu0 0.0
  %6615 = vmatprep.subr.mxu0 0.0
  %6616 = vmatpush2.msra.mxu0 0.0
  %6617 = vmatprep.subr.mxu0 0.0
  %6618 = vmatpush2.msra.mxu0 0.0
  %6619 = vmatprep.subr.mxu0 0.0
  %6620 = vmatpush2.msra.mxu0 0.0
  %6621 = vmatprep.subr.mxu0 0.0
  %6622 = vmatpush2.msra.mxu0 0.0
  %6623 = vmatprep.subr.mxu0 0.0
  %6624 = vmatpush2.msra.mxu0 0.0
  %6625 = vmatprep.subr.mxu0 0.0
  %6626 = vmatpush2.msra.mxu0 0.0
  %6627 = vmatprep.subr.mxu0 0.0
  %6628 = vmatpush2.msra.mxu0 0.0
  %6629 = vmatprep.subr.mxu0 0.0
  %6630 = vmatpush2.msra.mxu0 0.0
  %6631 = vmatprep.subr.mxu0 0.0
  %6632 = vmatpush2.msra.mxu0 0.0
  %6633 = vmatprep.subr.mxu0 0.0
  %6634 = vmatpush2.msra.mxu0 0.0
  %6635 = vmatprep.mubr.f32.mxu0 0.0
  %v6636 = vand.u32 %v6391, 4294901760
  %v6637 = vsub.f32 %v6391, %v6636
  %6638 = vmatmul.mubr.f32.gmra.mxu0 %v6637
  %v6639 = vpop.f32.mrf.mxu0
  %v6640 = vadd.f32 %v6560, %v6639
  %v6641 = vpop.f32.mrf.mxu0
  %6642 = vdwg.mxu0
  %6643 = vmatprep.subr.mxu0 0.0
  %6644 = vmatpush1.msra.mxu0 0.0
  %6645 = vmatprep.subr.mxu0 0.0
  %6646 = vmatpush1.msra.mxu0 0.0
  %6647 = vmatprep.subr.mxu0 0.0
  %6648 = vmatpush1.msra.mxu0 0.0
  %6649 = vmatprep.subr.mxu0 0.0
  %6650 = vmatpush1.msra.mxu0 0.0
  %6651 = vmatprep.subr.mxu0 0.0
  %6652 = vmatpush1.msra.mxu0 0.0
  %6653 = vmatprep.subr.mxu0 0.0
  %6654 = vmatpush1.msra.mxu0 0.0
  %6655 = vmatprep.subr.mxu0 0.0
  %6656 = vmatpush1.msra.mxu0 0.0
  %6657 = vmatprep.subr.mxu0 0.0
  %6658 = vmatpush1.msra.mxu0 0.0
  %6659 = vmatprep.subr.mxu0 0.0
  %6660 = vmatpush1.msra.mxu0 0.0
  %6661 = vmatprep.subr.mxu0 0.0
  %6662 = vmatpush1.msra.mxu0 0.0
  %6663 = vmatprep.subr.mxu0 0.0
  %6664 = vmatpush1.msra.mxu0 0.0
  %6665 = vmatprep.subr.mxu0 0.0
  %6666 = vmatpush1.msra.mxu0 0.0
  %6667 = vmatprep.subr.mxu0 0.0
  %v6668 = vand.u32 %v5040, 4294901760
  %6669 = vmatpush1.msra.mxu0 %v6668
  %6670 = vmatprep.subr.mxu0 0.0
  %v6671 = vand.u32 %v5039, 4294901760
  %6672 = vmatpush1.msra.mxu0 %v6671
  %6673 = vmatprep.subr.mxu0 0.0
  %v6674 = vand.u32 %v5038, 4294901760
  %6675 = vmatpush1.msra.mxu0 %v6674
  %6676 = vmatprep.subr.mxu0 0.0
  %v6677 = vand.u32 %v5037, 4294901760
  %6678 = vmatpush1.msra.mxu0 %v6677
  %6679 = vmatprep.subr.mxu0 0.0
  %6680 = vmatpush2.msra.mxu0 0.0
  %6681 = vmatprep.subr.mxu0 0.0
  %6682 = vmatpush2.msra.mxu0 0.0
  %6683 = vmatprep.subr.mxu0 0.0
  %6684 = vmatpush2.msra.mxu0 0.0
  %6685 = vmatprep.subr.mxu0 0.0
  %6686 = vmatpush2.msra.mxu0 0.0
  %6687 = vmatprep.subr.mxu0 0.0
  %6688 = vmatpush2.msra.mxu0 0.0
  %6689 = vmatprep.subr.mxu0 0.0
  %6690 = vmatpush2.msra.mxu0 0.0
  %6691 = vmatprep.subr.mxu0 0.0
  %6692 = vmatpush2.msra.mxu0 0.0
  %6693 = vmatprep.subr.mxu0 0.0
  %6694 = vmatpush2.msra.mxu0 0.0
  %6695 = vmatprep.subr.mxu0 0.0
  %6696 = vmatpush2.msra.mxu0 0.0
  %6697 = vmatprep.subr.mxu0 0.0
  %6698 = vmatpush2.msra.mxu0 0.0
  %6699 = vmatprep.subr.mxu0 0.0
  %6700 = vmatpush2.msra.mxu0 0.0
  %6701 = vmatprep.subr.mxu0 0.0
  %6702 = vmatpush2.msra.mxu0 0.0
  %6703 = vmatprep.subr.mxu0 0.0
  %6704 = vmatpush2.msra.mxu0 0.0
  %6705 = vmatprep.subr.mxu0 0.0
  %6706 = vmatpush2.msra.mxu0 0.0
  %6707 = vmatprep.subr.mxu0 0.0
  %6708 = vmatpush2.msra.mxu0 0.0
  %6709 = vmatprep.subr.mxu0 0.0
  %6710 = vmatpush2.msra.mxu0 0.0
  %6711 = vmatprep.mubr.f32.mxu0 0.0
  %v6712 = vand.u32 %v6391, 4294901760
  %v6713 = vsub.f32 %v6391, %v6712
  %v6714 = vand.u32 %v6713, 4294901760
  %6715 = vmatmul.mubr.f32.gmra.mxu0 %v6714
  %v6716 = vpop.f32.mrf.mxu0
  %v6717 = vadd.f32 %v6640, %v6716
  %v6718 = vpop.f32.mrf.mxu0
  %6719 = vdwg.mxu0
  %6720 = vmatprep.subr.mxu0 0.0
  %6721 = vmatpush1.msra.mxu0 0.0
  %6722 = vmatprep.subr.mxu0 0.0
  %6723 = vmatpush1.msra.mxu0 0.0
  %6724 = vmatprep.subr.mxu0 0.0
  %6725 = vmatpush1.msra.mxu0 0.0
  %6726 = vmatprep.subr.mxu0 0.0
  %6727 = vmatpush1.msra.mxu0 0.0
  %6728 = vmatprep.subr.mxu0 0.0
  %6729 = vmatpush1.msra.mxu0 0.0
  %6730 = vmatprep.subr.mxu0 0.0
  %6731 = vmatpush1.msra.mxu0 0.0
  %6732 = vmatprep.subr.mxu0 0.0
  %6733 = vmatpush1.msra.mxu0 0.0
  %6734 = vmatprep.subr.mxu0 0.0
  %6735 = vmatpush1.msra.mxu0 0.0
  %6736 = vmatprep.subr.mxu0 0.0
  %6737 = vmatpush1.msra.mxu0 0.0
  %6738 = vmatprep.subr.mxu0 0.0
  %6739 = vmatpush1.msra.mxu0 0.0
  %6740 = vmatprep.subr.mxu0 0.0
  %6741 = vmatpush1.msra.mxu0 0.0
  %6742 = vmatprep.subr.mxu0 0.0
  %6743 = vmatpush1.msra.mxu0 0.0
  %6744 = vmatprep.subr.mxu0 0.0
  %v6745 = vand.u32 %v5040, 4294901760
  %v6746 = vsub.f32 %v5040, %v6745
  %v6747 = vand.u32 %v6746, 4294901760
  %6748 = vmatpush1.msra.mxu0 %v6747
  %6749 = vmatprep.subr.mxu0 0.0
  %v6750 = vand.u32 %v5039, 4294901760
  %v6751 = vsub.f32 %v5039, %v6750
  %v6752 = vand.u32 %v6751, 4294901760
  %6753 = vmatpush1.msra.mxu0 %v6752
  %6754 = vmatprep.subr.mxu0 0.0
  %v6755 = vand.u32 %v5038, 4294901760
  %v6756 = vsub.f32 %v5038, %v6755
  %v6757 = vand.u32 %v6756, 4294901760
  %6758 = vmatpush1.msra.mxu0 %v6757
  %6759 = vmatprep.subr.mxu0 0.0
  %v6760 = vand.u32 %v5037, 4294901760
  %v6761 = vsub.f32 %v5037, %v6760
  %v6762 = vand.u32 %v6761, 4294901760
  %6763 = vmatpush1.msra.mxu0 %v6762
  %6764 = vmatprep.subr.mxu0 0.0
  %6765 = vmatpush2.msra.mxu0 0.0
  %6766 = vmatprep.subr.mxu0 0.0
  %6767 = vmatpush2.msra.mxu0 0.0
  %6768 = vmatprep.subr.mxu0 0.0
  %6769 = vmatpush2.msra.mxu0 0.0
  %6770 = vmatprep.subr.mxu0 0.0
  %6771 = vmatpush2.msra.mxu0 0.0
  %6772 = vmatprep.subr.mxu0 0.0
  %6773 = vmatpush2.msra.mxu0 0.0
  %6774 = vmatprep.subr.mxu0 0.0
  %6775 = vmatpush2.msra.mxu0 0.0
  %6776 = vmatprep.subr.mxu0 0.0
  %6777 = vmatpush2.msra.mxu0 0.0
  %6778 = vmatprep.subr.mxu0 0.0
  %6779 = vmatpush2.msra.mxu0 0.0
  %6780 = vmatprep.subr.mxu0 0.0
  %6781 = vmatpush2.msra.mxu0 0.0
  %6782 = vmatprep.subr.mxu0 0.0
  %6783 = vmatpush2.msra.mxu0 0.0
  %6784 = vmatprep.subr.mxu0 0.0
  %6785 = vmatpush2.msra.mxu0 0.0
  %6786 = vmatprep.subr.mxu0 0.0
  %6787 = vmatpush2.msra.mxu0 0.0
  %6788 = vmatprep.subr.mxu0 0.0
  %6789 = vmatpush2.msra.mxu0 0.0
  %6790 = vmatprep.subr.mxu0 0.0
  %6791 = vmatpush2.msra.mxu0 0.0
  %6792 = vmatprep.subr.mxu0 0.0
  %6793 = vmatpush2.msra.mxu0 0.0
  %6794 = vmatprep.subr.mxu0 0.0
  %6795 = vmatpush2.msra.mxu0 0.0
  %6796 = vmatprep.mubr.f32.mxu0 0.0
  %v6797 = vand.u32 %v6391, 4294901760
  %6798 = vmatmul.mubr.f32.gmra.mxu0 %v6797
  %v6799 = vpop.f32.mrf.mxu0
  %v6800 = vadd.f32 %v6717, %v6799
  %v6801 = vpop.f32.mrf.mxu0
  %6802 = vdwg.mxu0
  %6803 = vmatprep.subr.mxu0 0.0
  %6804 = vmatpush1.msra.mxu0 0.0
  %6805 = vmatprep.subr.mxu0 0.0
  %6806 = vmatpush1.msra.mxu0 0.0
  %6807 = vmatprep.subr.mxu0 0.0
  %6808 = vmatpush1.msra.mxu0 0.0
  %6809 = vmatprep.subr.mxu0 0.0
  %6810 = vmatpush1.msra.mxu0 0.0
  %6811 = vmatprep.subr.mxu0 0.0
  %6812 = vmatpush1.msra.mxu0 0.0
  %6813 = vmatprep.subr.mxu0 0.0
  %6814 = vmatpush1.msra.mxu0 0.0
  %6815 = vmatprep.subr.mxu0 0.0
  %6816 = vmatpush1.msra.mxu0 0.0
  %6817 = vmatprep.subr.mxu0 0.0
  %6818 = vmatpush1.msra.mxu0 0.0
  %6819 = vmatprep.subr.mxu0 0.0
  %6820 = vmatpush1.msra.mxu0 0.0
  %6821 = vmatprep.subr.mxu0 0.0
  %6822 = vmatpush1.msra.mxu0 0.0
  %6823 = vmatprep.subr.mxu0 0.0
  %6824 = vmatpush1.msra.mxu0 0.0
  %6825 = vmatprep.subr.mxu0 0.0
  %6826 = vmatpush1.msra.mxu0 0.0
  %6827 = vmatprep.subr.mxu0 0.0
  %v6828 = vand.u32 %v5040, 4294901760
  %6829 = vmatpush1.msra.mxu0 %v6828
  %6830 = vmatprep.subr.mxu0 0.0
  %v6831 = vand.u32 %v5039, 4294901760
  %6832 = vmatpush1.msra.mxu0 %v6831
  %6833 = vmatprep.subr.mxu0 0.0
  %v6834 = vand.u32 %v5038, 4294901760
  %6835 = vmatpush1.msra.mxu0 %v6834
  %6836 = vmatprep.subr.mxu0 0.0
  %v6837 = vand.u32 %v5037, 4294901760
  %6838 = vmatpush1.msra.mxu0 %v6837
  %6839 = vmatprep.subr.mxu0 0.0
  %6840 = vmatpush2.msra.mxu0 0.0
  %6841 = vmatprep.subr.mxu0 0.0
  %6842 = vmatpush2.msra.mxu0 0.0
  %6843 = vmatprep.subr.mxu0 0.0
  %6844 = vmatpush2.msra.mxu0 0.0
  %6845 = vmatprep.subr.mxu0 0.0
  %6846 = vmatpush2.msra.mxu0 0.0
  %6847 = vmatprep.subr.mxu0 0.0
  %6848 = vmatpush2.msra.mxu0 0.0
  %6849 = vmatprep.subr.mxu0 0.0
  %6850 = vmatpush2.msra.mxu0 0.0
  %6851 = vmatprep.subr.mxu0 0.0
  %6852 = vmatpush2.msra.mxu0 0.0
  %6853 = vmatprep.subr.mxu0 0.0
  %6854 = vmatpush2.msra.mxu0 0.0
  %6855 = vmatprep.subr.mxu0 0.0
  %6856 = vmatpush2.msra.mxu0 0.0
  %6857 = vmatprep.subr.mxu0 0.0
  %6858 = vmatpush2.msra.mxu0 0.0
  %6859 = vmatprep.subr.mxu0 0.0
  %6860 = vmatpush2.msra.mxu0 0.0
  %6861 = vmatprep.subr.mxu0 0.0
  %6862 = vmatpush2.msra.mxu0 0.0
  %6863 = vmatprep.subr.mxu0 0.0
  %6864 = vmatpush2.msra.mxu0 0.0
  %6865 = vmatprep.subr.mxu0 0.0
  %6866 = vmatpush2.msra.mxu0 0.0
  %6867 = vmatprep.subr.mxu0 0.0
  %6868 = vmatpush2.msra.mxu0 0.0
  %6869 = vmatprep.subr.mxu0 0.0
  %6870 = vmatpush2.msra.mxu0 0.0
  %6871 = vmatprep.mubr.f32.mxu0 0.0
  %v6872 = vand.u32 %v6391, 4294901760
  %6873 = vmatmul.mubr.f32.gmra.mxu0 %v6872
  %v6874 = vpop.f32.mrf.mxu0
  %v6875 = vadd.f32 %v6800, %v6874
  %v6876 = vpop.f32.mrf.mxu0
  %6877 = vdwg.mxu0
  %v6878 = vadd.f32 %v6390, %v6875
  %v6879 = vsub.f32 0.0, %v6878
  %v6880 = vmul.f32 %v6879, 1.442695
  %v6881 = vpow.pop %v6880
  %v6882 = vadd.f32 %v6881, 1.0
  %v6883 = vrcp.pop %v6882
  %v6884 = vmul.f32 1.0, %v6883
  %v6885 = vtanh.pop %v6878
  %v6886 = vmul.f32 %v6884, %v6378
  %6888 = vrot.lane.b32.xlu0 %v6885, 64
  %v6889 = vpop.permute.xlu0 %6888
  %v6891 = vmul.f32 %v6884, %v6889
  %6893 = vrot.lane.b32.xlu0 %v6891, 32
  %v6894 = vpop.permute.xlu0 %6893
  %v6896 = vadd.f32 %v6886, %v6894
  %v6897 = vtanh.pop %v6896
  %6899 = vrot.lane.b32.xlu0 %v6897, 64
  %v6900 = vpop.permute.xlu0 %6899
  %v6902 = vmul.f32 %v6884, %v6900
  %6904 = vrot.lane.b32.xlu0 %v6902, 32
  %v6905 = vpop.permute.xlu0 %6904
  %6907 = vst.msk [vmem:[%s1911] sm:$0xff] %vm55, %v6905
  %v6908 = vld [vmem:[%s1913] sm:$0xff]
  %v6909 = vsel %vm55, %v6905, 0
  %6911 = vmatprep.subr.mxu0 0.0
  %6912 = vmatpush1.msra.mxu0 0.0
  %6913 = vmatprep.subr.mxu0 0.0
  %6914 = vmatpush1.msra.mxu0 0.0
  %6915 = vmatprep.subr.mxu0 0.0
  %6916 = vmatpush1.msra.mxu0 0.0
  %6917 = vmatprep.subr.mxu0 0.0
  %6918 = vmatpush1.msra.mxu0 0.0
  %6919 = vmatprep.subr.mxu0 0.0
  %6920 = vmatpush1.msra.mxu0 0.0
  %6921 = vmatprep.subr.mxu0 0.0
  %6922 = vmatpush1.msra.mxu0 0.0
  %6923 = vmatprep.subr.mxu0 0.0
  %6924 = vmatpush1.msra.mxu0 0.0
  %6925 = vmatprep.subr.mxu0 0.0
  %6926 = vmatpush1.msra.mxu0 0.0
  %6927 = vmatprep.subr.mxu0 0.0
  %6928 = vmatpush1.msra.mxu0 0.0
  %6929 = vmatprep.subr.mxu0 0.0
  %6930 = vmatpush1.msra.mxu0 0.0
  %6931 = vmatprep.subr.mxu0 0.0
  %6932 = vmatpush1.msra.mxu0 0.0
  %6933 = vmatprep.subr.mxu0 0.0
  %6934 = vmatpush1.msra.mxu0 0.0
  %6935 = vmatprep.subr.mxu0 0.0
  %v6936 = vand.u32 %v5040, 4294901760
  %6937 = vmatpush1.msra.mxu0 %v6936
  %6938 = vmatprep.subr.mxu0 0.0
  %v6939 = vand.u32 %v5039, 4294901760
  %6940 = vmatpush1.msra.mxu0 %v6939
  %6941 = vmatprep.subr.mxu0 0.0
  %v6942 = vand.u32 %v5038, 4294901760
  %6943 = vmatpush1.msra.mxu0 %v6942
  %6944 = vmatprep.subr.mxu0 0.0
  %v6945 = vand.u32 %v5037, 4294901760
  %6946 = vmatpush1.msra.mxu0 %v6945
  %6947 = vmatprep.subr.mxu0 0.0
  %6948 = vmatpush2.msra.mxu0 0.0
  %6949 = vmatprep.subr.mxu0 0.0
  %6950 = vmatpush2.msra.mxu0 0.0
  %6951 = vmatprep.subr.mxu0 0.0
  %6952 = vmatpush2.msra.mxu0 0.0
  %6953 = vmatprep.subr.mxu0 0.0
  %6954 = vmatpush2.msra.mxu0 0.0
  %6955 = vmatprep.subr.mxu0 0.0
  %6956 = vmatpush2.msra.mxu0 0.0
  %6957 = vmatprep.subr.mxu0 0.0
  %6958 = vmatpush2.msra.mxu0 0.0
  %6959 = vmatprep.subr.mxu0 0.0
  %6960 = vmatpush2.msra.mxu0 0.0
  %6961 = vmatprep.subr.mxu0 0.0
  %6962 = vmatpush2.msra.mxu0 0.0
  %6963 = vmatprep.subr.mxu0 0.0
  %6964 = vmatpush2.msra.mxu0 0.0
  %6965 = vmatprep.subr.mxu0 0.0
  %6966 = vmatpush2.msra.mxu0 0.0
  %6967 = vmatprep.subr.mxu0 0.0
  %6968 = vmatpush2.msra.mxu0 0.0
  %6969 = vmatprep.subr.mxu0 0.0
  %6970 = vmatpush2.msra.mxu0 0.0
  %6971 = vmatprep.subr.mxu0 0.0
  %6972 = vmatpush2.msra.mxu0 0.0
  %6973 = vmatprep.subr.mxu0 0.0
  %6974 = vmatpush2.msra.mxu0 0.0
  %6975 = vmatprep.subr.mxu0 0.0
  %6976 = vmatpush2.msra.mxu0 0.0
  %6977 = vmatprep.subr.mxu0 0.0
  %6978 = vmatpush2.msra.mxu0 0.0
  %6979 = vmatprep.mubr.f32.mxu0 0.0
  %v6980 = vand.u32 %v6909, 4294901760
  %v6981 = vsub.f32 %v6909, %v6980
  %v6982 = vand.u32 %v6981, 4294901760
  %v6983 = vsub.f32 %v6981, %v6982
  %v6984 = vand.u32 %v6983, 4294901760
  %6985 = vmatmul.mubr.f32.gmra.mxu0 %v6984
  %v6986 = vpop.f32.mrf.mxu0
  %v6987 = vadd.f32 0.0, %v6986
  %v6988 = vpop.f32.mrf.mxu0
  %6989 = vdwg.mxu0
  %6990 = vmatprep.subr.mxu0 0.0
  %6991 = vmatpush1.msra.mxu0 0.0
  %6992 = vmatprep.subr.mxu0 0.0
  %6993 = vmatpush1.msra.mxu0 0.0
  %6994 = vmatprep.subr.mxu0 0.0
  %6995 = vmatpush1.msra.mxu0 0.0
  %6996 = vmatprep.subr.mxu0 0.0
  %6997 = vmatpush1.msra.mxu0 0.0
  %6998 = vmatprep.subr.mxu0 0.0
  %6999 = vmatpush1.msra.mxu0 0.0
  %7000 = vmatprep.subr.mxu0 0.0
  %7001 = vmatpush1.msra.mxu0 0.0
  %7002 = vmatprep.subr.mxu0 0.0
  %7003 = vmatpush1.msra.mxu0 0.0
  %7004 = vmatprep.subr.mxu0 0.0
  %7005 = vmatpush1.msra.mxu0 0.0
  %7006 = vmatprep.subr.mxu0 0.0
  %7007 = vmatpush1.msra.mxu0 0.0
  %7008 = vmatprep.subr.mxu0 0.0
  %7009 = vmatpush1.msra.mxu0 0.0
  %7010 = vmatprep.subr.mxu0 0.0
  %7011 = vmatpush1.msra.mxu0 0.0
  %7012 = vmatprep.subr.mxu0 0.0
  %7013 = vmatpush1.msra.mxu0 0.0
  %7014 = vmatprep.subr.mxu0 0.0
  %v7015 = vand.u32 %v5040, 4294901760
  %v7016 = vsub.f32 %v5040, %v7015
  %v7017 = vand.u32 %v7016, 4294901760
  %v7018 = vsub.f32 %v7016, %v7017
  %v7019 = vand.u32 %v7018, 4294901760
  %7020 = vmatpush1.msra.mxu0 %v7019
  %7021 = vmatprep.subr.mxu0 0.0
  %v7022 = vand.u32 %v5039, 4294901760
  %v7023 = vsub.f32 %v5039, %v7022
  %v7024 = vand.u32 %v7023, 4294901760
  %v7025 = vsub.f32 %v7023, %v7024
  %v7026 = vand.u32 %v7025, 4294901760
  %7027 = vmatpush1.msra.mxu0 %v7026
  %7028 = vmatprep.subr.mxu0 0.0
  %v7029 = vand.u32 %v5038, 4294901760
  %v7030 = vsub.f32 %v5038, %v7029
  %v7031 = vand.u32 %v7030, 4294901760
  %v7032 = vsub.f32 %v7030, %v7031
  %v7033 = vand.u32 %v7032, 4294901760
  %7034 = vmatpush1.msra.mxu0 %v7033
  %7035 = vmatprep.subr.mxu0 0.0
  %v7036 = vand.u32 %v5037, 4294901760
  %v7037 = vsub.f32 %v5037, %v7036
  %v7038 = vand.u32 %v7037, 4294901760
  %v7039 = vsub.f32 %v7037, %v7038
  %v7040 = vand.u32 %v7039, 4294901760
  %7041 = vmatpush1.msra.mxu0 %v7040
  %7042 = vmatprep.subr.mxu0 0.0
  %7043 = vmatpush2.msra.mxu0 0.0
  %7044 = vmatprep.subr.mxu0 0.0
  %7045 = vmatpush2.msra.mxu0 0.0
  %7046 = vmatprep.subr.mxu0 0.0
  %7047 = vmatpush2.msra.mxu0 0.0
  %7048 = vmatprep.subr.mxu0 0.0
  %7049 = vmatpush2.msra.mxu0 0.0
  %7050 = vmatprep.subr.mxu0 0.0
  %7051 = vmatpush2.msra.mxu0 0.0
  %7052 = vmatprep.subr.mxu0 0.0
  %7053 = vmatpush2.msra.mxu0 0.0
  %7054 = vmatprep.subr.mxu0 0.0
  %7055 = vmatpush2.msra.mxu0 0.0
  %7056 = vmatprep.subr.mxu0 0.0
  %7057 = vmatpush2.msra.mxu0 0.0
  %7058 = vmatprep.subr.mxu0 0.0
  %7059 = vmatpush2.msra.mxu0 0.0
  %7060 = vmatprep.subr.mxu0 0.0
  %7061 = vmatpush2.msra.mxu0 0.0
  %7062 = vmatprep.subr.mxu0 0.0
  %7063 = vmatpush2.msra.mxu0 0.0
  %7064 = vmatprep.subr.mxu0 0.0
  %7065 = vmatpush2.msra.mxu0 0.0
  %7066 = vmatprep.subr.mxu0 0.0
  %7067 = vmatpush2.msra.mxu0 0.0
  %7068 = vmatprep.subr.mxu0 0.0
  %7069 = vmatpush2.msra.mxu0 0.0
  %7070 = vmatprep.subr.mxu0 0.0
  %7071 = vmatpush2.msra.mxu0 0.0
  %7072 = vmatprep.subr.mxu0 0.0
  %7073 = vmatpush2.msra.mxu0 0.0
  %7074 = vmatprep.mubr.f32.mxu0 0.0
  %v7075 = vand.u32 %v6909, 4294901760
  %7076 = vmatmul.mubr.f32.gmra.mxu0 %v7075
  %v7077 = vpop.f32.mrf.mxu0
  %v7078 = vadd.f32 %v6987, %v7077
  %v7079 = vpop.f32.mrf.mxu0
  %7080 = vdwg.mxu0
  %7081 = vmatprep.subr.mxu0 0.0
  %7082 = vmatpush1.msra.mxu0 0.0
  %7083 = vmatprep.subr.mxu0 0.0
  %7084 = vmatpush1.msra.mxu0 0.0
  %7085 = vmatprep.subr.mxu0 0.0
  %7086 = vmatpush1.msra.mxu0 0.0
  %7087 = vmatprep.subr.mxu0 0.0
  %7088 = vmatpush1.msra.mxu0 0.0
  %7089 = vmatprep.subr.mxu0 0.0
  %7090 = vmatpush1.msra.mxu0 0.0
  %7091 = vmatprep.subr.mxu0 0.0
  %7092 = vmatpush1.msra.mxu0 0.0
  %7093 = vmatprep.subr.mxu0 0.0
  %7094 = vmatpush1.msra.mxu0 0.0
  %7095 = vmatprep.subr.mxu0 0.0
  %7096 = vmatpush1.msra.mxu0 0.0
  %7097 = vmatprep.subr.mxu0 0.0
  %7098 = vmatpush1.msra.mxu0 0.0
  %7099 = vmatprep.subr.mxu0 0.0
  %7100 = vmatpush1.msra.mxu0 0.0
  %7101 = vmatprep.subr.mxu0 0.0
  %7102 = vmatpush1.msra.mxu0 0.0
  %7103 = vmatprep.subr.mxu0 0.0
  %7104 = vmatpush1.msra.mxu0 0.0
  %7105 = vmatprep.subr.mxu0 0.0
  %v7106 = vand.u32 %v5040, 4294901760
  %v7107 = vsub.f32 %v5040, %v7106
  %7108 = vmatpush1.msra.mxu0 %v7107
  %7109 = vmatprep.subr.mxu0 0.0
  %v7110 = vand.u32 %v5039, 4294901760
  %v7111 = vsub.f32 %v5039, %v7110
  %7112 = vmatpush1.msra.mxu0 %v7111
  %7113 = vmatprep.subr.mxu0 0.0
  %v7114 = vand.u32 %v5038, 4294901760
  %v7115 = vsub.f32 %v5038, %v7114
  %7116 = vmatpush1.msra.mxu0 %v7115
  %7117 = vmatprep.subr.mxu0 0.0
  %v7118 = vand.u32 %v5037, 4294901760
  %v7119 = vsub.f32 %v5037, %v7118
  %7120 = vmatpush1.msra.mxu0 %v7119
  %7121 = vmatprep.subr.mxu0 0.0
  %7122 = vmatpush2.msra.mxu0 0.0
  %7123 = vmatprep.subr.mxu0 0.0
  %7124 = vmatpush2.msra.mxu0 0.0
  %7125 = vmatprep.subr.mxu0 0.0
  %7126 = vmatpush2.msra.mxu0 0.0
  %7127 = vmatprep.subr.mxu0 0.0
  %7128 = vmatpush2.msra.mxu0 0.0
  %7129 = vmatprep.subr.mxu0 0.0
  %7130 = vmatpush2.msra.mxu0 0.0
  %7131 = vmatprep.subr.mxu0 0.0
  %7132 = vmatpush2.msra.mxu0 0.0
  %7133 = vmatprep.subr.mxu0 0.0
  %7134 = vmatpush2.msra.mxu0 0.0
  %7135 = vmatprep.subr.mxu0 0.0
  %7136 = vmatpush2.msra.mxu0 0.0
  %7137 = vmatprep.subr.mxu0 0.0
  %7138 = vmatpush2.msra.mxu0 0.0
  %7139 = vmatprep.subr.mxu0 0.0
  %7140 = vmatpush2.msra.mxu0 0.0
  %7141 = vmatprep.subr.mxu0 0.0
  %7142 = vmatpush2.msra.mxu0 0.0
  %7143 = vmatprep.subr.mxu0 0.0
  %7144 = vmatpush2.msra.mxu0 0.0
  %7145 = vmatprep.subr.mxu0 0.0
  %7146 = vmatpush2.msra.mxu0 0.0
  %7147 = vmatprep.subr.mxu0 0.0
  %7148 = vmatpush2.msra.mxu0 0.0
  %7149 = vmatprep.subr.mxu0 0.0
  %7150 = vmatpush2.msra.mxu0 0.0
  %7151 = vmatprep.subr.mxu0 0.0
  %7152 = vmatpush2.msra.mxu0 0.0
  %7153 = vmatprep.mubr.f32.mxu0 0.0
  %v7154 = vand.u32 %v6909, 4294901760
  %v7155 = vsub.f32 %v6909, %v7154
  %7156 = vmatmul.mubr.f32.gmra.mxu0 %v7155
  %v7157 = vpop.f32.mrf.mxu0
  %v7158 = vadd.f32 %v7078, %v7157
  %v7159 = vpop.f32.mrf.mxu0
  %7160 = vdwg.mxu0
  %7161 = vmatprep.subr.mxu0 0.0
  %7162 = vmatpush1.msra.mxu0 0.0
  %7163 = vmatprep.subr.mxu0 0.0
  %7164 = vmatpush1.msra.mxu0 0.0
  %7165 = vmatprep.subr.mxu0 0.0
  %7166 = vmatpush1.msra.mxu0 0.0
  %7167 = vmatprep.subr.mxu0 0.0
  %7168 = vmatpush1.msra.mxu0 0.0
  %7169 = vmatprep.subr.mxu0 0.0
  %7170 = vmatpush1.msra.mxu0 0.0
  %7171 = vmatprep.subr.mxu0 0.0
  %7172 = vmatpush1.msra.mxu0 0.0
  %7173 = vmatprep.subr.mxu0 0.0
  %7174 = vmatpush1.msra.mxu0 0.0
  %7175 = vmatprep.subr.mxu0 0.0
  %7176 = vmatpush1.msra.mxu0 0.0
  %7177 = vmatprep.subr.mxu0 0.0
  %7178 = vmatpush1.msra.mxu0 0.0
  %7179 = vmatprep.subr.mxu0 0.0
  %7180 = vmatpush1.msra.mxu0 0.0
  %7181 = vmatprep.subr.mxu0 0.0
  %7182 = vmatpush1.msra.mxu0 0.0
  %7183 = vmatprep.subr.mxu0 0.0
  %7184 = vmatpush1.msra.mxu0 0.0
  %7185 = vmatprep.subr.mxu0 0.0
  %v7186 = vand.u32 %v5040, 4294901760
  %7187 = vmatpush1.msra.mxu0 %v7186
  %7188 = vmatprep.subr.mxu0 0.0
  %v7189 = vand.u32 %v5039, 4294901760
  %7190 = vmatpush1.msra.mxu0 %v7189
  %7191 = vmatprep.subr.mxu0 0.0
  %v7192 = vand.u32 %v5038, 4294901760
  %7193 = vmatpush1.msra.mxu0 %v7192
  %7194 = vmatprep.subr.mxu0 0.0
  %v7195 = vand.u32 %v5037, 4294901760
  %7196 = vmatpush1.msra.mxu0 %v7195
  %7197 = vmatprep.subr.mxu0 0.0
  %7198 = vmatpush2.msra.mxu0 0.0
  %7199 = vmatprep.subr.mxu0 0.0
  %7200 = vmatpush2.msra.mxu0 0.0
  %7201 = vmatprep.subr.mxu0 0.0
  %7202 = vmatpush2.msra.mxu0 0.0
  %7203 = vmatprep.subr.mxu0 0.0
  %7204 = vmatpush2.msra.mxu0 0.0
  %7205 = vmatprep.subr.mxu0 0.0
  %7206 = vmatpush2.msra.mxu0 0.0
  %7207 = vmatprep.subr.mxu0 0.0
  %7208 = vmatpush2.msra.mxu0 0.0
  %7209 = vmatprep.subr.mxu0 0.0
  %7210 = vmatpush2.msra.mxu0 0.0
  %7211 = vmatprep.subr.mxu0 0.0
  %7212 = vmatpush2.msra.mxu0 0.0
  %7213 = vmatprep.subr.mxu0 0.0
  %7214 = vmatpush2.msra.mxu0 0.0
  %7215 = vmatprep.subr.mxu0 0.0
  %7216 = vmatpush2.msra.mxu0 0.0
  %7217 = vmatprep.subr.mxu0 0.0
  %7218 = vmatpush2.msra.mxu0 0.0
  %7219 = vmatprep.subr.mxu0 0.0
  %7220 = vmatpush2.msra.mxu0 0.0
  %7221 = vmatprep.subr.mxu0 0.0
  %7222 = vmatpush2.msra.mxu0 0.0
  %7223 = vmatprep.subr.mxu0 0.0
  %7224 = vmatpush2.msra.mxu0 0.0
  %7225 = vmatprep.subr.mxu0 0.0
  %7226 = vmatpush2.msra.mxu0 0.0
  %7227 = vmatprep.subr.mxu0 0.0
  %7228 = vmatpush2.msra.mxu0 0.0
  %7229 = vmatprep.mubr.f32.mxu0 0.0
  %v7230 = vand.u32 %v6909, 4294901760
  %v7231 = vsub.f32 %v6909, %v7230
  %v7232 = vand.u32 %v7231, 4294901760
  %7233 = vmatmul.mubr.f32.gmra.mxu0 %v7232
  %v7234 = vpop.f32.mrf.mxu0
  %v7235 = vadd.f32 %v7158, %v7234
  %v7236 = vpop.f32.mrf.mxu0
  %7237 = vdwg.mxu0
  %7238 = vmatprep.subr.mxu0 0.0
  %7239 = vmatpush1.msra.mxu0 0.0
  %7240 = vmatprep.subr.mxu0 0.0
  %7241 = vmatpush1.msra.mxu0 0.0
  %7242 = vmatprep.subr.mxu0 0.0
  %7243 = vmatpush1.msra.mxu0 0.0
  %7244 = vmatprep.subr.mxu0 0.0
  %7245 = vmatpush1.msra.mxu0 0.0
  %7246 = vmatprep.subr.mxu0 0.0
  %7247 = vmatpush1.msra.mxu0 0.0
  %7248 = vmatprep.subr.mxu0 0.0
  %7249 = vmatpush1.msra.mxu0 0.0
  %7250 = vmatprep.subr.mxu0 0.0
  %7251 = vmatpush1.msra.mxu0 0.0
  %7252 = vmatprep.subr.mxu0 0.0
  %7253 = vmatpush1.msra.mxu0 0.0
  %7254 = vmatprep.subr.mxu0 0.0
  %7255 = vmatpush1.msra.mxu0 0.0
  %7256 = vmatprep.subr.mxu0 0.0
  %7257 = vmatpush1.msra.mxu0 0.0
  %7258 = vmatprep.subr.mxu0 0.0
  %7259 = vmatpush1.msra.mxu0 0.0
  %7260 = vmatprep.subr.mxu0 0.0
  %7261 = vmatpush1.msra.mxu0 0.0
  %7262 = vmatprep.subr.mxu0 0.0
  %v7263 = vand.u32 %v5040, 4294901760
  %v7264 = vsub.f32 %v5040, %v7263
  %v7265 = vand.u32 %v7264, 4294901760
  %7266 = vmatpush1.msra.mxu0 %v7265
  %7267 = vmatprep.subr.mxu0 0.0
  %v7268 = vand.u32 %v5039, 4294901760
  %v7269 = vsub.f32 %v5039, %v7268
  %v7270 = vand.u32 %v7269, 4294901760
  %7271 = vmatpush1.msra.mxu0 %v7270
  %7272 = vmatprep.subr.mxu0 0.0
  %v7273 = vand.u32 %v5038, 4294901760
  %v7274 = vsub.f32 %v5038, %v7273
  %v7275 = vand.u32 %v7274, 4294901760
  %7276 = vmatpush1.msra.mxu0 %v7275
  %7277 = vmatprep.subr.mxu0 0.0
  %v7278 = vand.u32 %v5037, 4294901760
  %v7279 = vsub.f32 %v5037, %v7278
  %v7280 = vand.u32 %v7279, 4294901760
  %7281 = vmatpush1.msra.mxu0 %v7280
  %7282 = vmatprep.subr.mxu0 0.0
  %7283 = vmatpush2.msra.mxu0 0.0
  %7284 = vmatprep.subr.mxu0 0.0
  %7285 = vmatpush2.msra.mxu0 0.0
  %7286 = vmatprep.subr.mxu0 0.0
  %7287 = vmatpush2.msra.mxu0 0.0
  %7288 = vmatprep.subr.mxu0 0.0
  %7289 = vmatpush2.msra.mxu0 0.0
  %7290 = vmatprep.subr.mxu0 0.0
  %7291 = vmatpush2.msra.mxu0 0.0
  %7292 = vmatprep.subr.mxu0 0.0
  %7293 = vmatpush2.msra.mxu0 0.0
  %7294 = vmatprep.subr.mxu0 0.0
  %7295 = vmatpush2.msra.mxu0 0.0
  %7296 = vmatprep.subr.mxu0 0.0
  %7297 = vmatpush2.msra.mxu0 0.0
  %7298 = vmatprep.subr.mxu0 0.0
  %7299 = vmatpush2.msra.mxu0 0.0
  %7300 = vmatprep.subr.mxu0 0.0
  %7301 = vmatpush2.msra.mxu0 0.0
  %7302 = vmatprep.subr.mxu0 0.0
  %7303 = vmatpush2.msra.mxu0 0.0
  %7304 = vmatprep.subr.mxu0 0.0
  %7305 = vmatpush2.msra.mxu0 0.0
  %7306 = vmatprep.subr.mxu0 0.0
  %7307 = vmatpush2.msra.mxu0 0.0
  %7308 = vmatprep.subr.mxu0 0.0
  %7309 = vmatpush2.msra.mxu0 0.0
  %7310 = vmatprep.subr.mxu0 0.0
  %7311 = vmatpush2.msra.mxu0 0.0
  %7312 = vmatprep.subr.mxu0 0.0
  %7313 = vmatpush2.msra.mxu0 0.0
  %7314 = vmatprep.mubr.f32.mxu0 0.0
  %v7315 = vand.u32 %v6909, 4294901760
  %7316 = vmatmul.mubr.f32.gmra.mxu0 %v7315
  %v7317 = vpop.f32.mrf.mxu0
  %v7318 = vadd.f32 %v7235, %v7317
  %v7319 = vpop.f32.mrf.mxu0
  %7320 = vdwg.mxu0
  %7321 = vmatprep.subr.mxu0 0.0
  %7322 = vmatpush1.msra.mxu0 0.0
  %7323 = vmatprep.subr.mxu0 0.0
  %7324 = vmatpush1.msra.mxu0 0.0
  %7325 = vmatprep.subr.mxu0 0.0
  %7326 = vmatpush1.msra.mxu0 0.0
  %7327 = vmatprep.subr.mxu0 0.0
  %7328 = vmatpush1.msra.mxu0 0.0
  %7329 = vmatprep.subr.mxu0 0.0
  %7330 = vmatpush1.msra.mxu0 0.0
  %7331 = vmatprep.subr.mxu0 0.0
  %7332 = vmatpush1.msra.mxu0 0.0
  %7333 = vmatprep.subr.mxu0 0.0
  %7334 = vmatpush1.msra.mxu0 0.0
  %7335 = vmatprep.subr.mxu0 0.0
  %7336 = vmatpush1.msra.mxu0 0.0
  %7337 = vmatprep.subr.mxu0 0.0
  %7338 = vmatpush1.msra.mxu0 0.0
  %7339 = vmatprep.subr.mxu0 0.0
  %7340 = vmatpush1.msra.mxu0 0.0
  %7341 = vmatprep.subr.mxu0 0.0
  %7342 = vmatpush1.msra.mxu0 0.0
  %7343 = vmatprep.subr.mxu0 0.0
  %7344 = vmatpush1.msra.mxu0 0.0
  %7345 = vmatprep.subr.mxu0 0.0
  %v7346 = vand.u32 %v5040, 4294901760
  %7347 = vmatpush1.msra.mxu0 %v7346
  %7348 = vmatprep.subr.mxu0 0.0
  %v7349 = vand.u32 %v5039, 4294901760
  %7350 = vmatpush1.msra.mxu0 %v7349
  %7351 = vmatprep.subr.mxu0 0.0
  %v7352 = vand.u32 %v5038, 4294901760
  %7353 = vmatpush1.msra.mxu0 %v7352
  %7354 = vmatprep.subr.mxu0 0.0
  %v7355 = vand.u32 %v5037, 4294901760
  %7356 = vmatpush1.msra.mxu0 %v7355
  %7357 = vmatprep.subr.mxu0 0.0
  %7358 = vmatpush2.msra.mxu0 0.0
  %7359 = vmatprep.subr.mxu0 0.0
  %7360 = vmatpush2.msra.mxu0 0.0
  %7361 = vmatprep.subr.mxu0 0.0
  %7362 = vmatpush2.msra.mxu0 0.0
  %7363 = vmatprep.subr.mxu0 0.0
  %7364 = vmatpush2.msra.mxu0 0.0
  %7365 = vmatprep.subr.mxu0 0.0
  %7366 = vmatpush2.msra.mxu0 0.0
  %7367 = vmatprep.subr.mxu0 0.0
  %7368 = vmatpush2.msra.mxu0 0.0
  %7369 = vmatprep.subr.mxu0 0.0
  %7370 = vmatpush2.msra.mxu0 0.0
  %7371 = vmatprep.subr.mxu0 0.0
  %7372 = vmatpush2.msra.mxu0 0.0
  %7373 = vmatprep.subr.mxu0 0.0
  %7374 = vmatpush2.msra.mxu0 0.0
  %7375 = vmatprep.subr.mxu0 0.0
  %7376 = vmatpush2.msra.mxu0 0.0
  %7377 = vmatprep.subr.mxu0 0.0
  %7378 = vmatpush2.msra.mxu0 0.0
  %7379 = vmatprep.subr.mxu0 0.0
  %7380 = vmatpush2.msra.mxu0 0.0
  %7381 = vmatprep.subr.mxu0 0.0
  %7382 = vmatpush2.msra.mxu0 0.0
  %7383 = vmatprep.subr.mxu0 0.0
  %7384 = vmatpush2.msra.mxu0 0.0
  %7385 = vmatprep.subr.mxu0 0.0
  %7386 = vmatpush2.msra.mxu0 0.0
  %7387 = vmatprep.subr.mxu0 0.0
  %7388 = vmatpush2.msra.mxu0 0.0
  %7389 = vmatprep.mubr.f32.mxu0 0.0
  %v7390 = vand.u32 %v6909, 4294901760
  %7391 = vmatmul.mubr.f32.gmra.mxu0 %v7390
  %v7392 = vpop.f32.mrf.mxu0
  %v7393 = vadd.f32 %v7318, %v7392
  %v7394 = vpop.f32.mrf.mxu0
  %7395 = vdwg.mxu0
  %v7396 = vadd.f32 %v6908, %v7393
  %v7397 = vsub.f32 0.0, %v7396
  %v7398 = vmul.f32 %v7397, 1.442695
  %v7399 = vpow.pop %v7398
  %v7400 = vadd.f32 %v7399, 1.0
  %v7401 = vrcp.pop %v7400
  %v7402 = vmul.f32 1.0, %v7401
  %v7403 = vtanh.pop %v7396
  %v7404 = vmul.f32 %v7402, %v6896
  %7406 = vrot.lane.b32.xlu0 %v7403, 64
  %v7407 = vpop.permute.xlu0 %7406
  %v7409 = vmul.f32 %v7402, %v7407
  %7411 = vrot.lane.b32.xlu0 %v7409, 32
  %v7412 = vpop.permute.xlu0 %7411
  %v7414 = vadd.f32 %v7404, %v7412
  %v7415 = vtanh.pop %v7414
  %7417 = vrot.lane.b32.xlu0 %v7415, 64
  %v7418 = vpop.permute.xlu0 %7417
  %v7420 = vmul.f32 %v7402, %v7418
  %7422 = vrot.lane.b32.xlu0 %v7420, 32
  %v7423 = vpop.permute.xlu0 %7422
  %7425 = vst.msk [vmem:[%s2431] sm:$0xff] %vm55, %v7423
  %v7426 = vld [vmem:[%s2433] sm:$0xff]
  %v7427 = vsel %vm55, %v7423, 0
  %7429 = vmatprep.subr.mxu0 0.0
  %7430 = vmatpush1.msra.mxu0 0.0
  %7431 = vmatprep.subr.mxu0 0.0
  %7432 = vmatpush1.msra.mxu0 0.0
  %7433 = vmatprep.subr.mxu0 0.0
  %7434 = vmatpush1.msra.mxu0 0.0
  %7435 = vmatprep.subr.mxu0 0.0
  %7436 = vmatpush1.msra.mxu0 0.0
  %7437 = vmatprep.subr.mxu0 0.0
  %7438 = vmatpush1.msra.mxu0 0.0
  %7439 = vmatprep.subr.mxu0 0.0
  %7440 = vmatpush1.msra.mxu0 0.0
  %7441 = vmatprep.subr.mxu0 0.0
  %7442 = vmatpush1.msra.mxu0 0.0
  %7443 = vmatprep.subr.mxu0 0.0
  %7444 = vmatpush1.msra.mxu0 0.0
  %7445 = vmatprep.subr.mxu0 0.0
  %7446 = vmatpush1.msra.mxu0 0.0
  %7447 = vmatprep.subr.mxu0 0.0
  %7448 = vmatpush1.msra.mxu0 0.0
  %7449 = vmatprep.subr.mxu0 0.0
  %7450 = vmatpush1.msra.mxu0 0.0
  %7451 = vmatprep.subr.mxu0 0.0
  %7452 = vmatpush1.msra.mxu0 0.0
  %7453 = vmatprep.subr.mxu0 0.0
  %v7454 = vand.u32 %v5040, 4294901760
  %7455 = vmatpush1.msra.mxu0 %v7454
  %7456 = vmatprep.subr.mxu0 0.0
  %v7457 = vand.u32 %v5039, 4294901760
  %7458 = vmatpush1.msra.mxu0 %v7457
  %7459 = vmatprep.subr.mxu0 0.0
  %v7460 = vand.u32 %v5038, 4294901760
  %7461 = vmatpush1.msra.mxu0 %v7460
  %7462 = vmatprep.subr.mxu0 0.0
  %v7463 = vand.u32 %v5037, 4294901760
  %7464 = vmatpush1.msra.mxu0 %v7463
  %7465 = vmatprep.subr.mxu0 0.0
  %7466 = vmatpush2.msra.mxu0 0.0
  %7467 = vmatprep.subr.mxu0 0.0
  %7468 = vmatpush2.msra.mxu0 0.0
  %7469 = vmatprep.subr.mxu0 0.0
  %7470 = vmatpush2.msra.mxu0 0.0
  %7471 = vmatprep.subr.mxu0 0.0
  %7472 = vmatpush2.msra.mxu0 0.0
  %7473 = vmatprep.subr.mxu0 0.0
  %7474 = vmatpush2.msra.mxu0 0.0
  %7475 = vmatprep.subr.mxu0 0.0
  %7476 = vmatpush2.msra.mxu0 0.0
  %7477 = vmatprep.subr.mxu0 0.0
  %7478 = vmatpush2.msra.mxu0 0.0
  %7479 = vmatprep.subr.mxu0 0.0
  %7480 = vmatpush2.msra.mxu0 0.0
  %7481 = vmatprep.subr.mxu0 0.0
  %7482 = vmatpush2.msra.mxu0 0.0
  %7483 = vmatprep.subr.mxu0 0.0
  %7484 = vmatpush2.msra.mxu0 0.0
  %7485 = vmatprep.subr.mxu0 0.0
  %7486 = vmatpush2.msra.mxu0 0.0
  %7487 = vmatprep.subr.mxu0 0.0
  %7488 = vmatpush2.msra.mxu0 0.0
  %7489 = vmatprep.subr.mxu0 0.0
  %7490 = vmatpush2.msra.mxu0 0.0
  %7491 = vmatprep.subr.mxu0 0.0
  %7492 = vmatpush2.msra.mxu0 0.0
  %7493 = vmatprep.subr.mxu0 0.0
  %7494 = vmatpush2.msra.mxu0 0.0
  %7495 = vmatprep.subr.mxu0 0.0
  %7496 = vmatpush2.msra.mxu0 0.0
  %7497 = vmatprep.mubr.f32.mxu0 0.0
  %v7498 = vand.u32 %v7427, 4294901760
  %v7499 = vsub.f32 %v7427, %v7498
  %v7500 = vand.u32 %v7499, 4294901760
  %v7501 = vsub.f32 %v7499, %v7500
  %v7502 = vand.u32 %v7501, 4294901760
  %7503 = vmatmul.mubr.f32.gmra.mxu0 %v7502
  %v7504 = vpop.f32.mrf.mxu0
  %v7505 = vadd.f32 0.0, %v7504
  %v7506 = vpop.f32.mrf.mxu0
  %7507 = vdwg.mxu0
  %7508 = vmatprep.subr.mxu0 0.0
  %7509 = vmatpush1.msra.mxu0 0.0
  %7510 = vmatprep.subr.mxu0 0.0
  %7511 = vmatpush1.msra.mxu0 0.0
  %7512 = vmatprep.subr.mxu0 0.0
  %7513 = vmatpush1.msra.mxu0 0.0
  %7514 = vmatprep.subr.mxu0 0.0
  %7515 = vmatpush1.msra.mxu0 0.0
  %7516 = vmatprep.subr.mxu0 0.0
  %7517 = vmatpush1.msra.mxu0 0.0
  %7518 = vmatprep.subr.mxu0 0.0
  %7519 = vmatpush1.msra.mxu0 0.0
  %7520 = vmatprep.subr.mxu0 0.0
  %7521 = vmatpush1.msra.mxu0 0.0
  %7522 = vmatprep.subr.mxu0 0.0
  %7523 = vmatpush1.msra.mxu0 0.0
  %7524 = vmatprep.subr.mxu0 0.0
  %7525 = vmatpush1.msra.mxu0 0.0
  %7526 = vmatprep.subr.mxu0 0.0
  %7527 = vmatpush1.msra.mxu0 0.0
  %7528 = vmatprep.subr.mxu0 0.0
  %7529 = vmatpush1.msra.mxu0 0.0
  %7530 = vmatprep.subr.mxu0 0.0
  %7531 = vmatpush1.msra.mxu0 0.0
  %7532 = vmatprep.subr.mxu0 0.0
  %v7533 = vand.u32 %v5040, 4294901760
  %v7534 = vsub.f32 %v5040, %v7533
  %v7535 = vand.u32 %v7534, 4294901760
  %v7536 = vsub.f32 %v7534, %v7535
  %v7537 = vand.u32 %v7536, 4294901760
  %7538 = vmatpush1.msra.mxu0 %v7537
  %7539 = vmatprep.subr.mxu0 0.0
  %v7540 = vand.u32 %v5039, 4294901760
  %v7541 = vsub.f32 %v5039, %v7540
  %v7542 = vand.u32 %v7541, 4294901760
  %v7543 = vsub.f32 %v7541, %v7542
  %v7544 = vand.u32 %v7543, 4294901760
  %7545 = vmatpush1.msra.mxu0 %v7544
  %7546 = vmatprep.subr.mxu0 0.0
  %v7547 = vand.u32 %v5038, 4294901760
  %v7548 = vsub.f32 %v5038, %v7547
  %v7549 = vand.u32 %v7548, 4294901760
  %v7550 = vsub.f32 %v7548, %v7549
  %v7551 = vand.u32 %v7550, 4294901760
  %7552 = vmatpush1.msra.mxu0 %v7551
  %7553 = vmatprep.subr.mxu0 0.0
  %v7554 = vand.u32 %v5037, 4294901760
  %v7555 = vsub.f32 %v5037, %v7554
  %v7556 = vand.u32 %v7555, 4294901760
  %v7557 = vsub.f32 %v7555, %v7556
  %v7558 = vand.u32 %v7557, 4294901760
  %7559 = vmatpush1.msra.mxu0 %v7558
  %7560 = vmatprep.subr.mxu0 0.0
  %7561 = vmatpush2.msra.mxu0 0.0
  %7562 = vmatprep.subr.mxu0 0.0
  %7563 = vmatpush2.msra.mxu0 0.0
  %7564 = vmatprep.subr.mxu0 0.0
  %7565 = vmatpush2.msra.mxu0 0.0
  %7566 = vmatprep.subr.mxu0 0.0
  %7567 = vmatpush2.msra.mxu0 0.0
  %7568 = vmatprep.subr.mxu0 0.0
  %7569 = vmatpush2.msra.mxu0 0.0
  %7570 = vmatprep.subr.mxu0 0.0
  %7571 = vmatpush2.msra.mxu0 0.0
  %7572 = vmatprep.subr.mxu0 0.0
  %7573 = vmatpush2.msra.mxu0 0.0
  %7574 = vmatprep.subr.mxu0 0.0
  %7575 = vmatpush2.msra.mxu0 0.0
  %7576 = vmatprep.subr.mxu0 0.0
  %7577 = vmatpush2.msra.mxu0 0.0
  %7578 = vmatprep.subr.mxu0 0.0
  %7579 = vmatpush2.msra.mxu0 0.0
  %7580 = vmatprep.subr.mxu0 0.0
  %7581 = vmatpush2.msra.mxu0 0.0
  %7582 = vmatprep.subr.mxu0 0.0
  %7583 = vmatpush2.msra.mxu0 0.0
  %7584 = vmatprep.subr.mxu0 0.0
  %7585 = vmatpush2.msra.mxu0 0.0
  %7586 = vmatprep.subr.mxu0 0.0
  %7587 = vmatpush2.msra.mxu0 0.0
  %7588 = vmatprep.subr.mxu0 0.0
  %7589 = vmatpush2.msra.mxu0 0.0
  %7590 = vmatprep.subr.mxu0 0.0
  %7591 = vmatpush2.msra.mxu0 0.0
  %7592 = vmatprep.mubr.f32.mxu0 0.0
  %v7593 = vand.u32 %v7427, 4294901760
  %7594 = vmatmul.mubr.f32.gmra.mxu0 %v7593
  %v7595 = vpop.f32.mrf.mxu0
  %v7596 = vadd.f32 %v7505, %v7595
  %v7597 = vpop.f32.mrf.mxu0
  %7598 = vdwg.mxu0
  %7599 = vmatprep.subr.mxu0 0.0
  %7600 = vmatpush1.msra.mxu0 0.0
  %7601 = vmatprep.subr.mxu0 0.0
  %7602 = vmatpush1.msra.mxu0 0.0
  %7603 = vmatprep.subr.mxu0 0.0
  %7604 = vmatpush1.msra.mxu0 0.0
  %7605 = vmatprep.subr.mxu0 0.0
  %7606 = vmatpush1.msra.mxu0 0.0
  %7607 = vmatprep.subr.mxu0 0.0
  %7608 = vmatpush1.msra.mxu0 0.0
  %7609 = vmatprep.subr.mxu0 0.0
  %7610 = vmatpush1.msra.mxu0 0.0
  %7611 = vmatprep.subr.mxu0 0.0
  %7612 = vmatpush1.msra.mxu0 0.0
  %7613 = vmatprep.subr.mxu0 0.0
  %7614 = vmatpush1.msra.mxu0 0.0
  %7615 = vmatprep.subr.mxu0 0.0
  %7616 = vmatpush1.msra.mxu0 0.0
  %7617 = vmatprep.subr.mxu0 0.0
  %7618 = vmatpush1.msra.mxu0 0.0
  %7619 = vmatprep.subr.mxu0 0.0
  %7620 = vmatpush1.msra.mxu0 0.0
  %7621 = vmatprep.subr.mxu0 0.0
  %7622 = vmatpush1.msra.mxu0 0.0
  %7623 = vmatprep.subr.mxu0 0.0
  %v7624 = vand.u32 %v5040, 4294901760
  %v7625 = vsub.f32 %v5040, %v7624
  %7626 = vmatpush1.msra.mxu0 %v7625
  %7627 = vmatprep.subr.mxu0 0.0
  %v7628 = vand.u32 %v5039, 4294901760
  %v7629 = vsub.f32 %v5039, %v7628
  %7630 = vmatpush1.msra.mxu0 %v7629
  %7631 = vmatprep.subr.mxu0 0.0
  %v7632 = vand.u32 %v5038, 4294901760
  %v7633 = vsub.f32 %v5038, %v7632
  %7634 = vmatpush1.msra.mxu0 %v7633
  %7635 = vmatprep.subr.mxu0 0.0
  %v7636 = vand.u32 %v5037, 4294901760
  %v7637 = vsub.f32 %v5037, %v7636
  %7638 = vmatpush1.msra.mxu0 %v7637
  %7639 = vmatprep.subr.mxu0 0.0
  %7640 = vmatpush2.msra.mxu0 0.0
  %7641 = vmatprep.subr.mxu0 0.0
  %7642 = vmatpush2.msra.mxu0 0.0
  %7643 = vmatprep.subr.mxu0 0.0
  %7644 = vmatpush2.msra.mxu0 0.0
  %7645 = vmatprep.subr.mxu0 0.0
  %7646 = vmatpush2.msra.mxu0 0.0
  %7647 = vmatprep.subr.mxu0 0.0
  %7648 = vmatpush2.msra.mxu0 0.0
  %7649 = vmatprep.subr.mxu0 0.0
  %7650 = vmatpush2.msra.mxu0 0.0
  %7651 = vmatprep.subr.mxu0 0.0
  %7652 = vmatpush2.msra.mxu0 0.0
  %7653 = vmatprep.subr.mxu0 0.0
  %7654 = vmatpush2.msra.mxu0 0.0
  %7655 = vmatprep.subr.mxu0 0.0
  %7656 = vmatpush2.msra.mxu0 0.0
  %7657 = vmatprep.subr.mxu0 0.0
  %7658 = vmatpush2.msra.mxu0 0.0
  %7659 = vmatprep.subr.mxu0 0.0
  %7660 = vmatpush2.msra.mxu0 0.0
  %7661 = vmatprep.subr.mxu0 0.0
  %7662 = vmatpush2.msra.mxu0 0.0
  %7663 = vmatprep.subr.mxu0 0.0
  %7664 = vmatpush2.msra.mxu0 0.0
  %7665 = vmatprep.subr.mxu0 0.0
  %7666 = vmatpush2.msra.mxu0 0.0
  %7667 = vmatprep.subr.mxu0 0.0
  %7668 = vmatpush2.msra.mxu0 0.0
  %7669 = vmatprep.subr.mxu0 0.0
  %7670 = vmatpush2.msra.mxu0 0.0
  %7671 = vmatprep.mubr.f32.mxu0 0.0
  %v7672 = vand.u32 %v7427, 4294901760
  %v7673 = vsub.f32 %v7427, %v7672
  %7674 = vmatmul.mubr.f32.gmra.mxu0 %v7673
  %v7675 = vpop.f32.mrf.mxu0
  %v7676 = vadd.f32 %v7596, %v7675
  %v7677 = vpop.f32.mrf.mxu0
  %7678 = vdwg.mxu0
  %7679 = vmatprep.subr.mxu0 0.0
  %7680 = vmatpush1.msra.mxu0 0.0
  %7681 = vmatprep.subr.mxu0 0.0
  %7682 = vmatpush1.msra.mxu0 0.0
  %7683 = vmatprep.subr.mxu0 0.0
  %7684 = vmatpush1.msra.mxu0 0.0
  %7685 = vmatprep.subr.mxu0 0.0
  %7686 = vmatpush1.msra.mxu0 0.0
  %7687 = vmatprep.subr.mxu0 0.0
  %7688 = vmatpush1.msra.mxu0 0.0
  %7689 = vmatprep.subr.mxu0 0.0
  %7690 = vmatpush1.msra.mxu0 0.0
  %7691 = vmatprep.subr.mxu0 0.0
  %7692 = vmatpush1.msra.mxu0 0.0
  %7693 = vmatprep.subr.mxu0 0.0
  %7694 = vmatpush1.msra.mxu0 0.0
  %7695 = vmatprep.subr.mxu0 0.0
  %7696 = vmatpush1.msra.mxu0 0.0
  %7697 = vmatprep.subr.mxu0 0.0
  %7698 = vmatpush1.msra.mxu0 0.0
  %7699 = vmatprep.subr.mxu0 0.0
  %7700 = vmatpush1.msra.mxu0 0.0
  %7701 = vmatprep.subr.mxu0 0.0
  %7702 = vmatpush1.msra.mxu0 0.0
  %7703 = vmatprep.subr.mxu0 0.0
  %v7704 = vand.u32 %v5040, 4294901760
  %7705 = vmatpush1.msra.mxu0 %v7704
  %7706 = vmatprep.subr.mxu0 0.0
  %v7707 = vand.u32 %v5039, 4294901760
  %7708 = vmatpush1.msra.mxu0 %v7707
  %7709 = vmatprep.subr.mxu0 0.0
  %v7710 = vand.u32 %v5038, 4294901760
  %7711 = vmatpush1.msra.mxu0 %v7710
  %7712 = vmatprep.subr.mxu0 0.0
  %v7713 = vand.u32 %v5037, 4294901760
  %7714 = vmatpush1.msra.mxu0 %v7713
  %7715 = vmatprep.subr.mxu0 0.0
  %7716 = vmatpush2.msra.mxu0 0.0
  %7717 = vmatprep.subr.mxu0 0.0
  %7718 = vmatpush2.msra.mxu0 0.0
  %7719 = vmatprep.subr.mxu0 0.0
  %7720 = vmatpush2.msra.mxu0 0.0
  %7721 = vmatprep.subr.mxu0 0.0
  %7722 = vmatpush2.msra.mxu0 0.0
  %7723 = vmatprep.subr.mxu0 0.0
  %7724 = vmatpush2.msra.mxu0 0.0
  %7725 = vmatprep.subr.mxu0 0.0
  %7726 = vmatpush2.msra.mxu0 0.0
  %7727 = vmatprep.subr.mxu0 0.0
  %7728 = vmatpush2.msra.mxu0 0.0
  %7729 = vmatprep.subr.mxu0 0.0
  %7730 = vmatpush2.msra.mxu0 0.0
  %7731 = vmatprep.subr.mxu0 0.0
  %7732 = vmatpush2.msra.mxu0 0.0
  %7733 = vmatprep.subr.mxu0 0.0
  %7734 = vmatpush2.msra.mxu0 0.0
  %7735 = vmatprep.subr.mxu0 0.0
  %7736 = vmatpush2.msra.mxu0 0.0
  %7737 = vmatprep.subr.mxu0 0.0
  %7738 = vmatpush2.msra.mxu0 0.0
  %7739 = vmatprep.subr.mxu0 0.0
  %7740 = vmatpush2.msra.mxu0 0.0
  %7741 = vmatprep.subr.mxu0 0.0
  %7742 = vmatpush2.msra.mxu0 0.0
  %7743 = vmatprep.subr.mxu0 0.0
  %7744 = vmatpush2.msra.mxu0 0.0
  %7745 = vmatprep.subr.mxu0 0.0
  %7746 = vmatpush2.msra.mxu0 0.0
  %7747 = vmatprep.mubr.f32.mxu0 0.0
  %v7748 = vand.u32 %v7427, 4294901760
  %v7749 = vsub.f32 %v7427, %v7748
  %v7750 = vand.u32 %v7749, 4294901760
  %7751 = vmatmul.mubr.f32.gmra.mxu0 %v7750
  %v7752 = vpop.f32.mrf.mxu0
  %v7753 = vadd.f32 %v7676, %v7752
  %v7754 = vpop.f32.mrf.mxu0
  %7755 = vdwg.mxu0
  %7756 = vmatprep.subr.mxu0 0.0
  %7757 = vmatpush1.msra.mxu0 0.0
  %7758 = vmatprep.subr.mxu0 0.0
  %7759 = vmatpush1.msra.mxu0 0.0
  %7760 = vmatprep.subr.mxu0 0.0
  %7761 = vmatpush1.msra.mxu0 0.0
  %7762 = vmatprep.subr.mxu0 0.0
  %7763 = vmatpush1.msra.mxu0 0.0
  %7764 = vmatprep.subr.mxu0 0.0
  %7765 = vmatpush1.msra.mxu0 0.0
  %7766 = vmatprep.subr.mxu0 0.0
  %7767 = vmatpush1.msra.mxu0 0.0
  %7768 = vmatprep.subr.mxu0 0.0
  %7769 = vmatpush1.msra.mxu0 0.0
  %7770 = vmatprep.subr.mxu0 0.0
  %7771 = vmatpush1.msra.mxu0 0.0
  %7772 = vmatprep.subr.mxu0 0.0
  %7773 = vmatpush1.msra.mxu0 0.0
  %7774 = vmatprep.subr.mxu0 0.0
  %7775 = vmatpush1.msra.mxu0 0.0
  %7776 = vmatprep.subr.mxu0 0.0
  %7777 = vmatpush1.msra.mxu0 0.0
  %7778 = vmatprep.subr.mxu0 0.0
  %7779 = vmatpush1.msra.mxu0 0.0
  %7780 = vmatprep.subr.mxu0 0.0
  %v7781 = vand.u32 %v5040, 4294901760
  %v7782 = vsub.f32 %v5040, %v7781
  %v7783 = vand.u32 %v7782, 4294901760
  %7784 = vmatpush1.msra.mxu0 %v7783
  %7785 = vmatprep.subr.mxu0 0.0
  %v7786 = vand.u32 %v5039, 4294901760
  %v7787 = vsub.f32 %v5039, %v7786
  %v7788 = vand.u32 %v7787, 4294901760
  %7789 = vmatpush1.msra.mxu0 %v7788
  %7790 = vmatprep.subr.mxu0 0.0
  %v7791 = vand.u32 %v5038, 4294901760
  %v7792 = vsub.f32 %v5038, %v7791
  %v7793 = vand.u32 %v7792, 4294901760
  %7794 = vmatpush1.msra.mxu0 %v7793
  %7795 = vmatprep.subr.mxu0 0.0
  %v7796 = vand.u32 %v5037, 4294901760
  %v7797 = vsub.f32 %v5037, %v7796
  %v7798 = vand.u32 %v7797, 4294901760
  %7799 = vmatpush1.msra.mxu0 %v7798
  %7800 = vmatprep.subr.mxu0 0.0
  %7801 = vmatpush2.msra.mxu0 0.0
  %7802 = vmatprep.subr.mxu0 0.0
  %7803 = vmatpush2.msra.mxu0 0.0
  %7804 = vmatprep.subr.mxu0 0.0
  %7805 = vmatpush2.msra.mxu0 0.0
  %7806 = vmatprep.subr.mxu0 0.0
  %7807 = vmatpush2.msra.mxu0 0.0
  %7808 = vmatprep.subr.mxu0 0.0
  %7809 = vmatpush2.msra.mxu0 0.0
  %7810 = vmatprep.subr.mxu0 0.0
  %7811 = vmatpush2.msra.mxu0 0.0
  %7812 = vmatprep.subr.mxu0 0.0
  %7813 = vmatpush2.msra.mxu0 0.0
  %7814 = vmatprep.subr.mxu0 0.0
  %7815 = vmatpush2.msra.mxu0 0.0
  %7816 = vmatprep.subr.mxu0 0.0
  %7817 = vmatpush2.msra.mxu0 0.0
  %7818 = vmatprep.subr.mxu0 0.0
  %7819 = vmatpush2.msra.mxu0 0.0
  %7820 = vmatprep.subr.mxu0 0.0
  %7821 = vmatpush2.msra.mxu0 0.0
  %7822 = vmatprep.subr.mxu0 0.0
  %7823 = vmatpush2.msra.mxu0 0.0
  %7824 = vmatprep.subr.mxu0 0.0
  %7825 = vmatpush2.msra.mxu0 0.0
  %7826 = vmatprep.subr.mxu0 0.0
  %7827 = vmatpush2.msra.mxu0 0.0
  %7828 = vmatprep.subr.mxu0 0.0
  %7829 = vmatpush2.msra.mxu0 0.0
  %7830 = vmatprep.subr.mxu0 0.0
  %7831 = vmatpush2.msra.mxu0 0.0
  %7832 = vmatprep.mubr.f32.mxu0 0.0
  %v7833 = vand.u32 %v7427, 4294901760
  %7834 = vmatmul.mubr.f32.gmra.mxu0 %v7833
  %v7835 = vpop.f32.mrf.mxu0
  %v7836 = vadd.f32 %v7753, %v7835
  %v7837 = vpop.f32.mrf.mxu0
  %7838 = vdwg.mxu0
  %7839 = vmatprep.subr.mxu0 0.0
  %7840 = vmatpush1.msra.mxu0 0.0
  %7841 = vmatprep.subr.mxu0 0.0
  %7842 = vmatpush1.msra.mxu0 0.0
  %7843 = vmatprep.subr.mxu0 0.0
  %7844 = vmatpush1.msra.mxu0 0.0
  %7845 = vmatprep.subr.mxu0 0.0
  %7846 = vmatpush1.msra.mxu0 0.0
  %7847 = vmatprep.subr.mxu0 0.0
  %7848 = vmatpush1.msra.mxu0 0.0
  %7849 = vmatprep.subr.mxu0 0.0
  %7850 = vmatpush1.msra.mxu0 0.0
  %7851 = vmatprep.subr.mxu0 0.0
  %7852 = vmatpush1.msra.mxu0 0.0
  %7853 = vmatprep.subr.mxu0 0.0
  %7854 = vmatpush1.msra.mxu0 0.0
  %7855 = vmatprep.subr.mxu0 0.0
  %7856 = vmatpush1.msra.mxu0 0.0
  %7857 = vmatprep.subr.mxu0 0.0
  %7858 = vmatpush1.msra.mxu0 0.0
  %7859 = vmatprep.subr.mxu0 0.0
  %7860 = vmatpush1.msra.mxu0 0.0
  %7861 = vmatprep.subr.mxu0 0.0
  %7862 = vmatpush1.msra.mxu0 0.0
  %7863 = vmatprep.subr.mxu0 0.0
  %v7864 = vand.u32 %v5040, 4294901760
  %7865 = vmatpush1.msra.mxu0 %v7864
  %7866 = vmatprep.subr.mxu0 0.0
  %v7867 = vand.u32 %v5039, 4294901760
  %7868 = vmatpush1.msra.mxu0 %v7867
  %7869 = vmatprep.subr.mxu0 0.0
  %v7870 = vand.u32 %v5038, 4294901760
  %7871 = vmatpush1.msra.mxu0 %v7870
  %7872 = vmatprep.subr.mxu0 0.0
  %v7873 = vand.u32 %v5037, 4294901760
  %7874 = vmatpush1.msra.mxu0 %v7873
  %7875 = vmatprep.subr.mxu0 0.0
  %7876 = vmatpush2.msra.mxu0 0.0
  %7877 = vmatprep.subr.mxu0 0.0
  %7878 = vmatpush2.msra.mxu0 0.0
  %7879 = vmatprep.subr.mxu0 0.0
  %7880 = vmatpush2.msra.mxu0 0.0
  %7881 = vmatprep.subr.mxu0 0.0
  %7882 = vmatpush2.msra.mxu0 0.0
  %7883 = vmatprep.subr.mxu0 0.0
  %7884 = vmatpush2.msra.mxu0 0.0
  %7885 = vmatprep.subr.mxu0 0.0
  %7886 = vmatpush2.msra.mxu0 0.0
  %7887 = vmatprep.subr.mxu0 0.0
  %7888 = vmatpush2.msra.mxu0 0.0
  %7889 = vmatprep.subr.mxu0 0.0
  %7890 = vmatpush2.msra.mxu0 0.0
  %7891 = vmatprep.subr.mxu0 0.0
  %7892 = vmatpush2.msra.mxu0 0.0
  %7893 = vmatprep.subr.mxu0 0.0
  %7894 = vmatpush2.msra.mxu0 0.0
  %7895 = vmatprep.subr.mxu0 0.0
  %7896 = vmatpush2.msra.mxu0 0.0
  %7897 = vmatprep.subr.mxu0 0.0
  %7898 = vmatpush2.msra.mxu0 0.0
  %7899 = vmatprep.subr.mxu0 0.0
  %7900 = vmatpush2.msra.mxu0 0.0
  %7901 = vmatprep.subr.mxu0 0.0
  %7902 = vmatpush2.msra.mxu0 0.0
  %7903 = vmatprep.subr.mxu0 0.0
  %7904 = vmatpush2.msra.mxu0 0.0
  %7905 = vmatprep.subr.mxu0 0.0
  %7906 = vmatpush2.msra.mxu0 0.0
  %7907 = vmatprep.mubr.f32.mxu0 0.0
  %v7908 = vand.u32 %v7427, 4294901760
  %7909 = vmatmul.mubr.f32.gmra.mxu0 %v7908
  %v7910 = vpop.f32.mrf.mxu0
  %v7911 = vadd.f32 %v7836, %v7910
  %v7912 = vpop.f32.mrf.mxu0
  %7913 = vdwg.mxu0
  %v7914 = vadd.f32 %v7426, %v7911
  %v7915 = vsub.f32 0.0, %v7914
  %v7916 = vmul.f32 %v7915, 1.442695
  %v7917 = vpow.pop %v7916
  %v7918 = vadd.f32 %v7917, 1.0
  %v7919 = vrcp.pop %v7918
  %v7920 = vmul.f32 1.0, %v7919
  %v7921 = vtanh.pop %v7914
  %v7922 = vmul.f32 %v7920, %v7414
  %7924 = vrot.lane.b32.xlu0 %v7921, 64
  %v7925 = vpop.permute.xlu0 %7924
  %v7927 = vmul.f32 %v7920, %v7925
  %7929 = vrot.lane.b32.xlu0 %v7927, 32
  %v7930 = vpop.permute.xlu0 %7929
  %v7932 = vadd.f32 %v7922, %v7930
  %v7933 = vtanh.pop %v7932
  %7935 = vrot.lane.b32.xlu0 %v7933, 64
  %v7936 = vpop.permute.xlu0 %7935
  %v7938 = vmul.f32 %v7920, %v7936
  %7940 = vrot.lane.b32.xlu0 %v7938, 32
  %v7941 = vpop.permute.xlu0 %7940
  %7943 = vst.msk [vmem:[%s2951] sm:$0xff] %vm55, %v7941
  %v7944 = vld [vmem:[%s2953] sm:$0xff]
  %v7945 = vsel %vm55, %v7941, 0
  %7947 = vmatprep.subr.mxu0 0.0
  %7948 = vmatpush1.msra.mxu0 0.0
  %7949 = vmatprep.subr.mxu0 0.0
  %7950 = vmatpush1.msra.mxu0 0.0
  %7951 = vmatprep.subr.mxu0 0.0
  %7952 = vmatpush1.msra.mxu0 0.0
  %7953 = vmatprep.subr.mxu0 0.0
  %7954 = vmatpush1.msra.mxu0 0.0
  %7955 = vmatprep.subr.mxu0 0.0
  %7956 = vmatpush1.msra.mxu0 0.0
  %7957 = vmatprep.subr.mxu0 0.0
  %7958 = vmatpush1.msra.mxu0 0.0
  %7959 = vmatprep.subr.mxu0 0.0
  %7960 = vmatpush1.msra.mxu0 0.0
  %7961 = vmatprep.subr.mxu0 0.0
  %7962 = vmatpush1.msra.mxu0 0.0
  %7963 = vmatprep.subr.mxu0 0.0
  %7964 = vmatpush1.msra.mxu0 0.0
  %7965 = vmatprep.subr.mxu0 0.0
  %7966 = vmatpush1.msra.mxu0 0.0
  %7967 = vmatprep.subr.mxu0 0.0
  %7968 = vmatpush1.msra.mxu0 0.0
  %7969 = vmatprep.subr.mxu0 0.0
  %7970 = vmatpush1.msra.mxu0 0.0
  %7971 = vmatprep.subr.mxu0 0.0
  %v7972 = vand.u32 %v5040, 4294901760
  %7973 = vmatpush1.msra.mxu0 %v7972
  %7974 = vmatprep.subr.mxu0 0.0
  %v7975 = vand.u32 %v5039, 4294901760
  %7976 = vmatpush1.msra.mxu0 %v7975
  %7977 = vmatprep.subr.mxu0 0.0
  %v7978 = vand.u32 %v5038, 4294901760
  %7979 = vmatpush1.msra.mxu0 %v7978
  %7980 = vmatprep.subr.mxu0 0.0
  %v7981 = vand.u32 %v5037, 4294901760
  %7982 = vmatpush1.msra.mxu0 %v7981
  %7983 = vmatprep.subr.mxu0 0.0
  %7984 = vmatpush2.msra.mxu0 0.0
  %7985 = vmatprep.subr.mxu0 0.0
  %7986 = vmatpush2.msra.mxu0 0.0
  %7987 = vmatprep.subr.mxu0 0.0
  %7988 = vmatpush2.msra.mxu0 0.0
  %7989 = vmatprep.subr.mxu0 0.0
  %7990 = vmatpush2.msra.mxu0 0.0
  %7991 = vmatprep.subr.mxu0 0.0
  %7992 = vmatpush2.msra.mxu0 0.0
  %7993 = vmatprep.subr.mxu0 0.0
  %7994 = vmatpush2.msra.mxu0 0.0
  %7995 = vmatprep.subr.mxu0 0.0
  %7996 = vmatpush2.msra.mxu0 0.0
  %7997 = vmatprep.subr.mxu0 0.0
  %7998 = vmatpush2.msra.mxu0 0.0
  %7999 = vmatprep.subr.mxu0 0.0
  %8000 = vmatpush2.msra.mxu0 0.0
  %8001 = vmatprep.subr.mxu0 0.0
  %8002 = vmatpush2.msra.mxu0 0.0
  %8003 = vmatprep.subr.mxu0 0.0
  %8004 = vmatpush2.msra.mxu0 0.0
  %8005 = vmatprep.subr.mxu0 0.0
  %8006 = vmatpush2.msra.mxu0 0.0
  %8007 = vmatprep.subr.mxu0 0.0
  %8008 = vmatpush2.msra.mxu0 0.0
  %8009 = vmatprep.subr.mxu0 0.0
  %8010 = vmatpush2.msra.mxu0 0.0
  %8011 = vmatprep.subr.mxu0 0.0
  %8012 = vmatpush2.msra.mxu0 0.0
  %8013 = vmatprep.subr.mxu0 0.0
  %8014 = vmatpush2.msra.mxu0 0.0
  %8015 = vmatprep.mubr.f32.mxu0 0.0
  %v8016 = vand.u32 %v7945, 4294901760
  %v8017 = vsub.f32 %v7945, %v8016
  %v8018 = vand.u32 %v8017, 4294901760
  %v8019 = vsub.f32 %v8017, %v8018
  %v8020 = vand.u32 %v8019, 4294901760
  %8021 = vmatmul.mubr.f32.gmra.mxu0 %v8020
  %v8022 = vpop.f32.mrf.mxu0
  %v8023 = vadd.f32 0.0, %v8022
  %v8024 = vpop.f32.mrf.mxu0
  %8025 = vdwg.mxu0
  %8026 = vmatprep.subr.mxu0 0.0
  %8027 = vmatpush1.msra.mxu0 0.0
  %8028 = vmatprep.subr.mxu0 0.0
  %8029 = vmatpush1.msra.mxu0 0.0
  %8030 = vmatprep.subr.mxu0 0.0
  %8031 = vmatpush1.msra.mxu0 0.0
  %8032 = vmatprep.subr.mxu0 0.0
  %8033 = vmatpush1.msra.mxu0 0.0
  %8034 = vmatprep.subr.mxu0 0.0
  %8035 = vmatpush1.msra.mxu0 0.0
  %8036 = vmatprep.subr.mxu0 0.0
  %8037 = vmatpush1.msra.mxu0 0.0
  %8038 = vmatprep.subr.mxu0 0.0
  %8039 = vmatpush1.msra.mxu0 0.0
  %8040 = vmatprep.subr.mxu0 0.0
  %8041 = vmatpush1.msra.mxu0 0.0
  %8042 = vmatprep.subr.mxu0 0.0
  %8043 = vmatpush1.msra.mxu0 0.0
  %8044 = vmatprep.subr.mxu0 0.0
  %8045 = vmatpush1.msra.mxu0 0.0
  %8046 = vmatprep.subr.mxu0 0.0
  %8047 = vmatpush1.msra.mxu0 0.0
  %8048 = vmatprep.subr.mxu0 0.0
  %8049 = vmatpush1.msra.mxu0 0.0
  %8050 = vmatprep.subr.mxu0 0.0
  %v8051 = vand.u32 %v5040, 4294901760
  %v8052 = vsub.f32 %v5040, %v8051
  %v8053 = vand.u32 %v8052, 4294901760
  %v8054 = vsub.f32 %v8052, %v8053
  %v8055 = vand.u32 %v8054, 4294901760
  %8056 = vmatpush1.msra.mxu0 %v8055
  %8057 = vmatprep.subr.mxu0 0.0
  %v8058 = vand.u32 %v5039, 4294901760
  %v8059 = vsub.f32 %v5039, %v8058
  %v8060 = vand.u32 %v8059, 4294901760
  %v8061 = vsub.f32 %v8059, %v8060
  %v8062 = vand.u32 %v8061, 4294901760
  %8063 = vmatpush1.msra.mxu0 %v8062
  %8064 = vmatprep.subr.mxu0 0.0
  %v8065 = vand.u32 %v5038, 4294901760
  %v8066 = vsub.f32 %v5038, %v8065
  %v8067 = vand.u32 %v8066, 4294901760
  %v8068 = vsub.f32 %v8066, %v8067
  %v8069 = vand.u32 %v8068, 4294901760
  %8070 = vmatpush1.msra.mxu0 %v8069
  %8071 = vmatprep.subr.mxu0 0.0
  %v8072 = vand.u32 %v5037, 4294901760
  %v8073 = vsub.f32 %v5037, %v8072
  %v8074 = vand.u32 %v8073, 4294901760
  %v8075 = vsub.f32 %v8073, %v8074
  %v8076 = vand.u32 %v8075, 4294901760
  %8077 = vmatpush1.msra.mxu0 %v8076
  %8078 = vmatprep.subr.mxu0 0.0
  %8079 = vmatpush2.msra.mxu0 0.0
  %8080 = vmatprep.subr.mxu0 0.0
  %8081 = vmatpush2.msra.mxu0 0.0
  %8082 = vmatprep.subr.mxu0 0.0
  %8083 = vmatpush2.msra.mxu0 0.0
  %8084 = vmatprep.subr.mxu0 0.0
  %8085 = vmatpush2.msra.mxu0 0.0
  %8086 = vmatprep.subr.mxu0 0.0
  %8087 = vmatpush2.msra.mxu0 0.0
  %8088 = vmatprep.subr.mxu0 0.0
  %8089 = vmatpush2.msra.mxu0 0.0
  %8090 = vmatprep.subr.mxu0 0.0
  %8091 = vmatpush2.msra.mxu0 0.0
  %8092 = vmatprep.subr.mxu0 0.0
  %8093 = vmatpush2.msra.mxu0 0.0
  %8094 = vmatprep.subr.mxu0 0.0
  %8095 = vmatpush2.msra.mxu0 0.0
  %8096 = vmatprep.subr.mxu0 0.0
  %8097 = vmatpush2.msra.mxu0 0.0
  %8098 = vmatprep.subr.mxu0 0.0
  %8099 = vmatpush2.msra.mxu0 0.0
  %8100 = vmatprep.subr.mxu0 0.0
  %8101 = vmatpush2.msra.mxu0 0.0
  %8102 = vmatprep.subr.mxu0 0.0
  %8103 = vmatpush2.msra.mxu0 0.0
  %8104 = vmatprep.subr.mxu0 0.0
  %8105 = vmatpush2.msra.mxu0 0.0
  %8106 = vmatprep.subr.mxu0 0.0
  %8107 = vmatpush2.msra.mxu0 0.0
  %8108 = vmatprep.subr.mxu0 0.0
  %8109 = vmatpush2.msra.mxu0 0.0
  %8110 = vmatprep.mubr.f32.mxu0 0.0
  %v8111 = vand.u32 %v7945, 4294901760
  %8112 = vmatmul.mubr.f32.gmra.mxu0 %v8111
  %v8113 = vpop.f32.mrf.mxu0
  %v8114 = vadd.f32 %v8023, %v8113
  %v8115 = vpop.f32.mrf.mxu0
  %8116 = vdwg.mxu0
  %8117 = vmatprep.subr.mxu0 0.0
  %8118 = vmatpush1.msra.mxu0 0.0
  %8119 = vmatprep.subr.mxu0 0.0
  %8120 = vmatpush1.msra.mxu0 0.0
  %8121 = vmatprep.subr.mxu0 0.0
  %8122 = vmatpush1.msra.mxu0 0.0
  %8123 = vmatprep.subr.mxu0 0.0
  %8124 = vmatpush1.msra.mxu0 0.0
  %8125 = vmatprep.subr.mxu0 0.0
  %8126 = vmatpush1.msra.mxu0 0.0
  %8127 = vmatprep.subr.mxu0 0.0
  %8128 = vmatpush1.msra.mxu0 0.0
  %8129 = vmatprep.subr.mxu0 0.0
  %8130 = vmatpush1.msra.mxu0 0.0
  %8131 = vmatprep.subr.mxu0 0.0
  %8132 = vmatpush1.msra.mxu0 0.0
  %8133 = vmatprep.subr.mxu0 0.0
  %8134 = vmatpush1.msra.mxu0 0.0
  %8135 = vmatprep.subr.mxu0 0.0
  %8136 = vmatpush1.msra.mxu0 0.0
  %8137 = vmatprep.subr.mxu0 0.0
  %8138 = vmatpush1.msra.mxu0 0.0
  %8139 = vmatprep.subr.mxu0 0.0
  %8140 = vmatpush1.msra.mxu0 0.0
  %8141 = vmatprep.subr.mxu0 0.0
  %v8142 = vand.u32 %v5040, 4294901760
  %v8143 = vsub.f32 %v5040, %v8142
  %8144 = vmatpush1.msra.mxu0 %v8143
  %8145 = vmatprep.subr.mxu0 0.0
  %v8146 = vand.u32 %v5039, 4294901760
  %v8147 = vsub.f32 %v5039, %v8146
  %8148 = vmatpush1.msra.mxu0 %v8147
  %8149 = vmatprep.subr.mxu0 0.0
  %v8150 = vand.u32 %v5038, 4294901760
  %v8151 = vsub.f32 %v5038, %v8150
  %8152 = vmatpush1.msra.mxu0 %v8151
  %8153 = vmatprep.subr.mxu0 0.0
  %v8154 = vand.u32 %v5037, 4294901760
  %v8155 = vsub.f32 %v5037, %v8154
  %8156 = vmatpush1.msra.mxu0 %v8155
  %8157 = vmatprep.subr.mxu0 0.0
  %8158 = vmatpush2.msra.mxu0 0.0
  %8159 = vmatprep.subr.mxu0 0.0
  %8160 = vmatpush2.msra.mxu0 0.0
  %8161 = vmatprep.subr.mxu0 0.0
  %8162 = vmatpush2.msra.mxu0 0.0
  %8163 = vmatprep.subr.mxu0 0.0
  %8164 = vmatpush2.msra.mxu0 0.0
  %8165 = vmatprep.subr.mxu0 0.0
  %8166 = vmatpush2.msra.mxu0 0.0
  %8167 = vmatprep.subr.mxu0 0.0
  %8168 = vmatpush2.msra.mxu0 0.0
  %8169 = vmatprep.subr.mxu0 0.0
  %8170 = vmatpush2.msra.mxu0 0.0
  %8171 = vmatprep.subr.mxu0 0.0
  %8172 = vmatpush2.msra.mxu0 0.0
  %8173 = vmatprep.subr.mxu0 0.0
  %8174 = vmatpush2.msra.mxu0 0.0
  %8175 = vmatprep.subr.mxu0 0.0
  %8176 = vmatpush2.msra.mxu0 0.0
  %8177 = vmatprep.subr.mxu0 0.0
  %8178 = vmatpush2.msra.mxu0 0.0
  %8179 = vmatprep.subr.mxu0 0.0
  %8180 = vmatpush2.msra.mxu0 0.0
  %8181 = vmatprep.subr.mxu0 0.0
  %8182 = vmatpush2.msra.mxu0 0.0
  %8183 = vmatprep.subr.mxu0 0.0
  %8184 = vmatpush2.msra.mxu0 0.0
  %8185 = vmatprep.subr.mxu0 0.0
  %8186 = vmatpush2.msra.mxu0 0.0
  %8187 = vmatprep.subr.mxu0 0.0
  %8188 = vmatpush2.msra.mxu0 0.0
  %8189 = vmatprep.mubr.f32.mxu0 0.0
  %v8190 = vand.u32 %v7945, 4294901760
  %v8191 = vsub.f32 %v7945, %v8190
  %8192 = vmatmul.mubr.f32.gmra.mxu0 %v8191
  %v8193 = vpop.f32.mrf.mxu0
  %v8194 = vadd.f32 %v8114, %v8193
  %v8195 = vpop.f32.mrf.mxu0
  %8196 = vdwg.mxu0
  %8197 = vmatprep.subr.mxu0 0.0
  %8198 = vmatpush1.msra.mxu0 0.0
  %8199 = vmatprep.subr.mxu0 0.0
  %8200 = vmatpush1.msra.mxu0 0.0
  %8201 = vmatprep.subr.mxu0 0.0
  %8202 = vmatpush1.msra.mxu0 0.0
  %8203 = vmatprep.subr.mxu0 0.0
  %8204 = vmatpush1.msra.mxu0 0.0
  %8205 = vmatprep.subr.mxu0 0.0
  %8206 = vmatpush1.msra.mxu0 0.0
  %8207 = vmatprep.subr.mxu0 0.0
  %8208 = vmatpush1.msra.mxu0 0.0
  %8209 = vmatprep.subr.mxu0 0.0
  %8210 = vmatpush1.msra.mxu0 0.0
  %8211 = vmatprep.subr.mxu0 0.0
  %8212 = vmatpush1.msra.mxu0 0.0
  %8213 = vmatprep.subr.mxu0 0.0
  %8214 = vmatpush1.msra.mxu0 0.0
  %8215 = vmatprep.subr.mxu0 0.0
  %8216 = vmatpush1.msra.mxu0 0.0
  %8217 = vmatprep.subr.mxu0 0.0
  %8218 = vmatpush1.msra.mxu0 0.0
  %8219 = vmatprep.subr.mxu0 0.0
  %8220 = vmatpush1.msra.mxu0 0.0
  %8221 = vmatprep.subr.mxu0 0.0
  %v8222 = vand.u32 %v5040, 4294901760
  %8223 = vmatpush1.msra.mxu0 %v8222
  %8224 = vmatprep.subr.mxu0 0.0
  %v8225 = vand.u32 %v5039, 4294901760
  %8226 = vmatpush1.msra.mxu0 %v8225
  %8227 = vmatprep.subr.mxu0 0.0
  %v8228 = vand.u32 %v5038, 4294901760
  %8229 = vmatpush1.msra.mxu0 %v8228
  %8230 = vmatprep.subr.mxu0 0.0
  %v8231 = vand.u32 %v5037, 4294901760
  %8232 = vmatpush1.msra.mxu0 %v8231
  %8233 = vmatprep.subr.mxu0 0.0
  %8234 = vmatpush2.msra.mxu0 0.0
  %8235 = vmatprep.subr.mxu0 0.0
  %8236 = vmatpush2.msra.mxu0 0.0
  %8237 = vmatprep.subr.mxu0 0.0
  %8238 = vmatpush2.msra.mxu0 0.0
  %8239 = vmatprep.subr.mxu0 0.0
  %8240 = vmatpush2.msra.mxu0 0.0
  %8241 = vmatprep.subr.mxu0 0.0
  %8242 = vmatpush2.msra.mxu0 0.0
  %8243 = vmatprep.subr.mxu0 0.0
  %8244 = vmatpush2.msra.mxu0 0.0
  %8245 = vmatprep.subr.mxu0 0.0
  %8246 = vmatpush2.msra.mxu0 0.0
  %8247 = vmatprep.subr.mxu0 0.0
  %8248 = vmatpush2.msra.mxu0 0.0
  %8249 = vmatprep.subr.mxu0 0.0
  %8250 = vmatpush2.msra.mxu0 0.0
  %8251 = vmatprep.subr.mxu0 0.0
  %8252 = vmatpush2.msra.mxu0 0.0
  %8253 = vmatprep.subr.mxu0 0.0
  %8254 = vmatpush2.msra.mxu0 0.0
  %8255 = vmatprep.subr.mxu0 0.0
  %8256 = vmatpush2.msra.mxu0 0.0
  %8257 = vmatprep.subr.mxu0 0.0
  %8258 = vmatpush2.msra.mxu0 0.0
  %8259 = vmatprep.subr.mxu0 0.0
  %8260 = vmatpush2.msra.mxu0 0.0
  %8261 = vmatprep.subr.mxu0 0.0
  %8262 = vmatpush2.msra.mxu0 0.0
  %8263 = vmatprep.subr.mxu0 0.0
  %8264 = vmatpush2.msra.mxu0 0.0
  %8265 = vmatprep.mubr.f32.mxu0 0.0
  %v8266 = vand.u32 %v7945, 4294901760
  %v8267 = vsub.f32 %v7945, %v8266
  %v8268 = vand.u32 %v8267, 4294901760
  %8269 = vmatmul.mubr.f32.gmra.mxu0 %v8268
  %v8270 = vpop.f32.mrf.mxu0
  %v8271 = vadd.f32 %v8194, %v8270
  %v8272 = vpop.f32.mrf.mxu0
  %8273 = vdwg.mxu0
  %8274 = vmatprep.subr.mxu0 0.0
  %8275 = vmatpush1.msra.mxu0 0.0
  %8276 = vmatprep.subr.mxu0 0.0
  %8277 = vmatpush1.msra.mxu0 0.0
  %8278 = vmatprep.subr.mxu0 0.0
  %8279 = vmatpush1.msra.mxu0 0.0
  %8280 = vmatprep.subr.mxu0 0.0
  %8281 = vmatpush1.msra.mxu0 0.0
  %8282 = vmatprep.subr.mxu0 0.0
  %8283 = vmatpush1.msra.mxu0 0.0
  %8284 = vmatprep.subr.mxu0 0.0
  %8285 = vmatpush1.msra.mxu0 0.0
  %8286 = vmatprep.subr.mxu0 0.0
  %8287 = vmatpush1.msra.mxu0 0.0
  %8288 = vmatprep.subr.mxu0 0.0
  %8289 = vmatpush1.msra.mxu0 0.0
  %8290 = vmatprep.subr.mxu0 0.0
  %8291 = vmatpush1.msra.mxu0 0.0
  %8292 = vmatprep.subr.mxu0 0.0
  %8293 = vmatpush1.msra.mxu0 0.0
  %8294 = vmatprep.subr.mxu0 0.0
  %8295 = vmatpush1.msra.mxu0 0.0
  %8296 = vmatprep.subr.mxu0 0.0
  %8297 = vmatpush1.msra.mxu0 0.0
  %8298 = vmatprep.subr.mxu0 0.0
  %v8299 = vand.u32 %v5040, 4294901760
  %v8300 = vsub.f32 %v5040, %v8299
  %v8301 = vand.u32 %v8300, 4294901760
  %8302 = vmatpush1.msra.mxu0 %v8301
  %8303 = vmatprep.subr.mxu0 0.0
  %v8304 = vand.u32 %v5039, 4294901760
  %v8305 = vsub.f32 %v5039, %v8304
  %v8306 = vand.u32 %v8305, 4294901760
  %8307 = vmatpush1.msra.mxu0 %v8306
  %8308 = vmatprep.subr.mxu0 0.0
  %v8309 = vand.u32 %v5038, 4294901760
  %v8310 = vsub.f32 %v5038, %v8309
  %v8311 = vand.u32 %v8310, 4294901760
  %8312 = vmatpush1.msra.mxu0 %v8311
  %8313 = vmatprep.subr.mxu0 0.0
  %v8314 = vand.u32 %v5037, 4294901760
  %v8315 = vsub.f32 %v5037, %v8314
  %v8316 = vand.u32 %v8315, 4294901760
  %8317 = vmatpush1.msra.mxu0 %v8316
  %8318 = vmatprep.subr.mxu0 0.0
  %8319 = vmatpush2.msra.mxu0 0.0
  %8320 = vmatprep.subr.mxu0 0.0
  %8321 = vmatpush2.msra.mxu0 0.0
  %8322 = vmatprep.subr.mxu0 0.0
  %8323 = vmatpush2.msra.mxu0 0.0
  %8324 = vmatprep.subr.mxu0 0.0
  %8325 = vmatpush2.msra.mxu0 0.0
  %8326 = vmatprep.subr.mxu0 0.0
  %8327 = vmatpush2.msra.mxu0 0.0
  %8328 = vmatprep.subr.mxu0 0.0
  %8329 = vmatpush2.msra.mxu0 0.0
  %8330 = vmatprep.subr.mxu0 0.0
  %8331 = vmatpush2.msra.mxu0 0.0
  %8332 = vmatprep.subr.mxu0 0.0
  %8333 = vmatpush2.msra.mxu0 0.0
  %8334 = vmatprep.subr.mxu0 0.0
  %8335 = vmatpush2.msra.mxu0 0.0
  %8336 = vmatprep.subr.mxu0 0.0
  %8337 = vmatpush2.msra.mxu0 0.0
  %8338 = vmatprep.subr.mxu0 0.0
  %8339 = vmatpush2.msra.mxu0 0.0
  %8340 = vmatprep.subr.mxu0 0.0
  %8341 = vmatpush2.msra.mxu0 0.0
  %8342 = vmatprep.subr.mxu0 0.0
  %8343 = vmatpush2.msra.mxu0 0.0
  %8344 = vmatprep.subr.mxu0 0.0
  %8345 = vmatpush2.msra.mxu0 0.0
  %8346 = vmatprep.subr.mxu0 0.0
  %8347 = vmatpush2.msra.mxu0 0.0
  %8348 = vmatprep.subr.mxu0 0.0
  %8349 = vmatpush2.msra.mxu0 0.0
  %8350 = vmatprep.mubr.f32.mxu0 0.0
  %v8351 = vand.u32 %v7945, 4294901760
  %8352 = vmatmul.mubr.f32.gmra.mxu0 %v8351
  %v8353 = vpop.f32.mrf.mxu0
  %v8354 = vadd.f32 %v8271, %v8353
  %v8355 = vpop.f32.mrf.mxu0
  %8356 = vdwg.mxu0
  %8357 = vmatprep.subr.mxu0 0.0
  %8358 = vmatpush1.msra.mxu0 0.0
  %8359 = vmatprep.subr.mxu0 0.0
  %8360 = vmatpush1.msra.mxu0 0.0
  %8361 = vmatprep.subr.mxu0 0.0
  %8362 = vmatpush1.msra.mxu0 0.0
  %8363 = vmatprep.subr.mxu0 0.0
  %8364 = vmatpush1.msra.mxu0 0.0
  %8365 = vmatprep.subr.mxu0 0.0
  %8366 = vmatpush1.msra.mxu0 0.0
  %8367 = vmatprep.subr.mxu0 0.0
  %8368 = vmatpush1.msra.mxu0 0.0
  %8369 = vmatprep.subr.mxu0 0.0
  %8370 = vmatpush1.msra.mxu0 0.0
  %8371 = vmatprep.subr.mxu0 0.0
  %8372 = vmatpush1.msra.mxu0 0.0
  %8373 = vmatprep.subr.mxu0 0.0
  %8374 = vmatpush1.msra.mxu0 0.0
  %8375 = vmatprep.subr.mxu0 0.0
  %8376 = vmatpush1.msra.mxu0 0.0
  %8377 = vmatprep.subr.mxu0 0.0
  %8378 = vmatpush1.msra.mxu0 0.0
  %8379 = vmatprep.subr.mxu0 0.0
  %8380 = vmatpush1.msra.mxu0 0.0
  %8381 = vmatprep.subr.mxu0 0.0
  %v8382 = vand.u32 %v5040, 4294901760
  %8383 = vmatpush1.msra.mxu0 %v8382
  %8384 = vmatprep.subr.mxu0 0.0
  %v8385 = vand.u32 %v5039, 4294901760
  %8386 = vmatpush1.msra.mxu0 %v8385
  %8387 = vmatprep.subr.mxu0 0.0
  %v8388 = vand.u32 %v5038, 4294901760
  %8389 = vmatpush1.msra.mxu0 %v8388
  %8390 = vmatprep.subr.mxu0 0.0
  %v8391 = vand.u32 %v5037, 4294901760
  %8392 = vmatpush1.msra.mxu0 %v8391
  %8393 = vmatprep.subr.mxu0 0.0
  %8394 = vmatpush2.msra.mxu0 0.0
  %8395 = vmatprep.subr.mxu0 0.0
  %8396 = vmatpush2.msra.mxu0 0.0
  %8397 = vmatprep.subr.mxu0 0.0
  %8398 = vmatpush2.msra.mxu0 0.0
  %8399 = vmatprep.subr.mxu0 0.0
  %8400 = vmatpush2.msra.mxu0 0.0
  %8401 = vmatprep.subr.mxu0 0.0
  %8402 = vmatpush2.msra.mxu0 0.0
  %8403 = vmatprep.subr.mxu0 0.0
  %8404 = vmatpush2.msra.mxu0 0.0
  %8405 = vmatprep.subr.mxu0 0.0
  %8406 = vmatpush2.msra.mxu0 0.0
  %8407 = vmatprep.subr.mxu0 0.0
  %8408 = vmatpush2.msra.mxu0 0.0
  %8409 = vmatprep.subr.mxu0 0.0
  %8410 = vmatpush2.msra.mxu0 0.0
  %8411 = vmatprep.subr.mxu0 0.0
  %8412 = vmatpush2.msra.mxu0 0.0
  %8413 = vmatprep.subr.mxu0 0.0
  %8414 = vmatpush2.msra.mxu0 0.0
  %8415 = vmatprep.subr.mxu0 0.0
  %8416 = vmatpush2.msra.mxu0 0.0
  %8417 = vmatprep.subr.mxu0 0.0
  %8418 = vmatpush2.msra.mxu0 0.0
  %8419 = vmatprep.subr.mxu0 0.0
  %8420 = vmatpush2.msra.mxu0 0.0
  %8421 = vmatprep.subr.mxu0 0.0
  %8422 = vmatpush2.msra.mxu0 0.0
  %8423 = vmatprep.subr.mxu0 0.0
  %8424 = vmatpush2.msra.mxu0 0.0
  %8425 = vmatprep.mubr.f32.mxu0 0.0
  %v8426 = vand.u32 %v7945, 4294901760
  %8427 = vmatmul.mubr.f32.gmra.mxu0 %v8426
  %v8428 = vpop.f32.mrf.mxu0
  %v8429 = vadd.f32 %v8354, %v8428
  %v8430 = vpop.f32.mrf.mxu0
  %8431 = vdwg.mxu0
  %v8432 = vadd.f32 %v7944, %v8429
  %v8433 = vsub.f32 0.0, %v8432
  %v8434 = vmul.f32 %v8433, 1.442695
  %v8435 = vpow.pop %v8434
  %v8436 = vadd.f32 %v8435, 1.0
  %v8437 = vrcp.pop %v8436
  %v8438 = vmul.f32 1.0, %v8437
  %v8439 = vtanh.pop %v8432
  %v8440 = vmul.f32 %v8438, %v7932
  %8442 = vrot.lane.b32.xlu0 %v8439, 64
  %v8443 = vpop.permute.xlu0 %8442
  %v8445 = vmul.f32 %v8438, %v8443
  %8447 = vrot.lane.b32.xlu0 %v8445, 32
  %v8448 = vpop.permute.xlu0 %8447
  %v8450 = vadd.f32 %v8440, %v8448
  %v8451 = vtanh.pop %v8450
  %8453 = vrot.lane.b32.xlu0 %v8451, 64
  %v8454 = vpop.permute.xlu0 %8453
  %v8456 = vmul.f32 %v8438, %v8454
  %8458 = vrot.lane.b32.xlu0 %v8456, 32
  %v8459 = vpop.permute.xlu0 %8458
  %8461 = vst.msk [vmem:[%s3471] sm:$0xff] %vm55, %v8459
  %v8462 = vld [vmem:[%s3473] sm:$0xff]
  %v8463 = vsel %vm55, %v8459, 0
  %8465 = vmatprep.subr.mxu0 0.0
  %8466 = vmatpush1.msra.mxu0 0.0
  %8467 = vmatprep.subr.mxu0 0.0
  %8468 = vmatpush1.msra.mxu0 0.0
  %8469 = vmatprep.subr.mxu0 0.0
  %8470 = vmatpush1.msra.mxu0 0.0
  %8471 = vmatprep.subr.mxu0 0.0
  %8472 = vmatpush1.msra.mxu0 0.0
  %8473 = vmatprep.subr.mxu0 0.0
  %8474 = vmatpush1.msra.mxu0 0.0
  %8475 = vmatprep.subr.mxu0 0.0
  %8476 = vmatpush1.msra.mxu0 0.0
  %8477 = vmatprep.subr.mxu0 0.0
  %8478 = vmatpush1.msra.mxu0 0.0
  %8479 = vmatprep.subr.mxu0 0.0
  %8480 = vmatpush1.msra.mxu0 0.0
  %8481 = vmatprep.subr.mxu0 0.0
  %8482 = vmatpush1.msra.mxu0 0.0
  %8483 = vmatprep.subr.mxu0 0.0
  %8484 = vmatpush1.msra.mxu0 0.0
  %8485 = vmatprep.subr.mxu0 0.0
  %8486 = vmatpush1.msra.mxu0 0.0
  %8487 = vmatprep.subr.mxu0 0.0
  %8488 = vmatpush1.msra.mxu0 0.0
  %8489 = vmatprep.subr.mxu0 0.0
  %v8490 = vand.u32 %v5040, 4294901760
  %8491 = vmatpush1.msra.mxu0 %v8490
  %8492 = vmatprep.subr.mxu0 0.0
  %v8493 = vand.u32 %v5039, 4294901760
  %8494 = vmatpush1.msra.mxu0 %v8493
  %8495 = vmatprep.subr.mxu0 0.0
  %v8496 = vand.u32 %v5038, 4294901760
  %8497 = vmatpush1.msra.mxu0 %v8496
  %8498 = vmatprep.subr.mxu0 0.0
  %v8499 = vand.u32 %v5037, 4294901760
  %8500 = vmatpush1.msra.mxu0 %v8499
  %8501 = vmatprep.subr.mxu0 0.0
  %8502 = vmatpush2.msra.mxu0 0.0
  %8503 = vmatprep.subr.mxu0 0.0
  %8504 = vmatpush2.msra.mxu0 0.0
  %8505 = vmatprep.subr.mxu0 0.0
  %8506 = vmatpush2.msra.mxu0 0.0
  %8507 = vmatprep.subr.mxu0 0.0
  %8508 = vmatpush2.msra.mxu0 0.0
  %8509 = vmatprep.subr.mxu0 0.0
  %8510 = vmatpush2.msra.mxu0 0.0
  %8511 = vmatprep.subr.mxu0 0.0
  %8512 = vmatpush2.msra.mxu0 0.0
  %8513 = vmatprep.subr.mxu0 0.0
  %8514 = vmatpush2.msra.mxu0 0.0
  %8515 = vmatprep.subr.mxu0 0.0
  %8516 = vmatpush2.msra.mxu0 0.0
  %8517 = vmatprep.subr.mxu0 0.0
  %8518 = vmatpush2.msra.mxu0 0.0
  %8519 = vmatprep.subr.mxu0 0.0
  %8520 = vmatpush2.msra.mxu0 0.0
  %8521 = vmatprep.subr.mxu0 0.0
  %8522 = vmatpush2.msra.mxu0 0.0
  %8523 = vmatprep.subr.mxu0 0.0
  %8524 = vmatpush2.msra.mxu0 0.0
  %8525 = vmatprep.subr.mxu0 0.0
  %8526 = vmatpush2.msra.mxu0 0.0
  %8527 = vmatprep.subr.mxu0 0.0
  %8528 = vmatpush2.msra.mxu0 0.0
  %8529 = vmatprep.subr.mxu0 0.0
  %8530 = vmatpush2.msra.mxu0 0.0
  %8531 = vmatprep.subr.mxu0 0.0
  %8532 = vmatpush2.msra.mxu0 0.0
  %8533 = vmatprep.mubr.f32.mxu0 0.0
  %v8534 = vand.u32 %v8463, 4294901760
  %v8535 = vsub.f32 %v8463, %v8534
  %v8536 = vand.u32 %v8535, 4294901760
  %v8537 = vsub.f32 %v8535, %v8536
  %v8538 = vand.u32 %v8537, 4294901760
  %8539 = vmatmul.mubr.f32.gmra.mxu0 %v8538
  %v8540 = vpop.f32.mrf.mxu0
  %v8541 = vadd.f32 0.0, %v8540
  %v8542 = vpop.f32.mrf.mxu0
  %8543 = vdwg.mxu0
  %8544 = vmatprep.subr.mxu0 0.0
  %8545 = vmatpush1.msra.mxu0 0.0
  %8546 = vmatprep.subr.mxu0 0.0
  %8547 = vmatpush1.msra.mxu0 0.0
  %8548 = vmatprep.subr.mxu0 0.0
  %8549 = vmatpush1.msra.mxu0 0.0
  %8550 = vmatprep.subr.mxu0 0.0
  %8551 = vmatpush1.msra.mxu0 0.0
  %8552 = vmatprep.subr.mxu0 0.0
  %8553 = vmatpush1.msra.mxu0 0.0
  %8554 = vmatprep.subr.mxu0 0.0
  %8555 = vmatpush1.msra.mxu0 0.0
  %8556 = vmatprep.subr.mxu0 0.0
  %8557 = vmatpush1.msra.mxu0 0.0
  %8558 = vmatprep.subr.mxu0 0.0
  %8559 = vmatpush1.msra.mxu0 0.0
  %8560 = vmatprep.subr.mxu0 0.0
  %8561 = vmatpush1.msra.mxu0 0.0
  %8562 = vmatprep.subr.mxu0 0.0
  %8563 = vmatpush1.msra.mxu0 0.0
  %8564 = vmatprep.subr.mxu0 0.0
  %8565 = vmatpush1.msra.mxu0 0.0
  %8566 = vmatprep.subr.mxu0 0.0
  %8567 = vmatpush1.msra.mxu0 0.0
  %8568 = vmatprep.subr.mxu0 0.0
  %v8569 = vand.u32 %v5040, 4294901760
  %v8570 = vsub.f32 %v5040, %v8569
  %v8571 = vand.u32 %v8570, 4294901760
  %v8572 = vsub.f32 %v8570, %v8571
  %v8573 = vand.u32 %v8572, 4294901760
  %8574 = vmatpush1.msra.mxu0 %v8573
  %8575 = vmatprep.subr.mxu0 0.0
  %v8576 = vand.u32 %v5039, 4294901760
  %v8577 = vsub.f32 %v5039, %v8576
  %v8578 = vand.u32 %v8577, 4294901760
  %v8579 = vsub.f32 %v8577, %v8578
  %v8580 = vand.u32 %v8579, 4294901760
  %8581 = vmatpush1.msra.mxu0 %v8580
  %8582 = vmatprep.subr.mxu0 0.0
  %v8583 = vand.u32 %v5038, 4294901760
  %v8584 = vsub.f32 %v5038, %v8583
  %v8585 = vand.u32 %v8584, 4294901760
  %v8586 = vsub.f32 %v8584, %v8585
  %v8587 = vand.u32 %v8586, 4294901760
  %8588 = vmatpush1.msra.mxu0 %v8587
  %8589 = vmatprep.subr.mxu0 0.0
  %v8590 = vand.u32 %v5037, 4294901760
  %v8591 = vsub.f32 %v5037, %v8590
  %v8592 = vand.u32 %v8591, 4294901760
  %v8593 = vsub.f32 %v8591, %v8592
  %v8594 = vand.u32 %v8593, 4294901760
  %8595 = vmatpush1.msra.mxu0 %v8594
  %8596 = vmatprep.subr.mxu0 0.0
  %8597 = vmatpush2.msra.mxu0 0.0
  %8598 = vmatprep.subr.mxu0 0.0
  %8599 = vmatpush2.msra.mxu0 0.0
  %8600 = vmatprep.subr.mxu0 0.0
  %8601 = vmatpush2.msra.mxu0 0.0
  %8602 = vmatprep.subr.mxu0 0.0
  %8603 = vmatpush2.msra.mxu0 0.0
  %8604 = vmatprep.subr.mxu0 0.0
  %8605 = vmatpush2.msra.mxu0 0.0
  %8606 = vmatprep.subr.mxu0 0.0
  %8607 = vmatpush2.msra.mxu0 0.0
  %8608 = vmatprep.subr.mxu0 0.0
  %8609 = vmatpush2.msra.mxu0 0.0
  %8610 = vmatprep.subr.mxu0 0.0
  %8611 = vmatpush2.msra.mxu0 0.0
  %8612 = vmatprep.subr.mxu0 0.0
  %8613 = vmatpush2.msra.mxu0 0.0
  %8614 = vmatprep.subr.mxu0 0.0
  %8615 = vmatpush2.msra.mxu0 0.0
  %8616 = vmatprep.subr.mxu0 0.0
  %8617 = vmatpush2.msra.mxu0 0.0
  %8618 = vmatprep.subr.mxu0 0.0
  %8619 = vmatpush2.msra.mxu0 0.0
  %8620 = vmatprep.subr.mxu0 0.0
  %8621 = vmatpush2.msra.mxu0 0.0
  %8622 = vmatprep.subr.mxu0 0.0
  %8623 = vmatpush2.msra.mxu0 0.0
  %8624 = vmatprep.subr.mxu0 0.0
  %8625 = vmatpush2.msra.mxu0 0.0
  %8626 = vmatprep.subr.mxu0 0.0
  %8627 = vmatpush2.msra.mxu0 0.0
  %8628 = vmatprep.mubr.f32.mxu0 0.0
  %v8629 = vand.u32 %v8463, 4294901760
  %8630 = vmatmul.mubr.f32.gmra.mxu0 %v8629
  %v8631 = vpop.f32.mrf.mxu0
  %v8632 = vadd.f32 %v8541, %v8631
  %v8633 = vpop.f32.mrf.mxu0
  %8634 = vdwg.mxu0
  %8635 = vmatprep.subr.mxu0 0.0
  %8636 = vmatpush1.msra.mxu0 0.0
  %8637 = vmatprep.subr.mxu0 0.0
  %8638 = vmatpush1.msra.mxu0 0.0
  %8639 = vmatprep.subr.mxu0 0.0
  %8640 = vmatpush1.msra.mxu0 0.0
  %8641 = vmatprep.subr.mxu0 0.0
  %8642 = vmatpush1.msra.mxu0 0.0
  %8643 = vmatprep.subr.mxu0 0.0
  %8644 = vmatpush1.msra.mxu0 0.0
  %8645 = vmatprep.subr.mxu0 0.0
  %8646 = vmatpush1.msra.mxu0 0.0
  %8647 = vmatprep.subr.mxu0 0.0
  %8648 = vmatpush1.msra.mxu0 0.0
  %8649 = vmatprep.subr.mxu0 0.0
  %8650 = vmatpush1.msra.mxu0 0.0
  %8651 = vmatprep.subr.mxu0 0.0
  %8652 = vmatpush1.msra.mxu0 0.0
  %8653 = vmatprep.subr.mxu0 0.0
  %8654 = vmatpush1.msra.mxu0 0.0
  %8655 = vmatprep.subr.mxu0 0.0
  %8656 = vmatpush1.msra.mxu0 0.0
  %8657 = vmatprep.subr.mxu0 0.0
  %8658 = vmatpush1.msra.mxu0 0.0
  %8659 = vmatprep.subr.mxu0 0.0
  %v8660 = vand.u32 %v5040, 4294901760
  %v8661 = vsub.f32 %v5040, %v8660
  %8662 = vmatpush1.msra.mxu0 %v8661
  %8663 = vmatprep.subr.mxu0 0.0
  %v8664 = vand.u32 %v5039, 4294901760
  %v8665 = vsub.f32 %v5039, %v8664
  %8666 = vmatpush1.msra.mxu0 %v8665
  %8667 = vmatprep.subr.mxu0 0.0
  %v8668 = vand.u32 %v5038, 4294901760
  %v8669 = vsub.f32 %v5038, %v8668
  %8670 = vmatpush1.msra.mxu0 %v8669
  %8671 = vmatprep.subr.mxu0 0.0
  %v8672 = vand.u32 %v5037, 4294901760
  %v8673 = vsub.f32 %v5037, %v8672
  %8674 = vmatpush1.msra.mxu0 %v8673
  %8675 = vmatprep.subr.mxu0 0.0
  %8676 = vmatpush2.msra.mxu0 0.0
  %8677 = vmatprep.subr.mxu0 0.0
  %8678 = vmatpush2.msra.mxu0 0.0
  %8679 = vmatprep.subr.mxu0 0.0
  %8680 = vmatpush2.msra.mxu0 0.0
  %8681 = vmatprep.subr.mxu0 0.0
  %8682 = vmatpush2.msra.mxu0 0.0
  %8683 = vmatprep.subr.mxu0 0.0
  %8684 = vmatpush2.msra.mxu0 0.0
  %8685 = vmatprep.subr.mxu0 0.0
  %8686 = vmatpush2.msra.mxu0 0.0
  %8687 = vmatprep.subr.mxu0 0.0
  %8688 = vmatpush2.msra.mxu0 0.0
  %8689 = vmatprep.subr.mxu0 0.0
  %8690 = vmatpush2.msra.mxu0 0.0
  %8691 = vmatprep.subr.mxu0 0.0
  %8692 = vmatpush2.msra.mxu0 0.0
  %8693 = vmatprep.subr.mxu0 0.0
  %8694 = vmatpush2.msra.mxu0 0.0
  %8695 = vmatprep.subr.mxu0 0.0
  %8696 = vmatpush2.msra.mxu0 0.0
  %8697 = vmatprep.subr.mxu0 0.0
  %8698 = vmatpush2.msra.mxu0 0.0
  %8699 = vmatprep.subr.mxu0 0.0
  %8700 = vmatpush2.msra.mxu0 0.0
  %8701 = vmatprep.subr.mxu0 0.0
  %8702 = vmatpush2.msra.mxu0 0.0
  %8703 = vmatprep.subr.mxu0 0.0
  %8704 = vmatpush2.msra.mxu0 0.0
  %8705 = vmatprep.subr.mxu0 0.0
  %8706 = vmatpush2.msra.mxu0 0.0
  %8707 = vmatprep.mubr.f32.mxu0 0.0
  %v8708 = vand.u32 %v8463, 4294901760
  %v8709 = vsub.f32 %v8463, %v8708
  %8710 = vmatmul.mubr.f32.gmra.mxu0 %v8709
  %v8711 = vpop.f32.mrf.mxu0
  %v8712 = vadd.f32 %v8632, %v8711
  %v8713 = vpop.f32.mrf.mxu0
  %8714 = vdwg.mxu0
  %8715 = vmatprep.subr.mxu0 0.0
  %8716 = vmatpush1.msra.mxu0 0.0
  %8717 = vmatprep.subr.mxu0 0.0
  %8718 = vmatpush1.msra.mxu0 0.0
  %8719 = vmatprep.subr.mxu0 0.0
  %8720 = vmatpush1.msra.mxu0 0.0
  %8721 = vmatprep.subr.mxu0 0.0
  %8722 = vmatpush1.msra.mxu0 0.0
  %8723 = vmatprep.subr.mxu0 0.0
  %8724 = vmatpush1.msra.mxu0 0.0
  %8725 = vmatprep.subr.mxu0 0.0
  %8726 = vmatpush1.msra.mxu0 0.0
  %8727 = vmatprep.subr.mxu0 0.0
  %8728 = vmatpush1.msra.mxu0 0.0
  %8729 = vmatprep.subr.mxu0 0.0
  %8730 = vmatpush1.msra.mxu0 0.0
  %8731 = vmatprep.subr.mxu0 0.0
  %8732 = vmatpush1.msra.mxu0 0.0
  %8733 = vmatprep.subr.mxu0 0.0
  %8734 = vmatpush1.msra.mxu0 0.0
  %8735 = vmatprep.subr.mxu0 0.0
  %8736 = vmatpush1.msra.mxu0 0.0
  %8737 = vmatprep.subr.mxu0 0.0
  %8738 = vmatpush1.msra.mxu0 0.0
  %8739 = vmatprep.subr.mxu0 0.0
  %v8740 = vand.u32 %v5040, 4294901760
  %8741 = vmatpush1.msra.mxu0 %v8740
  %8742 = vmatprep.subr.mxu0 0.0
  %v8743 = vand.u32 %v5039, 4294901760
  %8744 = vmatpush1.msra.mxu0 %v8743
  %8745 = vmatprep.subr.mxu0 0.0
  %v8746 = vand.u32 %v5038, 4294901760
  %8747 = vmatpush1.msra.mxu0 %v8746
  %8748 = vmatprep.subr.mxu0 0.0
  %v8749 = vand.u32 %v5037, 4294901760
  %8750 = vmatpush1.msra.mxu0 %v8749
  %8751 = vmatprep.subr.mxu0 0.0
  %8752 = vmatpush2.msra.mxu0 0.0
  %8753 = vmatprep.subr.mxu0 0.0
  %8754 = vmatpush2.msra.mxu0 0.0
  %8755 = vmatprep.subr.mxu0 0.0
  %8756 = vmatpush2.msra.mxu0 0.0
  %8757 = vmatprep.subr.mxu0 0.0
  %8758 = vmatpush2.msra.mxu0 0.0
  %8759 = vmatprep.subr.mxu0 0.0
  %8760 = vmatpush2.msra.mxu0 0.0
  %8761 = vmatprep.subr.mxu0 0.0
  %8762 = vmatpush2.msra.mxu0 0.0
  %8763 = vmatprep.subr.mxu0 0.0
  %8764 = vmatpush2.msra.mxu0 0.0
  %8765 = vmatprep.subr.mxu0 0.0
  %8766 = vmatpush2.msra.mxu0 0.0
  %8767 = vmatprep.subr.mxu0 0.0
  %8768 = vmatpush2.msra.mxu0 0.0
  %8769 = vmatprep.subr.mxu0 0.0
  %8770 = vmatpush2.msra.mxu0 0.0
  %8771 = vmatprep.subr.mxu0 0.0
  %8772 = vmatpush2.msra.mxu0 0.0
  %8773 = vmatprep.subr.mxu0 0.0
  %8774 = vmatpush2.msra.mxu0 0.0
  %8775 = vmatprep.subr.mxu0 0.0
  %8776 = vmatpush2.msra.mxu0 0.0
  %8777 = vmatprep.subr.mxu0 0.0
  %8778 = vmatpush2.msra.mxu0 0.0
  %8779 = vmatprep.subr.mxu0 0.0
  %8780 = vmatpush2.msra.mxu0 0.0
  %8781 = vmatprep.subr.mxu0 0.0
  %8782 = vmatpush2.msra.mxu0 0.0
  %8783 = vmatprep.mubr.f32.mxu0 0.0
  %v8784 = vand.u32 %v8463, 4294901760
  %v8785 = vsub.f32 %v8463, %v8784
  %v8786 = vand.u32 %v8785, 4294901760
  %8787 = vmatmul.mubr.f32.gmra.mxu0 %v8786
  %v8788 = vpop.f32.mrf.mxu0
  %v8789 = vadd.f32 %v8712, %v8788
  %v8790 = vpop.f32.mrf.mxu0
  %8791 = vdwg.mxu0
  %8792 = vmatprep.subr.mxu0 0.0
  %8793 = vmatpush1.msra.mxu0 0.0
  %8794 = vmatprep.subr.mxu0 0.0
  %8795 = vmatpush1.msra.mxu0 0.0
  %8796 = vmatprep.subr.mxu0 0.0
  %8797 = vmatpush1.msra.mxu0 0.0
  %8798 = vmatprep.subr.mxu0 0.0
  %8799 = vmatpush1.msra.mxu0 0.0
  %8800 = vmatprep.subr.mxu0 0.0
  %8801 = vmatpush1.msra.mxu0 0.0
  %8802 = vmatprep.subr.mxu0 0.0
  %8803 = vmatpush1.msra.mxu0 0.0
  %8804 = vmatprep.subr.mxu0 0.0
  %8805 = vmatpush1.msra.mxu0 0.0
  %8806 = vmatprep.subr.mxu0 0.0
  %8807 = vmatpush1.msra.mxu0 0.0
  %8808 = vmatprep.subr.mxu0 0.0
  %8809 = vmatpush1.msra.mxu0 0.0
  %8810 = vmatprep.subr.mxu0 0.0
  %8811 = vmatpush1.msra.mxu0 0.0
  %8812 = vmatprep.subr.mxu0 0.0
  %8813 = vmatpush1.msra.mxu0 0.0
  %8814 = vmatprep.subr.mxu0 0.0
  %8815 = vmatpush1.msra.mxu0 0.0
  %8816 = vmatprep.subr.mxu0 0.0
  %v8817 = vand.u32 %v5040, 4294901760
  %v8818 = vsub.f32 %v5040, %v8817
  %v8819 = vand.u32 %v8818, 4294901760
  %8820 = vmatpush1.msra.mxu0 %v8819
  %8821 = vmatprep.subr.mxu0 0.0
  %v8822 = vand.u32 %v5039, 4294901760
  %v8823 = vsub.f32 %v5039, %v8822
  %v8824 = vand.u32 %v8823, 4294901760
  %8825 = vmatpush1.msra.mxu0 %v8824
  %8826 = vmatprep.subr.mxu0 0.0
  %v8827 = vand.u32 %v5038, 4294901760
  %v8828 = vsub.f32 %v5038, %v8827
  %v8829 = vand.u32 %v8828, 4294901760
  %8830 = vmatpush1.msra.mxu0 %v8829
  %8831 = vmatprep.subr.mxu0 0.0
  %v8832 = vand.u32 %v5037, 4294901760
  %v8833 = vsub.f32 %v5037, %v8832
  %v8834 = vand.u32 %v8833, 4294901760
  %8835 = vmatpush1.msra.mxu0 %v8834
  %8836 = vmatprep.subr.mxu0 0.0
  %8837 = vmatpush2.msra.mxu0 0.0
  %8838 = vmatprep.subr.mxu0 0.0
  %8839 = vmatpush2.msra.mxu0 0.0
  %8840 = vmatprep.subr.mxu0 0.0
  %8841 = vmatpush2.msra.mxu0 0.0
  %8842 = vmatprep.subr.mxu0 0.0
  %8843 = vmatpush2.msra.mxu0 0.0
  %8844 = vmatprep.subr.mxu0 0.0
  %8845 = vmatpush2.msra.mxu0 0.0
  %8846 = vmatprep.subr.mxu0 0.0
  %8847 = vmatpush2.msra.mxu0 0.0
  %8848 = vmatprep.subr.mxu0 0.0
  %8849 = vmatpush2.msra.mxu0 0.0
  %8850 = vmatprep.subr.mxu0 0.0
  %8851 = vmatpush2.msra.mxu0 0.0
  %8852 = vmatprep.subr.mxu0 0.0
  %8853 = vmatpush2.msra.mxu0 0.0
  %8854 = vmatprep.subr.mxu0 0.0
  %8855 = vmatpush2.msra.mxu0 0.0
  %8856 = vmatprep.subr.mxu0 0.0
  %8857 = vmatpush2.msra.mxu0 0.0
  %8858 = vmatprep.subr.mxu0 0.0
  %8859 = vmatpush2.msra.mxu0 0.0
  %8860 = vmatprep.subr.mxu0 0.0
  %8861 = vmatpush2.msra.mxu0 0.0
  %8862 = vmatprep.subr.mxu0 0.0
  %8863 = vmatpush2.msra.mxu0 0.0
  %8864 = vmatprep.subr.mxu0 0.0
  %8865 = vmatpush2.msra.mxu0 0.0
  %8866 = vmatprep.subr.mxu0 0.0
  %8867 = vmatpush2.msra.mxu0 0.0
  %8868 = vmatprep.mubr.f32.mxu0 0.0
  %v8869 = vand.u32 %v8463, 4294901760
  %8870 = vmatmul.mubr.f32.gmra.mxu0 %v8869
  %v8871 = vpop.f32.mrf.mxu0
  %v8872 = vadd.f32 %v8789, %v8871
  %v8873 = vpop.f32.mrf.mxu0
  %8874 = vdwg.mxu0
  %8875 = vmatprep.subr.mxu0 0.0
  %8876 = vmatpush1.msra.mxu0 0.0
  %8877 = vmatprep.subr.mxu0 0.0
  %8878 = vmatpush1.msra.mxu0 0.0
  %8879 = vmatprep.subr.mxu0 0.0
  %8880 = vmatpush1.msra.mxu0 0.0
  %8881 = vmatprep.subr.mxu0 0.0
  %8882 = vmatpush1.msra.mxu0 0.0
  %8883 = vmatprep.subr.mxu0 0.0
  %8884 = vmatpush1.msra.mxu0 0.0
  %8885 = vmatprep.subr.mxu0 0.0
  %8886 = vmatpush1.msra.mxu0 0.0
  %8887 = vmatprep.subr.mxu0 0.0
  %8888 = vmatpush1.msra.mxu0 0.0
  %8889 = vmatprep.subr.mxu0 0.0
  %8890 = vmatpush1.msra.mxu0 0.0
  %8891 = vmatprep.subr.mxu0 0.0
  %8892 = vmatpush1.msra.mxu0 0.0
  %8893 = vmatprep.subr.mxu0 0.0
  %8894 = vmatpush1.msra.mxu0 0.0
  %8895 = vmatprep.subr.mxu0 0.0
  %8896 = vmatpush1.msra.mxu0 0.0
  %8897 = vmatprep.subr.mxu0 0.0
  %8898 = vmatpush1.msra.mxu0 0.0
  %8899 = vmatprep.subr.mxu0 0.0
  %v8900 = vand.u32 %v5040, 4294901760
  %8901 = vmatpush1.msra.mxu0 %v8900
  %8902 = vmatprep.subr.mxu0 0.0
  %v8903 = vand.u32 %v5039, 4294901760
  %8904 = vmatpush1.msra.mxu0 %v8903
  %8905 = vmatprep.subr.mxu0 0.0
  %v8906 = vand.u32 %v5038, 4294901760
  %8907 = vmatpush1.msra.mxu0 %v8906
  %8908 = vmatprep.subr.mxu0 0.0
  %v8909 = vand.u32 %v5037, 4294901760
  %8910 = vmatpush1.msra.mxu0 %v8909
  %8911 = vmatprep.subr.mxu0 0.0
  %8912 = vmatpush2.msra.mxu0 0.0
  %8913 = vmatprep.subr.mxu0 0.0
  %8914 = vmatpush2.msra.mxu0 0.0
  %8915 = vmatprep.subr.mxu0 0.0
  %8916 = vmatpush2.msra.mxu0 0.0
  %8917 = vmatprep.subr.mxu0 0.0
  %8918 = vmatpush2.msra.mxu0 0.0
  %8919 = vmatprep.subr.mxu0 0.0
  %8920 = vmatpush2.msra.mxu0 0.0
  %8921 = vmatprep.subr.mxu0 0.0
  %8922 = vmatpush2.msra.mxu0 0.0
  %8923 = vmatprep.subr.mxu0 0.0
  %8924 = vmatpush2.msra.mxu0 0.0
  %8925 = vmatprep.subr.mxu0 0.0
  %8926 = vmatpush2.msra.mxu0 0.0
  %8927 = vmatprep.subr.mxu0 0.0
  %8928 = vmatpush2.msra.mxu0 0.0
  %8929 = vmatprep.subr.mxu0 0.0
  %8930 = vmatpush2.msra.mxu0 0.0
  %8931 = vmatprep.subr.mxu0 0.0
  %8932 = vmatpush2.msra.mxu0 0.0
  %8933 = vmatprep.subr.mxu0 0.0
  %8934 = vmatpush2.msra.mxu0 0.0
  %8935 = vmatprep.subr.mxu0 0.0
  %8936 = vmatpush2.msra.mxu0 0.0
  %8937 = vmatprep.subr.mxu0 0.0
  %8938 = vmatpush2.msra.mxu0 0.0
  %8939 = vmatprep.subr.mxu0 0.0
  %8940 = vmatpush2.msra.mxu0 0.0
  %8941 = vmatprep.subr.mxu0 0.0
  %8942 = vmatpush2.msra.mxu0 0.0
  %8943 = vmatprep.mubr.f32.mxu0 0.0
  %v8944 = vand.u32 %v8463, 4294901760
  %8945 = vmatmul.mubr.f32.gmra.mxu0 %v8944
  %v8946 = vpop.f32.mrf.mxu0
  %v8947 = vadd.f32 %v8872, %v8946
  %v8948 = vpop.f32.mrf.mxu0
  %8949 = vdwg.mxu0
  %v8950 = vadd.f32 %v8462, %v8947
  %v8951 = vsub.f32 0.0, %v8950
  %v8952 = vmul.f32 %v8951, 1.442695
  %v8953 = vpow.pop %v8952
  %v8954 = vadd.f32 %v8953, 1.0
  %v8955 = vrcp.pop %v8954
  %v8956 = vmul.f32 1.0, %v8955
  %v8957 = vtanh.pop %v8950
  %v8958 = vmul.f32 %v8956, %v8450
  %8960 = vrot.lane.b32.xlu0 %v8957, 64
  %v8961 = vpop.permute.xlu0 %8960
  %v8963 = vmul.f32 %v8956, %v8961
  %8965 = vrot.lane.b32.xlu0 %v8963, 32
  %v8966 = vpop.permute.xlu0 %8965
  %v8968 = vadd.f32 %v8958, %v8966
  %v8969 = vtanh.pop %v8968
  %8971 = vrot.lane.b32.xlu0 %v8969, 64
  %v8972 = vpop.permute.xlu0 %8971
  %v8974 = vmul.f32 %v8956, %v8972
  %8976 = vrot.lane.b32.xlu0 %v8974, 32
  %v8977 = vpop.permute.xlu0 %8976
  %8979 = vst.msk [vmem:[%s3991] sm:$0xff] %vm55, %v8977
  %v8980 = vld [vmem:[%s3993] sm:$0xff]
  %v8981 = vsel %vm55, %v8977, 0
  %8983 = vmatprep.subr.mxu0 0.0
  %8984 = vmatpush1.msra.mxu0 0.0
  %8985 = vmatprep.subr.mxu0 0.0
  %8986 = vmatpush1.msra.mxu0 0.0
  %8987 = vmatprep.subr.mxu0 0.0
  %8988 = vmatpush1.msra.mxu0 0.0
  %8989 = vmatprep.subr.mxu0 0.0
  %8990 = vmatpush1.msra.mxu0 0.0
  %8991 = vmatprep.subr.mxu0 0.0
  %8992 = vmatpush1.msra.mxu0 0.0
  %8993 = vmatprep.subr.mxu0 0.0
  %8994 = vmatpush1.msra.mxu0 0.0
  %8995 = vmatprep.subr.mxu0 0.0
  %8996 = vmatpush1.msra.mxu0 0.0
  %8997 = vmatprep.subr.mxu0 0.0
  %8998 = vmatpush1.msra.mxu0 0.0
  %8999 = vmatprep.subr.mxu0 0.0
  %9000 = vmatpush1.msra.mxu0 0.0
  %9001 = vmatprep.subr.mxu0 0.0
  %9002 = vmatpush1.msra.mxu0 0.0
  %9003 = vmatprep.subr.mxu0 0.0
  %9004 = vmatpush1.msra.mxu0 0.0
  %9005 = vmatprep.subr.mxu0 0.0
  %9006 = vmatpush1.msra.mxu0 0.0
  %9007 = vmatprep.subr.mxu0 0.0
  %v9008 = vand.u32 %v5040, 4294901760
  %9009 = vmatpush1.msra.mxu0 %v9008
  %9010 = vmatprep.subr.mxu0 0.0
  %v9011 = vand.u32 %v5039, 4294901760
  %9012 = vmatpush1.msra.mxu0 %v9011
  %9013 = vmatprep.subr.mxu0 0.0
  %v9014 = vand.u32 %v5038, 4294901760
  %9015 = vmatpush1.msra.mxu0 %v9014
  %9016 = vmatprep.subr.mxu0 0.0
  %v9017 = vand.u32 %v5037, 4294901760
  %9018 = vmatpush1.msra.mxu0 %v9017
  %9019 = vmatprep.subr.mxu0 0.0
  %9020 = vmatpush2.msra.mxu0 0.0
  %9021 = vmatprep.subr.mxu0 0.0
  %9022 = vmatpush2.msra.mxu0 0.0
  %9023 = vmatprep.subr.mxu0 0.0
  %9024 = vmatpush2.msra.mxu0 0.0
  %9025 = vmatprep.subr.mxu0 0.0
  %9026 = vmatpush2.msra.mxu0 0.0
  %9027 = vmatprep.subr.mxu0 0.0
  %9028 = vmatpush2.msra.mxu0 0.0
  %9029 = vmatprep.subr.mxu0 0.0
  %9030 = vmatpush2.msra.mxu0 0.0
  %9031 = vmatprep.subr.mxu0 0.0
  %9032 = vmatpush2.msra.mxu0 0.0
  %9033 = vmatprep.subr.mxu0 0.0
  %9034 = vmatpush2.msra.mxu0 0.0
  %9035 = vmatprep.subr.mxu0 0.0
  %9036 = vmatpush2.msra.mxu0 0.0
  %9037 = vmatprep.subr.mxu0 0.0
  %9038 = vmatpush2.msra.mxu0 0.0
  %9039 = vmatprep.subr.mxu0 0.0
  %9040 = vmatpush2.msra.mxu0 0.0
  %9041 = vmatprep.subr.mxu0 0.0
  %9042 = vmatpush2.msra.mxu0 0.0
  %9043 = vmatprep.subr.mxu0 0.0
  %9044 = vmatpush2.msra.mxu0 0.0
  %9045 = vmatprep.subr.mxu0 0.0
  %9046 = vmatpush2.msra.mxu0 0.0
  %9047 = vmatprep.subr.mxu0 0.0
  %9048 = vmatpush2.msra.mxu0 0.0
  %9049 = vmatprep.subr.mxu0 0.0
  %9050 = vmatpush2.msra.mxu0 0.0
  %9051 = vmatprep.mubr.f32.mxu0 0.0
  %v9052 = vand.u32 %v8981, 4294901760
  %v9053 = vsub.f32 %v8981, %v9052
  %v9054 = vand.u32 %v9053, 4294901760
  %v9055 = vsub.f32 %v9053, %v9054
  %v9056 = vand.u32 %v9055, 4294901760
  %9057 = vmatmul.mubr.f32.gmra.mxu0 %v9056
  %v9058 = vpop.f32.mrf.mxu0
  %v9059 = vadd.f32 0.0, %v9058
  %v9060 = vpop.f32.mrf.mxu0
  %9061 = vdwg.mxu0
  %9062 = vmatprep.subr.mxu0 0.0
  %9063 = vmatpush1.msra.mxu0 0.0
  %9064 = vmatprep.subr.mxu0 0.0
  %9065 = vmatpush1.msra.mxu0 0.0
  %9066 = vmatprep.subr.mxu0 0.0
  %9067 = vmatpush1.msra.mxu0 0.0
  %9068 = vmatprep.subr.mxu0 0.0
  %9069 = vmatpush1.msra.mxu0 0.0
  %9070 = vmatprep.subr.mxu0 0.0
  %9071 = vmatpush1.msra.mxu0 0.0
  %9072 = vmatprep.subr.mxu0 0.0
  %9073 = vmatpush1.msra.mxu0 0.0
  %9074 = vmatprep.subr.mxu0 0.0
  %9075 = vmatpush1.msra.mxu0 0.0
  %9076 = vmatprep.subr.mxu0 0.0
  %9077 = vmatpush1.msra.mxu0 0.0
  %9078 = vmatprep.subr.mxu0 0.0
  %9079 = vmatpush1.msra.mxu0 0.0
  %9080 = vmatprep.subr.mxu0 0.0
  %9081 = vmatpush1.msra.mxu0 0.0
  %9082 = vmatprep.subr.mxu0 0.0
  %9083 = vmatpush1.msra.mxu0 0.0
  %9084 = vmatprep.subr.mxu0 0.0
  %9085 = vmatpush1.msra.mxu0 0.0
  %9086 = vmatprep.subr.mxu0 0.0
  %v9087 = vand.u32 %v5040, 4294901760
  %v9088 = vsub.f32 %v5040, %v9087
  %v9089 = vand.u32 %v9088, 4294901760
  %v9090 = vsub.f32 %v9088, %v9089
  %v9091 = vand.u32 %v9090, 4294901760
  %9092 = vmatpush1.msra.mxu0 %v9091
  %9093 = vmatprep.subr.mxu0 0.0
  %v9094 = vand.u32 %v5039, 4294901760
  %v9095 = vsub.f32 %v5039, %v9094
  %v9096 = vand.u32 %v9095, 4294901760
  %v9097 = vsub.f32 %v9095, %v9096
  %v9098 = vand.u32 %v9097, 4294901760
  %9099 = vmatpush1.msra.mxu0 %v9098
  %9100 = vmatprep.subr.mxu0 0.0
  %v9101 = vand.u32 %v5038, 4294901760
  %v9102 = vsub.f32 %v5038, %v9101
  %v9103 = vand.u32 %v9102, 4294901760
  %v9104 = vsub.f32 %v9102, %v9103
  %v9105 = vand.u32 %v9104, 4294901760
  %9106 = vmatpush1.msra.mxu0 %v9105
  %9107 = vmatprep.subr.mxu0 0.0
  %v9108 = vand.u32 %v5037, 4294901760
  %v9109 = vsub.f32 %v5037, %v9108
  %v9110 = vand.u32 %v9109, 4294901760
  %v9111 = vsub.f32 %v9109, %v9110
  %v9112 = vand.u32 %v9111, 4294901760
  %9113 = vmatpush1.msra.mxu0 %v9112
  %9114 = vmatprep.subr.mxu0 0.0
  %9115 = vmatpush2.msra.mxu0 0.0
  %9116 = vmatprep.subr.mxu0 0.0
  %9117 = vmatpush2.msra.mxu0 0.0
  %9118 = vmatprep.subr.mxu0 0.0
  %9119 = vmatpush2.msra.mxu0 0.0
  %9120 = vmatprep.subr.mxu0 0.0
  %9121 = vmatpush2.msra.mxu0 0.0
  %9122 = vmatprep.subr.mxu0 0.0
  %9123 = vmatpush2.msra.mxu0 0.0
  %9124 = vmatprep.subr.mxu0 0.0
  %9125 = vmatpush2.msra.mxu0 0.0
  %9126 = vmatprep.subr.mxu0 0.0
  %9127 = vmatpush2.msra.mxu0 0.0
  %9128 = vmatprep.subr.mxu0 0.0
  %9129 = vmatpush2.msra.mxu0 0.0
  %9130 = vmatprep.subr.mxu0 0.0
  %9131 = vmatpush2.msra.mxu0 0.0
  %9132 = vmatprep.subr.mxu0 0.0
  %9133 = vmatpush2.msra.mxu0 0.0
  %9134 = vmatprep.subr.mxu0 0.0
  %9135 = vmatpush2.msra.mxu0 0.0
  %9136 = vmatprep.subr.mxu0 0.0
  %9137 = vmatpush2.msra.mxu0 0.0
  %9138 = vmatprep.subr.mxu0 0.0
  %9139 = vmatpush2.msra.mxu0 0.0
  %9140 = vmatprep.subr.mxu0 0.0
  %9141 = vmatpush2.msra.mxu0 0.0
  %9142 = vmatprep.subr.mxu0 0.0
  %9143 = vmatpush2.msra.mxu0 0.0
  %9144 = vmatprep.subr.mxu0 0.0
  %9145 = vmatpush2.msra.mxu0 0.0
  %9146 = vmatprep.mubr.f32.mxu0 0.0
  %v9147 = vand.u32 %v8981, 4294901760
  %9148 = vmatmul.mubr.f32.gmra.mxu0 %v9147
  %v9149 = vpop.f32.mrf.mxu0
  %v9150 = vadd.f32 %v9059, %v9149
  %v9151 = vpop.f32.mrf.mxu0
  %9152 = vdwg.mxu0
  %9153 = vmatprep.subr.mxu0 0.0
  %9154 = vmatpush1.msra.mxu0 0.0
  %9155 = vmatprep.subr.mxu0 0.0
  %9156 = vmatpush1.msra.mxu0 0.0
  %9157 = vmatprep.subr.mxu0 0.0
  %9158 = vmatpush1.msra.mxu0 0.0
  %9159 = vmatprep.subr.mxu0 0.0
  %9160 = vmatpush1.msra.mxu0 0.0
  %9161 = vmatprep.subr.mxu0 0.0
  %9162 = vmatpush1.msra.mxu0 0.0
  %9163 = vmatprep.subr.mxu0 0.0
  %9164 = vmatpush1.msra.mxu0 0.0
  %9165 = vmatprep.subr.mxu0 0.0
  %9166 = vmatpush1.msra.mxu0 0.0
  %9167 = vmatprep.subr.mxu0 0.0
  %9168 = vmatpush1.msra.mxu0 0.0
  %9169 = vmatprep.subr.mxu0 0.0
  %9170 = vmatpush1.msra.mxu0 0.0
  %9171 = vmatprep.subr.mxu0 0.0
  %9172 = vmatpush1.msra.mxu0 0.0
  %9173 = vmatprep.subr.mxu0 0.0
  %9174 = vmatpush1.msra.mxu0 0.0
  %9175 = vmatprep.subr.mxu0 0.0
  %9176 = vmatpush1.msra.mxu0 0.0
  %9177 = vmatprep.subr.mxu0 0.0
  %v9178 = vand.u32 %v5040, 4294901760
  %v9179 = vsub.f32 %v5040, %v9178
  %9180 = vmatpush1.msra.mxu0 %v9179
  %9181 = vmatprep.subr.mxu0 0.0
  %v9182 = vand.u32 %v5039, 4294901760
  %v9183 = vsub.f32 %v5039, %v9182
  %9184 = vmatpush1.msra.mxu0 %v9183
  %9185 = vmatprep.subr.mxu0 0.0
  %v9186 = vand.u32 %v5038, 4294901760
  %v9187 = vsub.f32 %v5038, %v9186
  %9188 = vmatpush1.msra.mxu0 %v9187
  %9189 = vmatprep.subr.mxu0 0.0
  %v9190 = vand.u32 %v5037, 4294901760
  %v9191 = vsub.f32 %v5037, %v9190
  %9192 = vmatpush1.msra.mxu0 %v9191
  %9193 = vmatprep.subr.mxu0 0.0
  %9194 = vmatpush2.msra.mxu0 0.0
  %9195 = vmatprep.subr.mxu0 0.0
  %9196 = vmatpush2.msra.mxu0 0.0
  %9197 = vmatprep.subr.mxu0 0.0
  %9198 = vmatpush2.msra.mxu0 0.0
  %9199 = vmatprep.subr.mxu0 0.0
  %9200 = vmatpush2.msra.mxu0 0.0
  %9201 = vmatprep.subr.mxu0 0.0
  %9202 = vmatpush2.msra.mxu0 0.0
  %9203 = vmatprep.subr.mxu0 0.0
  %9204 = vmatpush2.msra.mxu0 0.0
  %9205 = vmatprep.subr.mxu0 0.0
  %9206 = vmatpush2.msra.mxu0 0.0
  %9207 = vmatprep.subr.mxu0 0.0
  %9208 = vmatpush2.msra.mxu0 0.0
  %9209 = vmatprep.subr.mxu0 0.0
  %9210 = vmatpush2.msra.mxu0 0.0
  %9211 = vmatprep.subr.mxu0 0.0
  %9212 = vmatpush2.msra.mxu0 0.0
  %9213 = vmatprep.subr.mxu0 0.0
  %9214 = vmatpush2.msra.mxu0 0.0
  %9215 = vmatprep.subr.mxu0 0.0
  %9216 = vmatpush2.msra.mxu0 0.0
  %9217 = vmatprep.subr.mxu0 0.0
  %9218 = vmatpush2.msra.mxu0 0.0
  %9219 = vmatprep.subr.mxu0 0.0
  %9220 = vmatpush2.msra.mxu0 0.0
  %9221 = vmatprep.subr.mxu0 0.0
  %9222 = vmatpush2.msra.mxu0 0.0
  %9223 = vmatprep.subr.mxu0 0.0
  %9224 = vmatpush2.msra.mxu0 0.0
  %9225 = vmatprep.mubr.f32.mxu0 0.0
  %v9226 = vand.u32 %v8981, 4294901760
  %v9227 = vsub.f32 %v8981, %v9226
  %9228 = vmatmul.mubr.f32.gmra.mxu0 %v9227
  %v9229 = vpop.f32.mrf.mxu0
  %v9230 = vadd.f32 %v9150, %v9229
  %v9231 = vpop.f32.mrf.mxu0
  %9232 = vdwg.mxu0
  %9233 = vmatprep.subr.mxu0 0.0
  %9234 = vmatpush1.msra.mxu0 0.0
  %9235 = vmatprep.subr.mxu0 0.0
  %9236 = vmatpush1.msra.mxu0 0.0
  %9237 = vmatprep.subr.mxu0 0.0
  %9238 = vmatpush1.msra.mxu0 0.0
  %9239 = vmatprep.subr.mxu0 0.0
  %9240 = vmatpush1.msra.mxu0 0.0
  %9241 = vmatprep.subr.mxu0 0.0
  %9242 = vmatpush1.msra.mxu0 0.0
  %9243 = vmatprep.subr.mxu0 0.0
  %9244 = vmatpush1.msra.mxu0 0.0
  %9245 = vmatprep.subr.mxu0 0.0
  %9246 = vmatpush1.msra.mxu0 0.0
  %9247 = vmatprep.subr.mxu0 0.0
  %9248 = vmatpush1.msra.mxu0 0.0
  %9249 = vmatprep.subr.mxu0 0.0
  %9250 = vmatpush1.msra.mxu0 0.0
  %9251 = vmatprep.subr.mxu0 0.0
  %9252 = vmatpush1.msra.mxu0 0.0
  %9253 = vmatprep.subr.mxu0 0.0
  %9254 = vmatpush1.msra.mxu0 0.0
  %9255 = vmatprep.subr.mxu0 0.0
  %9256 = vmatpush1.msra.mxu0 0.0
  %9257 = vmatprep.subr.mxu0 0.0
  %v9258 = vand.u32 %v5040, 4294901760
  %9259 = vmatpush1.msra.mxu0 %v9258
  %9260 = vmatprep.subr.mxu0 0.0
  %v9261 = vand.u32 %v5039, 4294901760
  %9262 = vmatpush1.msra.mxu0 %v9261
  %9263 = vmatprep.subr.mxu0 0.0
  %v9264 = vand.u32 %v5038, 4294901760
  %9265 = vmatpush1.msra.mxu0 %v9264
  %9266 = vmatprep.subr.mxu0 0.0
  %v9267 = vand.u32 %v5037, 4294901760
  %9268 = vmatpush1.msra.mxu0 %v9267
  %9269 = vmatprep.subr.mxu0 0.0
  %9270 = vmatpush2.msra.mxu0 0.0
  %9271 = vmatprep.subr.mxu0 0.0
  %9272 = vmatpush2.msra.mxu0 0.0
  %9273 = vmatprep.subr.mxu0 0.0
  %9274 = vmatpush2.msra.mxu0 0.0
  %9275 = vmatprep.subr.mxu0 0.0
  %9276 = vmatpush2.msra.mxu0 0.0
  %9277 = vmatprep.subr.mxu0 0.0
  %9278 = vmatpush2.msra.mxu0 0.0
  %9279 = vmatprep.subr.mxu0 0.0
  %9280 = vmatpush2.msra.mxu0 0.0
  %9281 = vmatprep.subr.mxu0 0.0
  %9282 = vmatpush2.msra.mxu0 0.0
  %9283 = vmatprep.subr.mxu0 0.0
  %9284 = vmatpush2.msra.mxu0 0.0
  %9285 = vmatprep.subr.mxu0 0.0
  %9286 = vmatpush2.msra.mxu0 0.0
  %9287 = vmatprep.subr.mxu0 0.0
  %9288 = vmatpush2.msra.mxu0 0.0
  %9289 = vmatprep.subr.mxu0 0.0
  %9290 = vmatpush2.msra.mxu0 0.0
  %9291 = vmatprep.subr.mxu0 0.0
  %9292 = vmatpush2.msra.mxu0 0.0
  %9293 = vmatprep.subr.mxu0 0.0
  %9294 = vmatpush2.msra.mxu0 0.0
  %9295 = vmatprep.subr.mxu0 0.0
  %9296 = vmatpush2.msra.mxu0 0.0
  %9297 = vmatprep.subr.mxu0 0.0
  %9298 = vmatpush2.msra.mxu0 0.0
  %9299 = vmatprep.subr.mxu0 0.0
  %9300 = vmatpush2.msra.mxu0 0.0
  %9301 = vmatprep.mubr.f32.mxu0 0.0
  %v9302 = vand.u32 %v8981, 4294901760
  %v9303 = vsub.f32 %v8981, %v9302
  %v9304 = vand.u32 %v9303, 4294901760
  %9305 = vmatmul.mubr.f32.gmra.mxu0 %v9304
  %v9306 = vpop.f32.mrf.mxu0
  %v9307 = vadd.f32 %v9230, %v9306
  %v9308 = vpop.f32.mrf.mxu0
  %9309 = vdwg.mxu0
  %9310 = vmatprep.subr.mxu0 0.0
  %9311 = vmatpush1.msra.mxu0 0.0
  %9312 = vmatprep.subr.mxu0 0.0
  %9313 = vmatpush1.msra.mxu0 0.0
  %9314 = vmatprep.subr.mxu0 0.0
  %9315 = vmatpush1.msra.mxu0 0.0
  %9316 = vmatprep.subr.mxu0 0.0
  %9317 = vmatpush1.msra.mxu0 0.0
  %9318 = vmatprep.subr.mxu0 0.0
  %9319 = vmatpush1.msra.mxu0 0.0
  %9320 = vmatprep.subr.mxu0 0.0
  %9321 = vmatpush1.msra.mxu0 0.0
  %9322 = vmatprep.subr.mxu0 0.0
  %9323 = vmatpush1.msra.mxu0 0.0
  %9324 = vmatprep.subr.mxu0 0.0
  %9325 = vmatpush1.msra.mxu0 0.0
  %9326 = vmatprep.subr.mxu0 0.0
  %9327 = vmatpush1.msra.mxu0 0.0
  %9328 = vmatprep.subr.mxu0 0.0
  %9329 = vmatpush1.msra.mxu0 0.0
  %9330 = vmatprep.subr.mxu0 0.0
  %9331 = vmatpush1.msra.mxu0 0.0
  %9332 = vmatprep.subr.mxu0 0.0
  %9333 = vmatpush1.msra.mxu0 0.0
  %9334 = vmatprep.subr.mxu0 0.0
  %v9335 = vand.u32 %v5040, 4294901760
  %v9336 = vsub.f32 %v5040, %v9335
  %v9337 = vand.u32 %v9336, 4294901760
  %9338 = vmatpush1.msra.mxu0 %v9337
  %9339 = vmatprep.subr.mxu0 0.0
  %v9340 = vand.u32 %v5039, 4294901760
  %v9341 = vsub.f32 %v5039, %v9340
  %v9342 = vand.u32 %v9341, 4294901760
  %9343 = vmatpush1.msra.mxu0 %v9342
  %9344 = vmatprep.subr.mxu0 0.0
  %v9345 = vand.u32 %v5038, 4294901760
  %v9346 = vsub.f32 %v5038, %v9345
  %v9347 = vand.u32 %v9346, 4294901760
  %9348 = vmatpush1.msra.mxu0 %v9347
  %9349 = vmatprep.subr.mxu0 0.0
  %v9350 = vand.u32 %v5037, 4294901760
  %v9351 = vsub.f32 %v5037, %v9350
  %v9352 = vand.u32 %v9351, 4294901760
  %9353 = vmatpush1.msra.mxu0 %v9352
  %9354 = vmatprep.subr.mxu0 0.0
  %9355 = vmatpush2.msra.mxu0 0.0
  %9356 = vmatprep.subr.mxu0 0.0
  %9357 = vmatpush2.msra.mxu0 0.0
  %9358 = vmatprep.subr.mxu0 0.0
  %9359 = vmatpush2.msra.mxu0 0.0
  %9360 = vmatprep.subr.mxu0 0.0
  %9361 = vmatpush2.msra.mxu0 0.0
  %9362 = vmatprep.subr.mxu0 0.0
  %9363 = vmatpush2.msra.mxu0 0.0
  %9364 = vmatprep.subr.mxu0 0.0
  %9365 = vmatpush2.msra.mxu0 0.0
  %9366 = vmatprep.subr.mxu0 0.0
  %9367 = vmatpush2.msra.mxu0 0.0
  %9368 = vmatprep.subr.mxu0 0.0
  %9369 = vmatpush2.msra.mxu0 0.0
  %9370 = vmatprep.subr.mxu0 0.0
  %9371 = vmatpush2.msra.mxu0 0.0
  %9372 = vmatprep.subr.mxu0 0.0
  %9373 = vmatpush2.msra.mxu0 0.0
  %9374 = vmatprep.subr.mxu0 0.0
  %9375 = vmatpush2.msra.mxu0 0.0
  %9376 = vmatprep.subr.mxu0 0.0
  %9377 = vmatpush2.msra.mxu0 0.0
  %9378 = vmatprep.subr.mxu0 0.0
  %9379 = vmatpush2.msra.mxu0 0.0
  %9380 = vmatprep.subr.mxu0 0.0
  %9381 = vmatpush2.msra.mxu0 0.0
  %9382 = vmatprep.subr.mxu0 0.0
  %9383 = vmatpush2.msra.mxu0 0.0
  %9384 = vmatprep.subr.mxu0 0.0
  %9385 = vmatpush2.msra.mxu0 0.0
  %9386 = vmatprep.mubr.f32.mxu0 0.0
  %v9387 = vand.u32 %v8981, 4294901760
  %9388 = vmatmul.mubr.f32.gmra.mxu0 %v9387
  %v9389 = vpop.f32.mrf.mxu0
  %v9390 = vadd.f32 %v9307, %v9389
  %v9391 = vpop.f32.mrf.mxu0
  %9392 = vdwg.mxu0
  %9393 = vmatprep.subr.mxu0 0.0
  %9394 = vmatpush1.msra.mxu0 0.0
  %9395 = vmatprep.subr.mxu0 0.0
  %9396 = vmatpush1.msra.mxu0 0.0
  %9397 = vmatprep.subr.mxu0 0.0
  %9398 = vmatpush1.msra.mxu0 0.0
  %9399 = vmatprep.subr.mxu0 0.0
  %9400 = vmatpush1.msra.mxu0 0.0
  %9401 = vmatprep.subr.mxu0 0.0
  %9402 = vmatpush1.msra.mxu0 0.0
  %9403 = vmatprep.subr.mxu0 0.0
  %9404 = vmatpush1.msra.mxu0 0.0
  %9405 = vmatprep.subr.mxu0 0.0
  %9406 = vmatpush1.msra.mxu0 0.0
  %9407 = vmatprep.subr.mxu0 0.0
  %9408 = vmatpush1.msra.mxu0 0.0
  %9409 = vmatprep.subr.mxu0 0.0
  %9410 = vmatpush1.msra.mxu0 0.0
  %9411 = vmatprep.subr.mxu0 0.0
  %9412 = vmatpush1.msra.mxu0 0.0
  %9413 = vmatprep.subr.mxu0 0.0
  %9414 = vmatpush1.msra.mxu0 0.0
  %9415 = vmatprep.subr.mxu0 0.0
  %9416 = vmatpush1.msra.mxu0 0.0
  %9417 = vmatprep.subr.mxu0 0.0
  %v9418 = vand.u32 %v5040, 4294901760
  %9419 = vmatpush1.msra.mxu0 %v9418
  %9420 = vmatprep.subr.mxu0 0.0
  %v9421 = vand.u32 %v5039, 4294901760
  %9422 = vmatpush1.msra.mxu0 %v9421
  %9423 = vmatprep.subr.mxu0 0.0
  %v9424 = vand.u32 %v5038, 4294901760
  %9425 = vmatpush1.msra.mxu0 %v9424
  %9426 = vmatprep.subr.mxu0 0.0
  %v9427 = vand.u32 %v5037, 4294901760
  %9428 = vmatpush1.msra.mxu0 %v9427
  %9429 = vmatprep.subr.mxu0 0.0
  %9430 = vmatpush2.msra.mxu0 0.0
  %9431 = vmatprep.subr.mxu0 0.0
  %9432 = vmatpush2.msra.mxu0 0.0
  %9433 = vmatprep.subr.mxu0 0.0
  %9434 = vmatpush2.msra.mxu0 0.0
  %9435 = vmatprep.subr.mxu0 0.0
  %9436 = vmatpush2.msra.mxu0 0.0
  %9437 = vmatprep.subr.mxu0 0.0
  %9438 = vmatpush2.msra.mxu0 0.0
  %9439 = vmatprep.subr.mxu0 0.0
  %9440 = vmatpush2.msra.mxu0 0.0
  %9441 = vmatprep.subr.mxu0 0.0
  %9442 = vmatpush2.msra.mxu0 0.0
  %9443 = vmatprep.subr.mxu0 0.0
  %9444 = vmatpush2.msra.mxu0 0.0
  %9445 = vmatprep.subr.mxu0 0.0
  %9446 = vmatpush2.msra.mxu0 0.0
  %9447 = vmatprep.subr.mxu0 0.0
  %9448 = vmatpush2.msra.mxu0 0.0
  %9449 = vmatprep.subr.mxu0 0.0
  %9450 = vmatpush2.msra.mxu0 0.0
  %9451 = vmatprep.subr.mxu0 0.0
  %9452 = vmatpush2.msra.mxu0 0.0
  %9453 = vmatprep.subr.mxu0 0.0
  %9454 = vmatpush2.msra.mxu0 0.0
  %9455 = vmatprep.subr.mxu0 0.0
  %9456 = vmatpush2.msra.mxu0 0.0
  %9457 = vmatprep.subr.mxu0 0.0
  %9458 = vmatpush2.msra.mxu0 0.0
  %9459 = vmatprep.subr.mxu0 0.0
  %9460 = vmatpush2.msra.mxu0 0.0
  %9461 = vmatprep.mubr.f32.mxu0 0.0
  %v9462 = vand.u32 %v8981, 4294901760
  %9463 = vmatmul.mubr.f32.gmra.mxu0 %v9462
  %v9464 = vpop.f32.mrf.mxu0
  %v9465 = vadd.f32 %v9390, %v9464
  %v9466 = vpop.f32.mrf.mxu0
  %9467 = vdwg.mxu0
  %v9468 = vadd.f32 %v8980, %v9465
  %v9469 = vsub.f32 0.0, %v9468
  %v9470 = vmul.f32 %v9469, 1.442695
  %v9471 = vpow.pop %v9470
  %v9472 = vadd.f32 %v9471, 1.0
  %v9473 = vrcp.pop %v9472
  %v9474 = vmul.f32 1.0, %v9473
  %v9475 = vtanh.pop %v9468
  %v9476 = vmul.f32 %v9474, %v8968
  %9478 = vrot.lane.b32.xlu0 %v9475, 64
  %v9479 = vpop.permute.xlu0 %9478
  %v9481 = vmul.f32 %v9474, %v9479
  %9483 = vrot.lane.b32.xlu0 %v9481, 32
  %v9484 = vpop.permute.xlu0 %9483
  %v9486 = vadd.f32 %v9476, %v9484
  %v9487 = vtanh.pop %v9486
  %9489 = vrot.lane.b32.xlu0 %v9487, 64
  %v9490 = vpop.permute.xlu0 %9489
  %v9492 = vmul.f32 %v9474, %v9490
  %9494 = vrot.lane.b32.xlu0 %v9492, 32
  %v9495 = vpop.permute.xlu0 %9494
  %9497 = vst.msk [vmem:[%s4511] sm:$0xff] %vm55, %v9495
  %v9498 = vld [vmem:[%s4513] sm:$0xff]
  %v9499 = vsel %vm55, %v9495, 0
  %9501 = vmatprep.subr.mxu0 0.0
  %9502 = vmatpush1.msra.mxu0 0.0
  %9503 = vmatprep.subr.mxu0 0.0
  %9504 = vmatpush1.msra.mxu0 0.0
  %9505 = vmatprep.subr.mxu0 0.0
  %9506 = vmatpush1.msra.mxu0 0.0
  %9507 = vmatprep.subr.mxu0 0.0
  %9508 = vmatpush1.msra.mxu0 0.0
  %9509 = vmatprep.subr.mxu0 0.0
  %9510 = vmatpush1.msra.mxu0 0.0
  %9511 = vmatprep.subr.mxu0 0.0
  %9512 = vmatpush1.msra.mxu0 0.0
  %9513 = vmatprep.subr.mxu0 0.0
  %9514 = vmatpush1.msra.mxu0 0.0
  %9515 = vmatprep.subr.mxu0 0.0
  %9516 = vmatpush1.msra.mxu0 0.0
  %9517 = vmatprep.subr.mxu0 0.0
  %9518 = vmatpush1.msra.mxu0 0.0
  %9519 = vmatprep.subr.mxu0 0.0
  %9520 = vmatpush1.msra.mxu0 0.0
  %9521 = vmatprep.subr.mxu0 0.0
  %9522 = vmatpush1.msra.mxu0 0.0
  %9523 = vmatprep.subr.mxu0 0.0
  %9524 = vmatpush1.msra.mxu0 0.0
  %9525 = vmatprep.subr.mxu0 0.0
  %v9526 = vand.u32 %v5040, 4294901760
  %9527 = vmatpush1.msra.mxu0 %v9526
  %9528 = vmatprep.subr.mxu0 0.0
  %v9529 = vand.u32 %v5039, 4294901760
  %9530 = vmatpush1.msra.mxu0 %v9529
  %9531 = vmatprep.subr.mxu0 0.0
  %v9532 = vand.u32 %v5038, 4294901760
  %9533 = vmatpush1.msra.mxu0 %v9532
  %9534 = vmatprep.subr.mxu0 0.0
  %v9535 = vand.u32 %v5037, 4294901760
  %9536 = vmatpush1.msra.mxu0 %v9535
  %9537 = vmatprep.subr.mxu0 0.0
  %9538 = vmatpush2.msra.mxu0 0.0
  %9539 = vmatprep.subr.mxu0 0.0
  %9540 = vmatpush2.msra.mxu0 0.0
  %9541 = vmatprep.subr.mxu0 0.0
  %9542 = vmatpush2.msra.mxu0 0.0
  %9543 = vmatprep.subr.mxu0 0.0
  %9544 = vmatpush2.msra.mxu0 0.0
  %9545 = vmatprep.subr.mxu0 0.0
  %9546 = vmatpush2.msra.mxu0 0.0
  %9547 = vmatprep.subr.mxu0 0.0
  %9548 = vmatpush2.msra.mxu0 0.0
  %9549 = vmatprep.subr.mxu0 0.0
  %9550 = vmatpush2.msra.mxu0 0.0
  %9551 = vmatprep.subr.mxu0 0.0
  %9552 = vmatpush2.msra.mxu0 0.0
  %9553 = vmatprep.subr.mxu0 0.0
  %9554 = vmatpush2.msra.mxu0 0.0
  %9555 = vmatprep.subr.mxu0 0.0
  %9556 = vmatpush2.msra.mxu0 0.0
  %9557 = vmatprep.subr.mxu0 0.0
  %9558 = vmatpush2.msra.mxu0 0.0
  %9559 = vmatprep.subr.mxu0 0.0
  %9560 = vmatpush2.msra.mxu0 0.0
  %9561 = vmatprep.subr.mxu0 0.0
  %9562 = vmatpush2.msra.mxu0 0.0
  %9563 = vmatprep.subr.mxu0 0.0
  %9564 = vmatpush2.msra.mxu0 0.0
  %9565 = vmatprep.subr.mxu0 0.0
  %9566 = vmatpush2.msra.mxu0 0.0
  %9567 = vmatprep.subr.mxu0 0.0
  %9568 = vmatpush2.msra.mxu0 0.0
  %9569 = vmatprep.mubr.f32.mxu0 0.0
  %v9570 = vand.u32 %v9499, 4294901760
  %v9571 = vsub.f32 %v9499, %v9570
  %v9572 = vand.u32 %v9571, 4294901760
  %v9573 = vsub.f32 %v9571, %v9572
  %v9574 = vand.u32 %v9573, 4294901760
  %9575 = vmatmul.mubr.f32.gmra.mxu0 %v9574
  %v9576 = vpop.f32.mrf.mxu0
  %v9577 = vadd.f32 0.0, %v9576
  %v9578 = vpop.f32.mrf.mxu0
  %9579 = vdwg.mxu0
  %9580 = vmatprep.subr.mxu0 0.0
  %9581 = vmatpush1.msra.mxu0 0.0
  %9582 = vmatprep.subr.mxu0 0.0
  %9583 = vmatpush1.msra.mxu0 0.0
  %9584 = vmatprep.subr.mxu0 0.0
  %9585 = vmatpush1.msra.mxu0 0.0
  %9586 = vmatprep.subr.mxu0 0.0
  %9587 = vmatpush1.msra.mxu0 0.0
  %9588 = vmatprep.subr.mxu0 0.0
  %9589 = vmatpush1.msra.mxu0 0.0
  %9590 = vmatprep.subr.mxu0 0.0
  %9591 = vmatpush1.msra.mxu0 0.0
  %9592 = vmatprep.subr.mxu0 0.0
  %9593 = vmatpush1.msra.mxu0 0.0
  %9594 = vmatprep.subr.mxu0 0.0
  %9595 = vmatpush1.msra.mxu0 0.0
  %9596 = vmatprep.subr.mxu0 0.0
  %9597 = vmatpush1.msra.mxu0 0.0
  %9598 = vmatprep.subr.mxu0 0.0
  %9599 = vmatpush1.msra.mxu0 0.0
  %9600 = vmatprep.subr.mxu0 0.0
  %9601 = vmatpush1.msra.mxu0 0.0
  %9602 = vmatprep.subr.mxu0 0.0
  %9603 = vmatpush1.msra.mxu0 0.0
  %9604 = vmatprep.subr.mxu0 0.0
  %v9605 = vand.u32 %v5040, 4294901760
  %v9606 = vsub.f32 %v5040, %v9605
  %v9607 = vand.u32 %v9606, 4294901760
  %v9608 = vsub.f32 %v9606, %v9607
  %v9609 = vand.u32 %v9608, 4294901760
  %9610 = vmatpush1.msra.mxu0 %v9609
  %9611 = vmatprep.subr.mxu0 0.0
  %v9612 = vand.u32 %v5039, 4294901760
  %v9613 = vsub.f32 %v5039, %v9612
  %v9614 = vand.u32 %v9613, 4294901760
  %v9615 = vsub.f32 %v9613, %v9614
  %v9616 = vand.u32 %v9615, 4294901760
  %9617 = vmatpush1.msra.mxu0 %v9616
  %9618 = vmatprep.subr.mxu0 0.0
  %v9619 = vand.u32 %v5038, 4294901760
  %v9620 = vsub.f32 %v5038, %v9619
  %v9621 = vand.u32 %v9620, 4294901760
  %v9622 = vsub.f32 %v9620, %v9621
  %v9623 = vand.u32 %v9622, 4294901760
  %9624 = vmatpush1.msra.mxu0 %v9623
  %9625 = vmatprep.subr.mxu0 0.0
  %v9626 = vand.u32 %v5037, 4294901760
  %v9627 = vsub.f32 %v5037, %v9626
  %v9628 = vand.u32 %v9627, 4294901760
  %v9629 = vsub.f32 %v9627, %v9628
  %v9630 = vand.u32 %v9629, 4294901760
  %9631 = vmatpush1.msra.mxu0 %v9630
  %9632 = vmatprep.subr.mxu0 0.0
  %9633 = vmatpush2.msra.mxu0 0.0
  %9634 = vmatprep.subr.mxu0 0.0
  %9635 = vmatpush2.msra.mxu0 0.0
  %9636 = vmatprep.subr.mxu0 0.0
  %9637 = vmatpush2.msra.mxu0 0.0
  %9638 = vmatprep.subr.mxu0 0.0
  %9639 = vmatpush2.msra.mxu0 0.0
  %9640 = vmatprep.subr.mxu0 0.0
  %9641 = vmatpush2.msra.mxu0 0.0
  %9642 = vmatprep.subr.mxu0 0.0
  %9643 = vmatpush2.msra.mxu0 0.0
  %9644 = vmatprep.subr.mxu0 0.0
  %9645 = vmatpush2.msra.mxu0 0.0
  %9646 = vmatprep.subr.mxu0 0.0
  %9647 = vmatpush2.msra.mxu0 0.0
  %9648 = vmatprep.subr.mxu0 0.0
  %9649 = vmatpush2.msra.mxu0 0.0
  %9650 = vmatprep.subr.mxu0 0.0
  %9651 = vmatpush2.msra.mxu0 0.0
  %9652 = vmatprep.subr.mxu0 0.0
  %9653 = vmatpush2.msra.mxu0 0.0
  %9654 = vmatprep.subr.mxu0 0.0
  %9655 = vmatpush2.msra.mxu0 0.0
  %9656 = vmatprep.subr.mxu0 0.0
  %9657 = vmatpush2.msra.mxu0 0.0
  %9658 = vmatprep.subr.mxu0 0.0
  %9659 = vmatpush2.msra.mxu0 0.0
  %9660 = vmatprep.subr.mxu0 0.0
  %9661 = vmatpush2.msra.mxu0 0.0
  %9662 = vmatprep.subr.mxu0 0.0
  %9663 = vmatpush2.msra.mxu0 0.0
  %9664 = vmatprep.mubr.f32.mxu0 0.0
  %v9665 = vand.u32 %v9499, 4294901760
  %9666 = vmatmul.mubr.f32.gmra.mxu0 %v9665
  %v9667 = vpop.f32.mrf.mxu0
  %v9668 = vadd.f32 %v9577, %v9667
  %v9669 = vpop.f32.mrf.mxu0
  %9670 = vdwg.mxu0
  %9671 = vmatprep.subr.mxu0 0.0
  %9672 = vmatpush1.msra.mxu0 0.0
  %9673 = vmatprep.subr.mxu0 0.0
  %9674 = vmatpush1.msra.mxu0 0.0
  %9675 = vmatprep.subr.mxu0 0.0
  %9676 = vmatpush1.msra.mxu0 0.0
  %9677 = vmatprep.subr.mxu0 0.0
  %9678 = vmatpush1.msra.mxu0 0.0
  %9679 = vmatprep.subr.mxu0 0.0
  %9680 = vmatpush1.msra.mxu0 0.0
  %9681 = vmatprep.subr.mxu0 0.0
  %9682 = vmatpush1.msra.mxu0 0.0
  %9683 = vmatprep.subr.mxu0 0.0
  %9684 = vmatpush1.msra.mxu0 0.0
  %9685 = vmatprep.subr.mxu0 0.0
  %9686 = vmatpush1.msra.mxu0 0.0
  %9687 = vmatprep.subr.mxu0 0.0
  %9688 = vmatpush1.msra.mxu0 0.0
  %9689 = vmatprep.subr.mxu0 0.0
  %9690 = vmatpush1.msra.mxu0 0.0
  %9691 = vmatprep.subr.mxu0 0.0
  %9692 = vmatpush1.msra.mxu0 0.0
  %9693 = vmatprep.subr.mxu0 0.0
  %9694 = vmatpush1.msra.mxu0 0.0
  %9695 = vmatprep.subr.mxu0 0.0
  %v9696 = vand.u32 %v5040, 4294901760
  %v9697 = vsub.f32 %v5040, %v9696
  %9698 = vmatpush1.msra.mxu0 %v9697
  %9699 = vmatprep.subr.mxu0 0.0
  %v9700 = vand.u32 %v5039, 4294901760
  %v9701 = vsub.f32 %v5039, %v9700
  %9702 = vmatpush1.msra.mxu0 %v9701
  %9703 = vmatprep.subr.mxu0 0.0
  %v9704 = vand.u32 %v5038, 4294901760
  %v9705 = vsub.f32 %v5038, %v9704
  %9706 = vmatpush1.msra.mxu0 %v9705
  %9707 = vmatprep.subr.mxu0 0.0
  %v9708 = vand.u32 %v5037, 4294901760
  %v9709 = vsub.f32 %v5037, %v9708
  %9710 = vmatpush1.msra.mxu0 %v9709
  %9711 = vmatprep.subr.mxu0 0.0
  %9712 = vmatpush2.msra.mxu0 0.0
  %9713 = vmatprep.subr.mxu0 0.0
  %9714 = vmatpush2.msra.mxu0 0.0
  %9715 = vmatprep.subr.mxu0 0.0
  %9716 = vmatpush2.msra.mxu0 0.0
  %9717 = vmatprep.subr.mxu0 0.0
  %9718 = vmatpush2.msra.mxu0 0.0
  %9719 = vmatprep.subr.mxu0 0.0
  %9720 = vmatpush2.msra.mxu0 0.0
  %9721 = vmatprep.subr.mxu0 0.0
  %9722 = vmatpush2.msra.mxu0 0.0
  %9723 = vmatprep.subr.mxu0 0.0
  %9724 = vmatpush2.msra.mxu0 0.0
  %9725 = vmatprep.subr.mxu0 0.0
  %9726 = vmatpush2.msra.mxu0 0.0
  %9727 = vmatprep.subr.mxu0 0.0
  %9728 = vmatpush2.msra.mxu0 0.0
  %9729 = vmatprep.subr.mxu0 0.0
  %9730 = vmatpush2.msra.mxu0 0.0
  %9731 = vmatprep.subr.mxu0 0.0
  %9732 = vmatpush2.msra.mxu0 0.0
  %9733 = vmatprep.subr.mxu0 0.0
  %9734 = vmatpush2.msra.mxu0 0.0
  %9735 = vmatprep.subr.mxu0 0.0
  %9736 = vmatpush2.msra.mxu0 0.0
  %9737 = vmatprep.subr.mxu0 0.0
  %9738 = vmatpush2.msra.mxu0 0.0
  %9739 = vmatprep.subr.mxu0 0.0
  %9740 = vmatpush2.msra.mxu0 0.0
  %9741 = vmatprep.subr.mxu0 0.0
  %9742 = vmatpush2.msra.mxu0 0.0
  %9743 = vmatprep.mubr.f32.mxu0 0.0
  %v9744 = vand.u32 %v9499, 4294901760
  %v9745 = vsub.f32 %v9499, %v9744
  %9746 = vmatmul.mubr.f32.gmra.mxu0 %v9745
  %v9747 = vpop.f32.mrf.mxu0
  %v9748 = vadd.f32 %v9668, %v9747
  %v9749 = vpop.f32.mrf.mxu0
  %9750 = vdwg.mxu0
  %9751 = vmatprep.subr.mxu0 0.0
  %9752 = vmatpush1.msra.mxu0 0.0
  %9753 = vmatprep.subr.mxu0 0.0
  %9754 = vmatpush1.msra.mxu0 0.0
  %9755 = vmatprep.subr.mxu0 0.0
  %9756 = vmatpush1.msra.mxu0 0.0
  %9757 = vmatprep.subr.mxu0 0.0
  %9758 = vmatpush1.msra.mxu0 0.0
  %9759 = vmatprep.subr.mxu0 0.0
  %9760 = vmatpush1.msra.mxu0 0.0
  %9761 = vmatprep.subr.mxu0 0.0
  %9762 = vmatpush1.msra.mxu0 0.0
  %9763 = vmatprep.subr.mxu0 0.0
  %9764 = vmatpush1.msra.mxu0 0.0
  %9765 = vmatprep.subr.mxu0 0.0
  %9766 = vmatpush1.msra.mxu0 0.0
  %9767 = vmatprep.subr.mxu0 0.0
  %9768 = vmatpush1.msra.mxu0 0.0
  %9769 = vmatprep.subr.mxu0 0.0
  %9770 = vmatpush1.msra.mxu0 0.0
  %9771 = vmatprep.subr.mxu0 0.0
  %9772 = vmatpush1.msra.mxu0 0.0
  %9773 = vmatprep.subr.mxu0 0.0
  %9774 = vmatpush1.msra.mxu0 0.0
  %9775 = vmatprep.subr.mxu0 0.0
  %v9776 = vand.u32 %v5040, 4294901760
  %9777 = vmatpush1.msra.mxu0 %v9776
  %9778 = vmatprep.subr.mxu0 0.0
  %v9779 = vand.u32 %v5039, 4294901760
  %9780 = vmatpush1.msra.mxu0 %v9779
  %9781 = vmatprep.subr.mxu0 0.0
  %v9782 = vand.u32 %v5038, 4294901760
  %9783 = vmatpush1.msra.mxu0 %v9782
  %9784 = vmatprep.subr.mxu0 0.0
  %v9785 = vand.u32 %v5037, 4294901760
  %9786 = vmatpush1.msra.mxu0 %v9785
  %9787 = vmatprep.subr.mxu0 0.0
  %9788 = vmatpush2.msra.mxu0 0.0
  %9789 = vmatprep.subr.mxu0 0.0
  %9790 = vmatpush2.msra.mxu0 0.0
  %9791 = vmatprep.subr.mxu0 0.0
  %9792 = vmatpush2.msra.mxu0 0.0
  %9793 = vmatprep.subr.mxu0 0.0
  %9794 = vmatpush2.msra.mxu0 0.0
  %9795 = vmatprep.subr.mxu0 0.0
  %9796 = vmatpush2.msra.mxu0 0.0
  %9797 = vmatprep.subr.mxu0 0.0
  %9798 = vmatpush2.msra.mxu0 0.0
  %9799 = vmatprep.subr.mxu0 0.0
  %9800 = vmatpush2.msra.mxu0 0.0
  %9801 = vmatprep.subr.mxu0 0.0
  %9802 = vmatpush2.msra.mxu0 0.0
  %9803 = vmatprep.subr.mxu0 0.0
  %9804 = vmatpush2.msra.mxu0 0.0
  %9805 = vmatprep.subr.mxu0 0.0
  %9806 = vmatpush2.msra.mxu0 0.0
  %9807 = vmatprep.subr.mxu0 0.0
  %9808 = vmatpush2.msra.mxu0 0.0
  %9809 = vmatprep.subr.mxu0 0.0
  %9810 = vmatpush2.msra.mxu0 0.0
  %9811 = vmatprep.subr.mxu0 0.0
  %9812 = vmatpush2.msra.mxu0 0.0
  %9813 = vmatprep.subr.mxu0 0.0
  %9814 = vmatpush2.msra.mxu0 0.0
  %9815 = vmatprep.subr.mxu0 0.0
  %9816 = vmatpush2.msra.mxu0 0.0
  %9817 = vmatprep.subr.mxu0 0.0
  %9818 = vmatpush2.msra.mxu0 0.0
  %9819 = vmatprep.mubr.f32.mxu0 0.0
  %v9820 = vand.u32 %v9499, 4294901760
  %v9821 = vsub.f32 %v9499, %v9820
  %v9822 = vand.u32 %v9821, 4294901760
  %9823 = vmatmul.mubr.f32.gmra.mxu0 %v9822
  %v9824 = vpop.f32.mrf.mxu0
  %v9825 = vadd.f32 %v9748, %v9824
  %v9826 = vpop.f32.mrf.mxu0
  %9827 = vdwg.mxu0
  %9828 = vmatprep.subr.mxu0 0.0
  %9829 = vmatpush1.msra.mxu0 0.0
  %9830 = vmatprep.subr.mxu0 0.0
  %9831 = vmatpush1.msra.mxu0 0.0
  %9832 = vmatprep.subr.mxu0 0.0
  %9833 = vmatpush1.msra.mxu0 0.0
  %9834 = vmatprep.subr.mxu0 0.0
  %9835 = vmatpush1.msra.mxu0 0.0
  %9836 = vmatprep.subr.mxu0 0.0
  %9837 = vmatpush1.msra.mxu0 0.0
  %9838 = vmatprep.subr.mxu0 0.0
  %9839 = vmatpush1.msra.mxu0 0.0
  %9840 = vmatprep.subr.mxu0 0.0
  %9841 = vmatpush1.msra.mxu0 0.0
  %9842 = vmatprep.subr.mxu0 0.0
  %9843 = vmatpush1.msra.mxu0 0.0
  %9844 = vmatprep.subr.mxu0 0.0
  %9845 = vmatpush1.msra.mxu0 0.0
  %9846 = vmatprep.subr.mxu0 0.0
  %9847 = vmatpush1.msra.mxu0 0.0
  %9848 = vmatprep.subr.mxu0 0.0
  %9849 = vmatpush1.msra.mxu0 0.0
  %9850 = vmatprep.subr.mxu0 0.0
  %9851 = vmatpush1.msra.mxu0 0.0
  %9852 = vmatprep.subr.mxu0 0.0
  %v9853 = vand.u32 %v5040, 4294901760
  %v9854 = vsub.f32 %v5040, %v9853
  %v9855 = vand.u32 %v9854, 4294901760
  %9856 = vmatpush1.msra.mxu0 %v9855
  %9857 = vmatprep.subr.mxu0 0.0
  %v9858 = vand.u32 %v5039, 4294901760
  %v9859 = vsub.f32 %v5039, %v9858
  %v9860 = vand.u32 %v9859, 4294901760
  %9861 = vmatpush1.msra.mxu0 %v9860
  %9862 = vmatprep.subr.mxu0 0.0
  %v9863 = vand.u32 %v5038, 4294901760
  %v9864 = vsub.f32 %v5038, %v9863
  %v9865 = vand.u32 %v9864, 4294901760
  %9866 = vmatpush1.msra.mxu0 %v9865
  %9867 = vmatprep.subr.mxu0 0.0
  %v9868 = vand.u32 %v5037, 4294901760
  %v9869 = vsub.f32 %v5037, %v9868
  %v9870 = vand.u32 %v9869, 4294901760
  %9871 = vmatpush1.msra.mxu0 %v9870
  %9872 = vmatprep.subr.mxu0 0.0
  %9873 = vmatpush2.msra.mxu0 0.0
  %9874 = vmatprep.subr.mxu0 0.0
  %9875 = vmatpush2.msra.mxu0 0.0
  %9876 = vmatprep.subr.mxu0 0.0
  %9877 = vmatpush2.msra.mxu0 0.0
  %9878 = vmatprep.subr.mxu0 0.0
  %9879 = vmatpush2.msra.mxu0 0.0
  %9880 = vmatprep.subr.mxu0 0.0
  %9881 = vmatpush2.msra.mxu0 0.0
  %9882 = vmatprep.subr.mxu0 0.0
  %9883 = vmatpush2.msra.mxu0 0.0
  %9884 = vmatprep.subr.mxu0 0.0
  %9885 = vmatpush2.msra.mxu0 0.0
  %9886 = vmatprep.subr.mxu0 0.0
  %9887 = vmatpush2.msra.mxu0 0.0
  %9888 = vmatprep.subr.mxu0 0.0
  %9889 = vmatpush2.msra.mxu0 0.0
  %9890 = vmatprep.subr.mxu0 0.0
  %9891 = vmatpush2.msra.mxu0 0.0
  %9892 = vmatprep.subr.mxu0 0.0
  %9893 = vmatpush2.msra.mxu0 0.0
  %9894 = vmatprep.subr.mxu0 0.0
  %9895 = vmatpush2.msra.mxu0 0.0
  %9896 = vmatprep.subr.mxu0 0.0
  %9897 = vmatpush2.msra.mxu0 0.0
  %9898 = vmatprep.subr.mxu0 0.0
  %9899 = vmatpush2.msra.mxu0 0.0
  %9900 = vmatprep.subr.mxu0 0.0
  %9901 = vmatpush2.msra.mxu0 0.0
  %9902 = vmatprep.subr.mxu0 0.0
  %9903 = vmatpush2.msra.mxu0 0.0
  %9904 = vmatprep.mubr.f32.mxu0 0.0
  %v9905 = vand.u32 %v9499, 4294901760
  %9906 = vmatmul.mubr.f32.gmra.mxu0 %v9905
  %v9907 = vpop.f32.mrf.mxu0
  %v9908 = vadd.f32 %v9825, %v9907
  %v9909 = vpop.f32.mrf.mxu0
  %9910 = vdwg.mxu0
  %9911 = vmatprep.subr.mxu0 0.0
  %9912 = vmatpush1.msra.mxu0 0.0
  %9913 = vmatprep.subr.mxu0 0.0
  %9914 = vmatpush1.msra.mxu0 0.0
  %9915 = vmatprep.subr.mxu0 0.0
  %9916 = vmatpush1.msra.mxu0 0.0
  %9917 = vmatprep.subr.mxu0 0.0
  %9918 = vmatpush1.msra.mxu0 0.0
  %9919 = vmatprep.subr.mxu0 0.0
  %9920 = vmatpush1.msra.mxu0 0.0
  %9921 = vmatprep.subr.mxu0 0.0
  %9922 = vmatpush1.msra.mxu0 0.0
  %9923 = vmatprep.subr.mxu0 0.0
  %9924 = vmatpush1.msra.mxu0 0.0
  %9925 = vmatprep.subr.mxu0 0.0
  %9926 = vmatpush1.msra.mxu0 0.0
  %9927 = vmatprep.subr.mxu0 0.0
  %9928 = vmatpush1.msra.mxu0 0.0
  %9929 = vmatprep.subr.mxu0 0.0
  %9930 = vmatpush1.msra.mxu0 0.0
  %9931 = vmatprep.subr.mxu0 0.0
  %9932 = vmatpush1.msra.mxu0 0.0
  %9933 = vmatprep.subr.mxu0 0.0
  %9934 = vmatpush1.msra.mxu0 0.0
  %9935 = vmatprep.subr.mxu0 0.0
  %v9936 = vand.u32 %v5040, 4294901760
  %9937 = vmatpush1.msra.mxu0 %v9936
  %9938 = vmatprep.subr.mxu0 0.0
  %v9939 = vand.u32 %v5039, 4294901760
  %9940 = vmatpush1.msra.mxu0 %v9939
  %9941 = vmatprep.subr.mxu0 0.0
  %v9942 = vand.u32 %v5038, 4294901760
  %9943 = vmatpush1.msra.mxu0 %v9942
  %9944 = vmatprep.subr.mxu0 0.0
  %v9945 = vand.u32 %v5037, 4294901760
  %9946 = vmatpush1.msra.mxu0 %v9945
  %9947 = vmatprep.subr.mxu0 0.0
  %9948 = vmatpush2.msra.mxu0 0.0
  %9949 = vmatprep.subr.mxu0 0.0
  %9950 = vmatpush2.msra.mxu0 0.0
  %9951 = vmatprep.subr.mxu0 0.0
  %9952 = vmatpush2.msra.mxu0 0.0
  %9953 = vmatprep.subr.mxu0 0.0
  %9954 = vmatpush2.msra.mxu0 0.0
  %9955 = vmatprep.subr.mxu0 0.0
  %9956 = vmatpush2.msra.mxu0 0.0
  %9957 = vmatprep.subr.mxu0 0.0
  %9958 = vmatpush2.msra.mxu0 0.0
  %9959 = vmatprep.subr.mxu0 0.0
  %9960 = vmatpush2.msra.mxu0 0.0
  %9961 = vmatprep.subr.mxu0 0.0
  %9962 = vmatpush2.msra.mxu0 0.0
  %9963 = vmatprep.subr.mxu0 0.0
  %9964 = vmatpush2.msra.mxu0 0.0
  %9965 = vmatprep.subr.mxu0 0.0
  %9966 = vmatpush2.msra.mxu0 0.0
  %9967 = vmatprep.subr.mxu0 0.0
  %9968 = vmatpush2.msra.mxu0 0.0
  %9969 = vmatprep.subr.mxu0 0.0
  %9970 = vmatpush2.msra.mxu0 0.0
  %9971 = vmatprep.subr.mxu0 0.0
  %9972 = vmatpush2.msra.mxu0 0.0
  %9973 = vmatprep.subr.mxu0 0.0
  %9974 = vmatpush2.msra.mxu0 0.0
  %9975 = vmatprep.subr.mxu0 0.0
  %9976 = vmatpush2.msra.mxu0 0.0
  %9977 = vmatprep.subr.mxu0 0.0
  %9978 = vmatpush2.msra.mxu0 0.0
  %9979 = vmatprep.mubr.f32.mxu0 0.0
  %v9980 = vand.u32 %v9499, 4294901760
  %9981 = vmatmul.mubr.f32.gmra.mxu0 %v9980
  %v9982 = vpop.f32.mrf.mxu0
  %v9983 = vadd.f32 %v9908, %v9982
  %v9984 = vpop.f32.mrf.mxu0
  %9985 = vdwg.mxu0
  %v9986 = vadd.f32 %v9498, %v9983
  %v9987 = vsub.f32 0.0, %v9986
  %v9988 = vmul.f32 %v9987, 1.442695
  %v9989 = vpow.pop %v9988
  %v9990 = vadd.f32 %v9989, 1.0
  %v9991 = vrcp.pop %v9990
  %v9992 = vmul.f32 1.0, %v9991
  %v9993 = vtanh.pop %v9986
  %v9994 = vmul.f32 %v9992, %v9486
  %9996 = vrot.lane.b32.xlu0 %v9993, 64
  %v9997 = vpop.permute.xlu0 %9996
  %v9999 = vmul.f32 %v9992, %v9997
  %10001 = vrot.lane.b32.xlu0 %v9999, 32
  %v10002 = vpop.permute.xlu0 %10001
  %v10004 = vadd.f32 %v9994, %v10002
  %v10005 = vtanh.pop %v10004
  %10007 = vrot.lane.b32.xlu0 %v10005, 64
  %v10008 = vpop.permute.xlu0 %10007
  %v10010 = vmul.f32 %v9992, %v10008
  %10012 = vrot.lane.b32.xlu0 %v10010, 32
  %v10013 = vpop.permute.xlu0 %10012
  %10015 = vst.msk [vmem:[%s5031] sm:$0xff] %vm55, %v10013
  %v10016 = vld [vmem:[#allocation2] sm:$0xff]
  %v10017 = vld [vmem:[#allocation2 + $0x8] sm:$0xff]
  %v10018 = vld [vmem:[#allocation2 + $0x10] sm:$0xff]
  %v10019 = vld [vmem:[#allocation2 + $0x18] sm:$0xff]
  %v10020 = vld [vmem:[#allocation2 + $0x20] sm:$0xff]
  %v10021 = vld [vmem:[#allocation2 + $0x28] sm:$0xff]
  %v10022 = vld [vmem:[#allocation2 + $0x30] sm:$0xff]
  %v10023 = vld [vmem:[#allocation2 + $0x38] sm:$0xff]
  %v10024 = vld [vmem:[%s7] sm:$0xff]
  %v10025 = vld [vmem:[%s7 + $0x8] sm:$0xff]
  %v10026 = vld [vmem:[%s7 + $0x10] sm:$0xff]
  %v10027 = vld [vmem:[%s7 + $0x18] sm:$0xff]
  %v10028 = vld [vmem:[%s8] sm:$0x1]
  %v10030 = vlaneseq
  %v10031 = vshrl.u32 %v10030, 7
  %v10032 = vsub.s32 0, %v10031
  %v10033 = vrot.slane %v10028, %v10032
  %v10036 = vsel %vm55, %v10016, 0
  %v10039 = vsel %vm55, %v10017, 0
  %v10042 = vsel %vm55, %v10018, 0
  %v10045 = vsel %vm55, %v10019, 0
  %v10048 = vsel %vm55, %v10020, 0
  %v10051 = vsel %vm55, %v10021, 0
  %v10054 = vsel %vm55, %v10022, 0
  %v10057 = vsel %vm55, %v10023, 0
  %10059 = vmatprep.subr.mxu0 0.0
  %10060 = vmatpush1.msra.mxu0 0.0
  %10061 = vmatprep.subr.mxu0 0.0
  %10062 = vmatpush1.msra.mxu0 0.0
  %10063 = vmatprep.subr.mxu0 0.0
  %10064 = vmatpush1.msra.mxu0 0.0
  %10065 = vmatprep.subr.mxu0 0.0
  %10066 = vmatpush1.msra.mxu0 0.0
  %10067 = vmatprep.subr.mxu0 0.0
  %10068 = vmatpush1.msra.mxu0 0.0
  %10069 = vmatprep.subr.mxu0 0.0
  %10070 = vmatpush1.msra.mxu0 0.0
  %10071 = vmatprep.subr.mxu0 0.0
  %10072 = vmatpush1.msra.mxu0 0.0
  %10073 = vmatprep.subr.mxu0 0.0
  %10074 = vmatpush1.msra.mxu0 0.0
  %10075 = vmatprep.subr.mxu0 0.0
  %10076 = vmatpush1.msra.mxu0 0.0
  %10077 = vmatprep.subr.mxu0 0.0
  %10078 = vmatpush1.msra.mxu0 0.0
  %10079 = vmatprep.subr.mxu0 0.0
  %10080 = vmatpush1.msra.mxu0 0.0
  %10081 = vmatprep.subr.mxu0 0.0
  %10082 = vmatpush1.msra.mxu0 0.0
  %10083 = vmatprep.subr.mxu0 0.0
  %v10084 = vand.u32 %v10027, 4294901760
  %10085 = vmatpush1.msra.mxu0 %v10084
  %10086 = vmatprep.subr.mxu0 0.0
  %v10087 = vand.u32 %v10026, 4294901760
  %10088 = vmatpush1.msra.mxu0 %v10087
  %10089 = vmatprep.subr.mxu0 0.0
  %v10090 = vand.u32 %v10025, 4294901760
  %10091 = vmatpush1.msra.mxu0 %v10090
  %10092 = vmatprep.subr.mxu0 0.0
  %v10093 = vand.u32 %v10024, 4294901760
  %10094 = vmatpush1.msra.mxu0 %v10093
  %10095 = vmatprep.subr.mxu0 0.0
  %10096 = vmatpush2.msra.mxu0 0.0
  %10097 = vmatprep.subr.mxu0 0.0
  %10098 = vmatpush2.msra.mxu0 0.0
  %10099 = vmatprep.subr.mxu0 0.0
  %10100 = vmatpush2.msra.mxu0 0.0
  %10101 = vmatprep.subr.mxu0 0.0
  %10102 = vmatpush2.msra.mxu0 0.0
  %10103 = vmatprep.subr.mxu0 0.0
  %10104 = vmatpush2.msra.mxu0 0.0
  %10105 = vmatprep.subr.mxu0 0.0
  %10106 = vmatpush2.msra.mxu0 0.0
  %10107 = vmatprep.subr.mxu0 0.0
  %10108 = vmatpush2.msra.mxu0 0.0
  %10109 = vmatprep.subr.mxu0 0.0
  %10110 = vmatpush2.msra.mxu0 0.0
  %10111 = vmatprep.subr.mxu0 0.0
  %10112 = vmatpush2.msra.mxu0 0.0
  %10113 = vmatprep.subr.mxu0 0.0
  %10114 = vmatpush2.msra.mxu0 0.0
  %10115 = vmatprep.subr.mxu0 0.0
  %10116 = vmatpush2.msra.mxu0 0.0
  %10117 = vmatprep.subr.mxu0 0.0
  %10118 = vmatpush2.msra.mxu0 0.0
  %10119 = vmatprep.subr.mxu0 0.0
  %10120 = vmatpush2.msra.mxu0 0.0
  %10121 = vmatprep.subr.mxu0 0.0
  %10122 = vmatpush2.msra.mxu0 0.0
  %10123 = vmatprep.subr.mxu0 0.0
  %10124 = vmatpush2.msra.mxu0 0.0
  %10125 = vmatprep.subr.mxu0 0.0
  %10126 = vmatpush2.msra.mxu0 0.0
  %10127 = vmatprep.mubr.f32.mxu0 0.0
  %v10128 = vand.u32 %v10036, 4294901760
  %v10129 = vsub.f32 %v10036, %v10128
  %v10130 = vand.u32 %v10129, 4294901760
  %v10131 = vsub.f32 %v10129, %v10130
  %v10132 = vand.u32 %v10131, 4294901760
  %10133 = vmatmul.mubr.f32.gmra.mxu0 %v10132
  %v10134 = vpop.f32.mrf.mxu0
  %v10135 = vadd.f32 %v10033, %v10134
  %v10136 = vpop.f32.mrf.mxu0
  %10137 = vmatprep.mubr.f32.mxu0 0.0
  %v10138 = vand.u32 %v10039, 4294901760
  %v10139 = vsub.f32 %v10039, %v10138
  %v10140 = vand.u32 %v10139, 4294901760
  %v10141 = vsub.f32 %v10139, %v10140
  %v10142 = vand.u32 %v10141, 4294901760
  %10143 = vmatmul.mubr.f32.gmra.mxu0 %v10142
  %v10144 = vpop.f32.mrf.mxu0
  %v10145 = vadd.f32 %v10033, %v10144
  %v10146 = vpop.f32.mrf.mxu0
  %10147 = vmatprep.mubr.f32.mxu0 0.0
  %v10148 = vand.u32 %v10042, 4294901760
  %v10149 = vsub.f32 %v10042, %v10148
  %v10150 = vand.u32 %v10149, 4294901760
  %v10151 = vsub.f32 %v10149, %v10150
  %v10152 = vand.u32 %v10151, 4294901760
  %10153 = vmatmul.mubr.f32.gmra.mxu0 %v10152
  %v10154 = vpop.f32.mrf.mxu0
  %v10155 = vadd.f32 %v10033, %v10154
  %v10156 = vpop.f32.mrf.mxu0
  %10157 = vmatprep.mubr.f32.mxu0 0.0
  %v10158 = vand.u32 %v10045, 4294901760
  %v10159 = vsub.f32 %v10045, %v10158
  %v10160 = vand.u32 %v10159, 4294901760
  %v10161 = vsub.f32 %v10159, %v10160
  %v10162 = vand.u32 %v10161, 4294901760
  %10163 = vmatmul.mubr.f32.gmra.mxu0 %v10162
  %v10164 = vpop.f32.mrf.mxu0
  %v10165 = vadd.f32 %v10033, %v10164
  %v10166 = vpop.f32.mrf.mxu0
  %10167 = vmatprep.mubr.f32.mxu0 0.0
  %v10168 = vand.u32 %v10048, 4294901760
  %v10169 = vsub.f32 %v10048, %v10168
  %v10170 = vand.u32 %v10169, 4294901760
  %v10171 = vsub.f32 %v10169, %v10170
  %v10172 = vand.u32 %v10171, 4294901760
  %10173 = vmatmul.mubr.f32.gmra.mxu0 %v10172
  %v10174 = vpop.f32.mrf.mxu0
  %v10175 = vadd.f32 %v10033, %v10174
  %v10176 = vpop.f32.mrf.mxu0
  %10177 = vmatprep.mubr.f32.mxu0 0.0
  %v10178 = vand.u32 %v10051, 4294901760
  %v10179 = vsub.f32 %v10051, %v10178
  %v10180 = vand.u32 %v10179, 4294901760
  %v10181 = vsub.f32 %v10179, %v10180
  %v10182 = vand.u32 %v10181, 4294901760
  %10183 = vmatmul.mubr.f32.gmra.mxu0 %v10182
  %v10184 = vpop.f32.mrf.mxu0
  %v10185 = vadd.f32 %v10033, %v10184
  %v10186 = vpop.f32.mrf.mxu0
  %10187 = vmatprep.mubr.f32.mxu0 0.0
  %v10188 = vand.u32 %v10054, 4294901760
  %v10189 = vsub.f32 %v10054, %v10188
  %v10190 = vand.u32 %v10189, 4294901760
  %v10191 = vsub.f32 %v10189, %v10190
  %v10192 = vand.u32 %v10191, 4294901760
  %10193 = vmatmul.mubr.f32.gmra.mxu0 %v10192
  %v10194 = vpop.f32.mrf.mxu0
  %v10195 = vadd.f32 %v10033, %v10194
  %v10196 = vpop.f32.mrf.mxu0
  %10197 = vmatprep.mubr.f32.mxu0 0.0
  %v10198 = vand.u32 %v10057, 4294901760
  %v10199 = vsub.f32 %v10057, %v10198
  %v10200 = vand.u32 %v10199, 4294901760
  %v10201 = vsub.f32 %v10199, %v10200
  %v10202 = vand.u32 %v10201, 4294901760
  %10203 = vmatmul.mubr.f32.gmra.mxu0 %v10202
  %v10204 = vpop.f32.mrf.mxu0
  %v10205 = vadd.f32 %v10033, %v10204
  %v10206 = vpop.f32.mrf.mxu0
  %10207 = vdwg.mxu0
  %10208 = vmatprep.subr.mxu0 0.0
  %10209 = vmatpush1.msra.mxu0 0.0
  %10210 = vmatprep.subr.mxu0 0.0
  %10211 = vmatpush1.msra.mxu0 0.0
  %10212 = vmatprep.subr.mxu0 0.0
  %10213 = vmatpush1.msra.mxu0 0.0
  %10214 = vmatprep.subr.mxu0 0.0
  %10215 = vmatpush1.msra.mxu0 0.0
  %10216 = vmatprep.subr.mxu0 0.0
  %10217 = vmatpush1.msra.mxu0 0.0
  %10218 = vmatprep.subr.mxu0 0.0
  %10219 = vmatpush1.msra.mxu0 0.0
  %10220 = vmatprep.subr.mxu0 0.0
  %10221 = vmatpush1.msra.mxu0 0.0
  %10222 = vmatprep.subr.mxu0 0.0
  %10223 = vmatpush1.msra.mxu0 0.0
  %10224 = vmatprep.subr.mxu0 0.0
  %10225 = vmatpush1.msra.mxu0 0.0
  %10226 = vmatprep.subr.mxu0 0.0
  %10227 = vmatpush1.msra.mxu0 0.0
  %10228 = vmatprep.subr.mxu0 0.0
  %10229 = vmatpush1.msra.mxu0 0.0
  %10230 = vmatprep.subr.mxu0 0.0
  %10231 = vmatpush1.msra.mxu0 0.0
  %10232 = vmatprep.subr.mxu0 0.0
  %v10233 = vand.u32 %v10027, 4294901760
  %v10234 = vsub.f32 %v10027, %v10233
  %v10235 = vand.u32 %v10234, 4294901760
  %v10236 = vsub.f32 %v10234, %v10235
  %v10237 = vand.u32 %v10236, 4294901760
  %10238 = vmatpush1.msra.mxu0 %v10237
  %10239 = vmatprep.subr.mxu0 0.0
  %v10240 = vand.u32 %v10026, 4294901760
  %v10241 = vsub.f32 %v10026, %v10240
  %v10242 = vand.u32 %v10241, 4294901760
  %v10243 = vsub.f32 %v10241, %v10242
  %v10244 = vand.u32 %v10243, 4294901760
  %10245 = vmatpush1.msra.mxu0 %v10244
  %10246 = vmatprep.subr.mxu0 0.0
  %v10247 = vand.u32 %v10025, 4294901760
  %v10248 = vsub.f32 %v10025, %v10247
  %v10249 = vand.u32 %v10248, 4294901760
  %v10250 = vsub.f32 %v10248, %v10249
  %v10251 = vand.u32 %v10250, 4294901760
  %10252 = vmatpush1.msra.mxu0 %v10251
  %10253 = vmatprep.subr.mxu0 0.0
  %v10254 = vand.u32 %v10024, 4294901760
  %v10255 = vsub.f32 %v10024, %v10254
  %v10256 = vand.u32 %v10255, 4294901760
  %v10257 = vsub.f32 %v10255, %v10256
  %v10258 = vand.u32 %v10257, 4294901760
  %10259 = vmatpush1.msra.mxu0 %v10258
  %10260 = vmatprep.subr.mxu0 0.0
  %10261 = vmatpush2.msra.mxu0 0.0
  %10262 = vmatprep.subr.mxu0 0.0
  %10263 = vmatpush2.msra.mxu0 0.0
  %10264 = vmatprep.subr.mxu0 0.0
  %10265 = vmatpush2.msra.mxu0 0.0
  %10266 = vmatprep.subr.mxu0 0.0
  %10267 = vmatpush2.msra.mxu0 0.0
  %10268 = vmatprep.subr.mxu0 0.0
  %10269 = vmatpush2.msra.mxu0 0.0
  %10270 = vmatprep.subr.mxu0 0.0
  %10271 = vmatpush2.msra.mxu0 0.0
  %10272 = vmatprep.subr.mxu0 0.0
  %10273 = vmatpush2.msra.mxu0 0.0
  %10274 = vmatprep.subr.mxu0 0.0
  %10275 = vmatpush2.msra.mxu0 0.0
  %10276 = vmatprep.subr.mxu0 0.0
  %10277 = vmatpush2.msra.mxu0 0.0
  %10278 = vmatprep.subr.mxu0 0.0
  %10279 = vmatpush2.msra.mxu0 0.0
  %10280 = vmatprep.subr.mxu0 0.0
  %10281 = vmatpush2.msra.mxu0 0.0
  %10282 = vmatprep.subr.mxu0 0.0
  %10283 = vmatpush2.msra.mxu0 0.0
  %10284 = vmatprep.subr.mxu0 0.0
  %10285 = vmatpush2.msra.mxu0 0.0
  %10286 = vmatprep.subr.mxu0 0.0
  %10287 = vmatpush2.msra.mxu0 0.0
  %10288 = vmatprep.subr.mxu0 0.0
  %10289 = vmatpush2.msra.mxu0 0.0
  %10290 = vmatprep.subr.mxu0 0.0
  %10291 = vmatpush2.msra.mxu0 0.0
  %10292 = vmatprep.mubr.f32.mxu0 0.0
  %v10293 = vand.u32 %v10036, 4294901760
  %10294 = vmatmul.mubr.f32.gmra.mxu0 %v10293
  %v10295 = vpop.f32.mrf.mxu0
  %v10296 = vadd.f32 %v10135, %v10295
  %v10297 = vpop.f32.mrf.mxu0
  %10298 = vmatprep.mubr.f32.mxu0 0.0
  %v10299 = vand.u32 %v10039, 4294901760
  %10300 = vmatmul.mubr.f32.gmra.mxu0 %v10299
  %v10301 = vpop.f32.mrf.mxu0
  %v10302 = vadd.f32 %v10145, %v10301
  %v10303 = vpop.f32.mrf.mxu0
  %10304 = vmatprep.mubr.f32.mxu0 0.0
  %v10305 = vand.u32 %v10042, 4294901760
  %10306 = vmatmul.mubr.f32.gmra.mxu0 %v10305
  %v10307 = vpop.f32.mrf.mxu0
  %v10308 = vadd.f32 %v10155, %v10307
  %v10309 = vpop.f32.mrf.mxu0
  %10310 = vmatprep.mubr.f32.mxu0 0.0
  %v10311 = vand.u32 %v10045, 4294901760
  %10312 = vmatmul.mubr.f32.gmra.mxu0 %v10311
  %v10313 = vpop.f32.mrf.mxu0
  %v10314 = vadd.f32 %v10165, %v10313
  %v10315 = vpop.f32.mrf.mxu0
  %10316 = vmatprep.mubr.f32.mxu0 0.0
  %v10317 = vand.u32 %v10048, 4294901760
  %10318 = vmatmul.mubr.f32.gmra.mxu0 %v10317
  %v10319 = vpop.f32.mrf.mxu0
  %v10320 = vadd.f32 %v10175, %v10319
  %v10321 = vpop.f32.mrf.mxu0
  %10322 = vmatprep.mubr.f32.mxu0 0.0
  %v10323 = vand.u32 %v10051, 4294901760
  %10324 = vmatmul.mubr.f32.gmra.mxu0 %v10323
  %v10325 = vpop.f32.mrf.mxu0
  %v10326 = vadd.f32 %v10185, %v10325
  %v10327 = vpop.f32.mrf.mxu0
  %10328 = vmatprep.mubr.f32.mxu0 0.0
  %v10329 = vand.u32 %v10054, 4294901760
  %10330 = vmatmul.mubr.f32.gmra.mxu0 %v10329
  %v10331 = vpop.f32.mrf.mxu0
  %v10332 = vadd.f32 %v10195, %v10331
  %v10333 = vpop.f32.mrf.mxu0
  %10334 = vmatprep.mubr.f32.mxu0 0.0
  %v10335 = vand.u32 %v10057, 4294901760
  %10336 = vmatmul.mubr.f32.gmra.mxu0 %v10335
  %v10337 = vpop.f32.mrf.mxu0
  %v10338 = vadd.f32 %v10205, %v10337
  %v10339 = vpop.f32.mrf.mxu0
  %10340 = vdwg.mxu0
  %10341 = vmatprep.subr.mxu0 0.0
  %10342 = vmatpush1.msra.mxu0 0.0
  %10343 = vmatprep.subr.mxu0 0.0
  %10344 = vmatpush1.msra.mxu0 0.0
  %10345 = vmatprep.subr.mxu0 0.0
  %10346 = vmatpush1.msra.mxu0 0.0
  %10347 = vmatprep.subr.mxu0 0.0
  %10348 = vmatpush1.msra.mxu0 0.0
  %10349 = vmatprep.subr.mxu0 0.0
  %10350 = vmatpush1.msra.mxu0 0.0
  %10351 = vmatprep.subr.mxu0 0.0
  %10352 = vmatpush1.msra.mxu0 0.0
  %10353 = vmatprep.subr.mxu0 0.0
  %10354 = vmatpush1.msra.mxu0 0.0
  %10355 = vmatprep.subr.mxu0 0.0
  %10356 = vmatpush1.msra.mxu0 0.0
  %10357 = vmatprep.subr.mxu0 0.0
  %10358 = vmatpush1.msra.mxu0 0.0
  %10359 = vmatprep.subr.mxu0 0.0
  %10360 = vmatpush1.msra.mxu0 0.0
  %10361 = vmatprep.subr.mxu0 0.0
  %10362 = vmatpush1.msra.mxu0 0.0
  %10363 = vmatprep.subr.mxu0 0.0
  %10364 = vmatpush1.msra.mxu0 0.0
  %10365 = vmatprep.subr.mxu0 0.0
  %v10366 = vand.u32 %v10027, 4294901760
  %v10367 = vsub.f32 %v10027, %v10366
  %10368 = vmatpush1.msra.mxu0 %v10367
  %10369 = vmatprep.subr.mxu0 0.0
  %v10370 = vand.u32 %v10026, 4294901760
  %v10371 = vsub.f32 %v10026, %v10370
  %10372 = vmatpush1.msra.mxu0 %v10371
  %10373 = vmatprep.subr.mxu0 0.0
  %v10374 = vand.u32 %v10025, 4294901760
  %v10375 = vsub.f32 %v10025, %v10374
  %10376 = vmatpush1.msra.mxu0 %v10375
  %10377 = vmatprep.subr.mxu0 0.0
  %v10378 = vand.u32 %v10024, 4294901760
  %v10379 = vsub.f32 %v10024, %v10378
  %10380 = vmatpush1.msra.mxu0 %v10379
  %10381 = vmatprep.subr.mxu0 0.0
  %10382 = vmatpush2.msra.mxu0 0.0
  %10383 = vmatprep.subr.mxu0 0.0
  %10384 = vmatpush2.msra.mxu0 0.0
  %10385 = vmatprep.subr.mxu0 0.0
  %10386 = vmatpush2.msra.mxu0 0.0
  %10387 = vmatprep.subr.mxu0 0.0
  %10388 = vmatpush2.msra.mxu0 0.0
  %10389 = vmatprep.subr.mxu0 0.0
  %10390 = vmatpush2.msra.mxu0 0.0
  %10391 = vmatprep.subr.mxu0 0.0
  %10392 = vmatpush2.msra.mxu0 0.0
  %10393 = vmatprep.subr.mxu0 0.0
  %10394 = vmatpush2.msra.mxu0 0.0
  %10395 = vmatprep.subr.mxu0 0.0
  %10396 = vmatpush2.msra.mxu0 0.0
  %10397 = vmatprep.subr.mxu0 0.0
  %10398 = vmatpush2.msra.mxu0 0.0
  %10399 = vmatprep.subr.mxu0 0.0
  %10400 = vmatpush2.msra.mxu0 0.0
  %10401 = vmatprep.subr.mxu0 0.0
  %10402 = vmatpush2.msra.mxu0 0.0
  %10403 = vmatprep.subr.mxu0 0.0
  %10404 = vmatpush2.msra.mxu0 0.0
  %10405 = vmatprep.subr.mxu0 0.0
  %10406 = vmatpush2.msra.mxu0 0.0
  %10407 = vmatprep.subr.mxu0 0.0
  %10408 = vmatpush2.msra.mxu0 0.0
  %10409 = vmatprep.subr.mxu0 0.0
  %10410 = vmatpush2.msra.mxu0 0.0
  %10411 = vmatprep.subr.mxu0 0.0
  %10412 = vmatpush2.msra.mxu0 0.0
  %10413 = vmatprep.mubr.f32.mxu0 0.0
  %v10414 = vand.u32 %v10036, 4294901760
  %v10415 = vsub.f32 %v10036, %v10414
  %10416 = vmatmul.mubr.f32.gmra.mxu0 %v10415
  %v10417 = vpop.f32.mrf.mxu0
  %v10418 = vadd.f32 %v10296, %v10417
  %v10419 = vpop.f32.mrf.mxu0
  %10420 = vmatprep.mubr.f32.mxu0 0.0
  %v10421 = vand.u32 %v10039, 4294901760
  %v10422 = vsub.f32 %v10039, %v10421
  %10423 = vmatmul.mubr.f32.gmra.mxu0 %v10422
  %v10424 = vpop.f32.mrf.mxu0
  %v10425 = vadd.f32 %v10302, %v10424
  %v10426 = vpop.f32.mrf.mxu0
  %10427 = vmatprep.mubr.f32.mxu0 0.0
  %v10428 = vand.u32 %v10042, 4294901760
  %v10429 = vsub.f32 %v10042, %v10428
  %10430 = vmatmul.mubr.f32.gmra.mxu0 %v10429
  %v10431 = vpop.f32.mrf.mxu0
  %v10432 = vadd.f32 %v10308, %v10431
  %v10433 = vpop.f32.mrf.mxu0
  %10434 = vmatprep.mubr.f32.mxu0 0.0
  %v10435 = vand.u32 %v10045, 4294901760
  %v10436 = vsub.f32 %v10045, %v10435
  %10437 = vmatmul.mubr.f32.gmra.mxu0 %v10436
  %v10438 = vpop.f32.mrf.mxu0
  %v10439 = vadd.f32 %v10314, %v10438
  %v10440 = vpop.f32.mrf.mxu0
  %10441 = vmatprep.mubr.f32.mxu0 0.0
  %v10442 = vand.u32 %v10048, 4294901760
  %v10443 = vsub.f32 %v10048, %v10442
  %10444 = vmatmul.mubr.f32.gmra.mxu0 %v10443
  %v10445 = vpop.f32.mrf.mxu0
  %v10446 = vadd.f32 %v10320, %v10445
  %v10447 = vpop.f32.mrf.mxu0
  %10448 = vmatprep.mubr.f32.mxu0 0.0
  %v10449 = vand.u32 %v10051, 4294901760
  %v10450 = vsub.f32 %v10051, %v10449
  %10451 = vmatmul.mubr.f32.gmra.mxu0 %v10450
  %v10452 = vpop.f32.mrf.mxu0
  %v10453 = vadd.f32 %v10326, %v10452
  %v10454 = vpop.f32.mrf.mxu0
  %10455 = vmatprep.mubr.f32.mxu0 0.0
  %v10456 = vand.u32 %v10054, 4294901760
  %v10457 = vsub.f32 %v10054, %v10456
  %10458 = vmatmul.mubr.f32.gmra.mxu0 %v10457
  %v10459 = vpop.f32.mrf.mxu0
  %v10460 = vadd.f32 %v10332, %v10459
  %v10461 = vpop.f32.mrf.mxu0
  %10462 = vmatprep.mubr.f32.mxu0 0.0
  %v10463 = vand.u32 %v10057, 4294901760
  %v10464 = vsub.f32 %v10057, %v10463
  %10465 = vmatmul.mubr.f32.gmra.mxu0 %v10464
  %v10466 = vpop.f32.mrf.mxu0
  %v10467 = vadd.f32 %v10338, %v10466
  %v10468 = vpop.f32.mrf.mxu0
  %10469 = vdwg.mxu0
  %10470 = vmatprep.subr.mxu0 0.0
  %10471 = vmatpush1.msra.mxu0 0.0
  %10472 = vmatprep.subr.mxu0 0.0
  %10473 = vmatpush1.msra.mxu0 0.0
  %10474 = vmatprep.subr.mxu0 0.0
  %10475 = vmatpush1.msra.mxu0 0.0
  %10476 = vmatprep.subr.mxu0 0.0
  %10477 = vmatpush1.msra.mxu0 0.0
  %10478 = vmatprep.subr.mxu0 0.0
  %10479 = vmatpush1.msra.mxu0 0.0
  %10480 = vmatprep.subr.mxu0 0.0
  %10481 = vmatpush1.msra.mxu0 0.0
  %10482 = vmatprep.subr.mxu0 0.0
  %10483 = vmatpush1.msra.mxu0 0.0
  %10484 = vmatprep.subr.mxu0 0.0
  %10485 = vmatpush1.msra.mxu0 0.0
  %10486 = vmatprep.subr.mxu0 0.0
  %10487 = vmatpush1.msra.mxu0 0.0
  %10488 = vmatprep.subr.mxu0 0.0
  %10489 = vmatpush1.msra.mxu0 0.0
  %10490 = vmatprep.subr.mxu0 0.0
  %10491 = vmatpush1.msra.mxu0 0.0
  %10492 = vmatprep.subr.mxu0 0.0
  %10493 = vmatpush1.msra.mxu0 0.0
  %10494 = vmatprep.subr.mxu0 0.0
  %v10495 = vand.u32 %v10027, 4294901760
  %10496 = vmatpush1.msra.mxu0 %v10495
  %10497 = vmatprep.subr.mxu0 0.0
  %v10498 = vand.u32 %v10026, 4294901760
  %10499 = vmatpush1.msra.mxu0 %v10498
  %10500 = vmatprep.subr.mxu0 0.0
  %v10501 = vand.u32 %v10025, 4294901760
  %10502 = vmatpush1.msra.mxu0 %v10501
  %10503 = vmatprep.subr.mxu0 0.0
  %v10504 = vand.u32 %v10024, 4294901760
  %10505 = vmatpush1.msra.mxu0 %v10504
  %10506 = vmatprep.subr.mxu0 0.0
  %10507 = vmatpush2.msra.mxu0 0.0
  %10508 = vmatprep.subr.mxu0 0.0
  %10509 = vmatpush2.msra.mxu0 0.0
  %10510 = vmatprep.subr.mxu0 0.0
  %10511 = vmatpush2.msra.mxu0 0.0
  %10512 = vmatprep.subr.mxu0 0.0
  %10513 = vmatpush2.msra.mxu0 0.0
  %10514 = vmatprep.subr.mxu0 0.0
  %10515 = vmatpush2.msra.mxu0 0.0
  %10516 = vmatprep.subr.mxu0 0.0
  %10517 = vmatpush2.msra.mxu0 0.0
  %10518 = vmatprep.subr.mxu0 0.0
  %10519 = vmatpush2.msra.mxu0 0.0
  %10520 = vmatprep.subr.mxu0 0.0
  %10521 = vmatpush2.msra.mxu0 0.0
  %10522 = vmatprep.subr.mxu0 0.0
  %10523 = vmatpush2.msra.mxu0 0.0
  %10524 = vmatprep.subr.mxu0 0.0
  %10525 = vmatpush2.msra.mxu0 0.0
  %10526 = vmatprep.subr.mxu0 0.0
  %10527 = vmatpush2.msra.mxu0 0.0
  %10528 = vmatprep.subr.mxu0 0.0
  %10529 = vmatpush2.msra.mxu0 0.0
  %10530 = vmatprep.subr.mxu0 0.0
  %10531 = vmatpush2.msra.mxu0 0.0
  %10532 = vmatprep.subr.mxu0 0.0
  %10533 = vmatpush2.msra.mxu0 0.0
  %10534 = vmatprep.subr.mxu0 0.0
  %10535 = vmatpush2.msra.mxu0 0.0
  %10536 = vmatprep.subr.mxu0 0.0
  %10537 = vmatpush2.msra.mxu0 0.0
  %10538 = vmatprep.mubr.f32.mxu0 0.0
  %v10539 = vand.u32 %v10036, 4294901760
  %v10540 = vsub.f32 %v10036, %v10539
  %v10541 = vand.u32 %v10540, 4294901760
  %10542 = vmatmul.mubr.f32.gmra.mxu0 %v10541
  %v10543 = vpop.f32.mrf.mxu0
  %v10544 = vadd.f32 %v10418, %v10543
  %v10545 = vpop.f32.mrf.mxu0
  %10546 = vmatprep.mubr.f32.mxu0 0.0
  %v10547 = vand.u32 %v10039, 4294901760
  %v10548 = vsub.f32 %v10039, %v10547
  %v10549 = vand.u32 %v10548, 4294901760
  %10550 = vmatmul.mubr.f32.gmra.mxu0 %v10549
  %v10551 = vpop.f32.mrf.mxu0
  %v10552 = vadd.f32 %v10425, %v10551
  %v10553 = vpop.f32.mrf.mxu0
  %10554 = vmatprep.mubr.f32.mxu0 0.0
  %v10555 = vand.u32 %v10042, 4294901760
  %v10556 = vsub.f32 %v10042, %v10555
  %v10557 = vand.u32 %v10556, 4294901760
  %10558 = vmatmul.mubr.f32.gmra.mxu0 %v10557
  %v10559 = vpop.f32.mrf.mxu0
  %v10560 = vadd.f32 %v10432, %v10559
  %v10561 = vpop.f32.mrf.mxu0
  %10562 = vmatprep.mubr.f32.mxu0 0.0
  %v10563 = vand.u32 %v10045, 4294901760
  %v10564 = vsub.f32 %v10045, %v10563
  %v10565 = vand.u32 %v10564, 4294901760
  %10566 = vmatmul.mubr.f32.gmra.mxu0 %v10565
  %v10567 = vpop.f32.mrf.mxu0
  %v10568 = vadd.f32 %v10439, %v10567
  %v10569 = vpop.f32.mrf.mxu0
  %10570 = vmatprep.mubr.f32.mxu0 0.0
  %v10571 = vand.u32 %v10048, 4294901760
  %v10572 = vsub.f32 %v10048, %v10571
  %v10573 = vand.u32 %v10572, 4294901760
  %10574 = vmatmul.mubr.f32.gmra.mxu0 %v10573
  %v10575 = vpop.f32.mrf.mxu0
  %v10576 = vadd.f32 %v10446, %v10575
  %v10577 = vpop.f32.mrf.mxu0
  %10578 = vmatprep.mubr.f32.mxu0 0.0
  %v10579 = vand.u32 %v10051, 4294901760
  %v10580 = vsub.f32 %v10051, %v10579
  %v10581 = vand.u32 %v10580, 4294901760
  %10582 = vmatmul.mubr.f32.gmra.mxu0 %v10581
  %v10583 = vpop.f32.mrf.mxu0
  %v10584 = vadd.f32 %v10453, %v10583
  %v10585 = vpop.f32.mrf.mxu0
  %10586 = vmatprep.mubr.f32.mxu0 0.0
  %v10587 = vand.u32 %v10054, 4294901760
  %v10588 = vsub.f32 %v10054, %v10587
  %v10589 = vand.u32 %v10588, 4294901760
  %10590 = vmatmul.mubr.f32.gmra.mxu0 %v10589
  %v10591 = vpop.f32.mrf.mxu0
  %v10592 = vadd.f32 %v10460, %v10591
  %v10593 = vpop.f32.mrf.mxu0
  %10594 = vmatprep.mubr.f32.mxu0 0.0
  %v10595 = vand.u32 %v10057, 4294901760
  %v10596 = vsub.f32 %v10057, %v10595
  %v10597 = vand.u32 %v10596, 4294901760
  %10598 = vmatmul.mubr.f32.gmra.mxu0 %v10597
  %v10599 = vpop.f32.mrf.mxu0
  %v10600 = vadd.f32 %v10467, %v10599
  %v10601 = vpop.f32.mrf.mxu0
  %10602 = vdwg.mxu0
  %10603 = vmatprep.subr.mxu0 0.0
  %10604 = vmatpush1.msra.mxu0 0.0
  %10605 = vmatprep.subr.mxu0 0.0
  %10606 = vmatpush1.msra.mxu0 0.0
  %10607 = vmatprep.subr.mxu0 0.0
  %10608 = vmatpush1.msra.mxu0 0.0
  %10609 = vmatprep.subr.mxu0 0.0
  %10610 = vmatpush1.msra.mxu0 0.0
  %10611 = vmatprep.subr.mxu0 0.0
  %10612 = vmatpush1.msra.mxu0 0.0
  %10613 = vmatprep.subr.mxu0 0.0
  %10614 = vmatpush1.msra.mxu0 0.0
  %10615 = vmatprep.subr.mxu0 0.0
  %10616 = vmatpush1.msra.mxu0 0.0
  %10617 = vmatprep.subr.mxu0 0.0
  %10618 = vmatpush1.msra.mxu0 0.0
  %10619 = vmatprep.subr.mxu0 0.0
  %10620 = vmatpush1.msra.mxu0 0.0
  %10621 = vmatprep.subr.mxu0 0.0
  %10622 = vmatpush1.msra.mxu0 0.0
  %10623 = vmatprep.subr.mxu0 0.0
  %10624 = vmatpush1.msra.mxu0 0.0
  %10625 = vmatprep.subr.mxu0 0.0
  %10626 = vmatpush1.msra.mxu0 0.0
  %10627 = vmatprep.subr.mxu0 0.0
  %v10628 = vand.u32 %v10027, 4294901760
  %v10629 = vsub.f32 %v10027, %v10628
  %v10630 = vand.u32 %v10629, 4294901760
  %10631 = vmatpush1.msra.mxu0 %v10630
  %10632 = vmatprep.subr.mxu0 0.0
  %v10633 = vand.u32 %v10026, 4294901760
  %v10634 = vsub.f32 %v10026, %v10633
  %v10635 = vand.u32 %v10634, 4294901760
  %10636 = vmatpush1.msra.mxu0 %v10635
  %10637 = vmatprep.subr.mxu0 0.0
  %v10638 = vand.u32 %v10025, 4294901760
  %v10639 = vsub.f32 %v10025, %v10638
  %v10640 = vand.u32 %v10639, 4294901760
  %10641 = vmatpush1.msra.mxu0 %v10640
  %10642 = vmatprep.subr.mxu0 0.0
  %v10643 = vand.u32 %v10024, 4294901760
  %v10644 = vsub.f32 %v10024, %v10643
  %v10645 = vand.u32 %v10644, 4294901760
  %10646 = vmatpush1.msra.mxu0 %v10645
  %10647 = vmatprep.subr.mxu0 0.0
  %10648 = vmatpush2.msra.mxu0 0.0
  %10649 = vmatprep.subr.mxu0 0.0
  %10650 = vmatpush2.msra.mxu0 0.0
  %10651 = vmatprep.subr.mxu0 0.0
  %10652 = vmatpush2.msra.mxu0 0.0
  %10653 = vmatprep.subr.mxu0 0.0
  %10654 = vmatpush2.msra.mxu0 0.0
  %10655 = vmatprep.subr.mxu0 0.0
  %10656 = vmatpush2.msra.mxu0 0.0
  %10657 = vmatprep.subr.mxu0 0.0
  %10658 = vmatpush2.msra.mxu0 0.0
  %10659 = vmatprep.subr.mxu0 0.0
  %10660 = vmatpush2.msra.mxu0 0.0
  %10661 = vmatprep.subr.mxu0 0.0
  %10662 = vmatpush2.msra.mxu0 0.0
  %10663 = vmatprep.subr.mxu0 0.0
  %10664 = vmatpush2.msra.mxu0 0.0
  %10665 = vmatprep.subr.mxu0 0.0
  %10666 = vmatpush2.msra.mxu0 0.0
  %10667 = vmatprep.subr.mxu0 0.0
  %10668 = vmatpush2.msra.mxu0 0.0
  %10669 = vmatprep.subr.mxu0 0.0
  %10670 = vmatpush2.msra.mxu0 0.0
  %10671 = vmatprep.subr.mxu0 0.0
  %10672 = vmatpush2.msra.mxu0 0.0
  %10673 = vmatprep.subr.mxu0 0.0
  %10674 = vmatpush2.msra.mxu0 0.0
  %10675 = vmatprep.subr.mxu0 0.0
  %10676 = vmatpush2.msra.mxu0 0.0
  %10677 = vmatprep.subr.mxu0 0.0
  %10678 = vmatpush2.msra.mxu0 0.0
  %10679 = vmatprep.mubr.f32.mxu0 0.0
  %v10680 = vand.u32 %v10036, 4294901760
  %10681 = vmatmul.mubr.f32.gmra.mxu0 %v10680
  %v10682 = vpop.f32.mrf.mxu0
  %v10683 = vadd.f32 %v10544, %v10682
  %v10684 = vpop.f32.mrf.mxu0
  %10685 = vmatprep.mubr.f32.mxu0 0.0
  %v10686 = vand.u32 %v10039, 4294901760
  %10687 = vmatmul.mubr.f32.gmra.mxu0 %v10686
  %v10688 = vpop.f32.mrf.mxu0
  %v10689 = vadd.f32 %v10552, %v10688
  %v10690 = vpop.f32.mrf.mxu0
  %10691 = vmatprep.mubr.f32.mxu0 0.0
  %v10692 = vand.u32 %v10042, 4294901760
  %10693 = vmatmul.mubr.f32.gmra.mxu0 %v10692
  %v10694 = vpop.f32.mrf.mxu0
  %v10695 = vadd.f32 %v10560, %v10694
  %v10696 = vpop.f32.mrf.mxu0
  %10697 = vmatprep.mubr.f32.mxu0 0.0
  %v10698 = vand.u32 %v10045, 4294901760
  %10699 = vmatmul.mubr.f32.gmra.mxu0 %v10698
  %v10700 = vpop.f32.mrf.mxu0
  %v10701 = vadd.f32 %v10568, %v10700
  %v10702 = vpop.f32.mrf.mxu0
  %10703 = vmatprep.mubr.f32.mxu0 0.0
  %v10704 = vand.u32 %v10048, 4294901760
  %10705 = vmatmul.mubr.f32.gmra.mxu0 %v10704
  %v10706 = vpop.f32.mrf.mxu0
  %v10707 = vadd.f32 %v10576, %v10706
  %v10708 = vpop.f32.mrf.mxu0
  %10709 = vmatprep.mubr.f32.mxu0 0.0
  %v10710 = vand.u32 %v10051, 4294901760
  %10711 = vmatmul.mubr.f32.gmra.mxu0 %v10710
  %v10712 = vpop.f32.mrf.mxu0
  %v10713 = vadd.f32 %v10584, %v10712
  %v10714 = vpop.f32.mrf.mxu0
  %10715 = vmatprep.mubr.f32.mxu0 0.0
  %v10716 = vand.u32 %v10054, 4294901760
  %10717 = vmatmul.mubr.f32.gmra.mxu0 %v10716
  %v10718 = vpop.f32.mrf.mxu0
  %v10719 = vadd.f32 %v10592, %v10718
  %v10720 = vpop.f32.mrf.mxu0
  %10721 = vmatprep.mubr.f32.mxu0 0.0
  %v10722 = vand.u32 %v10057, 4294901760
  %10723 = vmatmul.mubr.f32.gmra.mxu0 %v10722
  %v10724 = vpop.f32.mrf.mxu0
  %v10725 = vadd.f32 %v10600, %v10724
  %v10726 = vpop.f32.mrf.mxu0
  %10727 = vdwg.mxu0
  %10728 = vmatprep.subr.mxu0 0.0
  %10729 = vmatpush1.msra.mxu0 0.0
  %10730 = vmatprep.subr.mxu0 0.0
  %10731 = vmatpush1.msra.mxu0 0.0
  %10732 = vmatprep.subr.mxu0 0.0
  %10733 = vmatpush1.msra.mxu0 0.0
  %10734 = vmatprep.subr.mxu0 0.0
  %10735 = vmatpush1.msra.mxu0 0.0
  %10736 = vmatprep.subr.mxu0 0.0
  %10737 = vmatpush1.msra.mxu0 0.0
  %10738 = vmatprep.subr.mxu0 0.0
  %10739 = vmatpush1.msra.mxu0 0.0
  %10740 = vmatprep.subr.mxu0 0.0
  %10741 = vmatpush1.msra.mxu0 0.0
  %10742 = vmatprep.subr.mxu0 0.0
  %10743 = vmatpush1.msra.mxu0 0.0
  %10744 = vmatprep.subr.mxu0 0.0
  %10745 = vmatpush1.msra.mxu0 0.0
  %10746 = vmatprep.subr.mxu0 0.0
  %10747 = vmatpush1.msra.mxu0 0.0
  %10748 = vmatprep.subr.mxu0 0.0
  %10749 = vmatpush1.msra.mxu0 0.0
  %10750 = vmatprep.subr.mxu0 0.0
  %10751 = vmatpush1.msra.mxu0 0.0
  %10752 = vmatprep.subr.mxu0 0.0
  %v10753 = vand.u32 %v10027, 4294901760
  %10754 = vmatpush1.msra.mxu0 %v10753
  %10755 = vmatprep.subr.mxu0 0.0
  %v10756 = vand.u32 %v10026, 4294901760
  %10757 = vmatpush1.msra.mxu0 %v10756
  %10758 = vmatprep.subr.mxu0 0.0
  %v10759 = vand.u32 %v10025, 4294901760
  %10760 = vmatpush1.msra.mxu0 %v10759
  %10761 = vmatprep.subr.mxu0 0.0
  %v10762 = vand.u32 %v10024, 4294901760
  %10763 = vmatpush1.msra.mxu0 %v10762
  %10764 = vmatprep.subr.mxu0 0.0
  %10765 = vmatpush2.msra.mxu0 0.0
  %10766 = vmatprep.subr.mxu0 0.0
  %10767 = vmatpush2.msra.mxu0 0.0
  %10768 = vmatprep.subr.mxu0 0.0
  %10769 = vmatpush2.msra.mxu0 0.0
  %10770 = vmatprep.subr.mxu0 0.0
  %10771 = vmatpush2.msra.mxu0 0.0
  %10772 = vmatprep.subr.mxu0 0.0
  %10773 = vmatpush2.msra.mxu0 0.0
  %10774 = vmatprep.subr.mxu0 0.0
  %10775 = vmatpush2.msra.mxu0 0.0
  %10776 = vmatprep.subr.mxu0 0.0
  %10777 = vmatpush2.msra.mxu0 0.0
  %10778 = vmatprep.subr.mxu0 0.0
  %10779 = vmatpush2.msra.mxu0 0.0
  %10780 = vmatprep.subr.mxu0 0.0
  %10781 = vmatpush2.msra.mxu0 0.0
  %10782 = vmatprep.subr.mxu0 0.0
  %10783 = vmatpush2.msra.mxu0 0.0
  %10784 = vmatprep.subr.mxu0 0.0
  %10785 = vmatpush2.msra.mxu0 0.0
  %10786 = vmatprep.subr.mxu0 0.0
  %10787 = vmatpush2.msra.mxu0 0.0
  %10788 = vmatprep.subr.mxu0 0.0
  %10789 = vmatpush2.msra.mxu0 0.0
  %10790 = vmatprep.subr.mxu0 0.0
  %10791 = vmatpush2.msra.mxu0 0.0
  %10792 = vmatprep.subr.mxu0 0.0
  %10793 = vmatpush2.msra.mxu0 0.0
  %10794 = vmatprep.subr.mxu0 0.0
  %10795 = vmatpush2.msra.mxu0 0.0
  %10796 = vmatprep.mubr.f32.mxu0 0.0
  %v10797 = vand.u32 %v10036, 4294901760
  %10798 = vmatmul.mubr.f32.gmra.mxu0 %v10797
  %v10799 = vpop.f32.mrf.mxu0
  %v10800 = vadd.f32 %v10683, %v10799
  %v10801 = vpop.f32.mrf.mxu0
  %10802 = vmatprep.mubr.f32.mxu0 0.0
  %v10803 = vand.u32 %v10039, 4294901760
  %10804 = vmatmul.mubr.f32.gmra.mxu0 %v10803
  %v10805 = vpop.f32.mrf.mxu0
  %v10806 = vadd.f32 %v10689, %v10805
  %v10807 = vpop.f32.mrf.mxu0
  %10808 = vmatprep.mubr.f32.mxu0 0.0
  %v10809 = vand.u32 %v10042, 4294901760
  %10810 = vmatmul.mubr.f32.gmra.mxu0 %v10809
  %v10811 = vpop.f32.mrf.mxu0
  %v10812 = vadd.f32 %v10695, %v10811
  %v10813 = vpop.f32.mrf.mxu0
  %10814 = vmatprep.mubr.f32.mxu0 0.0
  %v10815 = vand.u32 %v10045, 4294901760
  %10816 = vmatmul.mubr.f32.gmra.mxu0 %v10815
  %v10817 = vpop.f32.mrf.mxu0
  %v10818 = vadd.f32 %v10701, %v10817
  %v10819 = vpop.f32.mrf.mxu0
  %10820 = vmatprep.mubr.f32.mxu0 0.0
  %v10821 = vand.u32 %v10048, 4294901760
  %10822 = vmatmul.mubr.f32.gmra.mxu0 %v10821
  %v10823 = vpop.f32.mrf.mxu0
  %v10824 = vadd.f32 %v10707, %v10823
  %v10825 = vpop.f32.mrf.mxu0
  %10826 = vmatprep.mubr.f32.mxu0 0.0
  %v10827 = vand.u32 %v10051, 4294901760
  %10828 = vmatmul.mubr.f32.gmra.mxu0 %v10827
  %v10829 = vpop.f32.mrf.mxu0
  %v10830 = vadd.f32 %v10713, %v10829
  %v10831 = vpop.f32.mrf.mxu0
  %10832 = vmatprep.mubr.f32.mxu0 0.0
  %v10833 = vand.u32 %v10054, 4294901760
  %10834 = vmatmul.mubr.f32.gmra.mxu0 %v10833
  %v10835 = vpop.f32.mrf.mxu0
  %v10836 = vadd.f32 %v10719, %v10835
  %v10837 = vpop.f32.mrf.mxu0
  %10838 = vmatprep.mubr.f32.mxu0 0.0
  %v10839 = vand.u32 %v10057, 4294901760
  %10840 = vmatmul.mubr.f32.gmra.mxu0 %v10839
  %v10841 = vpop.f32.mrf.mxu0
  %v10842 = vadd.f32 %v10725, %v10841
  %v10843 = vpop.f32.mrf.mxu0
  %10844 = vdwg.mxu0
  %10845 = vst [vmem:[%s9] sm:$0xff] %v10800
  %10846 = vst [vmem:[%s9 + $0x8] sm:$0xff] %v10806
  %10847 = vst [vmem:[%s9 + $0x10] sm:$0xff] %v10812
  %10848 = vst [vmem:[%s9 + $0x18] sm:$0xff] %v10818
  %10849 = vst [vmem:[%s9 + $0x20] sm:$0xff] %v10824
  %10850 = vst [vmem:[%s9 + $0x28] sm:$0xff] %v10830
  %10851 = vst [vmem:[%s9 + $0x30] sm:$0xff] %v10836
  %10852 = vst [vmem:[%s9 + $0x38] sm:$0xff] %v10842
  // Predicated region
  $region38: #{decoder_forward.1} parent=0 // pred_check
    _
  $region39: #{decoder_forward.1} parent=0 // pred_check_branch
    %10854 = sbr.rel (0) target = $region41
  $region40: #{decoder_forward.1} parent=0 // pred_region
    _
  $region41: #{decoder_forward.1} parent=0 // pred_fallthru
    _
  // Predicated region
  $region42: #{decoder_forward.1} parent=0 // pred_check
    _
  $region43: #{decoder_forward.1} parent=0 // pred_check_branch
    %10856 = sbr.rel (0) target = $region45
  $region44: #{decoder_forward.1} parent=0 // pred_region
    _
  $region45: #{decoder_forward.1} parent=0 // pred_fallthru
    _

</llo_original>
